<compile_context>
chip_gen: v7x
topology: tpu7x:2x2x1
jax: 0.10.0
libtpu: 0.0.40
codegen_flags: <defaults>
</compile_context>

<pallas_src>
import functools

import jax
import jax.numpy as jnp
from jax.experimental import pallas as pl
from jax.experimental.pallas import tpu as pltpu

_EPS = 1e-5
_LANE = 128


def _round_up(x, m):
    return (x + m - 1) // m * m


# ----------------------------- Pallas kernels ------------------------------ #

def _conv3x3_taps(pad_ref, w_ref, H, W):
    """3x3 conv as 9 accumulated matmuls (f32 accumulation on the MXU).

    pad_ref: (1, H+2, W+2, Cin) VMEM scratch already holding the zero-padded
             input for this image.
    w_ref:   (9, Cin, Cout) tap weights (HWIO flattened over the 3x3 taps).
    returns: (H*W, Cout) f32 accumulator.
    """
    cin = pad_ref.shape[-1]
    cout = w_ref.shape[-1]
    acc = jnp.zeros((H * W, cout), jnp.float32)
    for t in range(9):                       # static 9-way unroll
        dy, dx = divmod(t, 3)
        xs = pad_ref[0, dy:dy + H, dx:dx + W, :].reshape(H * W, cin)
        acc = acc + jnp.dot(xs, w_ref[t], preferred_element_type=jnp.float32)
    return acc


def _store_conv_outputs(acc, y_ref, s_ref, ss_ref):
    """Store raw conv output + per-image BN partial statistics."""
    y_ref[...] = acc[None]                                          # (1, H*W, C)
    s_ref[...] = jnp.sum(acc, axis=0, keepdims=True)[None]          # (1, 1, C)
    ss_ref[...] = jnp.sum(acc * acc, axis=0, keepdims=True)[None]   # (1, 1, C)


def _conv_kernel(x_ref, w_ref, y_ref, s_ref, ss_ref, pad_ref, *, H, W):
    """conv1: pad -> 9 tap matmuls -> conv output + BN partial sums."""
    # Zero the halo every grid step: with a "parallel" grid axis each core owns
    # its own scratch, so init must not be gated on program_id == 0.
    pad_ref[...] = jnp.zeros_like(pad_ref)
    pad_ref[0, 1:H + 1, 1:W + 1, :] = x_ref[0]
    acc = _conv3x3_taps(pad_ref, w_ref, H, W)
    _store_conv_outputs(acc, y_ref, s_ref, ss_ref)


def _bn_relu_conv_kernel(y_ref, sc_ref, sh_ref, w_ref, o_ref, s_ref, ss_ref,
                         pad_ref, *, H, W):
    """BN1+ReLU prologue fused into conv2 (intermediate never hits HBM twice)."""
    a = jnp.maximum(y_ref[...] * sc_ref[...] + sh_ref[...], 0.0)    # (1,H,W,C)
    pad_ref[...] = jnp.zeros_like(pad_ref)
    pad_ref[0, 1:H + 1, 1:W + 1, :] = a[0]
    acc = _conv3x3_taps(pad_ref, w_ref, H, W)
    _store_conv_outputs(acc, o_ref, s_ref, ss_ref)


def _bn_relu_pool_kernel(y_ref, sc_ref, sh_ref, x_ref, p_ref, *, C):
    """BN2 + ReLU + fused 2x2 max-pool.

    y_ref is the conv2 output viewed as (1, H/2, 2, W/2, 2*C): axis 2 is the
    row inside each 2x2 window, and the two lane halves of the last dim are the
    two columns.  This keeps all accesses contiguous / lane-dense (no strided
    or masked loads).
    """
    a = jnp.maximum(y_ref[...] * sc_ref[...] + sh_ref[...], 0.0)
    x_ref[...] = a                                                   # unpooled x
    m = jnp.maximum(a[:, :, 0, :, :], a[:, :, 1, :, :])              # max over rows
    p_ref[...] = jnp.maximum(m[..., :C], m[..., C:])                 # max over cols


# ------------------------------ JAX wrappers -------------------------------- #

def _conv_bn_stats_call(kernel, inputs, in_specs, N, H, W, C, cin_pad):
    out_shape = (jax.ShapeDtypeStruct((N, H * W, C), jnp.float32),   # raw conv out
                 jax.ShapeDtypeStruct((N, 1, C), jnp.float32),       # partial sum
                 jax.ShapeDtypeStruct((N, 1, C), jnp.float32))       # partial sumsq
    out_specs = (pl.BlockSpec((1, H * W, C), lambda n: (n, 0, 0)),
                 pl.BlockSpec((1, 1, C), lambda n: (n, 0, 0)),
                 pl.BlockSpec((1, 1, C), lambda n: (n, 0, 0)))
    return pl.pallas_call(
        kernel,
        out_shape=out_shape,
        grid=(N,),
        in_specs=in_specs,
        out_specs=out_specs,
        scratch_shapes=[pltpu.VMEM((1, H + 2, W + 2, cin_pad), jnp.float32)],
        compiler_params=pltpu.CompilerParams(dimension_semantics=("parallel",)),
    )(*inputs)


def conv1_pass(x_nhwc, w):
    N, H, W, cin = x_nhwc.shape
    C = w.shape[-1]
    kern = functools.partial(_conv_kernel, H=H, W=W)
    in_specs = [pl.BlockSpec((1, H, W, cin), lambda n: (n, 0, 0, 0)),
                pl.BlockSpec((9, cin, C), lambda n: (0, 0, 0))]
    return _conv_bn_stats_call(kern, (x_nhwc, w), in_specs, N, H, W, C, cin)


def conv2_pass(y1_spatial, scale1, shift1, w):
    N, H, W, C = y1_spatial.shape
    kern = functools.partial(_bn_relu_conv_kernel, H=H, W=W)
    in_specs = [pl.BlockSpec((1, H, W, C), lambda n: (n, 0, 0, 0)),
                pl.BlockSpec((1, C), lambda n: (0, 0)),
                pl.BlockSpec((1, C), lambda n: (0, 0)),
                pl.BlockSpec((9, C, C), lambda n: (0, 0, 0))]
    return _conv_bn_stats_call(kern, (y1_spatial, scale1, shift1, w),
                               in_specs, N, H, W, C, C)


def bn_relu_pool(y2_flat, scale, shift, N, H, W, C):
    Hh, Wh = H // 2, W // 2
    yv = y2_flat.reshape(N, Hh, 2, Wh, 2 * C)          # free row-major reinterpretation
    sc2 = jnp.concatenate([scale, scale], axis=1)       # (1, 2C) per-lane-half copies
    sh2 = jnp.concatenate([shift, shift], axis=1)
    kern = functools.partial(_bn_relu_pool_kernel, C=C)
    xv, p = pl.pallas_call(
        kern,
        out_shape=(jax.ShapeDtypeStruct((N, Hh, 2, Wh, 2 * C), jnp.float32),
                   jax.ShapeDtypeStruct((N, Hh, Wh, C), jnp.float32)),
        grid=(N,),
        in_specs=[pl.BlockSpec((1, Hh, 2, Wh, 2 * C), lambda n: (n, 0, 0, 0, 0)),
                  pl.BlockSpec((1, 2 * C), lambda n: (0, 0)),
                  pl.BlockSpec((1, 2 * C), lambda n: (0, 0))],
        out_specs=(pl.BlockSpec((1, Hh, 2, Wh, 2 * C), lambda n: (n, 0, 0, 0, 0)),
                   pl.BlockSpec((1, Hh, Wh, C), lambda n: (n, 0, 0, 0))),
        compiler_params=pltpu.CompilerParams(dimension_semantics=("parallel",)),
    )(yv, sc2, sh2)
    return xv.reshape(N, H, W, C), p                    # reshape is free


def _bn_scale_shift(s, ss, gamma, beta, count):
    """Fold per-image partial sums into per-channel scale/shift (tiny XLA work)."""
    tot = jnp.sum(s[:, 0, :], axis=0)
    tot2 = jnp.sum(ss[:, 0, :], axis=0)
    mean = tot / count
    var = jnp.maximum(tot2 / count - mean * mean, 0.0)
    inv = 1.0 / jnp.sqrt(var + _EPS)          # divide-by-sqrt: matches torch/reference
    scale = gamma * inv
    shift = beta - mean * scale
    return scale[None, :], shift[None, :]


def encoder_block_forward(x_nchw, params, *, out_c):
    """Returns (x, p) in NCHW, matching the PyTorch module."""
    x = jnp.transpose(x_nchw, (0, 2, 3, 1)).astype(jnp.float32)   # NCHW -> NHWC
    N, H, W, _ = x.shape
    assert H % 2 == 0 and W % 2 == 0 and W % 8 == 0, "expect even H/W and W % 8 == 0"
    C = params["w1"].shape[-1]
    cnt = N * H * W

    # conv1 + BN1 partial stats (conv bias omitted: cancelled by BN mean-subtract).
    y1, s1, ss1 = conv1_pass(x, params["w1"])
    sc1, sh1 = _bn_scale_shift(s1, ss1, params["g1"], params["be1"], cnt)

    # BN1+ReLU fused into conv2's prologue; conv2 + BN2 partial stats.
    y2, s2, ss2 = conv2_pass(y1.reshape(N, H, W, C), sc1, sh1, params["w2"])
    sc2, sh2 = _bn_scale_shift(s2, ss2, params["g2"], params["be2"], cnt)

    # BN2 + ReLU + fused 2x2 max-pool.
    x_full, p_full = bn_relu_pool(y2, sc2, sh2, N, H, W, C)

    x_out = jnp.transpose(x_full[..., :out_c], (0, 3, 1, 2))
    p_out = jnp.transpose(p_full[..., :out_c], (0, 3, 1, 2))
    return x_out, p_out


# ------------------------- deterministic parameters ------------------------- #

def init_params(key, in_c, out_c):
    C = max(_LANE, _round_up(out_c, _LANE))   # lane-dense channel count
    ks = jax.random.split(key, 8)
    w1_oihw = 0.1 * jax.random.normal(ks[0], (out_c, in_c, 3, 3), jnp.float32)
    w2_oihw = 0.1 * jax.random.normal(ks[1], (out_c, out_c, 3, 3), jnp.float32)
    b1 = 0.1 * jax.random.normal(ks[2], (out_c,), jnp.float32)
    g1 = 1.0 + 0.1 * jax.random.normal(ks[3], (out_c,), jnp.float32)
    be1 = 0.1 * jax.random.normal(ks[4], (out_c,), jnp.float32)
    b2 = 0.1 * jax.random.normal(ks[5], (out_c,), jnp.float32)
    g2 = 1.0 + 0.1 * jax.random.normal(ks[6], (out_c,), jnp.float32)
    be2 = 0.1 * jax.random.normal(ks[7], (out_c,), jnp.float32)

    w1_hwio = jnp.transpose(w1_oihw, (2, 3, 1, 0))     # (3,3,in_c,out_c)
    w2_hwio = jnp.transpose(w2_oihw, (2, 3, 1, 0))

    def pad_w(w_hwio, cin_pad):
        cin, cout = w_hwio.shape[2], w_hwio.shape[3]
        w = jnp.zeros((3, 3, cin_pad, C), jnp.float32).at[:, :, :cin, :cout].set(w_hwio)
        return w.reshape(9, cin_pad, C)

    def pad_c(v):
        return jnp.zeros((C,), jnp.float32).at[:out_c].set(v)

    params = dict(w1=pad_w(w1_hwio, in_c), w2=pad_w(w2_hwio, C),
                  g1=pad_c(g1), be1=pad_c(be1), g2=pad_c(g2), be2=pad_c(be2))
    # bias is only used by the reference (it cancels under training-mode BN).
    ref = dict(w1_hwio=w1_hwio, w2_hwio=w2_hwio, b1=b1, g1=g1, be1=be1,
               b2=b2, g2=g2, be2=be2)
    return params, ref


# ------------------------------ pure-JAX reference --------------------------- #

def _ref_conv_bn_relu(x, w_hwio, b, g, be):
    y = jax.lax.conv_general_dilated(
        x, w_hwio, window_strides=(1, 1), padding="SAME",
        dimension_numbers=("NHWC", "HWIO", "NHWC"))
    y = y + b
    mean = y.mean(axis=(0, 1, 2), keepdims=True)
    var = jnp.square(y - mean).mean(axis=(0, 1, 2), keepdims=True)
    return jnp.maximum((y - mean) / jnp.sqrt(var + _EPS) * g + be, 0.0)


def _ref_forward(x_nchw, ref):
    x = jnp.transpose(x_nchw, (0, 2, 3, 1)).astype(jnp.float32)
    x = _ref_conv_bn_relu(x, ref["w1_hwio"], ref["b1"], ref["g1"], ref["be1"])
    x = _ref_conv_bn_relu(x, ref["w2_hwio"], ref["b2"], ref["g2"], ref["be2"])
    p = jax.lax.reduce_window(x, -jnp.inf, jax.lax.max,
                              (1, 2, 2, 1), (1, 2, 2, 1), "VALID")
    return jnp.transpose(x, (0, 3, 1, 2)), jnp.transpose(p, (0, 3, 1, 2))


# ----------------------------------- main ----------------------------------- #

if __name__ == "__main__":
    key = jax.random.PRNGKey(0)
    k_x, k_p = jax.random.split(key)

    in_c, out_c = 4, 8
    N, H, W = 2, 16, 16
    x = jax.random.normal(k_x, (N, in_c, H, W), jnp.float32)   # NCHW like PyTorch

    params, ref = init_params(k_p, in_c, out_c)

    fwd = jax.jit(encoder_block_forward, static_argnames=("out_c",))
    x_out, p_out = fwd(x, params, out_c=out_c)
    jax.block_until_ready((x_out, p_out))

    x_ref, p_ref = _ref_forward(x, ref)
    assert x_out.shape == (N, out_c, H, W)
    assert p_out.shape == (N, out_c, H // 2, W // 2)
    assert jnp.allclose(x_out, x_ref, atol=2e-4, rtol=2e-4), "conv_block mismatch"
    assert jnp.allclose(p_out, p_ref, atol=2e-4, rtol=2e-4), "maxpool mismatch"

    print("KERNEL_OK")
</pallas_src>

<mosaic_0001>
module attributes {stable_mosaic.version = 11 : i64} {
  func.func @_conv_kernel(%arg0: i32, %arg1: memref<1x16x16x4xf32, #tpu.memory_space<vmem>>, %arg2: memref<9x4x128xf32, #tpu.memory_space<vmem>>, %arg3: memref<1x256x128xf32, #tpu.memory_space<vmem>>, %arg4: memref<1x1x128xf32, #tpu.memory_space<vmem>>, %arg5: memref<1x1x128xf32, #tpu.memory_space<vmem>>, %arg6: memref<1x18x18x4xf32, #tpu.memory_space<vmem>>) attributes {dimension_semantics = [#tpu.dimension_semantics<parallel>], iteration_bounds = array<i64: 2>, scalar_prefetch = 0 : i64, scratch_operands = 1 : i64, tpu.core_type = #tpu.core_type<tc>, window_params = [{transform_indices = @transform_0, window_bounds = array<i64: 1, 16, 16, 4>}, {pipeline_mode = #tpu.pipeline_mode<synchronous>, transform_indices = @transform_1, window_bounds = array<i64: 9, 4, 128>}, {transform_indices = @transform_2, window_bounds = array<i64: 1, 256, 128>}, {transform_indices = @transform_3, window_bounds = array<i64: 1, 1, 128>}, {transform_indices = @transform_4, window_bounds = array<i64: 1, 1, 128>}]} {
    %cst = arith.constant 0.000000e+00 : f32
    %0 = vector.broadcast %cst : f32 to vector<1x18x18x4xf32>
    %c0 = arith.constant 0 : index
    %c0_0 = arith.constant 0 : index
    %c0_1 = arith.constant 0 : index
    %c0_2 = arith.constant 0 : index
    %1 = vector.load %arg6[%c0, %c0_0, %c0_1, %c0_2] : memref<1x18x18x4xf32, #tpu.memory_space<vmem>>, vector<1x18x18x4xf32>
    tpu.vector_store %arg6[%c0, %c0_0, %c0_1, %c0_2], %0 {strides = array<i32>} : memref<1x18x18x4xf32, #tpu.memory_space<vmem>>, vector<1x18x18x4xf32>,
    %c0_3 = arith.constant 0 : index
    %c0_4 = arith.constant 0 : index
    %c0_5 = arith.constant 0 : index
    %c0_6 = arith.constant 0 : index
    %2 = vector.load %arg1[%c0_3, %c0_4, %c0_5, %c0_6] : memref<1x16x16x4xf32, #tpu.memory_space<vmem>>, vector<1x16x16x4xf32>
    %3 = vector.shape_cast %2 : vector<1x16x16x4xf32> to vector<16x16x4xf32>
    %c0_7 = arith.constant 0 : index
    %c1 = arith.constant 1 : index
    %c1_8 = arith.constant 1 : index
    %c0_9 = arith.constant 0 : index
    %4 = vector.load %arg6[%c0_7, %c1, %c1_8, %c0_9] : memref<1x18x18x4xf32, #tpu.memory_space<vmem>>, vector<1x16x16x4xf32>
    %5 = vector.shape_cast %4 : vector<1x16x16x4xf32> to vector<16x16x4xf32>
    %6 = vector.shape_cast %3 : vector<16x16x4xf32> to vector<1x16x16x4xf32>
    tpu.vector_store %arg6[%c0_7, %c1, %c1_8, %c0_9], %6 {strides = array<i32>} : memref<1x18x18x4xf32, #tpu.memory_space<vmem>>, vector<1x16x16x4xf32>,
    %cst_10 = arith.constant 0.000000e+00 : f32
    %7 = vector.broadcast %cst_10 : f32 to vector<256x128xf32>
    %c0_11 = arith.constant 0 : index
    %c0_12 = arith.constant 0 : index
    %c0_13 = arith.constant 0 : index
    %c0_14 = arith.constant 0 : index
    %8 = vector.load %arg6[%c0_11, %c0_12, %c0_13, %c0_14] : memref<1x18x18x4xf32, #tpu.memory_space<vmem>>, vector<1x16x16x4xf32>
    %9 = vector.shape_cast %8 : vector<1x16x16x4xf32> to vector<16x16x4xf32>
    %10 = vector.shape_cast %9 : vector<16x16x4xf32> to vector<256x4xf32>
    %c0_15 = arith.constant 0 : index
    %c0_16 = arith.constant 0 : index
    %c0_17 = arith.constant 0 : index
    %11 = vector.load %arg2[%c0_15, %c0_16, %c0_17] : memref<9x4x128xf32, #tpu.memory_space<vmem>>, vector<1x4x128xf32>
    %12 = vector.shape_cast %11 : vector<1x4x128xf32> to vector<4x128xf32>
    %cst_18 = arith.constant dense<0.000000e+00> : vector<256x128xf32>
    %13 = tpu.matmul %10, %12, %cst_18 {dimension_numbers = #tpu.dot_dimension_numbers<[1], [0], [0], [1], [0, 0, 1, 1], [], []>} : vector<256x4xf32>, vector<4x128xf32>, vector<256x128xf32> -> vector<256x128xf32>
    %14 = arith.addf %7, %13 : vector<256x128xf32>
    %c0_19 = arith.constant 0 : index
    %c0_20 = arith.constant 0 : index
    %c1_21 = arith.constant 1 : index
    %c0_22 = arith.constant 0 : index
    %15 = vector.load %arg6[%c0_19, %c0_20, %c1_21, %c0_22] : memref<1x18x18x4xf32, #tpu.memory_space<vmem>>, vector<1x16x16x4xf32>
    %16 = vector.shape_cast %15 : vector<1x16x16x4xf32> to vector<16x16x4xf32>
    %17 = vector.shape_cast %16 : vector<16x16x4xf32> to vector<256x4xf32>
    %c1_23 = arith.constant 1 : index
    %c0_24 = arith.constant 0 : index
    %c0_25 = arith.constant 0 : index
    %18 = vector.load %arg2[%c1_23, %c0_24, %c0_25] : memref<9x4x128xf32, #tpu.memory_space<vmem>>, vector<1x4x128xf32>
    %19 = vector.shape_cast %18 : vector<1x4x128xf32> to vector<4x128xf32>
    %cst_26 = arith.constant dense<0.000000e+00> : vector<256x128xf32>
    %20 = tpu.matmul %17, %19, %cst_26 {dimension_numbers = #tpu.dot_dimension_numbers<[1], [0], [0], [1], [0, 0, 1, 1], [], []>} : vector<256x4xf32>, vector<4x128xf32>, vector<256x128xf32> -> vector<256x128xf32>
    %21 = arith.addf %14, %20 : vector<256x128xf32>
    %c0_27 = arith.constant 0 : index
    %c0_28 = arith.constant 0 : index
    %c2 = arith.constant 2 : index
    %c0_29 = arith.constant 0 : index
    %22 = vector.load %arg6[%c0_27, %c0_28, %c2, %c0_29] : memref<1x18x18x4xf32, #tpu.memory_space<vmem>>, vector<1x16x16x4xf32>
    %23 = vector.shape_cast %22 : vector<1x16x16x4xf32> to vector<16x16x4xf32>
    %24 = vector.shape_cast %23 : vector<16x16x4xf32> to vector<256x4xf32>
    %c2_30 = arith.constant 2 : index
    %c0_31 = arith.constant 0 : index
    %c0_32 = arith.constant 0 : index
    %25 = vector.load %arg2[%c2_30, %c0_31, %c0_32] : memref<9x4x128xf32, #tpu.memory_space<vmem>>, vector<1x4x128xf32>
    %26 = vector.shape_cast %25 : vector<1x4x128xf32> to vector<4x128xf32>
    %cst_33 = arith.constant dense<0.000000e+00> : vector<256x128xf32>
    %27 = tpu.matmul %24, %26, %cst_33 {dimension_numbers = #tpu.dot_dimension_numbers<[1], [0], [0], [1], [0, 0, 1, 1], [], []>} : vector<256x4xf32>, vector<4x128xf32>, vector<256x128xf32> -> vector<256x128xf32>
    %28 = arith.addf %21, %27 : vector<256x128xf32>
    %c0_34 = arith.constant 0 : index
    %c1_35 = arith.constant 1 : index
    %c0_36 = arith.constant 0 : index
    %c0_37 = arith.constant 0 : index
    %29 = vector.load %arg6[%c0_34, %c1_35, %c0_36, %c0_37] : memref<1x18x18x4xf32, #tpu.memory_space<vmem>>, vector<1x16x16x4xf32>
    %30 = vector.shape_cast %29 : vector<1x16x16x4xf32> to vector<16x16x4xf32>
    %31 = vector.shape_cast %30 : vector<16x16x4xf32> to vector<256x4xf32>
    %c3 = arith.constant 3 : index
    %c0_38 = arith.constant 0 : index
    %c0_39 = arith.constant 0 : index
    %32 = vector.load %arg2[%c3, %c0_38, %c0_39] : memref<9x4x128xf32, #tpu.memory_space<vmem>>, vector<1x4x128xf32>
    %33 = vector.shape_cast %32 : vector<1x4x128xf32> to vector<4x128xf32>
    %cst_40 = arith.constant dense<0.000000e+00> : vector<256x128xf32>
    %34 = tpu.matmul %31, %33, %cst_40 {dimension_numbers = #tpu.dot_dimension_numbers<[1], [0], [0], [1], [0, 0, 1, 1], [], []>} : vector<256x4xf32>, vector<4x128xf32>, vector<256x128xf32> -> vector<256x128xf32>
    %35 = arith.addf %28, %34 : vector<256x128xf32>
    %c0_41 = arith.constant 0 : index
    %c1_42 = arith.constant 1 : index
    %c1_43 = arith.constant 1 : index
    %c0_44 = arith.constant 0 : index
    %36 = vector.load %arg6[%c0_41, %c1_42, %c1_43, %c0_44] : memref<1x18x18x4xf32, #tpu.memory_space<vmem>>, vector<1x16x16x4xf32>
    %37 = vector.shape_cast %36 : vector<1x16x16x4xf32> to vector<16x16x4xf32>
    %38 = vector.shape_cast %37 : vector<16x16x4xf32> to vector<256x4xf32>
    %c4 = arith.constant 4 : index
    %c0_45 = arith.constant 0 : index
    %c0_46 = arith.constant 0 : index
    %39 = vector.load %arg2[%c4, %c0_45, %c0_46] : memref<9x4x128xf32, #tpu.memory_space<vmem>>, vector<1x4x128xf32>
    %40 = vector.shape_cast %39 : vector<1x4x128xf32> to vector<4x128xf32>
    %cst_47 = arith.constant dense<0.000000e+00> : vector<256x128xf32>
    %41 = tpu.matmul %38, %40, %cst_47 {dimension_numbers = #tpu.dot_dimension_numbers<[1], [0], [0], [1], [0, 0, 1, 1], [], []>} : vector<256x4xf32>, vector<4x128xf32>, vector<256x128xf32> -> vector<256x128xf32>
    %42 = arith.addf %35, %41 : vector<256x128xf32>
    %c0_48 = arith.constant 0 : index
    %c1_49 = arith.constant 1 : index
    %c2_50 = arith.constant 2 : index
    %c0_51 = arith.constant 0 : index
    %43 = vector.load %arg6[%c0_48, %c1_49, %c2_50, %c0_51] : memref<1x18x18x4xf32, #tpu.memory_space<vmem>>, vector<1x16x16x4xf32>
    %44 = vector.shape_cast %43 : vector<1x16x16x4xf32> to vector<16x16x4xf32>
    %45 = vector.shape_cast %44 : vector<16x16x4xf32> to vector<256x4xf32>
    %c5 = arith.constant 5 : index
    %c0_52 = arith.constant 0 : index
    %c0_53 = arith.constant 0 : index
    %46 = vector.load %arg2[%c5, %c0_52, %c0_53] : memref<9x4x128xf32, #tpu.memory_space<vmem>>, vector<1x4x128xf32>
    %47 = vector.shape_cast %46 : vector<1x4x128xf32> to vector<4x128xf32>
    %cst_54 = arith.constant dense<0.000000e+00> : vector<256x128xf32>
    %48 = tpu.matmul %45, %47, %cst_54 {dimension_numbers = #tpu.dot_dimension_numbers<[1], [0], [0], [1], [0, 0, 1, 1], [], []>} : vector<256x4xf32>, vector<4x128xf32>, vector<256x128xf32> -> vector<256x128xf32>
    %49 = arith.addf %42, %48 : vector<256x128xf32>
    %c0_55 = arith.constant 0 : index
    %c2_56 = arith.constant 2 : index
    %c0_57 = arith.constant 0 : index
    %c0_58 = arith.constant 0 : index
    %50 = vector.load %arg6[%c0_55, %c2_56, %c0_57, %c0_58] : memref<1x18x18x4xf32, #tpu.memory_space<vmem>>, vector<1x16x16x4xf32>
    %51 = vector.shape_cast %50 : vector<1x16x16x4xf32> to vector<16x16x4xf32>
    %52 = vector.shape_cast %51 : vector<16x16x4xf32> to vector<256x4xf32>
    %c6 = arith.constant 6 : index
    %c0_59 = arith.constant 0 : index
    %c0_60 = arith.constant 0 : index
    %53 = vector.load %arg2[%c6, %c0_59, %c0_60] : memref<9x4x128xf32, #tpu.memory_space<vmem>>, vector<1x4x128xf32>
    %54 = vector.shape_cast %53 : vector<1x4x128xf32> to vector<4x128xf32>
    %cst_61 = arith.constant dense<0.000000e+00> : vector<256x128xf32>
    %55 = tpu.matmul %52, %54, %cst_61 {dimension_numbers = #tpu.dot_dimension_numbers<[1], [0], [0], [1], [0, 0, 1, 1], [], []>} : vector<256x4xf32>, vector<4x128xf32>, vector<256x128xf32> -> vector<256x128xf32>
    %56 = arith.addf %49, %55 : vector<256x128xf32>
    %c0_62 = arith.constant 0 : index
    %c2_63 = arith.constant 2 : index
    %c1_64 = arith.constant 1 : index
    %c0_65 = arith.constant 0 : index
    %57 = vector.load %arg6[%c0_62, %c2_63, %c1_64, %c0_65] : memref<1x18x18x4xf32, #tpu.memory_space<vmem>>, vector<1x16x16x4xf32>
    %58 = vector.shape_cast %57 : vector<1x16x16x4xf32> to vector<16x16x4xf32>
    %59 = vector.shape_cast %58 : vector<16x16x4xf32> to vector<256x4xf32>
    %c7 = arith.constant 7 : index
    %c0_66 = arith.constant 0 : index
    %c0_67 = arith.constant 0 : index
    %60 = vector.load %arg2[%c7, %c0_66, %c0_67] : memref<9x4x128xf32, #tpu.memory_space<vmem>>, vector<1x4x128xf32>
    %61 = vector.shape_cast %60 : vector<1x4x128xf32> to vector<4x128xf32>
    %cst_68 = arith.constant dense<0.000000e+00> : vector<256x128xf32>
    %62 = tpu.matmul %59, %61, %cst_68 {dimension_numbers = #tpu.dot_dimension_numbers<[1], [0], [0], [1], [0, 0, 1, 1], [], []>} : vector<256x4xf32>, vector<4x128xf32>, vector<256x128xf32> -> vector<256x128xf32>
    %63 = arith.addf %56, %62 : vector<256x128xf32>
    %c0_69 = arith.constant 0 : index
    %c2_70 = arith.constant 2 : index
    %c2_71 = arith.constant 2 : index
    %c0_72 = arith.constant 0 : index
    %64 = vector.load %arg6[%c0_69, %c2_70, %c2_71, %c0_72] : memref<1x18x18x4xf32, #tpu.memory_space<vmem>>, vector<1x16x16x4xf32>
    %65 = vector.shape_cast %64 : vector<1x16x16x4xf32> to vector<16x16x4xf32>
    %66 = vector.shape_cast %65 : vector<16x16x4xf32> to vector<256x4xf32>
    %c8 = arith.constant 8 : index
    %c0_73 = arith.constant 0 : index
    %c0_74 = arith.constant 0 : index
    %67 = vector.load %arg2[%c8, %c0_73, %c0_74] : memref<9x4x128xf32, #tpu.memory_space<vmem>>, vector<1x4x128xf32>
    %68 = vector.shape_cast %67 : vector<1x4x128xf32> to vector<4x128xf32>
    %cst_75 = arith.constant dense<0.000000e+00> : vector<256x128xf32>
    %69 = tpu.matmul %66, %68, %cst_75 {dimension_numbers = #tpu.dot_dimension_numbers<[1], [0], [0], [1], [0, 0, 1, 1], [], []>} : vector<256x4xf32>, vector<4x128xf32>, vector<256x128xf32> -> vector<256x128xf32>
    %70 = arith.addf %63, %69 : vector<256x128xf32>
    %71 = vector.shape_cast %70 : vector<256x128xf32> to vector<1x256x128xf32>
    %c0_76 = arith.constant 0 : index
    %c0_77 = arith.constant 0 : index
    %c0_78 = arith.constant 0 : index
    %72 = vector.load %arg3[%c0_76, %c0_77, %c0_78] : memref<1x256x128xf32, #tpu.memory_space<vmem>>, vector<1x256x128xf32>
    tpu.vector_store %arg3[%c0_76, %c0_77, %c0_78], %71 {strides = array<i32>} : memref<1x256x128xf32, #tpu.memory_space<vmem>>, vector<1x256x128xf32>,
    %cst_79 = arith.constant dense<0.000000e+00> : vector<128xf32>
    %73 = vector.multi_reduction <add>, %70, %cst_79 [0] : vector<256x128xf32> to vector<128xf32>
    %74 = vector.shape_cast %73 : vector<128xf32> to vector<1x128xf32>
    %75 = vector.shape_cast %74 : vector<1x128xf32> to vector<1x1x128xf32>
    %c0_80 = arith.constant 0 : index
    %c0_81 = arith.constant 0 : index
    %c0_82 = arith.constant 0 : index
    %76 = vector.load %arg4[%c0_80, %c0_81, %c0_82] : memref<1x1x128xf32, #tpu.memory_space<vmem>>, vector<1x1x128xf32>
    tpu.vector_store %arg4[%c0_80, %c0_81, %c0_82], %75 {strides = array<i32>} : memref<1x1x128xf32, #tpu.memory_space<vmem>>, vector<1x1x128xf32>,
    %77 = arith.mulf %70, %70 : vector<256x128xf32>
    %cst_83 = arith.constant dense<0.000000e+00> : vector<128xf32>
    %78 = vector.multi_reduction <add>, %77, %cst_83 [0] : vector<256x128xf32> to vector<128xf32>
    %79 = vector.shape_cast %78 : vector<128xf32> to vector<1x128xf32>
    %80 = vector.shape_cast %79 : vector<1x128xf32> to vector<1x1x128xf32>
    %c0_84 = arith.constant 0 : index
    %c0_85 = arith.constant 0 : index
    %c0_86 = arith.constant 0 : index
    %81 = vector.load %arg5[%c0_84, %c0_85, %c0_86] : memref<1x1x128xf32, #tpu.memory_space<vmem>>, vector<1x1x128xf32>
    tpu.vector_store %arg5[%c0_84, %c0_85, %c0_86], %80 {strides = array<i32>} : memref<1x1x128xf32, #tpu.memory_space<vmem>>, vector<1x1x128xf32>,
    return
  }
  func.func @transform_0(%arg0: i32) -> (i32, i32, i32, i32) {
    %c0_i32 = arith.constant 0 : i32
    %c0_i32_0 = arith.constant 0 : i32
    %c0_i32_1 = arith.constant 0 : i32
    %c0_i32_2 = arith.constant 0 : i32
    return %arg0, %c0_i32, %c0_i32_0, %c0_i32_1 : i32, i32, i32, i32
  }
  func.func @transform_1(%arg0: i32) -> (i32, i32, i32) {
    %c0_i32 = arith.constant 0 : i32
    %c0_i32_0 = arith.constant 0 : i32
    %c0_i32_1 = arith.constant 0 : i32
    %c0_i32_2 = arith.constant 0 : i32
    return %c0_i32, %c0_i32_0, %c0_i32_1 : i32, i32, i32
  }
  func.func @transform_2(%arg0: i32) -> (i32, i32, i32) {
    %c0_i32 = arith.constant 0 : i32
    %c0_i32_0 = arith.constant 0 : i32
    %c0_i32_1 = arith.constant 0 : i32
    return %arg0, %c0_i32, %c0_i32_0 : i32, i32, i32
  }
  func.func @transform_3(%arg0: i32) -> (i32, i32, i32) {
    %c0_i32 = arith.constant 0 : i32
    %c0_i32_0 = arith.constant 0 : i32
    %c0_i32_1 = arith.constant 0 : i32
    return %arg0, %c0_i32, %c0_i32_0 : i32, i32, i32
  }
  func.func @transform_4(%arg0: i32) -> (i32, i32, i32) {
    %c0_i32 = arith.constant 0 : i32
    %c0_i32_0 = arith.constant 0 : i32
    %c0_i32_1 = arith.constant 0 : i32
    return %arg0, %c0_i32, %c0_i32_0 : i32, i32, i32
  }
}

module attributes {stable_mosaic.version = 11 : i64} {
  func.func @_bn_relu_conv_kernel(%arg0: i32, %arg1: memref<1x16x16x128xf32, #tpu.memory_space<vmem>>, %arg2: memref<1x128xf32, #tpu.memory_space<vmem>>, %arg3: memref<1x128xf32, #tpu.memory_space<vmem>>, %arg4: memref<9x128x128xf32, #tpu.memory_space<vmem>>, %arg5: memref<1x256x128xf32, #tpu.memory_space<vmem>>, %arg6: memref<1x1x128xf32, #tpu.memory_space<vmem>>, %arg7: memref<1x1x128xf32, #tpu.memory_space<vmem>>, %arg8: memref<1x18x18x128xf32, #tpu.memory_space<vmem>>) attributes {dimension_semantics = [#tpu.dimension_semantics<parallel>], iteration_bounds = array<i64: 2>, scalar_prefetch = 0 : i64, scratch_operands = 1 : i64, tpu.core_type = #tpu.core_type<tc>, window_params = [{transform_indices = @transform_0, window_bounds = array<i64: 1, 16, 16, 128>}, {pipeline_mode = #tpu.pipeline_mode<synchronous>, transform_indices = @transform_1, window_bounds = array<i64: 1, 128>}, {pipeline_mode = #tpu.pipeline_mode<synchronous>, transform_indices = @transform_2, window_bounds = array<i64: 1, 128>}, {pipeline_mode = #tpu.pipeline_mode<synchronous>, transform_indices = @transform_3, window_bounds = array<i64: 9, 128, 128>}, {transform_indices = @transform_4, window_bounds = array<i64: 1, 256, 128>}, {transform_indices = @transform_5, window_bounds = array<i64: 1, 1, 128>}, {transform_indices = @transform_6, window_bounds = array<i64: 1, 1, 128>}]} {
    %c0 = arith.constant 0 : index
    %c0_0 = arith.constant 0 : index
    %c0_1 = arith.constant 0 : index
    %c0_2 = arith.constant 0 : index
    %0 = vector.load %arg1[%c0, %c0_0, %c0_1, %c0_2] : memref<1x16x16x128xf32, #tpu.memory_space<vmem>>, vector<1x16x16x128xf32>
    %c0_3 = arith.constant 0 : index
    %c0_4 = arith.constant 0 : index
    %1 = vector.load %arg2[%c0_3, %c0_4] : memref<1x128xf32, #tpu.memory_space<vmem>>, vector<1x128xf32>
    %2 = vector.shape_cast %1 : vector<1x128xf32> to vector<1x1x1x128xf32>
    %3 = vector.broadcast %2 : vector<1x1x1x128xf32> to vector<1x16x16x128xf32>
    %4 = arith.mulf %0, %3 : vector<1x16x16x128xf32>
    %c0_5 = arith.constant 0 : index
    %c0_6 = arith.constant 0 : index
    %5 = vector.load %arg3[%c0_5, %c0_6] : memref<1x128xf32, #tpu.memory_space<vmem>>, vector<1x128xf32>
    %6 = vector.shape_cast %5 : vector<1x128xf32> to vector<1x1x1x128xf32>
    %7 = vector.broadcast %6 : vector<1x1x1x128xf32> to vector<1x16x16x128xf32>
    %8 = arith.addf %4, %7 : vector<1x16x16x128xf32>
    %cst = arith.constant 0.000000e+00 : f32
    %9 = vector.broadcast %cst : f32 to vector<1x16x16x128xf32>
    %10 = arith.maximumf %8, %9 : vector<1x16x16x128xf32>
    %cst_7 = arith.constant 0.000000e+00 : f32
    %11 = vector.broadcast %cst_7 : f32 to vector<1x18x18x128xf32>
    %c0_8 = arith.constant 0 : index
    %c0_9 = arith.constant 0 : index
    %c0_10 = arith.constant 0 : index
    %c0_11 = arith.constant 0 : index
    %12 = vector.load %arg8[%c0_8, %c0_9, %c0_10, %c0_11] : memref<1x18x18x128xf32, #tpu.memory_space<vmem>>, vector<1x18x18x128xf32>
    tpu.vector_store %arg8[%c0_8, %c0_9, %c0_10, %c0_11], %11 {strides = array<i32>} : memref<1x18x18x128xf32, #tpu.memory_space<vmem>>, vector<1x18x18x128xf32>,
    %13 = vector.shape_cast %10 : vector<1x16x16x128xf32> to vector<16x16x128xf32>
    %c0_12 = arith.constant 0 : index
    %c1 = arith.constant 1 : index
    %c1_13 = arith.constant 1 : index
    %c0_14 = arith.constant 0 : index
    %14 = vector.load %arg8[%c0_12, %c1, %c1_13, %c0_14] : memref<1x18x18x128xf32, #tpu.memory_space<vmem>>, vector<1x16x16x128xf32>
    %15 = vector.shape_cast %14 : vector<1x16x16x128xf32> to vector<16x16x128xf32>
    %16 = vector.shape_cast %13 : vector<16x16x128xf32> to vector<1x16x16x128xf32>
    tpu.vector_store %arg8[%c0_12, %c1, %c1_13, %c0_14], %16 {strides = array<i32>} : memref<1x18x18x128xf32, #tpu.memory_space<vmem>>, vector<1x16x16x128xf32>,
    %cst_15 = arith.constant 0.000000e+00 : f32
    %17 = vector.broadcast %cst_15 : f32 to vector<256x128xf32>
    %c0_16 = arith.constant 0 : index
    %c0_17 = arith.constant 0 : index
    %c0_18 = arith.constant 0 : index
    %c0_19 = arith.constant 0 : index
    %18 = vector.load %arg8[%c0_16, %c0_17, %c0_18, %c0_19] : memref<1x18x18x128xf32, #tpu.memory_space<vmem>>, vector<1x16x16x128xf32>
    %19 = vector.shape_cast %18 : vector<1x16x16x128xf32> to vector<16x16x128xf32>
    %20 = vector.shape_cast %19 : vector<16x16x128xf32> to vector<256x128xf32>
    %c0_20 = arith.constant 0 : index
    %c0_21 = arith.constant 0 : index
    %c0_22 = arith.constant 0 : index
    %21 = vector.load %arg4[%c0_20, %c0_21, %c0_22] : memref<9x128x128xf32, #tpu.memory_space<vmem>>, vector<1x128x128xf32>
    %22 = vector.shape_cast %21 : vector<1x128x128xf32> to vector<128x128xf32>
    %cst_23 = arith.constant dense<0.000000e+00> : vector<256x128xf32>
    %23 = tpu.matmul %20, %22, %cst_23 {dimension_numbers = #tpu.dot_dimension_numbers<[1], [0], [0], [1], [0, 0, 1, 1], [], []>} : vector<256x128xf32>, vector<128x128xf32>, vector<256x128xf32> -> vector<256x128xf32>
    %24 = arith.addf %17, %23 : vector<256x128xf32>
    %c0_24 = arith.constant 0 : index
    %c0_25 = arith.constant 0 : index
    %c1_26 = arith.constant 1 : index
    %c0_27 = arith.constant 0 : index
    %25 = vector.load %arg8[%c0_24, %c0_25, %c1_26, %c0_27] : memref<1x18x18x128xf32, #tpu.memory_space<vmem>>, vector<1x16x16x128xf32>
    %26 = vector.shape_cast %25 : vector<1x16x16x128xf32> to vector<16x16x128xf32>
    %27 = vector.shape_cast %26 : vector<16x16x128xf32> to vector<256x128xf32>
    %c1_28 = arith.constant 1 : index
    %c0_29 = arith.constant 0 : index
    %c0_30 = arith.constant 0 : index
    %28 = vector.load %arg4[%c1_28, %c0_29, %c0_30] : memref<9x128x128xf32, #tpu.memory_space<vmem>>, vector<1x128x128xf32>
    %29 = vector.shape_cast %28 : vector<1x128x128xf32> to vector<128x128xf32>
    %cst_31 = arith.constant dense<0.000000e+00> : vector<256x128xf32>
    %30 = tpu.matmul %27, %29, %cst_31 {dimension_numbers = #tpu.dot_dimension_numbers<[1], [0], [0], [1], [0, 0, 1, 1], [], []>} : vector<256x128xf32>, vector<128x128xf32>, vector<256x128xf32> -> vector<256x128xf32>
    %31 = arith.addf %24, %30 : vector<256x128xf32>
    %c0_32 = arith.constant 0 : index
    %c0_33 = arith.constant 0 : index
    %c2 = arith.constant 2 : index
    %c0_34 = arith.constant 0 : index
    %32 = vector.load %arg8[%c0_32, %c0_33, %c2, %c0_34] : memref<1x18x18x128xf32, #tpu.memory_space<vmem>>, vector<1x16x16x128xf32>
    %33 = vector.shape_cast %32 : vector<1x16x16x128xf32> to vector<16x16x128xf32>
    %34 = vector.shape_cast %33 : vector<16x16x128xf32> to vector<256x128xf32>
    %c2_35 = arith.constant 2 : index
    %c0_36 = arith.constant 0 : index
    %c0_37 = arith.constant 0 : index
    %35 = vector.load %arg4[%c2_35, %c0_36, %c0_37] : memref<9x128x128xf32, #tpu.memory_space<vmem>>, vector<1x128x128xf32>
    %36 = vector.shape_cast %35 : vector<1x128x128xf32> to vector<128x128xf32>
    %cst_38 = arith.constant dense<0.000000e+00> : vector<256x128xf32>
    %37 = tpu.matmul %34, %36, %cst_38 {dimension_numbers = #tpu.dot_dimension_numbers<[1], [0], [0], [1], [0, 0, 1, 1], [], []>} : vector<256x128xf32>, vector<128x128xf32>, vector<256x128xf32> -> vector<256x128xf32>
    %38 = arith.addf %31, %37 : vector<256x128xf32>
    %c0_39 = arith.constant 0 : index
    %c1_40 = arith.constant 1 : index
    %c0_41 = arith.constant 0 : index
    %c0_42 = arith.constant 0 : index
    %39 = vector.load %arg8[%c0_39, %c1_40, %c0_41, %c0_42] : memref<1x18x18x128xf32, #tpu.memory_space<vmem>>, vector<1x16x16x128xf32>
    %40 = vector.shape_cast %39 : vector<1x16x16x128xf32> to vector<16x16x128xf32>
    %41 = vector.shape_cast %40 : vector<16x16x128xf32> to vector<256x128xf32>
    %c3 = arith.constant 3 : index
    %c0_43 = arith.constant 0 : index
    %c0_44 = arith.constant 0 : index
    %42 = vector.load %arg4[%c3, %c0_43, %c0_44] : memref<9x128x128xf32, #tpu.memory_space<vmem>>, vector<1x128x128xf32>
    %43 = vector.shape_cast %42 : vector<1x128x128xf32> to vector<128x128xf32>
    %cst_45 = arith.constant dense<0.000000e+00> : vector<256x128xf32>
    %44 = tpu.matmul %41, %43, %cst_45 {dimension_numbers = #tpu.dot_dimension_numbers<[1], [0], [0], [1], [0, 0, 1, 1], [], []>} : vector<256x128xf32>, vector<128x128xf32>, vector<256x128xf32> -> vector<256x128xf32>
    %45 = arith.addf %38, %44 : vector<256x128xf32>
    %c0_46 = arith.constant 0 : index
    %c1_47 = arith.constant 1 : index
    %c1_48 = arith.constant 1 : index
    %c0_49 = arith.constant 0 : index
    %46 = vector.load %arg8[%c0_46, %c1_47, %c1_48, %c0_49] : memref<1x18x18x128xf32, #tpu.memory_space<vmem>>, vector<1x16x16x128xf32>
    %47 = vector.shape_cast %46 : vector<1x16x16x128xf32> to vector<16x16x128xf32>
    %48 = vector.shape_cast %47 : vector<16x16x128xf32> to vector<256x128xf32>
    %c4 = arith.constant 4 : index
    %c0_50 = arith.constant 0 : index
    %c0_51 = arith.constant 0 : index
    %49 = vector.load %arg4[%c4, %c0_50, %c0_51] : memref<9x128x128xf32, #tpu.memory_space<vmem>>, vector<1x128x128xf32>
    %50 = vector.shape_cast %49 : vector<1x128x128xf32> to vector<128x128xf32>
    %cst_52 = arith.constant dense<0.000000e+00> : vector<256x128xf32>
    %51 = tpu.matmul %48, %50, %cst_52 {dimension_numbers = #tpu.dot_dimension_numbers<[1], [0], [0], [1], [0, 0, 1, 1], [], []>} : vector<256x128xf32>, vector<128x128xf32>, vector<256x128xf32> -> vector<256x128xf32>
    %52 = arith.addf %45, %51 : vector<256x128xf32>
    %c0_53 = arith.constant 0 : index
    %c1_54 = arith.constant 1 : index
    %c2_55 = arith.constant 2 : index
    %c0_56 = arith.constant 0 : index
    %53 = vector.load %arg8[%c0_53, %c1_54, %c2_55, %c0_56] : memref<1x18x18x128xf32, #tpu.memory_space<vmem>>, vector<1x16x16x128xf32>
    %54 = vector.shape_cast %53 : vector<1x16x16x128xf32> to vector<16x16x128xf32>
    %55 = vector.shape_cast %54 : vector<16x16x128xf32> to vector<256x128xf32>
    %c5 = arith.constant 5 : index
    %c0_57 = arith.constant 0 : index
    %c0_58 = arith.constant 0 : index
    %56 = vector.load %arg4[%c5, %c0_57, %c0_58] : memref<9x128x128xf32, #tpu.memory_space<vmem>>, vector<1x128x128xf32>
    %57 = vector.shape_cast %56 : vector<1x128x128xf32> to vector<128x128xf32>
    %cst_59 = arith.constant dense<0.000000e+00> : vector<256x128xf32>
    %58 = tpu.matmul %55, %57, %cst_59 {dimension_numbers = #tpu.dot_dimension_numbers<[1], [0], [0], [1], [0, 0, 1, 1], [], []>} : vector<256x128xf32>, vector<128x128xf32>, vector<256x128xf32> -> vector<256x128xf32>
    %59 = arith.addf %52, %58 : vector<256x128xf32>
    %c0_60 = arith.constant 0 : index
    %c2_61 = arith.constant 2 : index
    %c0_62 = arith.constant 0 : index
    %c0_63 = arith.constant 0 : index
    %60 = vector.load %arg8[%c0_60, %c2_61, %c0_62, %c0_63] : memref<1x18x18x128xf32, #tpu.memory_space<vmem>>, vector<1x16x16x128xf32>
    %61 = vector.shape_cast %60 : vector<1x16x16x128xf32> to vector<16x16x128xf32>
    %62 = vector.shape_cast %61 : vector<16x16x128xf32> to vector<256x128xf32>
    %c6 = arith.constant 6 : index
    %c0_64 = arith.constant 0 : index
    %c0_65 = arith.constant 0 : index
    %63 = vector.load %arg4[%c6, %c0_64, %c0_65] : memref<9x128x128xf32, #tpu.memory_space<vmem>>, vector<1x128x128xf32>
    %64 = vector.shape_cast %63 : vector<1x128x128xf32> to vector<128x128xf32>
    %cst_66 = arith.constant dense<0.000000e+00> : vector<256x128xf32>
    %65 = tpu.matmul %62, %64, %cst_66 {dimension_numbers = #tpu.dot_dimension_numbers<[1], [0], [0], [1], [0, 0, 1, 1], [], []>} : vector<256x128xf32>, vector<128x128xf32>, vector<256x128xf32> -> vector<256x128xf32>
    %66 = arith.addf %59, %65 : vector<256x128xf32>
    %c0_67 = arith.constant 0 : index
    %c2_68 = arith.constant 2 : index
    %c1_69 = arith.constant 1 : index
    %c0_70 = arith.constant 0 : index
    %67 = vector.load %arg8[%c0_67, %c2_68, %c1_69, %c0_70] : memref<1x18x18x128xf32, #tpu.memory_space<vmem>>, vector<1x16x16x128xf32>
    %68 = vector.shape_cast %67 : vector<1x16x16x128xf32> to vector<16x16x128xf32>
    %69 = vector.shape_cast %68 : vector<16x16x128xf32> to vector<256x128xf32>
    %c7 = arith.constant 7 : index
    %c0_71 = arith.constant 0 : index
    %c0_72 = arith.constant 0 : index
    %70 = vector.load %arg4[%c7, %c0_71, %c0_72] : memref<9x128x128xf32, #tpu.memory_space<vmem>>, vector<1x128x128xf32>
    %71 = vector.shape_cast %70 : vector<1x128x128xf32> to vector<128x128xf32>
    %cst_73 = arith.constant dense<0.000000e+00> : vector<256x128xf32>
    %72 = tpu.matmul %69, %71, %cst_73 {dimension_numbers = #tpu.dot_dimension_numbers<[1], [0], [0], [1], [0, 0, 1, 1], [], []>} : vector<256x128xf32>, vector<128x128xf32>, vector<256x128xf32> -> vector<256x128xf32>
    %73 = arith.addf %66, %72 : vector<256x128xf32>
    %c0_74 = arith.constant 0 : index
    %c2_75 = arith.constant 2 : index
    %c2_76 = arith.constant 2 : index
    %c0_77 = arith.constant 0 : index
    %74 = vector.load %arg8[%c0_74, %c2_75, %c2_76, %c0_77] : memref<1x18x18x128xf32, #tpu.memory_space<vmem>>, vector<1x16x16x128xf32>
    %75 = vector.shape_cast %74 : vector<1x16x16x128xf32> to vector<16x16x128xf32>
    %76 = vector.shape_cast %75 : vector<16x16x128xf32> to vector<256x128xf32>
    %c8 = arith.constant 8 : index
    %c0_78 = arith.constant 0 : index
    %c0_79 = arith.constant 0 : index
    %77 = vector.load %arg4[%c8, %c0_78, %c0_79] : memref<9x128x128xf32, #tpu.memory_space<vmem>>, vector<1x128x128xf32>
    %78 = vector.shape_cast %77 : vector<1x128x128xf32> to vector<128x128xf32>
    %cst_80 = arith.constant dense<0.000000e+00> : vector<256x128xf32>
    %79 = tpu.matmul %76, %78, %cst_80 {dimension_numbers = #tpu.dot_dimension_numbers<[1], [0], [0], [1], [0, 0, 1, 1], [], []>} : vector<256x128xf32>, vector<128x128xf32>, vector<256x128xf32> -> vector<256x128xf32>
    %80 = arith.addf %73, %79 : vector<256x128xf32>
    %81 = vector.shape_cast %80 : vector<256x128xf32> to vector<1x256x128xf32>
    %c0_81 = arith.constant 0 : index
    %c0_82 = arith.constant 0 : index
    %c0_83 = arith.constant 0 : index
    %82 = vector.load %arg5[%c0_81, %c0_82, %c0_83] : memref<1x256x128xf32, #tpu.memory_space<vmem>>, vector<1x256x128xf32>
    tpu.vector_store %arg5[%c0_81, %c0_82, %c0_83], %81 {strides = array<i32>} : memref<1x256x128xf32, #tpu.memory_space<vmem>>, vector<1x256x128xf32>,
    %cst_84 = arith.constant dense<0.000000e+00> : vector<128xf32>
    %83 = vector.multi_reduction <add>, %80, %cst_84 [0] : vector<256x128xf32> to vector<128xf32>
    %84 = vector.shape_cast %83 : vector<128xf32> to vector<1x128xf32>
    %85 = vector.shape_cast %84 : vector<1x128xf32> to vector<1x1x128xf32>
    %c0_85 = arith.constant 0 : index
    %c0_86 = arith.constant 0 : index
    %c0_87 = arith.constant 0 : index
    %86 = vector.load %arg6[%c0_85, %c0_86, %c0_87] : memref<1x1x128xf32, #tpu.memory_space<vmem>>, vector<1x1x128xf32>
    tpu.vector_store %arg6[%c0_85, %c0_86, %c0_87], %85 {strides = array<i32>} : memref<1x1x128xf32, #tpu.memory_space<vmem>>, vector<1x1x128xf32>,
    %87 = arith.mulf %80, %80 : vector<256x128xf32>
    %cst_88 = arith.constant dense<0.000000e+00> : vector<128xf32>
    %88 = vector.multi_reduction <add>, %87, %cst_88 [0] : vector<256x128xf32> to vector<128xf32>
    %89 = vector.shape_cast %88 : vector<128xf32> to vector<1x128xf32>
    %90 = vector.shape_cast %89 : vector<1x128xf32> to vector<1x1x128xf32>
    %c0_89 = arith.constant 0 : index
    %c0_90 = arith.constant 0 : index
    %c0_91 = arith.constant 0 : index
    %91 = vector.load %arg7[%c0_89, %c0_90, %c0_91] : memref<1x1x128xf32, #tpu.memory_space<vmem>>, vector<1x1x128xf32>
    tpu.vector_store %arg7[%c0_89, %c0_90, %c0_91], %90 {strides = array<i32>} : memref<1x1x128xf32, #tpu.memory_space<vmem>>, vector<1x1x128xf32>,
    return
  }
  func.func @transform_0(%arg0: i32) -> (i32, i32, i32, i32) {
    %c0_i32 = arith.constant 0 : i32
    %c0_i32_0 = arith.constant 0 : i32
    %c0_i32_1 = arith.constant 0 : i32
    %c0_i32_2 = arith.constant 0 : i32
    return %arg0, %c0_i32, %c0_i32_0, %c0_i32_1 : i32, i32, i32, i32
  }
  func.func @transform_1(%arg0: i32) -> (i32, i32) {
    %c0_i32 = arith.constant 0 : i32
    %c0_i32_0 = arith.constant 0 : i32
    %c0_i32_1 = arith.constant 0 : i32
    return %c0_i32, %c0_i32_0 : i32, i32
  }
  func.func @transform_2(%arg0: i32) -> (i32, i32) {
    %c0_i32 = arith.constant 0 : i32
    %c0_i32_0 = arith.constant 0 : i32
    %c0_i32_1 = arith.constant 0 : i32
    return %c0_i32, %c0_i32_0 : i32, i32
  }
  func.func @transform_3(%arg0: i32) -> (i32, i32, i32) {
    %c0_i32 = arith.constant 0 : i32
    %c0_i32_0 = arith.constant 0 : i32
    %c0_i32_1 = arith.constant 0 : i32
    %c0_i32_2 = arith.constant 0 : i32
    return %c0_i32, %c0_i32_0, %c0_i32_1 : i32, i32, i32
  }
  func.func @transform_4(%arg0: i32) -> (i32, i32, i32) {
    %c0_i32 = arith.constant 0 : i32
    %c0_i32_0 = arith.constant 0 : i32
    %c0_i32_1 = arith.constant 0 : i32
    return %arg0, %c0_i32, %c0_i32_0 : i32, i32, i32
  }
  func.func @transform_5(%arg0: i32) -> (i32, i32, i32) {
    %c0_i32 = arith.constant 0 : i32
    %c0_i32_0 = arith.constant 0 : i32
    %c0_i32_1 = arith.constant 0 : i32
    return %arg0, %c0_i32, %c0_i32_0 : i32, i32, i32
  }
  func.func @transform_6(%arg0: i32) -> (i32, i32, i32) {
    %c0_i32 = arith.constant 0 : i32
    %c0_i32_0 = arith.constant 0 : i32
    %c0_i32_1 = arith.constant 0 : i32
    return %arg0, %c0_i32, %c0_i32_0 : i32, i32, i32
  }
}

module attributes {stable_mosaic.version = 11 : i64} {
  func.func @_bn_relu_pool_kernel(%arg0: i32, %arg1: memref<1x8x2x8x256xf32, #tpu.memory_space<vmem>>, %arg2: memref<1x256xf32, #tpu.memory_space<vmem>>, %arg3: memref<1x256xf32, #tpu.memory_space<vmem>>, %arg4: memref<1x8x2x8x256xf32, #tpu.memory_space<vmem>>, %arg5: memref<1x8x8x128xf32, #tpu.memory_space<vmem>>) attributes {dimension_semantics = [#tpu.dimension_semantics<parallel>], iteration_bounds = array<i64: 2>, scalar_prefetch = 0 : i64, scratch_operands = 0 : i64, tpu.core_type = #tpu.core_type<tc>, window_params = [{transform_indices = @transform_0, window_bounds = array<i64: 1, 8, 2, 8, 256>}, {pipeline_mode = #tpu.pipeline_mode<synchronous>, transform_indices = @transform_1, window_bounds = array<i64: 1, 256>}, {pipeline_mode = #tpu.pipeline_mode<synchronous>, transform_indices = @transform_2, window_bounds = array<i64: 1, 256>}, {transform_indices = @transform_3, window_bounds = array<i64: 1, 8, 2, 8, 256>}, {transform_indices = @transform_4, window_bounds = array<i64: 1, 8, 8, 128>}]} {
    %c0 = arith.constant 0 : index
    %c0_0 = arith.constant 0 : index
    %c0_1 = arith.constant 0 : index
    %c0_2 = arith.constant 0 : index
    %c0_3 = arith.constant 0 : index
    %0 = vector.load %arg1[%c0, %c0_0, %c0_1, %c0_2, %c0_3] : memref<1x8x2x8x256xf32, #tpu.memory_space<vmem>>, vector<1x8x2x8x256xf32>
    %c0_4 = arith.constant 0 : index
    %c0_5 = arith.constant 0 : index
    %1 = vector.load %arg2[%c0_4, %c0_5] : memref<1x256xf32, #tpu.memory_space<vmem>>, vector<1x256xf32>
    %2 = vector.shape_cast %1 : vector<1x256xf32> to vector<1x1x1x1x256xf32>
    %3 = vector.broadcast %2 : vector<1x1x1x1x256xf32> to vector<1x8x2x8x256xf32>
    %4 = arith.mulf %0, %3 : vector<1x8x2x8x256xf32>
    %c0_6 = arith.constant 0 : index
    %c0_7 = arith.constant 0 : index
    %5 = vector.load %arg3[%c0_6, %c0_7] : memref<1x256xf32, #tpu.memory_space<vmem>>, vector<1x256xf32>
    %6 = vector.shape_cast %5 : vector<1x256xf32> to vector<1x1x1x1x256xf32>
    %7 = vector.broadcast %6 : vector<1x1x1x1x256xf32> to vector<1x8x2x8x256xf32>
    %8 = arith.addf %4, %7 : vector<1x8x2x8x256xf32>
    %cst = arith.constant 0.000000e+00 : f32
    %9 = vector.broadcast %cst : f32 to vector<1x8x2x8x256xf32>
    %10 = arith.maximumf %8, %9 : vector<1x8x2x8x256xf32>
    %c0_8 = arith.constant 0 : index
    %c0_9 = arith.constant 0 : index
    %c0_10 = arith.constant 0 : index
    %c0_11 = arith.constant 0 : index
    %c0_12 = arith.constant 0 : index
    %11 = vector.load %arg4[%c0_8, %c0_9, %c0_10, %c0_11, %c0_12] : memref<1x8x2x8x256xf32, #tpu.memory_space<vmem>>, vector<1x8x2x8x256xf32>
    tpu.vector_store %arg4[%c0_8, %c0_9, %c0_10, %c0_11, %c0_12], %10 {strides = array<i32>} : memref<1x8x2x8x256xf32, #tpu.memory_space<vmem>>, vector<1x8x2x8x256xf32>,
    %12 = vector.extract_strided_slice %10 {offsets = [0, 0, 0, 0, 0], sizes = [1, 8, 1, 8, 256], strides = [1, 1, 1, 1, 1]} : vector<1x8x2x8x256xf32> to vector<1x8x1x8x256xf32>
    %13 = vector.shape_cast %12 : vector<1x8x1x8x256xf32> to vector<1x8x8x256xf32>
    %14 = vector.extract_strided_slice %10 {offsets = [0, 0, 1, 0, 0], sizes = [1, 8, 1, 8, 256], strides = [1, 1, 1, 1, 1]} : vector<1x8x2x8x256xf32> to vector<1x8x1x8x256xf32>
    %15 = vector.shape_cast %14 : vector<1x8x1x8x256xf32> to vector<1x8x8x256xf32>
    %16 = arith.maximumf %13, %15 : vector<1x8x8x256xf32>
    %17 = vector.extract_strided_slice %16 {offsets = [0, 0, 0, 0], sizes = [1, 8, 8, 128], strides = [1, 1, 1, 1]} : vector<1x8x8x256xf32> to vector<1x8x8x128xf32>
    %18 = vector.extract_strided_slice %16 {offsets = [0, 0, 0, 128], sizes = [1, 8, 8, 128], strides = [1, 1, 1, 1]} : vector<1x8x8x256xf32> to vector<1x8x8x128xf32>
    %19 = arith.maximumf %17, %18 : vector<1x8x8x128xf32>
    %c0_13 = arith.constant 0 : index
    %c0_14 = arith.constant 0 : index
    %c0_15 = arith.constant 0 : index
    %c0_16 = arith.constant 0 : index
    %20 = vector.load %arg5[%c0_13, %c0_14, %c0_15, %c0_16] : memref<1x8x8x128xf32, #tpu.memory_space<vmem>>, vector<1x8x8x128xf32>
    tpu.vector_store %arg5[%c0_13, %c0_14, %c0_15, %c0_16], %19 {strides = array<i32>} : memref<1x8x8x128xf32, #tpu.memory_space<vmem>>, vector<1x8x8x128xf32>,
    return
  }
  func.func @transform_0(%arg0: i32) -> (i32, i32, i32, i32, i32) {
    %c0_i32 = arith.constant 0 : i32
    %c0_i32_0 = arith.constant 0 : i32
    %c0_i32_1 = arith.constant 0 : i32
    %c0_i32_2 = arith.constant 0 : i32
    %c0_i32_3 = arith.constant 0 : i32
    return %arg0, %c0_i32, %c0_i32_0, %c0_i32_1, %c0_i32_2 : i32, i32, i32, i32, i32
  }
  func.func @transform_1(%arg0: i32) -> (i32, i32) {
    %c0_i32 = arith.constant 0 : i32
    %c0_i32_0 = arith.constant 0 : i32
    %c0_i32_1 = arith.constant 0 : i32
    return %c0_i32, %c0_i32_0 : i32, i32
  }
  func.func @transform_2(%arg0: i32) -> (i32, i32) {
    %c0_i32 = arith.constant 0 : i32
    %c0_i32_0 = arith.constant 0 : i32
    %c0_i32_1 = arith.constant 0 : i32
    return %c0_i32, %c0_i32_0 : i32, i32
  }
  func.func @transform_3(%arg0: i32) -> (i32, i32, i32, i32, i32) {
    %c0_i32 = arith.constant 0 : i32
    %c0_i32_0 = arith.constant 0 : i32
    %c0_i32_1 = arith.constant 0 : i32
    %c0_i32_2 = arith.constant 0 : i32
    %c0_i32_3 = arith.constant 0 : i32
    return %arg0, %c0_i32, %c0_i32_0, %c0_i32_1, %c0_i32_2 : i32, i32, i32, i32, i32
  }
  func.func @transform_4(%arg0: i32) -> (i32, i32, i32, i32) {
    %c0_i32 = arith.constant 0 : i32
    %c0_i32_0 = arith.constant 0 : i32
    %c0_i32_1 = arith.constant 0 : i32
    %c0_i32_2 = arith.constant 0 : i32
    return %arg0, %c0_i32, %c0_i32_0, %c0_i32_1 : i32, i32, i32, i32
  }
}

</mosaic_0001>

<llo_original>
// kernel: encoder_block_forward.5
$region0: #{encoder_block_forward.5}
  #allocation0 [shape = 'u32[]', space=smem, size = 0x4, offset = 0x4, fixed_abs, tag = 'smem constant byte address 0x4 - core index']
  #allocation1 [shape = 'u32[144,128]{1,0:T(1,128)}', space=vmem, size = 0x12000, scoped, tag = 'internal scratch']
  %s0 = inlined_call_operand.vmem [shape: f32[2,8,2,8,256], index: 0, kind: input, shape index: {}]
  %s1 = inlined_call_operand.vmem [shape: f32[1,256], index: 1, kind: input, shape index: {}]
  %s2 = inlined_call_operand.vmem [shape: f32[1,256], index: 2, kind: input, shape index: {}]
  %s3 = inlined_call_operand.vmem [shape: f32[2,8,2,8,256], index: 3, kind: output, shape index: {0}]
  %s4 = inlined_call_operand.vmem [shape: f32[2,8,8,128], index: 4, kind: output, shape index: {1}]
  %5 = xla_tuple %s3, %s4
  %s6 = sld [smem:[#allocation0]]
  $region53: #{encoder_block_forward.5} parent=0
    _
  %s8 = ssub.s32 1, %s6
  %s9 = scalar_select 0, %s8, %s6
  loop: start=0, step=1, limit=4
  $region2: #{encoder_block_forward.5} parent=0 // loop_pre_header
    _
  $region3: #{encoder_block_forward.5} parent=0 // loop_header
    %s11 = sphi 0, %s15
    %p12 = scmp.ge.s32.totalorder %s11, 4
    %s21 = sphi 0, %s23
    %s24 = sphi 0, %s21
    %s25 = sphi 0, %s24
    %s41 = sphi 0, %s25
    %s45 = sphi 0, %s45
    %s47 = sphi 0, %s45
    %s48 = sphi 0, %s47
    %s62 = sphi 0, %s48
    %s66 = sphi 0, %s66
    %s68 = sphi 0, %s66
    %s69 = sphi 0, %s68
    %s83 = sphi 0, %s69
    %s89 = sphi 0, %s91
    %s92 = sphi 0, %s89
    %s93 = sphi 0, %s92
    %s109 = sphi 0, %s93
    %s115 = sphi 0, %s117
    %s118 = sphi 0, %s115
    %s119 = sphi 0, %s118
    %s135 = sphi 0, %s119
  $region4: #{encoder_block_forward.5} parent=0 // loop_header_branch
    %14 = sbr.rel (%p12) target = $region8
  $region5: #{encoder_block_forward.5} parent=0 // loop_body
    %s16 = ssub.s32 %s11, 1
    %s17 = ssub.s32 %s11, 2
    %s18 = sadd.s32 %s11, 1
    %s19 = ssub.s32 %s11, %s18
    %p20 = scmp.eq.s32.totalorder %s19, 0
    %s22 = sadd.s32 %s21, 1
    %s23 = scalar_select %p20, %s21, %s22
    %p26 = pneg %p20
    %p27 = scmp.eq.s32.totalorder %s11, 1
    %p28 = por %p26, %p27
    %p29 = scmp.ne.s32.totalorder %s21, %s24
    %p30 = scmp.eq.s32.totalorder %s11, 0
    %p31 = por %p29, %p30
    %p32 = scmp.ne.s32.totalorder %s21, %s24
    %p33 = scmp.eq.s32.totalorder %s16, 1
    %p34 = por %p32, %p33
    %p35 = scmp.ne.s32.totalorder %s24, %s25
    %p36 = scmp.eq.s32.totalorder %s16, 0
    %p37 = por %p35, %p36
    %p38 = scmp.ne.s32.totalorder %s24, %s25
    %p39 = scmp.eq.s32.totalorder %s17, 1
    %p40 = por %p38, %p39
    %p42 = scmp.ne.s32.totalorder %s25, %s41
    %p43 = scmp.eq.s32.totalorder %s17, 0
    %p44 = por %p42, %p43
    %s46 = sadd.s32 %s45, 1
    %p49 = scmp.eq.s32.totalorder %s11, 1
    %p50 = scmp.ne.s32.totalorder %s45, %s47
    %p51 = scmp.eq.s32.totalorder %s11, 0
    %p52 = por %p50, %p51
    %p53 = scmp.ne.s32.totalorder %s45, %s47
    %p54 = scmp.eq.s32.totalorder %s16, 1
    %p55 = por %p53, %p54
    %p56 = scmp.ne.s32.totalorder %s47, %s48
    %p57 = scmp.eq.s32.totalorder %s16, 0
    %p58 = por %p56, %p57
    %p59 = scmp.ne.s32.totalorder %s47, %s48
    %p60 = scmp.eq.s32.totalorder %s17, 1
    %p61 = por %p59, %p60
    %p63 = scmp.ne.s32.totalorder %s48, %s62
    %p64 = scmp.eq.s32.totalorder %s17, 0
    %p65 = por %p63, %p64
    %s67 = sadd.s32 %s66, 1
    %p70 = scmp.eq.s32.totalorder %s11, 1
    %p71 = scmp.ne.s32.totalorder %s66, %s68
    %p72 = scmp.eq.s32.totalorder %s11, 0
    %p73 = por %p71, %p72
    %p74 = scmp.ne.s32.totalorder %s66, %s68
    %p75 = scmp.eq.s32.totalorder %s16, 1
    %p76 = por %p74, %p75
    %p77 = scmp.ne.s32.totalorder %s68, %s69
    %p78 = scmp.eq.s32.totalorder %s16, 0
    %p79 = por %p77, %p78
    %p80 = scmp.ne.s32.totalorder %s68, %s69
    %p81 = scmp.eq.s32.totalorder %s17, 1
    %p82 = por %p80, %p81
    %p84 = scmp.ne.s32.totalorder %s69, %s83
    %p85 = scmp.eq.s32.totalorder %s17, 0
    %p86 = por %p84, %p85
    %s87 = ssub.s32 %s11, %s18
    %p88 = scmp.eq.s32.totalorder %s87, 0
    %s90 = sadd.s32 %s89, 1
    %s91 = scalar_select %p88, %s89, %s90
    %p94 = pneg %p88
    %p95 = scmp.eq.s32.totalorder %s11, 1
    %p96 = por %p94, %p95
    %p97 = scmp.ne.s32.totalorder %s89, %s92
    %p98 = scmp.eq.s32.totalorder %s11, 0
    %p99 = por %p97, %p98
    %p100 = scmp.ne.s32.totalorder %s89, %s92
    %p101 = scmp.eq.s32.totalorder %s16, 1
    %p102 = por %p100, %p101
    %p103 = scmp.ne.s32.totalorder %s92, %s93
    %p104 = scmp.eq.s32.totalorder %s16, 0
    %p105 = por %p103, %p104
    %p106 = scmp.ne.s32.totalorder %s92, %s93
    %p107 = scmp.eq.s32.totalorder %s17, 1
    %p108 = por %p106, %p107
    %p110 = scmp.ne.s32.totalorder %s93, %s109
    %p111 = scmp.eq.s32.totalorder %s17, 0
    %p112 = por %p110, %p111
    %s113 = ssub.s32 %s11, %s18
    %p114 = scmp.eq.s32.totalorder %s113, 0
    %s116 = sadd.s32 %s115, 1
    %s117 = scalar_select %p114, %s115, %s116
    %p120 = pneg %p114
    %p121 = scmp.eq.s32.totalorder %s11, 1
    %p122 = por %p120, %p121
    %p123 = scmp.ne.s32.totalorder %s115, %s118
    %p124 = scmp.eq.s32.totalorder %s11, 0
    %p125 = por %p123, %p124
    %p126 = scmp.ne.s32.totalorder %s115, %s118
    %p127 = scmp.eq.s32.totalorder %s16, 1
    %p128 = por %p126, %p127
    %p129 = scmp.ne.s32.totalorder %s118, %s119
    %p130 = scmp.eq.s32.totalorder %s16, 0
    %p131 = por %p129, %p130
    %p132 = scmp.ne.s32.totalorder %s118, %s119
    %p133 = scmp.eq.s32.totalorder %s17, 1
    %p134 = por %p132, %p133
    %p136 = scmp.ne.s32.totalorder %s119, %s135
    %p137 = scmp.eq.s32.totalorder %s17, 0
    %p138 = por %p136, %p137
    %p139 = scmp.le.s32.totalorder 1, %s11
    %p140 = scmp.lt.s32.totalorder %s11, 3
    %p141 = pnand %p139, %p140
    %p142 = pneg %p141
    // Predicated region
    $region9: #{encoder_block_forward.5} parent=5 // pred_check
      _
    $region10: #{encoder_block_forward.5} parent=5 // pred_check_branch
      %144 = sbr.rel (%p141) target = $region12
    $region11: #{encoder_block_forward.5} parent=5 // pred_region
      %s145 = ssub.s32 %s11, 1
      // Predicated region
      $region13: #{encoder_block_forward.5} parent=11 // pred_check
        %p146 = pneg %p58
      $region14: #{encoder_block_forward.5} parent=11 // pred_check_branch
        %148 = sbr.rel (%p146) target = $region16
      $region15: #{encoder_block_forward.5} parent=11 // pred_region
        _
      $region16: #{encoder_block_forward.5} parent=11 // pred_fallthru
        _
      // Predicated region
      $region17: #{encoder_block_forward.5} parent=11 // pred_check
        %p149 = pneg %p79
      $region18: #{encoder_block_forward.5} parent=11 // pred_check_branch
        %151 = sbr.rel (%p149) target = $region20
      $region19: #{encoder_block_forward.5} parent=11 // pred_region
        _
      $region20: #{encoder_block_forward.5} parent=11 // pred_fallthru
        _
    $region12: #{encoder_block_forward.5} parent=5 // pred_fallthru
      _
    %p152 = scmp.lt.s32.totalorder %s11, 2
    // Predicated region
    $region21: #{encoder_block_forward.5} parent=5 // pred_check
      %p153 = pneg %p152
    $region22: #{encoder_block_forward.5} parent=5 // pred_check_branch
      %155 = sbr.rel (%p153) target = $region24
    $region23: #{encoder_block_forward.5} parent=5 // pred_region
      // Predicated region
      $region25: #{encoder_block_forward.5} parent=23 // pred_check
        %p156 = pneg %p31
      $region26: #{encoder_block_forward.5} parent=23 // pred_check_branch
        %158 = sbr.rel (%p156) target = $region28
      $region27: #{encoder_block_forward.5} parent=23 // pred_region
        %p159 = scmp.lt.s32.totalorder %s11, 1
        %s160 = scalar_select %p159, %s11, 1
        %s161 = smul.addr %s160, 32
        %s162 = smul.addr %s161, 8
        %s163 = scalar_lea.vmem %s0, %s162
      $region28: #{encoder_block_forward.5} parent=23 // pred_fallthru
        _
    $region24: #{encoder_block_forward.5} parent=5 // pred_fallthru
      _
    %p164 = scmp.le.s32.totalorder 1, %s11
    %p165 = scmp.lt.s32.totalorder %s11, 3
    %p166 = pnand %p164, %p165
    %p167 = pneg %p166
    // Predicated region
    $region29: #{encoder_block_forward.5} parent=5 // pred_check
      _
    $region30: #{encoder_block_forward.5} parent=5 // pred_check_branch
      %169 = sbr.rel (%p166) target = $region32
    $region31: #{encoder_block_forward.5} parent=5 // pred_region
      %s170 = ssub.s32 %s11, 1
      %p171 = scmp.lt.s32.totalorder %s16, 1
      %s172 = scalar_select %p171, %s16, 1
      %s173 = smul.addr %s172, 32
      %s174 = smul.addr %s173, 8
      %s175 = scalar_lea.vmem %s0, %s174
      %p176 = pneg %p37
      %p177 = pneg %p34
      %p178 = pneg %p58
      %p179 = pneg %p55
      %p180 = pneg %p79
      %p181 = pneg %p76
      %p182 = pneg %p105
      %p183 = pneg %p102
      %p184 = scmp.lt.s32.totalorder %s16, 1
      %s185 = scalar_select %p184, %s16, 1
      %s186 = smul.addr %s185, 32
      %s187 = smul.addr %s186, 8
      %s188 = scalar_lea.vmem %s3, %s187
      %p189 = pneg %p131
      %p190 = pneg %p128
      %p191 = scmp.lt.s32.totalorder %s16, 1
      %s192 = scalar_select %p191, %s16, 1
      %s193 = smul.addr %s192, 8
      %s194 = smul.addr %s193, 8
      %s195 = scalar_lea.vmem %s4, %s194
      %p196 = scmp.lt.s32.totalorder %s16, 1
      %s197 = scalar_select %p196, %s16, 1
      %s198 = smul.addr %s197, 32
      %s199 = smul.addr %s198, 8
      %s200 = scalar_lea.vmem %s0, %s199
      %p201 = scmp.lt.s32.totalorder %s16, 1
      %s202 = scalar_select %p201, %s16, 1
      %s203 = smul.addr %s202, 32
      %s204 = smul.addr %s203, 8
      %s205 = scalar_lea.vmem %s3, %s204
      %p206 = scmp.lt.s32.totalorder %s16, 1
      %s207 = scalar_select %p206, %s16, 1
      %s208 = smul.addr %s207, 8
      %s209 = smul.addr %s208, 8
      %s210 = scalar_lea.vmem %s4, %s209
      %v211 = vld [vmem:[%s200] sm:$0xff]
      %v212 = vld [vmem:[%s200 + $0x8] sm:$0xff]
      %v213 = vld [vmem:[%s200 + $0x10] sm:$0xff]
      %v214 = vld [vmem:[%s200 + $0x18] sm:$0xff]
      %v215 = vld [vmem:[%s200 + $0x20] sm:$0xff]
      %v216 = vld [vmem:[%s200 + $0x28] sm:$0xff]
      %v217 = vld [vmem:[%s200 + $0x30] sm:$0xff]
      %v218 = vld [vmem:[%s200 + $0x38] sm:$0xff]
      %v219 = vld [vmem:[%s200 + $0x40] sm:$0xff]
      %v220 = vld [vmem:[%s200 + $0x48] sm:$0xff]
      %v221 = vld [vmem:[%s200 + $0x50] sm:$0xff]
      %v222 = vld [vmem:[%s200 + $0x58] sm:$0xff]
      %v223 = vld [vmem:[%s200 + $0x60] sm:$0xff]
      %v224 = vld [vmem:[%s200 + $0x68] sm:$0xff]
      %v225 = vld [vmem:[%s200 + $0x70] sm:$0xff]
      %v226 = vld [vmem:[%s200 + $0x78] sm:$0xff]
      %v227 = vld [vmem:[%s200 + $0x80] sm:$0xff]
      %v228 = vld [vmem:[%s200 + $0x88] sm:$0xff]
      %v229 = vld [vmem:[%s200 + $0x90] sm:$0xff]
      %v230 = vld [vmem:[%s200 + $0x98] sm:$0xff]
      %v231 = vld [vmem:[%s200 + $0xa0] sm:$0xff]
      %v232 = vld [vmem:[%s200 + $0xa8] sm:$0xff]
      %v233 = vld [vmem:[%s200 + $0xb0] sm:$0xff]
      %v234 = vld [vmem:[%s200 + $0xb8] sm:$0xff]
      %v235 = vld [vmem:[%s200 + $0xc0] sm:$0xff]
      %v236 = vld [vmem:[%s200 + $0xc8] sm:$0xff]
      %v237 = vld [vmem:[%s200 + $0xd0] sm:$0xff]
      %v238 = vld [vmem:[%s200 + $0xd8] sm:$0xff]
      %v239 = vld [vmem:[%s200 + $0xe0] sm:$0xff]
      %v240 = vld [vmem:[%s200 + $0xe8] sm:$0xff]
      %v241 = vld [vmem:[%s200 + $0xf0] sm:$0xff]
      %v242 = vld [vmem:[%s200 + $0xf8] sm:$0xff]
      %v243 = vld [vmem:[%s1] sm:$0x3]
      %v245 = vlaneseq
      %v246 = vshrl.u32 %v245, 7
      %v247 = vsub.s32 0, %v246
      %v248 = vrot.slane %v243, %v247
      %v249 = vlaneseq
      %v250 = vshrl.u32 %v249, 7
      %v251 = vsub.s32 1, %v250
      %v252 = vrot.slane %v243, %v251
      %v255 = vmul.f32 %v211, %v248
      %v256 = vmul.f32 %v212, %v252
      %v257 = vmul.f32 %v213, %v248
      %v258 = vmul.f32 %v214, %v252
      %v259 = vmul.f32 %v215, %v248
      %v260 = vmul.f32 %v216, %v252
      %v261 = vmul.f32 %v217, %v248
      %v262 = vmul.f32 %v218, %v252
      %v263 = vmul.f32 %v219, %v248
      %v264 = vmul.f32 %v220, %v252
      %v265 = vmul.f32 %v221, %v248
      %v266 = vmul.f32 %v222, %v252
      %v267 = vmul.f32 %v223, %v248
      %v268 = vmul.f32 %v224, %v252
      %v269 = vmul.f32 %v225, %v248
      %v270 = vmul.f32 %v226, %v252
      %v271 = vmul.f32 %v227, %v248
      %v272 = vmul.f32 %v228, %v252
      %v273 = vmul.f32 %v229, %v248
      %v274 = vmul.f32 %v230, %v252
      %v275 = vmul.f32 %v231, %v248
      %v276 = vmul.f32 %v232, %v252
      %v277 = vmul.f32 %v233, %v248
      %v278 = vmul.f32 %v234, %v252
      %v279 = vmul.f32 %v235, %v248
      %v280 = vmul.f32 %v236, %v252
      %v281 = vmul.f32 %v237, %v248
      %v282 = vmul.f32 %v238, %v252
      %v283 = vmul.f32 %v239, %v248
      %v284 = vmul.f32 %v240, %v252
      %v285 = vmul.f32 %v241, %v248
      %v286 = vmul.f32 %v242, %v252
      %v287 = vld [vmem:[%s2] sm:$0x3]
      %v289 = vlaneseq
      %v290 = vshrl.u32 %v289, 7
      %v291 = vsub.s32 0, %v290
      %v292 = vrot.slane %v287, %v291
      %v293 = vlaneseq
      %v294 = vshrl.u32 %v293, 7
      %v295 = vsub.s32 1, %v294
      %v296 = vrot.slane %v287, %v295
      %v299 = vadd.f32 %v255, %v292
      %v300 = vadd.f32 %v256, %v296
      %v301 = vadd.f32 %v257, %v292
      %v302 = vadd.f32 %v258, %v296
      %v303 = vadd.f32 %v259, %v292
      %v304 = vadd.f32 %v260, %v296
      %v305 = vadd.f32 %v261, %v292
      %v306 = vadd.f32 %v262, %v296
      %v307 = vadd.f32 %v263, %v292
      %v308 = vadd.f32 %v264, %v296
      %v309 = vadd.f32 %v265, %v292
      %v310 = vadd.f32 %v266, %v296
      %v311 = vadd.f32 %v267, %v292
      %v312 = vadd.f32 %v268, %v296
      %v313 = vadd.f32 %v269, %v292
      %v314 = vadd.f32 %v270, %v296
      %v315 = vadd.f32 %v271, %v292
      %v316 = vadd.f32 %v272, %v296
      %v317 = vadd.f32 %v273, %v292
      %v318 = vadd.f32 %v274, %v296
      %v319 = vadd.f32 %v275, %v292
      %v320 = vadd.f32 %v276, %v296
      %v321 = vadd.f32 %v277, %v292
      %v322 = vadd.f32 %v278, %v296
      %v323 = vadd.f32 %v279, %v292
      %v324 = vadd.f32 %v280, %v296
      %v325 = vadd.f32 %v281, %v292
      %v326 = vadd.f32 %v282, %v296
      %v327 = vadd.f32 %v283, %v292
      %v328 = vadd.f32 %v284, %v296
      %v329 = vadd.f32 %v285, %v292
      %v330 = vadd.f32 %v286, %v296
      %v331 = vmax.f32 %v299, 0.0
      %v332 = vmax.f32 %v300, 0.0
      %v333 = vmax.f32 %v301, 0.0
      %v334 = vmax.f32 %v302, 0.0
      %v335 = vmax.f32 %v303, 0.0
      %v336 = vmax.f32 %v304, 0.0
      %v337 = vmax.f32 %v305, 0.0
      %v338 = vmax.f32 %v306, 0.0
      %v339 = vmax.f32 %v307, 0.0
      %v340 = vmax.f32 %v308, 0.0
      %v341 = vmax.f32 %v309, 0.0
      %v342 = vmax.f32 %v310, 0.0
      %v343 = vmax.f32 %v311, 0.0
      %v344 = vmax.f32 %v312, 0.0
      %v345 = vmax.f32 %v313, 0.0
      %v346 = vmax.f32 %v314, 0.0
      %v347 = vmax.f32 %v315, 0.0
      %v348 = vmax.f32 %v316, 0.0
      %v349 = vmax.f32 %v317, 0.0
      %v350 = vmax.f32 %v318, 0.0
      %v351 = vmax.f32 %v319, 0.0
      %v352 = vmax.f32 %v320, 0.0
      %v353 = vmax.f32 %v321, 0.0
      %v354 = vmax.f32 %v322, 0.0
      %v355 = vmax.f32 %v323, 0.0
      %v356 = vmax.f32 %v324, 0.0
      %v357 = vmax.f32 %v325, 0.0
      %v358 = vmax.f32 %v326, 0.0
      %v359 = vmax.f32 %v327, 0.0
      %v360 = vmax.f32 %v328, 0.0
      %v361 = vmax.f32 %v329, 0.0
      %v362 = vmax.f32 %v330, 0.0
      %363 = vst [vmem:[%s205] sm:$0xff] %v331
      %364 = vst [vmem:[%s205 + $0x8] sm:$0xff] %v332
      %365 = vst [vmem:[%s205 + $0x10] sm:$0xff] %v333
      %366 = vst [vmem:[%s205 + $0x18] sm:$0xff] %v334
      %367 = vst [vmem:[%s205 + $0x20] sm:$0xff] %v335
      %368 = vst [vmem:[%s205 + $0x28] sm:$0xff] %v336
      %369 = vst [vmem:[%s205 + $0x30] sm:$0xff] %v337
      %370 = vst [vmem:[%s205 + $0x38] sm:$0xff] %v338
      %371 = vst [vmem:[%s205 + $0x40] sm:$0xff] %v339
      %372 = vst [vmem:[%s205 + $0x48] sm:$0xff] %v340
      %373 = vst [vmem:[%s205 + $0x50] sm:$0xff] %v341
      %374 = vst [vmem:[%s205 + $0x58] sm:$0xff] %v342
      %375 = vst [vmem:[%s205 + $0x60] sm:$0xff] %v343
      %376 = vst [vmem:[%s205 + $0x68] sm:$0xff] %v344
      %377 = vst [vmem:[%s205 + $0x70] sm:$0xff] %v345
      %378 = vst [vmem:[%s205 + $0x78] sm:$0xff] %v346
      %379 = vst [vmem:[%s205 + $0x80] sm:$0xff] %v347
      %380 = vst [vmem:[%s205 + $0x88] sm:$0xff] %v348
      %381 = vst [vmem:[%s205 + $0x90] sm:$0xff] %v349
      %382 = vst [vmem:[%s205 + $0x98] sm:$0xff] %v350
      %383 = vst [vmem:[%s205 + $0xa0] sm:$0xff] %v351
      %384 = vst [vmem:[%s205 + $0xa8] sm:$0xff] %v352
      %385 = vst [vmem:[%s205 + $0xb0] sm:$0xff] %v353
      %386 = vst [vmem:[%s205 + $0xb8] sm:$0xff] %v354
      %387 = vst [vmem:[%s205 + $0xc0] sm:$0xff] %v355
      %388 = vst [vmem:[%s205 + $0xc8] sm:$0xff] %v356
      %389 = vst [vmem:[%s205 + $0xd0] sm:$0xff] %v357
      %390 = vst [vmem:[%s205 + $0xd8] sm:$0xff] %v358
      %391 = vst [vmem:[%s205 + $0xe0] sm:$0xff] %v359
      %392 = vst [vmem:[%s205 + $0xe8] sm:$0xff] %v360
      %393 = vst [vmem:[%s205 + $0xf0] sm:$0xff] %v361
      %394 = vst [vmem:[%s205 + $0xf8] sm:$0xff] %v362
      %v395 = vmax.f32 %v331, %v333
      %v396 = vmax.f32 %v332, %v334
      %v397 = vmax.f32 %v335, %v337
      %v398 = vmax.f32 %v336, %v338
      %v399 = vmax.f32 %v339, %v341
      %v400 = vmax.f32 %v340, %v342
      %v401 = vmax.f32 %v343, %v345
      %v402 = vmax.f32 %v344, %v346
      %v403 = vmax.f32 %v347, %v349
      %v404 = vmax.f32 %v348, %v350
      %v405 = vmax.f32 %v351, %v353
      %v406 = vmax.f32 %v352, %v354
      %v407 = vmax.f32 %v355, %v357
      %v408 = vmax.f32 %v356, %v358
      %v409 = vmax.f32 %v359, %v361
      %v410 = vmax.f32 %v360, %v362
      %v411 = vmax.f32 %v395, %v396
      %v412 = vmax.f32 %v397, %v398
      %v413 = vmax.f32 %v399, %v400
      %v414 = vmax.f32 %v401, %v402
      %v415 = vmax.f32 %v403, %v404
      %v416 = vmax.f32 %v405, %v406
      %v417 = vmax.f32 %v407, %v408
      %v418 = vmax.f32 %v409, %v410
      %419 = vst [vmem:[%s210] sm:$0xff] %v411
      %420 = vst [vmem:[%s210 + $0x8] sm:$0xff] %v412
      %421 = vst [vmem:[%s210 + $0x10] sm:$0xff] %v413
      %422 = vst [vmem:[%s210 + $0x18] sm:$0xff] %v414
      %423 = vst [vmem:[%s210 + $0x20] sm:$0xff] %v415
      %424 = vst [vmem:[%s210 + $0x28] sm:$0xff] %v416
      %425 = vst [vmem:[%s210 + $0x30] sm:$0xff] %v417
      %426 = vst [vmem:[%s210 + $0x38] sm:$0xff] %v418
      %p427 = scmp.lt.s32.totalorder %s16, 1
      %s428 = scalar_select %p427, %s16, 1
      %s429 = smul.addr %s428, 32
      %s430 = smul.addr %s429, 8
      %s431 = scalar_lea.vmem %s3, %s430
      %p432 = scmp.lt.s32.totalorder %s16, 1
      %s433 = scalar_select %p432, %s16, 1
      %s434 = smul.addr %s433, 8
      %s435 = smul.addr %s434, 8
      %s436 = scalar_lea.vmem %s4, %s435
      // Predicated region
      $region33: #{encoder_block_forward.5} parent=31 // pred_check
        %p437 = pneg %p102
      $region34: #{encoder_block_forward.5} parent=31 // pred_check_branch
        %439 = sbr.rel (%p437) target = $region36
      $region35: #{encoder_block_forward.5} parent=31 // pred_region
        _
      $region36: #{encoder_block_forward.5} parent=31 // pred_fallthru
        _
      // Predicated region
      $region37: #{encoder_block_forward.5} parent=31 // pred_check
        %p440 = pneg %p128
      $region38: #{encoder_block_forward.5} parent=31 // pred_check_branch
        %442 = sbr.rel (%p440) target = $region40
      $region39: #{encoder_block_forward.5} parent=31 // pred_region
        _
      $region40: #{encoder_block_forward.5} parent=31 // pred_fallthru
        _
    $region32: #{encoder_block_forward.5} parent=5 // pred_fallthru
      _
    %p443 = scmp.le.s32.totalorder 2, %s11
    // Predicated region
    $region41: #{encoder_block_forward.5} parent=5 // pred_check
      %p444 = pneg %p443
    $region42: #{encoder_block_forward.5} parent=5 // pred_check_branch
      %446 = sbr.rel (%p444) target = $region44
    $region43: #{encoder_block_forward.5} parent=5 // pred_region
      %s447 = ssub.s32 %s11, 2
      // Predicated region
      $region45: #{encoder_block_forward.5} parent=43 // pred_check
        %p448 = pneg %p108
      $region46: #{encoder_block_forward.5} parent=43 // pred_check_branch
        %450 = sbr.rel (%p448) target = $region48
      $region47: #{encoder_block_forward.5} parent=43 // pred_region
        %p451 = scmp.lt.s32.totalorder %s17, 1
        %s452 = scalar_select %p451, %s17, 1
        %s453 = smul.addr %s452, 32
        %s454 = smul.addr %s453, 8
        %s455 = scalar_lea.vmem %s3, %s454
      $region48: #{encoder_block_forward.5} parent=43 // pred_fallthru
        _
      // Predicated region
      $region49: #{encoder_block_forward.5} parent=43 // pred_check
        %p456 = pneg %p134
      $region50: #{encoder_block_forward.5} parent=43 // pred_check_branch
        %458 = sbr.rel (%p456) target = $region52
      $region51: #{encoder_block_forward.5} parent=43 // pred_region
        %p459 = scmp.lt.s32.totalorder %s17, 1
        %s460 = scalar_select %p459, %s17, 1
        %s461 = smul.addr %s460, 8
        %s462 = smul.addr %s461, 8
        %s463 = scalar_lea.vmem %s4, %s462
      $region52: #{encoder_block_forward.5} parent=43 // pred_fallthru
        _
    $region44: #{encoder_block_forward.5} parent=5 // pred_fallthru
      _
  $region6: #{encoder_block_forward.5} parent=0 // loop_footer
    %s15 = sadd.s32 1, %s11
  $region7: #{encoder_block_forward.5} parent=0 // loop_footer_branch
    %10 = sbr.rel target = $region3
  $region8: #{encoder_block_forward.5} parent=0 // loop_exit
    _

// kernel: encoder_block_forward.3
$region0: #{encoder_block_forward.3}
  #allocation0 [shape = 'u32[]', space=smem, size = 0x4, offset = 0x4, fixed_abs, tag = 'smem constant byte address 0x4 - core index']
  #allocation1 [shape = 'u32[144,128]{1,0:T(1,128)}', space=vmem, size = 0x12000, scoped, tag = 'internal scratch']
  #allocation2 [shape = 'f32[1,18,18,4]{3,2,1,0:T(8,128)}', space=vmem, size = 0x36000, scoped, tag = 'scratch operand']
  %s0 = inlined_call_operand.vmem [shape: f32[2,16,16,4], index: 0, kind: input, shape index: {}]
  %s1 = inlined_call_operand.hbm [shape: f32[9,4,128], index: 1, kind: input, shape index: {}]
  %s2 = inlined_call_operand.vmem [shape: f32[2,256,128], index: 2, kind: output, shape index: {0}]
  %s3 = inlined_call_operand.vmem [shape: f32[2,1,128], index: 3, kind: output, shape index: {1}]
  %s4 = inlined_call_operand.vmem [shape: f32[2,1,128], index: 4, kind: output, shape index: {2}]
  %5 = xla_tuple %s2, %s3, %s4
  %s6 = sld [smem:[#allocation0]]
  $region61: #{encoder_block_forward.3} parent=0
    _
  %s8 = ssub.s32 1, %s6
  %s9 = scalar_select 0, %s8, %s6
  $region1: #{encoder_block_forward.3} parent=0
    #allocation3 [shape = 'u8[18432]{0}', space=vmem, size = 0x4800, scoped, tag = 'input window, operand 1, single buffered']
    #allocation4 [shape = 's32[2]{0}', space=sflag, size = 0x8, scoped, tag = 'scoped memory for encoder_block_forward.3']
    %10 = vsyncpa [#allocation4], 0
    loop: start=0, step=1, limit=4
    $region2: #{encoder_block_forward.3} parent=1 // loop_pre_header
      _
    $region3: #{encoder_block_forward.3} parent=1 // loop_header
      %s12 = sphi 0, %s16
      %p13 = scmp.ge.s32.totalorder %s12, 4
      %s22 = sphi 0, %s24
      %s25 = sphi 0, %s22
      %s26 = sphi 0, %s25
      %s42 = sphi 0, %s26
      %s46 = sphi 0, %s46
      %s48 = sphi 0, %s46
      %s49 = sphi 0, %s48
      %s63 = sphi 0, %s49
      %s69 = sphi 0, %s71
      %s72 = sphi 0, %s69
      %s73 = sphi 0, %s72
      %s89 = sphi 0, %s73
      %s95 = sphi 0, %s97
      %s98 = sphi 0, %s95
      %s99 = sphi 0, %s98
      %s115 = sphi 0, %s99
      %s121 = sphi 0, %s123
      %s124 = sphi 0, %s121
      %s125 = sphi 0, %s124
      %s141 = sphi 0, %s125
    $region4: #{encoder_block_forward.3} parent=1 // loop_header_branch
      %15 = sbr.rel (%p13) target = $region8
    $region5: #{encoder_block_forward.3} parent=1 // loop_body
      %s17 = ssub.s32 %s12, 1
      %s18 = ssub.s32 %s12, 2
      %s19 = sadd.s32 %s12, 1
      %s20 = ssub.s32 %s12, %s19
      %p21 = scmp.eq.s32.totalorder %s20, 0
      %s23 = sadd.s32 %s22, 1
      %s24 = scalar_select %p21, %s22, %s23
      %p27 = pneg %p21
      %p28 = scmp.eq.s32.totalorder %s12, 1
      %p29 = por %p27, %p28
      %p30 = scmp.ne.s32.totalorder %s22, %s25
      %p31 = scmp.eq.s32.totalorder %s12, 0
      %p32 = por %p30, %p31
      %p33 = scmp.ne.s32.totalorder %s22, %s25
      %p34 = scmp.eq.s32.totalorder %s17, 1
      %p35 = por %p33, %p34
      %p36 = scmp.ne.s32.totalorder %s25, %s26
      %p37 = scmp.eq.s32.totalorder %s17, 0
      %p38 = por %p36, %p37
      %p39 = scmp.ne.s32.totalorder %s25, %s26
      %p40 = scmp.eq.s32.totalorder %s18, 1
      %p41 = por %p39, %p40
      %p43 = scmp.ne.s32.totalorder %s26, %s42
      %p44 = scmp.eq.s32.totalorder %s18, 0
      %p45 = por %p43, %p44
      %s47 = sadd.s32 %s46, 1
      %p50 = scmp.eq.s32.totalorder %s12, 1
      %p51 = scmp.ne.s32.totalorder %s46, %s48
      %p52 = scmp.eq.s32.totalorder %s12, 0
      %p53 = por %p51, %p52
      %p54 = scmp.ne.s32.totalorder %s46, %s48
      %p55 = scmp.eq.s32.totalorder %s17, 1
      %p56 = por %p54, %p55
      %p57 = scmp.ne.s32.totalorder %s48, %s49
      %p58 = scmp.eq.s32.totalorder %s17, 0
      %p59 = por %p57, %p58
      %p60 = scmp.ne.s32.totalorder %s48, %s49
      %p61 = scmp.eq.s32.totalorder %s18, 1
      %p62 = por %p60, %p61
      %p64 = scmp.ne.s32.totalorder %s49, %s63
      %p65 = scmp.eq.s32.totalorder %s18, 0
      %p66 = por %p64, %p65
      %s67 = ssub.s32 %s12, %s19
      %p68 = scmp.eq.s32.totalorder %s67, 0
      %s70 = sadd.s32 %s69, 1
      %s71 = scalar_select %p68, %s69, %s70
      %p74 = pneg %p68
      %p75 = scmp.eq.s32.totalorder %s12, 1
      %p76 = por %p74, %p75
      %p77 = scmp.ne.s32.totalorder %s69, %s72
      %p78 = scmp.eq.s32.totalorder %s12, 0
      %p79 = por %p77, %p78
      %p80 = scmp.ne.s32.totalorder %s69, %s72
      %p81 = scmp.eq.s32.totalorder %s17, 1
      %p82 = por %p80, %p81
      %p83 = scmp.ne.s32.totalorder %s72, %s73
      %p84 = scmp.eq.s32.totalorder %s17, 0
      %p85 = por %p83, %p84
      %p86 = scmp.ne.s32.totalorder %s72, %s73
      %p87 = scmp.eq.s32.totalorder %s18, 1
      %p88 = por %p86, %p87
      %p90 = scmp.ne.s32.totalorder %s73, %s89
      %p91 = scmp.eq.s32.totalorder %s18, 0
      %p92 = por %p90, %p91
      %s93 = ssub.s32 %s12, %s19
      %p94 = scmp.eq.s32.totalorder %s93, 0
      %s96 = sadd.s32 %s95, 1
      %s97 = scalar_select %p94, %s95, %s96
      %p100 = pneg %p94
      %p101 = scmp.eq.s32.totalorder %s12, 1
      %p102 = por %p100, %p101
      %p103 = scmp.ne.s32.totalorder %s95, %s98
      %p104 = scmp.eq.s32.totalorder %s12, 0
      %p105 = por %p103, %p104
      %p106 = scmp.ne.s32.totalorder %s95, %s98
      %p107 = scmp.eq.s32.totalorder %s17, 1
      %p108 = por %p106, %p107
      %p109 = scmp.ne.s32.totalorder %s98, %s99
      %p110 = scmp.eq.s32.totalorder %s17, 0
      %p111 = por %p109, %p110
      %p112 = scmp.ne.s32.totalorder %s98, %s99
      %p113 = scmp.eq.s32.totalorder %s18, 1
      %p114 = por %p112, %p113
      %p116 = scmp.ne.s32.totalorder %s99, %s115
      %p117 = scmp.eq.s32.totalorder %s18, 0
      %p118 = por %p116, %p117
      %s119 = ssub.s32 %s12, %s19
      %p120 = scmp.eq.s32.totalorder %s119, 0
      %s122 = sadd.s32 %s121, 1
      %s123 = scalar_select %p120, %s121, %s122
      %p126 = pneg %p120
      %p127 = scmp.eq.s32.totalorder %s12, 1
      %p128 = por %p126, %p127
      %p129 = scmp.ne.s32.totalorder %s121, %s124
      %p130 = scmp.eq.s32.totalorder %s12, 0
      %p131 = por %p129, %p130
      %p132 = scmp.ne.s32.totalorder %s121, %s124
      %p133 = scmp.eq.s32.totalorder %s17, 1
      %p134 = por %p132, %p133
      %p135 = scmp.ne.s32.totalorder %s124, %s125
      %p136 = scmp.eq.s32.totalorder %s17, 0
      %p137 = por %p135, %p136
      %p138 = scmp.ne.s32.totalorder %s124, %s125
      %p139 = scmp.eq.s32.totalorder %s18, 1
      %p140 = por %p138, %p139
      %p142 = scmp.ne.s32.totalorder %s125, %s141
      %p143 = scmp.eq.s32.totalorder %s18, 0
      %p144 = por %p142, %p143
      %p145 = scmp.le.s32.totalorder 1, %s12
      %p146 = scmp.lt.s32.totalorder %s12, 3
      %p147 = pnand %p145, %p146
      %p148 = pneg %p147
      // Predicated region
      $region9: #{encoder_block_forward.3} parent=5 // pred_check
        _
      $region10: #{encoder_block_forward.3} parent=5 // pred_check_branch
        %150 = sbr.rel (%p147) target = $region12
      $region11: #{encoder_block_forward.3} parent=5 // pred_region
        %s151 = ssub.s32 %s12, 1
        // Predicated region
        $region13: #{encoder_block_forward.3} parent=11 // pred_check
          %p152 = pneg %p59
        $region14: #{encoder_block_forward.3} parent=11 // pred_check_branch
          %154 = sbr.rel (%p152) target = $region16
        $region15: #{encoder_block_forward.3} parent=11 // pred_region
          %s156 = ssub.s32 576, 576
          %157 = vsyncadd [#allocation4], %s156
          %s158 = sshll.u32 [#allocation3], 4
          %s159 = int_to_ptr.vmem [resolvable:$true] %s158
          %164 = dma.hbm_to_vmem [thread:$0]  %s1, 576, %s159, [#allocation4], 64, 64, 4
        $region16: #{encoder_block_forward.3} parent=11 // pred_fallthru
          _
      $region12: #{encoder_block_forward.3} parent=5 // pred_fallthru
        _
      %p165 = scmp.lt.s32.totalorder %s12, 2
      // Predicated region
      $region17: #{encoder_block_forward.3} parent=5 // pred_check
        %p166 = pneg %p165
      $region18: #{encoder_block_forward.3} parent=5 // pred_check_branch
        %168 = sbr.rel (%p166) target = $region20
      $region19: #{encoder_block_forward.3} parent=5 // pred_region
        // Predicated region
        $region21: #{encoder_block_forward.3} parent=19 // pred_check
          %p169 = pneg %p32
        $region22: #{encoder_block_forward.3} parent=19 // pred_check_branch
          %171 = sbr.rel (%p169) target = $region24
        $region23: #{encoder_block_forward.3} parent=19 // pred_region
          %p172 = scmp.lt.s32.totalorder %s12, 1
          %s173 = scalar_select %p172, %s12, 1
          %s174 = smul.addr %s173, 32
          %s175 = smul.addr %s174, 8
          %s176 = scalar_lea.vmem %s0, %s175
        $region24: #{encoder_block_forward.3} parent=19 // pred_fallthru
          _
      $region20: #{encoder_block_forward.3} parent=5 // pred_fallthru
        _
      %p177 = scmp.le.s32.totalorder 1, %s12
      %p178 = scmp.lt.s32.totalorder %s12, 3
      %p179 = pnand %p177, %p178
      %p180 = pneg %p179
      // Predicated region
      $region25: #{encoder_block_forward.3} parent=5 // pred_check
        _
      $region26: #{encoder_block_forward.3} parent=5 // pred_check_branch
        %182 = sbr.rel (%p179) target = $region28
      $region27: #{encoder_block_forward.3} parent=5 // pred_region
        %s183 = ssub.s32 %s12, 1
        // Predicated region
        $region29: #{encoder_block_forward.3} parent=27 // pred_check
          %p184 = pneg %p59
        $region30: #{encoder_block_forward.3} parent=27 // pred_check_branch
          %186 = sbr.rel (%p184) target = $region32
        $region31: #{encoder_block_forward.3} parent=27 // pred_region
          %187 = dma.done [#allocation4], 576
        $region32: #{encoder_block_forward.3} parent=27 // pred_fallthru
          _
        %p188 = scmp.lt.s32.totalorder %s17, 1
        %s189 = scalar_select %p188, %s17, 1
        %s190 = smul.addr %s189, 32
        %s191 = smul.addr %s190, 8
        %s192 = scalar_lea.vmem %s0, %s191
        %p193 = pneg %p38
        %p194 = pneg %p35
        %p195 = pneg %p59
        %p196 = pneg %p56
        %p197 = pneg %p85
        %p198 = pneg %p82
        %p199 = scmp.lt.s32.totalorder %s17, 1
        %s200 = scalar_select %p199, %s17, 1
        %s201 = smul.addr %s200, 32
        %s202 = smul.addr %s201, 8
        %s203 = scalar_lea.vmem %s2, %s202
        %p204 = pneg %p111
        %p205 = pneg %p108
        %p206 = scmp.lt.s32.totalorder %s17, 1
        %s207 = scalar_select %p206, %s17, 1
        %s208 = scalar_lea.vmem %s3, %s207
        %p209 = pneg %p137
        %p210 = pneg %p134
        %p211 = scmp.lt.s32.totalorder %s17, 1
        %s212 = scalar_select %p211, %s17, 1
        %s213 = scalar_lea.vmem %s4, %s212
        %p214 = scmp.lt.s32.totalorder %s17, 1
        %s215 = scalar_select %p214, %s17, 1
        %s216 = smul.addr %s215, 32
        %s217 = smul.addr %s216, 8
        %s218 = scalar_lea.vmem %s0, %s217
        %p219 = scmp.lt.s32.totalorder %s17, 1
        %s220 = scalar_select %p219, %s17, 1
        %s221 = smul.addr %s220, 32
        %s222 = smul.addr %s221, 8
        %s223 = scalar_lea.vmem %s2, %s222
        %p224 = scmp.lt.s32.totalorder %s17, 1
        %s225 = scalar_select %p224, %s17, 1
        %s226 = scalar_lea.vmem %s3, %s225
        %p227 = scmp.lt.s32.totalorder %s17, 1
        %s228 = scalar_select %p227, %s17, 1
        %s229 = scalar_lea.vmem %s4, %s228
        %vm230 = vcmask 31744
        %231 = vst.msk [vmem:[#allocation2] sm:$0xff] %vm230, 0.0
        %232 = vst.msk [vmem:[#allocation2 + $0x8] sm:$0xff] %vm230, 0.0
        %vm233 = vcmask 25600
        %234 = vst.msk [vmem:[#allocation2 + $0x10] sm:$0x3] %vm233, 0.0
        %235 = vst.msk [vmem:[#allocation2 + $0x18] sm:$0xff] %vm230, 0.0
        %236 = vst.msk [vmem:[#allocation2 + $0x20] sm:$0xff] %vm230, 0.0
        %237 = vst.msk [vmem:[#allocation2 + $0x28] sm:$0x3] %vm233, 0.0
        %238 = vst.msk [vmem:[#allocation2 + $0x30] sm:$0xff] %vm230, 0.0
        %239 = vst.msk [vmem:[#allocation2 + $0x38] sm:$0xff] %vm230, 0.0
        %240 = vst.msk [vmem:[#allocation2 + $0x40] sm:$0x3] %vm233, 0.0
        %241 = vst.msk [vmem:[#allocation2 + $0x48] sm:$0xff] %vm230, 0.0
        %242 = vst.msk [vmem:[#allocation2 + $0x50] sm:$0xff] %vm230, 0.0
        %243 = vst.msk [vmem:[#allocation2 + $0x58] sm:$0x3] %vm233, 0.0
        %244 = vst.msk [vmem:[#allocation2 + $0x60] sm:$0xff] %vm230, 0.0
        %245 = vst.msk [vmem:[#allocation2 + $0x68] sm:$0xff] %vm230, 0.0
        %246 = vst.msk [vmem:[#allocation2 + $0x70] sm:$0x3] %vm233, 0.0
        %247 = vst.msk [vmem:[#allocation2 + $0x78] sm:$0xff] %vm230, 0.0
        %248 = vst.msk [vmem:[#allocation2 + $0x80] sm:$0xff] %vm230, 0.0
        %249 = vst.msk [vmem:[#allocation2 + $0x88] sm:$0x3] %vm233, 0.0
        %250 = vst.msk [vmem:[#allocation2 + $0x90] sm:$0xff] %vm230, 0.0
        %251 = vst.msk [vmem:[#allocation2 + $0x98] sm:$0xff] %vm230, 0.0
        %252 = vst.msk [vmem:[#allocation2 + $0xa0] sm:$0x3] %vm233, 0.0
        %253 = vst.msk [vmem:[#allocation2 + $0xa8] sm:$0xff] %vm230, 0.0
        %254 = vst.msk [vmem:[#allocation2 + $0xb0] sm:$0xff] %vm230, 0.0
        %255 = vst.msk [vmem:[#allocation2 + $0xb8] sm:$0x3] %vm233, 0.0
        %256 = vst.msk [vmem:[#allocation2 + $0xc0] sm:$0xff] %vm230, 0.0
        %257 = vst.msk [vmem:[#allocation2 + $0xc8] sm:$0xff] %vm230, 0.0
        %258 = vst.msk [vmem:[#allocation2 + $0xd0] sm:$0x3] %vm233, 0.0
        %259 = vst.msk [vmem:[#allocation2 + $0xd8] sm:$0xff] %vm230, 0.0
        %260 = vst.msk [vmem:[#allocation2 + $0xe0] sm:$0xff] %vm230, 0.0
        %261 = vst.msk [vmem:[#allocation2 + $0xe8] sm:$0x3] %vm233, 0.0
        %262 = vst.msk [vmem:[#allocation2 + $0xf0] sm:$0xff] %vm230, 0.0
        %263 = vst.msk [vmem:[#allocation2 + $0xf8] sm:$0xff] %vm230, 0.0
        %264 = vst.msk [vmem:[#allocation2 + $0x100] sm:$0x3] %vm233, 0.0
        %265 = vst.msk [vmem:[#allocation2 + $0x108] sm:$0xff] %vm230, 0.0
        %266 = vst.msk [vmem:[#allocation2 + $0x110] sm:$0xff] %vm230, 0.0
        %267 = vst.msk [vmem:[#allocation2 + $0x118] sm:$0x3] %vm233, 0.0
        %268 = vst.msk [vmem:[#allocation2 + $0x120] sm:$0xff] %vm230, 0.0
        %269 = vst.msk [vmem:[#allocation2 + $0x128] sm:$0xff] %vm230, 0.0
        %270 = vst.msk [vmem:[#allocation2 + $0x130] sm:$0x3] %vm233, 0.0
        %271 = vst.msk [vmem:[#allocation2 + $0x138] sm:$0xff] %vm230, 0.0
        %272 = vst.msk [vmem:[#allocation2 + $0x140] sm:$0xff] %vm230, 0.0
        %273 = vst.msk [vmem:[#allocation2 + $0x148] sm:$0x3] %vm233, 0.0
        %274 = vst.msk [vmem:[#allocation2 + $0x150] sm:$0xff] %vm230, 0.0
        %275 = vst.msk [vmem:[#allocation2 + $0x158] sm:$0xff] %vm230, 0.0
        %276 = vst.msk [vmem:[#allocation2 + $0x160] sm:$0x3] %vm233, 0.0
        %277 = vst.msk [vmem:[#allocation2 + $0x168] sm:$0xff] %vm230, 0.0
        %278 = vst.msk [vmem:[#allocation2 + $0x170] sm:$0xff] %vm230, 0.0
        %279 = vst.msk [vmem:[#allocation2 + $0x178] sm:$0x3] %vm233, 0.0
        %280 = vst.msk [vmem:[#allocation2 + $0x180] sm:$0xff] %vm230, 0.0
        %281 = vst.msk [vmem:[#allocation2 + $0x188] sm:$0xff] %vm230, 0.0
        %282 = vst.msk [vmem:[#allocation2 + $0x190] sm:$0x3] %vm233, 0.0
        %283 = vst.msk [vmem:[#allocation2 + $0x198] sm:$0xff] %vm230, 0.0
        %284 = vst.msk [vmem:[#allocation2 + $0x1a0] sm:$0xff] %vm230, 0.0
        %285 = vst.msk [vmem:[#allocation2 + $0x1a8] sm:$0x3] %vm233, 0.0
        %v286 = vld [vmem:[%s218] sm:$0xff]
        %v287 = vld [vmem:[%s218 + $0x8] sm:$0xff]
        %v288 = vld [vmem:[%s218 + $0x10] sm:$0xff]
        %v289 = vld [vmem:[%s218 + $0x18] sm:$0xff]
        %v290 = vld [vmem:[%s218 + $0x20] sm:$0xff]
        %v291 = vld [vmem:[%s218 + $0x28] sm:$0xff]
        %v292 = vld [vmem:[%s218 + $0x30] sm:$0xff]
        %v293 = vld [vmem:[%s218 + $0x38] sm:$0xff]
        %v294 = vld [vmem:[%s218 + $0x40] sm:$0xff]
        %v295 = vld [vmem:[%s218 + $0x48] sm:$0xff]
        %v296 = vld [vmem:[%s218 + $0x50] sm:$0xff]
        %v297 = vld [vmem:[%s218 + $0x58] sm:$0xff]
        %v298 = vld [vmem:[%s218 + $0x60] sm:$0xff]
        %v299 = vld [vmem:[%s218 + $0x68] sm:$0xff]
        %v300 = vld [vmem:[%s218 + $0x70] sm:$0xff]
        %v301 = vld [vmem:[%s218 + $0x78] sm:$0xff]
        %v302 = vld [vmem:[%s218 + $0x80] sm:$0xff]
        %v303 = vld [vmem:[%s218 + $0x88] sm:$0xff]
        %v304 = vld [vmem:[%s218 + $0x90] sm:$0xff]
        %v305 = vld [vmem:[%s218 + $0x98] sm:$0xff]
        %v306 = vld [vmem:[%s218 + $0xa0] sm:$0xff]
        %v307 = vld [vmem:[%s218 + $0xa8] sm:$0xff]
        %v308 = vld [vmem:[%s218 + $0xb0] sm:$0xff]
        %v309 = vld [vmem:[%s218 + $0xb8] sm:$0xff]
        %v310 = vld [vmem:[%s218 + $0xc0] sm:$0xff]
        %v311 = vld [vmem:[%s218 + $0xc8] sm:$0xff]
        %v312 = vld [vmem:[%s218 + $0xd0] sm:$0xff]
        %v313 = vld [vmem:[%s218 + $0xd8] sm:$0xff]
        %v314 = vld [vmem:[%s218 + $0xe0] sm:$0xff]
        %v315 = vld [vmem:[%s218 + $0xe8] sm:$0xff]
        %v316 = vld [vmem:[%s218 + $0xf0] sm:$0xff]
        %v317 = vld [vmem:[%s218 + $0xf8] sm:$0xff]
        %s318 = scalar_lea.vmem [#allocation2], 24
        %319 = vst.msk [vmem:[%s318 + $0x1] sm:$0xff] %vm230, %v286
        %320 = vst.msk [vmem:[%s318 + $0x9] sm:$0xff] %vm230, %v287
        %321 = vst.msk [vmem:[%s318 + $0x19] sm:$0xff] %vm230, %v288
        %322 = vst.msk [vmem:[%s318 + $0x21] sm:$0xff] %vm230, %v289
        %323 = vst.msk [vmem:[%s318 + $0x31] sm:$0xff] %vm230, %v290
        %324 = vst.msk [vmem:[%s318 + $0x39] sm:$0xff] %vm230, %v291
        %325 = vst.msk [vmem:[%s318 + $0x49] sm:$0xff] %vm230, %v292
        %326 = vst.msk [vmem:[%s318 + $0x51] sm:$0xff] %vm230, %v293
        %327 = vst.msk [vmem:[%s318 + $0x61] sm:$0xff] %vm230, %v294
        %328 = vst.msk [vmem:[%s318 + $0x69] sm:$0xff] %vm230, %v295
        %329 = vst.msk [vmem:[%s318 + $0x79] sm:$0xff] %vm230, %v296
        %330 = vst.msk [vmem:[%s318 + $0x81] sm:$0xff] %vm230, %v297
        %331 = vst.msk [vmem:[%s318 + $0x91] sm:$0xff] %vm230, %v298
        %332 = vst.msk [vmem:[%s318 + $0x99] sm:$0xff] %vm230, %v299
        %333 = vst.msk [vmem:[%s318 + $0xa9] sm:$0xff] %vm230, %v300
        %334 = vst.msk [vmem:[%s318 + $0xb1] sm:$0xff] %vm230, %v301
        %335 = vst.msk [vmem:[%s318 + $0xc1] sm:$0xff] %vm230, %v302
        %336 = vst.msk [vmem:[%s318 + $0xc9] sm:$0xff] %vm230, %v303
        %337 = vst.msk [vmem:[%s318 + $0xd9] sm:$0xff] %vm230, %v304
        %338 = vst.msk [vmem:[%s318 + $0xe1] sm:$0xff] %vm230, %v305
        %339 = vst.msk [vmem:[%s318 + $0xf1] sm:$0xff] %vm230, %v306
        %340 = vst.msk [vmem:[%s318 + $0xf9] sm:$0xff] %vm230, %v307
        %341 = vst.msk [vmem:[%s318 + $0x109] sm:$0xff] %vm230, %v308
        %342 = vst.msk [vmem:[%s318 + $0x111] sm:$0xff] %vm230, %v309
        %343 = vst.msk [vmem:[%s318 + $0x121] sm:$0xff] %vm230, %v310
        %344 = vst.msk [vmem:[%s318 + $0x129] sm:$0xff] %vm230, %v311
        %345 = vst.msk [vmem:[%s318 + $0x139] sm:$0xff] %vm230, %v312
        %346 = vst.msk [vmem:[%s318 + $0x141] sm:$0xff] %vm230, %v313
        %347 = vst.msk [vmem:[%s318 + $0x151] sm:$0xff] %vm230, %v314
        %348 = vst.msk [vmem:[%s318 + $0x159] sm:$0xff] %vm230, %v315
        %349 = vst.msk [vmem:[%s318 + $0x169] sm:$0xff] %vm230, %v316
        %350 = vst.msk [vmem:[%s318 + $0x171] sm:$0xff] %vm230, %v317
        %v351 = vld [vmem:[#allocation2] sm:$0xff]
        %v352 = vld [vmem:[#allocation2 + $0x8] sm:$0xff]
        %v353 = vld [vmem:[#allocation2 + $0x18] sm:$0xff]
        %v354 = vld [vmem:[#allocation2 + $0x20] sm:$0xff]
        %v355 = vld [vmem:[#allocation2 + $0x30] sm:$0xff]
        %v356 = vld [vmem:[#allocation2 + $0x38] sm:$0xff]
        %v357 = vld [vmem:[#allocation2 + $0x48] sm:$0xff]
        %v358 = vld [vmem:[#allocation2 + $0x50] sm:$0xff]
        %v359 = vld [vmem:[#allocation2 + $0x60] sm:$0xff]
        %v360 = vld [vmem:[#allocation2 + $0x68] sm:$0xff]
        %v361 = vld [vmem:[#allocation2 + $0x78] sm:$0xff]
        %v362 = vld [vmem:[#allocation2 + $0x80] sm:$0xff]
        %v363 = vld [vmem:[#allocation2 + $0x90] sm:$0xff]
        %v364 = vld [vmem:[#allocation2 + $0x98] sm:$0xff]
        %v365 = vld [vmem:[#allocation2 + $0xa8] sm:$0xff]
        %v366 = vld [vmem:[#allocation2 + $0xb0] sm:$0xff]
        %v367 = vld [vmem:[#allocation2 + $0xc0] sm:$0xff]
        %v368 = vld [vmem:[#allocation2 + $0xc8] sm:$0xff]
        %v369 = vld [vmem:[#allocation2 + $0xd8] sm:$0xff]
        %v370 = vld [vmem:[#allocation2 + $0xe0] sm:$0xff]
        %v371 = vld [vmem:[#allocation2 + $0xf0] sm:$0xff]
        %v372 = vld [vmem:[#allocation2 + $0xf8] sm:$0xff]
        %v373 = vld [vmem:[#allocation2 + $0x108] sm:$0xff]
        %v374 = vld [vmem:[#allocation2 + $0x110] sm:$0xff]
        %v375 = vld [vmem:[#allocation2 + $0x120] sm:$0xff]
        %v376 = vld [vmem:[#allocation2 + $0x128] sm:$0xff]
        %v377 = vld [vmem:[#allocation2 + $0x138] sm:$0xff]
        %v378 = vld [vmem:[#allocation2 + $0x140] sm:$0xff]
        %v379 = vld [vmem:[#allocation2 + $0x150] sm:$0xff]
        %v380 = vld [vmem:[#allocation2 + $0x158] sm:$0xff]
        %v381 = vld [vmem:[#allocation2 + $0x168] sm:$0xff]
        %v382 = vld [vmem:[#allocation2 + $0x170] sm:$0xff]
        %v383 = vld [vmem:[#allocation3] sm:$0xf]
        %v384 = vld [vmem:[#allocation2 + $0x1] sm:$0xff]
        %v385 = vld [vmem:[#allocation2 + $0x9] sm:$0xff]
        %v386 = vld [vmem:[#allocation2 + $0x19] sm:$0xff]
        %v387 = vld [vmem:[#allocation2 + $0x21] sm:$0xff]
        %v388 = vld [vmem:[#allocation2 + $0x31] sm:$0xff]
        %v389 = vld [vmem:[#allocation2 + $0x39] sm:$0xff]
        %v390 = vld [vmem:[#allocation2 + $0x49] sm:$0xff]
        %v391 = vld [vmem:[#allocation2 + $0x51] sm:$0xff]
        %v392 = vld [vmem:[#allocation2 + $0x61] sm:$0xff]
        %v393 = vld [vmem:[#allocation2 + $0x69] sm:$0xff]
        %v394 = vld [vmem:[#allocation2 + $0x79] sm:$0xff]
        %v395 = vld [vmem:[#allocation2 + $0x81] sm:$0xff]
        %v396 = vld [vmem:[#allocation2 + $0x91] sm:$0xff]
        %v397 = vld [vmem:[#allocation2 + $0x99] sm:$0xff]
        %v398 = vld [vmem:[#allocation2 + $0xa9] sm:$0xff]
        %v399 = vld [vmem:[#allocation2 + $0xb1] sm:$0xff]
        %v400 = vld [vmem:[#allocation2 + $0xc1] sm:$0xff]
        %v401 = vld [vmem:[#allocation2 + $0xc9] sm:$0xff]
        %v402 = vld [vmem:[#allocation2 + $0xd9] sm:$0xff]
        %v403 = vld [vmem:[#allocation2 + $0xe1] sm:$0xff]
        %v404 = vld [vmem:[#allocation2 + $0xf1] sm:$0xff]
        %v405 = vld [vmem:[#allocation2 + $0xf9] sm:$0xff]
        %v406 = vld [vmem:[#allocation2 + $0x109] sm:$0xff]
        %v407 = vld [vmem:[#allocation2 + $0x111] sm:$0xff]
        %v408 = vld [vmem:[#allocation2 + $0x121] sm:$0xff]
        %v409 = vld [vmem:[#allocation2 + $0x129] sm:$0xff]
        %v410 = vld [vmem:[#allocation2 + $0x139] sm:$0xff]
        %v411 = vld [vmem:[#allocation2 + $0x141] sm:$0xff]
        %v412 = vld [vmem:[#allocation2 + $0x151] sm:$0xff]
        %v413 = vld [vmem:[#allocation2 + $0x159] sm:$0xff]
        %v414 = vld [vmem:[#allocation2 + $0x169] sm:$0xff]
        %v415 = vld [vmem:[#allocation2 + $0x171] sm:$0xff]
        %s416 = scalar_lea.vmem [#allocation3], 4
        %v417 = vld [vmem:[%s416] sm:$0xf]
        %v419 = vsel %vm230, %v384, 0
        %v422 = vsel %vm230, %v385, 0
        %v425 = vsel %vm230, %v386, 0
        %v428 = vsel %vm230, %v387, 0
        %v431 = vsel %vm230, %v388, 0
        %v434 = vsel %vm230, %v389, 0
        %v437 = vsel %vm230, %v390, 0
        %v440 = vsel %vm230, %v391, 0
        %v443 = vsel %vm230, %v392, 0
        %v446 = vsel %vm230, %v393, 0
        %v449 = vsel %vm230, %v394, 0
        %v452 = vsel %vm230, %v395, 0
        %v455 = vsel %vm230, %v396, 0
        %v458 = vsel %vm230, %v397, 0
        %v461 = vsel %vm230, %v398, 0
        %v464 = vsel %vm230, %v399, 0
        %v467 = vsel %vm230, %v400, 0
        %v470 = vsel %vm230, %v401, 0
        %v473 = vsel %vm230, %v402, 0
        %v476 = vsel %vm230, %v403, 0
        %v479 = vsel %vm230, %v404, 0
        %v482 = vsel %vm230, %v405, 0
        %v485 = vsel %vm230, %v406, 0
        %v488 = vsel %vm230, %v407, 0
        %v491 = vsel %vm230, %v408, 0
        %v494 = vsel %vm230, %v409, 0
        %v497 = vsel %vm230, %v410, 0
        %v500 = vsel %vm230, %v411, 0
        %v503 = vsel %vm230, %v412, 0
        %v506 = vsel %vm230, %v413, 0
        %v509 = vsel %vm230, %v414, 0
        %v512 = vsel %vm230, %v415, 0
        %vm514 = vcmask 1043456
        %v516 = vsel %vm514, %v417, 0
        %518 = vmatprep.subr.mxu0 0.0
        %519 = vmatpush1.msra.mxu0 %v516
        %520 = vmatprep.subr.mxu0 0.0
        %521 = vmatpush1.msra.mxu0 0.0
        %522 = vmatprep.subr.mxu0 0.0
        %523 = vmatpush1.msra.mxu0 0.0
        %524 = vmatprep.subr.mxu0 0.0
        %525 = vmatpush1.msra.mxu0 0.0
        %526 = vmatprep.subr.mxu0 0.0
        %527 = vmatpush1.msra.mxu0 0.0
        %528 = vmatprep.subr.mxu0 0.0
        %529 = vmatpush1.msra.mxu0 0.0
        %530 = vmatprep.subr.mxu0 0.0
        %531 = vmatpush1.msra.mxu0 0.0
        %532 = vmatprep.subr.mxu0 0.0
        %533 = vmatpush1.msra.mxu0 0.0
        %534 = vmatprep.subr.mxu0 0.0
        %535 = vmatpush1.msra.mxu0 0.0
        %536 = vmatprep.subr.mxu0 0.0
        %537 = vmatpush1.msra.mxu0 0.0
        %538 = vmatprep.subr.mxu0 0.0
        %539 = vmatpush1.msra.mxu0 0.0
        %540 = vmatprep.subr.mxu0 0.0
        %541 = vmatpush1.msra.mxu0 0.0
        %542 = vmatprep.subr.mxu0 0.0
        %543 = vmatpush1.msra.mxu0 0.0
        %544 = vmatprep.subr.mxu0 0.0
        %545 = vmatpush1.msra.mxu0 0.0
        %546 = vmatprep.subr.mxu0 0.0
        %547 = vmatpush1.msra.mxu0 0.0
        %548 = vmatprep.subr.mxu0 0.0
        %549 = vmatpush1.msra.mxu0 0.0
        %550 = vmatprep.subr.mxu0 0.0
        %551 = vmatpush1.msra.mxu0 0.0
        %552 = vmatprep.subr.mxu0 0.0
        %553 = vmatpush1.msra.mxu0 0.0
        %554 = vmatprep.subr.mxu0 0.0
        %555 = vmatpush1.msra.mxu0 0.0
        %556 = vmatprep.subr.mxu0 0.0
        %557 = vmatpush1.msra.mxu0 0.0
        %558 = vmatprep.subr.mxu0 0.0
        %559 = vmatpush1.msra.mxu0 0.0
        %560 = vmatprep.subr.mxu0 0.0
        %561 = vmatpush1.msra.mxu0 0.0
        %562 = vmatprep.subr.mxu0 0.0
        %563 = vmatpush1.msra.mxu0 0.0
        %564 = vmatprep.subr.mxu0 0.0
        %565 = vmatpush1.msra.mxu0 0.0
        %566 = vmatprep.subr.mxu0 0.0
        %567 = vmatpush1.msra.mxu0 0.0
        %568 = vmatprep.subr.mxu0 0.0
        %569 = vmatpush1.msra.mxu0 0.0
        %570 = vmatprep.subr.mxu0 0.0
        %571 = vmatpush1.msra.mxu0 0.0
        %572 = vmatprep.subr.mxu0 0.0
        %573 = vmatpush1.msra.mxu0 0.0
        %574 = vmatprep.subr.mxu0 0.0
        %575 = vmatpush1.msra.mxu0 0.0
        %576 = vmatprep.subr.mxu0 0.0
        %577 = vmatpush1.msra.mxu0 0.0
        %578 = vmatprep.subr.mxu0 0.0
        %579 = vmatpush1.msra.mxu0 0.0
        %580 = vmatprep.subr.mxu0 0.0
        %581 = vmatpush1.msra.mxu0 0.0
        %582 = vmatprep.mubr.f32.mxu0 0.0
        %583 = vmatmul.mubr.f32.gmra.mrb[0].mxu0 %v419
        %v584 = vpop.f32.mrb[0].mxu0
        %v585 = vadd.f32 0.0, %v584
        %v586 = vpop.f32.mrb[0].mxu0
        %587 = vmatprep.mubr.f32.mxu0 0.0
        %588 = vmatmul.mubr.f32.gmra.mrb[0].mxu0 %v422
        %v589 = vpop.f32.mrb[0].mxu0
        %v590 = vadd.f32 0.0, %v589
        %v591 = vpop.f32.mrb[0].mxu0
        %592 = vmatprep.mubr.f32.mxu0 0.0
        %593 = vmatmul.mubr.f32.gmra.mrb[0].mxu0 %v425
        %v594 = vpop.f32.mrb[0].mxu0
        %v595 = vadd.f32 0.0, %v594
        %v596 = vpop.f32.mrb[0].mxu0
        %597 = vmatprep.mubr.f32.mxu0 0.0
        %598 = vmatmul.mubr.f32.gmra.mrb[0].mxu0 %v428
        %v599 = vpop.f32.mrb[0].mxu0
        %v600 = vadd.f32 0.0, %v599
        %v601 = vpop.f32.mrb[0].mxu0
        %602 = vmatprep.mubr.f32.mxu0 0.0
        %603 = vmatmul.mubr.f32.gmra.mrb[0].mxu0 %v431
        %v604 = vpop.f32.mrb[0].mxu0
        %v605 = vadd.f32 0.0, %v604
        %v606 = vpop.f32.mrb[0].mxu0
        %607 = vmatprep.mubr.f32.mxu0 0.0
        %608 = vmatmul.mubr.f32.gmra.mrb[0].mxu0 %v434
        %v609 = vpop.f32.mrb[0].mxu0
        %v610 = vadd.f32 0.0, %v609
        %v611 = vpop.f32.mrb[0].mxu0
        %612 = vmatprep.mubr.f32.mxu0 0.0
        %613 = vmatmul.mubr.f32.gmra.mrb[0].mxu0 %v437
        %v614 = vpop.f32.mrb[0].mxu0
        %v615 = vadd.f32 0.0, %v614
        %v616 = vpop.f32.mrb[0].mxu0
        %617 = vmatprep.mubr.f32.mxu0 0.0
        %618 = vmatmul.mubr.f32.gmra.mrb[0].mxu0 %v440
        %v619 = vpop.f32.mrb[0].mxu0
        %v620 = vadd.f32 0.0, %v619
        %v621 = vpop.f32.mrb[0].mxu0
        %622 = vmatprep.mubr.f32.mxu0 0.0
        %623 = vmatmul.mubr.f32.gmra.mrb[0].mxu0 %v443
        %v624 = vpop.f32.mrb[0].mxu0
        %v625 = vadd.f32 0.0, %v624
        %v626 = vpop.f32.mrb[0].mxu0
        %627 = vmatprep.mubr.f32.mxu0 0.0
        %628 = vmatmul.mubr.f32.gmra.mrb[0].mxu0 %v446
        %v629 = vpop.f32.mrb[0].mxu0
        %v630 = vadd.f32 0.0, %v629
        %v631 = vpop.f32.mrb[0].mxu0
        %632 = vmatprep.mubr.f32.mxu0 0.0
        %633 = vmatmul.mubr.f32.gmra.mrb[0].mxu0 %v449
        %v634 = vpop.f32.mrb[0].mxu0
        %v635 = vadd.f32 0.0, %v634
        %v636 = vpop.f32.mrb[0].mxu0
        %637 = vmatprep.mubr.f32.mxu0 0.0
        %638 = vmatmul.mubr.f32.gmra.mrb[0].mxu0 %v452
        %v639 = vpop.f32.mrb[0].mxu0
        %v640 = vadd.f32 0.0, %v639
        %v641 = vpop.f32.mrb[0].mxu0
        %642 = vmatprep.mubr.f32.mxu0 0.0
        %643 = vmatmul.mubr.f32.gmra.mrb[0].mxu0 %v455
        %v644 = vpop.f32.mrb[0].mxu0
        %v645 = vadd.f32 0.0, %v644
        %v646 = vpop.f32.mrb[0].mxu0
        %647 = vmatprep.mubr.f32.mxu0 0.0
        %648 = vmatmul.mubr.f32.gmra.mrb[0].mxu0 %v458
        %v649 = vpop.f32.mrb[0].mxu0
        %v650 = vadd.f32 0.0, %v649
        %v651 = vpop.f32.mrb[0].mxu0
        %652 = vmatprep.mubr.f32.mxu0 0.0
        %653 = vmatmul.mubr.f32.gmra.mrb[0].mxu0 %v461
        %v654 = vpop.f32.mrb[0].mxu0
        %v655 = vadd.f32 0.0, %v654
        %v656 = vpop.f32.mrb[0].mxu0
        %657 = vmatprep.mubr.f32.mxu0 0.0
        %658 = vmatmul.mubr.f32.gmra.mrb[0].mxu0 %v464
        %v659 = vpop.f32.mrb[0].mxu0
        %v660 = vadd.f32 0.0, %v659
        %v661 = vpop.f32.mrb[0].mxu0
        %662 = vmatprep.mubr.f32.mxu0 0.0
        %663 = vmatmul.mubr.f32.gmra.mrb[0].mxu0 %v467
        %v664 = vpop.f32.mrb[0].mxu0
        %v665 = vadd.f32 0.0, %v664
        %v666 = vpop.f32.mrb[0].mxu0
        %667 = vmatprep.mubr.f32.mxu0 0.0
        %668 = vmatmul.mubr.f32.gmra.mrb[0].mxu0 %v470
        %v669 = vpop.f32.mrb[0].mxu0
        %v670 = vadd.f32 0.0, %v669
        %v671 = vpop.f32.mrb[0].mxu0
        %672 = vmatprep.mubr.f32.mxu0 0.0
        %673 = vmatmul.mubr.f32.gmra.mrb[0].mxu0 %v473
        %v674 = vpop.f32.mrb[0].mxu0
        %v675 = vadd.f32 0.0, %v674
        %v676 = vpop.f32.mrb[0].mxu0
        %677 = vmatprep.mubr.f32.mxu0 0.0
        %678 = vmatmul.mubr.f32.gmra.mrb[0].mxu0 %v476
        %v679 = vpop.f32.mrb[0].mxu0
        %v680 = vadd.f32 0.0, %v679
        %v681 = vpop.f32.mrb[0].mxu0
        %682 = vmatprep.mubr.f32.mxu0 0.0
        %683 = vmatmul.mubr.f32.gmra.mrb[0].mxu0 %v479
        %v684 = vpop.f32.mrb[0].mxu0
        %v685 = vadd.f32 0.0, %v684
        %v686 = vpop.f32.mrb[0].mxu0
        %687 = vmatprep.mubr.f32.mxu0 0.0
        %688 = vmatmul.mubr.f32.gmra.mrb[0].mxu0 %v482
        %v689 = vpop.f32.mrb[0].mxu0
        %v690 = vadd.f32 0.0, %v689
        %v691 = vpop.f32.mrb[0].mxu0
        %692 = vmatprep.mubr.f32.mxu0 0.0
        %693 = vmatmul.mubr.f32.gmra.mrb[0].mxu0 %v485
        %v694 = vpop.f32.mrb[0].mxu0
        %v695 = vadd.f32 0.0, %v694
        %v696 = vpop.f32.mrb[0].mxu0
        %697 = vmatprep.mubr.f32.mxu0 0.0
        %698 = vmatmul.mubr.f32.gmra.mrb[0].mxu0 %v488
        %v699 = vpop.f32.mrb[0].mxu0
        %v700 = vadd.f32 0.0, %v699
        %v701 = vpop.f32.mrb[0].mxu0
        %702 = vmatprep.mubr.f32.mxu0 0.0
        %703 = vmatmul.mubr.f32.gmra.mrb[0].mxu0 %v491
        %v704 = vpop.f32.mrb[0].mxu0
        %v705 = vadd.f32 0.0, %v704
        %v706 = vpop.f32.mrb[0].mxu0
        %707 = vmatprep.mubr.f32.mxu0 0.0
        %708 = vmatmul.mubr.f32.gmra.mrb[0].mxu0 %v494
        %v709 = vpop.f32.mrb[0].mxu0
        %v710 = vadd.f32 0.0, %v709
        %v711 = vpop.f32.mrb[0].mxu0
        %712 = vmatprep.mubr.f32.mxu0 0.0
        %713 = vmatmul.mubr.f32.gmra.mrb[0].mxu0 %v497
        %v714 = vpop.f32.mrb[0].mxu0
        %v715 = vadd.f32 0.0, %v714
        %v716 = vpop.f32.mrb[0].mxu0
        %717 = vmatprep.mubr.f32.mxu0 0.0
        %718 = vmatmul.mubr.f32.gmra.mrb[0].mxu0 %v500
        %v719 = vpop.f32.mrb[0].mxu0
        %v720 = vadd.f32 0.0, %v719
        %v721 = vpop.f32.mrb[0].mxu0
        %722 = vmatprep.mubr.f32.mxu0 0.0
        %723 = vmatmul.mubr.f32.gmra.mrb[0].mxu0 %v503
        %v724 = vpop.f32.mrb[0].mxu0
        %v725 = vadd.f32 0.0, %v724
        %v726 = vpop.f32.mrb[0].mxu0
        %727 = vmatprep.mubr.f32.mxu0 0.0
        %728 = vmatmul.mubr.f32.gmra.mrb[0].mxu0 %v506
        %v729 = vpop.f32.mrb[0].mxu0
        %v730 = vadd.f32 0.0, %v729
        %v731 = vpop.f32.mrb[0].mxu0
        %732 = vmatprep.mubr.f32.mxu0 0.0
        %733 = vmatmul.mubr.f32.gmra.mrb[0].mxu0 %v509
        %v734 = vpop.f32.mrb[0].mxu0
        %v735 = vadd.f32 0.0, %v734
        %v736 = vpop.f32.mrb[0].mxu0
        %737 = vmatprep.mubr.f32.mxu0 0.0
        %738 = vmatmul.mubr.f32.gmra.mrb[0].mxu0 %v512
        %v739 = vpop.f32.mrb[0].mxu0
        %v740 = vadd.f32 0.0, %v739
        %v741 = vpop.f32.mrb[0].mxu0
        %742 = vdwg.mxu0
        %v744 = vsel %vm230, %v351, 0
        %v747 = vsel %vm230, %v352, 0
        %v750 = vsel %vm230, %v353, 0
        %v753 = vsel %vm230, %v354, 0
        %v756 = vsel %vm230, %v355, 0
        %v759 = vsel %vm230, %v356, 0
        %v762 = vsel %vm230, %v357, 0
        %v765 = vsel %vm230, %v358, 0
        %v768 = vsel %vm230, %v359, 0
        %v771 = vsel %vm230, %v360, 0
        %v774 = vsel %vm230, %v361, 0
        %v777 = vsel %vm230, %v362, 0
        %v780 = vsel %vm230, %v363, 0
        %v783 = vsel %vm230, %v364, 0
        %v786 = vsel %vm230, %v365, 0
        %v789 = vsel %vm230, %v366, 0
        %v792 = vsel %vm230, %v367, 0
        %v795 = vsel %vm230, %v368, 0
        %v798 = vsel %vm230, %v369, 0
        %v801 = vsel %vm230, %v370, 0
        %v804 = vsel %vm230, %v371, 0
        %v807 = vsel %vm230, %v372, 0
        %v810 = vsel %vm230, %v373, 0
        %v813 = vsel %vm230, %v374, 0
        %v816 = vsel %vm230, %v375, 0
        %v819 = vsel %vm230, %v376, 0
        %v822 = vsel %vm230, %v377, 0
        %v825 = vsel %vm230, %v378, 0
        %v828 = vsel %vm230, %v379, 0
        %v831 = vsel %vm230, %v380, 0
        %v834 = vsel %vm230, %v381, 0
        %v837 = vsel %vm230, %v382, 0
        %v840 = vsel %vm514, %v383, 0
        %842 = vmatprep.subr.mxu0 0.0
        %843 = vmatpush1.msra.mxu0 %v840
        %844 = vmatprep.subr.mxu0 0.0
        %845 = vmatpush1.msra.mxu0 0.0
        %846 = vmatprep.subr.mxu0 0.0
        %847 = vmatpush1.msra.mxu0 0.0
        %848 = vmatprep.subr.mxu0 0.0
        %849 = vmatpush1.msra.mxu0 0.0
        %850 = vmatprep.subr.mxu0 0.0
        %851 = vmatpush1.msra.mxu0 0.0
        %852 = vmatprep.subr.mxu0 0.0
        %853 = vmatpush1.msra.mxu0 0.0
        %854 = vmatprep.subr.mxu0 0.0
        %855 = vmatpush1.msra.mxu0 0.0
        %856 = vmatprep.subr.mxu0 0.0
        %857 = vmatpush1.msra.mxu0 0.0
        %858 = vmatprep.subr.mxu0 0.0
        %859 = vmatpush1.msra.mxu0 0.0
        %860 = vmatprep.subr.mxu0 0.0
        %861 = vmatpush1.msra.mxu0 0.0
        %862 = vmatprep.subr.mxu0 0.0
        %863 = vmatpush1.msra.mxu0 0.0
        %864 = vmatprep.subr.mxu0 0.0
        %865 = vmatpush1.msra.mxu0 0.0
        %866 = vmatprep.subr.mxu0 0.0
        %867 = vmatpush1.msra.mxu0 0.0
        %868 = vmatprep.subr.mxu0 0.0
        %869 = vmatpush1.msra.mxu0 0.0
        %870 = vmatprep.subr.mxu0 0.0
        %871 = vmatpush1.msra.mxu0 0.0
        %872 = vmatprep.subr.mxu0 0.0
        %873 = vmatpush1.msra.mxu0 0.0
        %874 = vmatprep.subr.mxu0 0.0
        %875 = vmatpush1.msra.mxu0 0.0
        %876 = vmatprep.subr.mxu0 0.0
        %877 = vmatpush1.msra.mxu0 0.0
        %878 = vmatprep.subr.mxu0 0.0
        %879 = vmatpush1.msra.mxu0 0.0
        %880 = vmatprep.subr.mxu0 0.0
        %881 = vmatpush1.msra.mxu0 0.0
        %882 = vmatprep.subr.mxu0 0.0
        %883 = vmatpush1.msra.mxu0 0.0
        %884 = vmatprep.subr.mxu0 0.0
        %885 = vmatpush1.msra.mxu0 0.0
        %886 = vmatprep.subr.mxu0 0.0
        %887 = vmatpush1.msra.mxu0 0.0
        %888 = vmatprep.subr.mxu0 0.0
        %889 = vmatpush1.msra.mxu0 0.0
        %890 = vmatprep.subr.mxu0 0.0
        %891 = vmatpush1.msra.mxu0 0.0
        %892 = vmatprep.subr.mxu0 0.0
        %893 = vmatpush1.msra.mxu0 0.0
        %894 = vmatprep.subr.mxu0 0.0
        %895 = vmatpush1.msra.mxu0 0.0
        %896 = vmatprep.subr.mxu0 0.0
        %897 = vmatpush1.msra.mxu0 0.0
        %898 = vmatprep.subr.mxu0 0.0
        %899 = vmatpush1.msra.mxu0 0.0
        %900 = vmatprep.subr.mxu0 0.0
        %901 = vmatpush1.msra.mxu0 0.0
        %902 = vmatprep.subr.mxu0 0.0
        %903 = vmatpush1.msra.mxu0 0.0
        %904 = vmatprep.subr.mxu0 0.0
        %905 = vmatpush1.msra.mxu0 0.0
        %906 = vmatprep.mubr.f32.mxu0 0.0
        %907 = vmatmul.mubr.f32.gmra.mrb[0].mxu0 %v744
        %v908 = vpop.f32.mrb[0].mxu0
        %v909 = vadd.f32 %v585, %v908
        %v910 = vpop.f32.mrb[0].mxu0
        %911 = vmatprep.mubr.f32.mxu0 0.0
        %912 = vmatmul.mubr.f32.gmra.mrb[0].mxu0 %v747
        %v913 = vpop.f32.mrb[0].mxu0
        %v914 = vadd.f32 %v590, %v913
        %v915 = vpop.f32.mrb[0].mxu0
        %916 = vmatprep.mubr.f32.mxu0 0.0
        %917 = vmatmul.mubr.f32.gmra.mrb[0].mxu0 %v750
        %v918 = vpop.f32.mrb[0].mxu0
        %v919 = vadd.f32 %v595, %v918
        %v920 = vpop.f32.mrb[0].mxu0
        %921 = vmatprep.mubr.f32.mxu0 0.0
        %922 = vmatmul.mubr.f32.gmra.mrb[0].mxu0 %v753
        %v923 = vpop.f32.mrb[0].mxu0
        %v924 = vadd.f32 %v600, %v923
        %v925 = vpop.f32.mrb[0].mxu0
        %926 = vmatprep.mubr.f32.mxu0 0.0
        %927 = vmatmul.mubr.f32.gmra.mrb[0].mxu0 %v756
        %v928 = vpop.f32.mrb[0].mxu0
        %v929 = vadd.f32 %v605, %v928
        %v930 = vpop.f32.mrb[0].mxu0
        %931 = vmatprep.mubr.f32.mxu0 0.0
        %932 = vmatmul.mubr.f32.gmra.mrb[0].mxu0 %v759
        %v933 = vpop.f32.mrb[0].mxu0
        %v934 = vadd.f32 %v610, %v933
        %v935 = vpop.f32.mrb[0].mxu0
        %936 = vmatprep.mubr.f32.mxu0 0.0
        %937 = vmatmul.mubr.f32.gmra.mrb[0].mxu0 %v762
        %v938 = vpop.f32.mrb[0].mxu0
        %v939 = vadd.f32 %v615, %v938
        %v940 = vpop.f32.mrb[0].mxu0
        %941 = vmatprep.mubr.f32.mxu0 0.0
        %942 = vmatmul.mubr.f32.gmra.mrb[0].mxu0 %v765
        %v943 = vpop.f32.mrb[0].mxu0
        %v944 = vadd.f32 %v620, %v943
        %v945 = vpop.f32.mrb[0].mxu0
        %946 = vmatprep.mubr.f32.mxu0 0.0
        %947 = vmatmul.mubr.f32.gmra.mrb[0].mxu0 %v768
        %v948 = vpop.f32.mrb[0].mxu0
        %v949 = vadd.f32 %v625, %v948
        %v950 = vpop.f32.mrb[0].mxu0
        %951 = vmatprep.mubr.f32.mxu0 0.0
        %952 = vmatmul.mubr.f32.gmra.mrb[0].mxu0 %v771
        %v953 = vpop.f32.mrb[0].mxu0
        %v954 = vadd.f32 %v630, %v953
        %v955 = vpop.f32.mrb[0].mxu0
        %956 = vmatprep.mubr.f32.mxu0 0.0
        %957 = vmatmul.mubr.f32.gmra.mrb[0].mxu0 %v774
        %v958 = vpop.f32.mrb[0].mxu0
        %v959 = vadd.f32 %v635, %v958
        %v960 = vpop.f32.mrb[0].mxu0
        %961 = vmatprep.mubr.f32.mxu0 0.0
        %962 = vmatmul.mubr.f32.gmra.mrb[0].mxu0 %v777
        %v963 = vpop.f32.mrb[0].mxu0
        %v964 = vadd.f32 %v640, %v963
        %v965 = vpop.f32.mrb[0].mxu0
        %966 = vmatprep.mubr.f32.mxu0 0.0
        %967 = vmatmul.mubr.f32.gmra.mrb[0].mxu0 %v780
        %v968 = vpop.f32.mrb[0].mxu0
        %v969 = vadd.f32 %v645, %v968
        %v970 = vpop.f32.mrb[0].mxu0
        %971 = vmatprep.mubr.f32.mxu0 0.0
        %972 = vmatmul.mubr.f32.gmra.mrb[0].mxu0 %v783
        %v973 = vpop.f32.mrb[0].mxu0
        %v974 = vadd.f32 %v650, %v973
        %v975 = vpop.f32.mrb[0].mxu0
        %976 = vmatprep.mubr.f32.mxu0 0.0
        %977 = vmatmul.mubr.f32.gmra.mrb[0].mxu0 %v786
        %v978 = vpop.f32.mrb[0].mxu0
        %v979 = vadd.f32 %v655, %v978
        %v980 = vpop.f32.mrb[0].mxu0
        %981 = vmatprep.mubr.f32.mxu0 0.0
        %982 = vmatmul.mubr.f32.gmra.mrb[0].mxu0 %v789
        %v983 = vpop.f32.mrb[0].mxu0
        %v984 = vadd.f32 %v660, %v983
        %v985 = vpop.f32.mrb[0].mxu0
        %986 = vmatprep.mubr.f32.mxu0 0.0
        %987 = vmatmul.mubr.f32.gmra.mrb[0].mxu0 %v792
        %v988 = vpop.f32.mrb[0].mxu0
        %v989 = vadd.f32 %v665, %v988
        %v990 = vpop.f32.mrb[0].mxu0
        %991 = vmatprep.mubr.f32.mxu0 0.0
        %992 = vmatmul.mubr.f32.gmra.mrb[0].mxu0 %v795
        %v993 = vpop.f32.mrb[0].mxu0
        %v994 = vadd.f32 %v670, %v993
        %v995 = vpop.f32.mrb[0].mxu0
        %996 = vmatprep.mubr.f32.mxu0 0.0
        %997 = vmatmul.mubr.f32.gmra.mrb[0].mxu0 %v798
        %v998 = vpop.f32.mrb[0].mxu0
        %v999 = vadd.f32 %v675, %v998
        %v1000 = vpop.f32.mrb[0].mxu0
        %1001 = vmatprep.mubr.f32.mxu0 0.0
        %1002 = vmatmul.mubr.f32.gmra.mrb[0].mxu0 %v801
        %v1003 = vpop.f32.mrb[0].mxu0
        %v1004 = vadd.f32 %v680, %v1003
        %v1005 = vpop.f32.mrb[0].mxu0
        %1006 = vmatprep.mubr.f32.mxu0 0.0
        %1007 = vmatmul.mubr.f32.gmra.mrb[0].mxu0 %v804
        %v1008 = vpop.f32.mrb[0].mxu0
        %v1009 = vadd.f32 %v685, %v1008
        %v1010 = vpop.f32.mrb[0].mxu0
        %1011 = vmatprep.mubr.f32.mxu0 0.0
        %1012 = vmatmul.mubr.f32.gmra.mrb[0].mxu0 %v807
        %v1013 = vpop.f32.mrb[0].mxu0
        %v1014 = vadd.f32 %v690, %v1013
        %v1015 = vpop.f32.mrb[0].mxu0
        %1016 = vmatprep.mubr.f32.mxu0 0.0
        %1017 = vmatmul.mubr.f32.gmra.mrb[0].mxu0 %v810
        %v1018 = vpop.f32.mrb[0].mxu0
        %v1019 = vadd.f32 %v695, %v1018
        %v1020 = vpop.f32.mrb[0].mxu0
        %1021 = vmatprep.mubr.f32.mxu0 0.0
        %1022 = vmatmul.mubr.f32.gmra.mrb[0].mxu0 %v813
        %v1023 = vpop.f32.mrb[0].mxu0
        %v1024 = vadd.f32 %v700, %v1023
        %v1025 = vpop.f32.mrb[0].mxu0
        %1026 = vmatprep.mubr.f32.mxu0 0.0
        %1027 = vmatmul.mubr.f32.gmra.mrb[0].mxu0 %v816
        %v1028 = vpop.f32.mrb[0].mxu0
        %v1029 = vadd.f32 %v705, %v1028
        %v1030 = vpop.f32.mrb[0].mxu0
        %1031 = vmatprep.mubr.f32.mxu0 0.0
        %1032 = vmatmul.mubr.f32.gmra.mrb[0].mxu0 %v819
        %v1033 = vpop.f32.mrb[0].mxu0
        %v1034 = vadd.f32 %v710, %v1033
        %v1035 = vpop.f32.mrb[0].mxu0
        %1036 = vmatprep.mubr.f32.mxu0 0.0
        %1037 = vmatmul.mubr.f32.gmra.mrb[0].mxu0 %v822
        %v1038 = vpop.f32.mrb[0].mxu0
        %v1039 = vadd.f32 %v715, %v1038
        %v1040 = vpop.f32.mrb[0].mxu0
        %1041 = vmatprep.mubr.f32.mxu0 0.0
        %1042 = vmatmul.mubr.f32.gmra.mrb[0].mxu0 %v825
        %v1043 = vpop.f32.mrb[0].mxu0
        %v1044 = vadd.f32 %v720, %v1043
        %v1045 = vpop.f32.mrb[0].mxu0
        %1046 = vmatprep.mubr.f32.mxu0 0.0
        %1047 = vmatmul.mubr.f32.gmra.mrb[0].mxu0 %v828
        %v1048 = vpop.f32.mrb[0].mxu0
        %v1049 = vadd.f32 %v725, %v1048
        %v1050 = vpop.f32.mrb[0].mxu0
        %1051 = vmatprep.mubr.f32.mxu0 0.0
        %1052 = vmatmul.mubr.f32.gmra.mrb[0].mxu0 %v831
        %v1053 = vpop.f32.mrb[0].mxu0
        %v1054 = vadd.f32 %v730, %v1053
        %v1055 = vpop.f32.mrb[0].mxu0
        %1056 = vmatprep.mubr.f32.mxu0 0.0
        %1057 = vmatmul.mubr.f32.gmra.mrb[0].mxu0 %v834
        %v1058 = vpop.f32.mrb[0].mxu0
        %v1059 = vadd.f32 %v735, %v1058
        %v1060 = vpop.f32.mrb[0].mxu0
        %1061 = vmatprep.mubr.f32.mxu0 0.0
        %1062 = vmatmul.mubr.f32.gmra.mrb[0].mxu0 %v837
        %v1063 = vpop.f32.mrb[0].mxu0
        %v1064 = vadd.f32 %v740, %v1063
        %v1065 = vpop.f32.mrb[0].mxu0
        %1066 = vdwg.mxu0
        %v1067 = vld [vmem:[#allocation2 + $0x2] sm:$0xff]
        %v1068 = vld [vmem:[#allocation2 + $0xa] sm:$0xff]
        %v1069 = vld [vmem:[#allocation2 + $0x1a] sm:$0xff]
        %v1070 = vld [vmem:[#allocation2 + $0x22] sm:$0xff]
        %v1071 = vld [vmem:[#allocation2 + $0x32] sm:$0xff]
        %v1072 = vld [vmem:[#allocation2 + $0x3a] sm:$0xff]
        %v1073 = vld [vmem:[#allocation2 + $0x4a] sm:$0xff]
        %v1074 = vld [vmem:[#allocation2 + $0x52] sm:$0xff]
        %v1075 = vld [vmem:[#allocation2 + $0x62] sm:$0xff]
        %v1076 = vld [vmem:[#allocation2 + $0x6a] sm:$0xff]
        %v1077 = vld [vmem:[#allocation2 + $0x7a] sm:$0xff]
        %v1078 = vld [vmem:[#allocation2 + $0x82] sm:$0xff]
        %v1079 = vld [vmem:[#allocation2 + $0x92] sm:$0xff]
        %v1080 = vld [vmem:[#allocation2 + $0x9a] sm:$0xff]
        %v1081 = vld [vmem:[#allocation2 + $0xaa] sm:$0xff]
        %v1082 = vld [vmem:[#allocation2 + $0xb2] sm:$0xff]
        %v1083 = vld [vmem:[#allocation2 + $0xc2] sm:$0xff]
        %v1084 = vld [vmem:[#allocation2 + $0xca] sm:$0xff]
        %v1085 = vld [vmem:[#allocation2 + $0xda] sm:$0xff]
        %v1086 = vld [vmem:[#allocation2 + $0xe2] sm:$0xff]
        %v1087 = vld [vmem:[#allocation2 + $0xf2] sm:$0xff]
        %v1088 = vld [vmem:[#allocation2 + $0xfa] sm:$0xff]
        %v1089 = vld [vmem:[#allocation2 + $0x10a] sm:$0xff]
        %v1090 = vld [vmem:[#allocation2 + $0x112] sm:$0xff]
        %v1091 = vld [vmem:[#allocation2 + $0x122] sm:$0xff]
        %v1092 = vld [vmem:[#allocation2 + $0x12a] sm:$0xff]
        %v1093 = vld [vmem:[#allocation2 + $0x13a] sm:$0xff]
        %v1094 = vld [vmem:[#allocation2 + $0x142] sm:$0xff]
        %v1095 = vld [vmem:[#allocation2 + $0x152] sm:$0xff]
        %v1096 = vld [vmem:[#allocation2 + $0x15a] sm:$0xff]
        %v1097 = vld [vmem:[#allocation2 + $0x16a] sm:$0xff]
        %v1098 = vld [vmem:[#allocation2 + $0x172] sm:$0xff]
        %s1099 = scalar_lea.vmem [#allocation3], 8
        %v1100 = vld [vmem:[%s1099] sm:$0xf]
        %v1102 = vsel %vm230, %v1067, 0
        %v1105 = vsel %vm230, %v1068, 0
        %v1108 = vsel %vm230, %v1069, 0
        %v1111 = vsel %vm230, %v1070, 0
        %v1114 = vsel %vm230, %v1071, 0
        %v1117 = vsel %vm230, %v1072, 0
        %v1120 = vsel %vm230, %v1073, 0
        %v1123 = vsel %vm230, %v1074, 0
        %v1126 = vsel %vm230, %v1075, 0
        %v1129 = vsel %vm230, %v1076, 0
        %v1132 = vsel %vm230, %v1077, 0
        %v1135 = vsel %vm230, %v1078, 0
        %v1138 = vsel %vm230, %v1079, 0
        %v1141 = vsel %vm230, %v1080, 0
        %v1144 = vsel %vm230, %v1081, 0
        %v1147 = vsel %vm230, %v1082, 0
        %v1150 = vsel %vm230, %v1083, 0
        %v1153 = vsel %vm230, %v1084, 0
        %v1156 = vsel %vm230, %v1085, 0
        %v1159 = vsel %vm230, %v1086, 0
        %v1162 = vsel %vm230, %v1087, 0
        %v1165 = vsel %vm230, %v1088, 0
        %v1168 = vsel %vm230, %v1089, 0
        %v1171 = vsel %vm230, %v1090, 0
        %v1174 = vsel %vm230, %v1091, 0
        %v1177 = vsel %vm230, %v1092, 0
        %v1180 = vsel %vm230, %v1093, 0
        %v1183 = vsel %vm230, %v1094, 0
        %v1186 = vsel %vm230, %v1095, 0
        %v1189 = vsel %vm230, %v1096, 0
        %v1192 = vsel %vm230, %v1097, 0
        %v1195 = vsel %vm230, %v1098, 0
        %v1198 = vsel %vm514, %v1100, 0
        %1200 = vmatprep.subr.mxu0 0.0
        %1201 = vmatpush1.msra.mxu0 %v1198
        %1202 = vmatprep.subr.mxu0 0.0
        %1203 = vmatpush1.msra.mxu0 0.0
        %1204 = vmatprep.subr.mxu0 0.0
        %1205 = vmatpush1.msra.mxu0 0.0
        %1206 = vmatprep.subr.mxu0 0.0
        %1207 = vmatpush1.msra.mxu0 0.0
        %1208 = vmatprep.subr.mxu0 0.0
        %1209 = vmatpush1.msra.mxu0 0.0
        %1210 = vmatprep.subr.mxu0 0.0
        %1211 = vmatpush1.msra.mxu0 0.0
        %1212 = vmatprep.subr.mxu0 0.0
        %1213 = vmatpush1.msra.mxu0 0.0
        %1214 = vmatprep.subr.mxu0 0.0
        %1215 = vmatpush1.msra.mxu0 0.0
        %1216 = vmatprep.subr.mxu0 0.0
        %1217 = vmatpush1.msra.mxu0 0.0
        %1218 = vmatprep.subr.mxu0 0.0
        %1219 = vmatpush1.msra.mxu0 0.0
        %1220 = vmatprep.subr.mxu0 0.0
        %1221 = vmatpush1.msra.mxu0 0.0
        %1222 = vmatprep.subr.mxu0 0.0
        %1223 = vmatpush1.msra.mxu0 0.0
        %1224 = vmatprep.subr.mxu0 0.0
        %1225 = vmatpush1.msra.mxu0 0.0
        %1226 = vmatprep.subr.mxu0 0.0
        %1227 = vmatpush1.msra.mxu0 0.0
        %1228 = vmatprep.subr.mxu0 0.0
        %1229 = vmatpush1.msra.mxu0 0.0
        %1230 = vmatprep.subr.mxu0 0.0
        %1231 = vmatpush1.msra.mxu0 0.0
        %1232 = vmatprep.subr.mxu0 0.0
        %1233 = vmatpush1.msra.mxu0 0.0
        %1234 = vmatprep.subr.mxu0 0.0
        %1235 = vmatpush1.msra.mxu0 0.0
        %1236 = vmatprep.subr.mxu0 0.0
        %1237 = vmatpush1.msra.mxu0 0.0
        %1238 = vmatprep.subr.mxu0 0.0
        %1239 = vmatpush1.msra.mxu0 0.0
        %1240 = vmatprep.subr.mxu0 0.0
        %1241 = vmatpush1.msra.mxu0 0.0
        %1242 = vmatprep.subr.mxu0 0.0
        %1243 = vmatpush1.msra.mxu0 0.0
        %1244 = vmatprep.subr.mxu0 0.0
        %1245 = vmatpush1.msra.mxu0 0.0
        %1246 = vmatprep.subr.mxu0 0.0
        %1247 = vmatpush1.msra.mxu0 0.0
        %1248 = vmatprep.subr.mxu0 0.0
        %1249 = vmatpush1.msra.mxu0 0.0
        %1250 = vmatprep.subr.mxu0 0.0
        %1251 = vmatpush1.msra.mxu0 0.0
        %1252 = vmatprep.subr.mxu0 0.0
        %1253 = vmatpush1.msra.mxu0 0.0
        %1254 = vmatprep.subr.mxu0 0.0
        %1255 = vmatpush1.msra.mxu0 0.0
        %1256 = vmatprep.subr.mxu0 0.0
        %1257 = vmatpush1.msra.mxu0 0.0
        %1258 = vmatprep.subr.mxu0 0.0
        %1259 = vmatpush1.msra.mxu0 0.0
        %1260 = vmatprep.subr.mxu0 0.0
        %1261 = vmatpush1.msra.mxu0 0.0
        %1262 = vmatprep.subr.mxu0 0.0
        %1263 = vmatpush1.msra.mxu0 0.0
        %1264 = vmatprep.mubr.f32.mxu0 0.0
        %1265 = vmatmul.mubr.f32.gmra.mrb[0].mxu0 %v1102
        %v1266 = vpop.f32.mrb[0].mxu0
        %v1267 = vadd.f32 0.0, %v1266
        %v1268 = vpop.f32.mrb[0].mxu0
        %1269 = vmatprep.mubr.f32.mxu0 0.0
        %1270 = vmatmul.mubr.f32.gmra.mrb[0].mxu0 %v1105
        %v1271 = vpop.f32.mrb[0].mxu0
        %v1272 = vadd.f32 0.0, %v1271
        %v1273 = vpop.f32.mrb[0].mxu0
        %1274 = vmatprep.mubr.f32.mxu0 0.0
        %1275 = vmatmul.mubr.f32.gmra.mrb[0].mxu0 %v1108
        %v1276 = vpop.f32.mrb[0].mxu0
        %v1277 = vadd.f32 0.0, %v1276
        %v1278 = vpop.f32.mrb[0].mxu0
        %1279 = vmatprep.mubr.f32.mxu0 0.0
        %1280 = vmatmul.mubr.f32.gmra.mrb[0].mxu0 %v1111
        %v1281 = vpop.f32.mrb[0].mxu0
        %v1282 = vadd.f32 0.0, %v1281
        %v1283 = vpop.f32.mrb[0].mxu0
        %1284 = vmatprep.mubr.f32.mxu0 0.0
        %1285 = vmatmul.mubr.f32.gmra.mrb[0].mxu0 %v1114
        %v1286 = vpop.f32.mrb[0].mxu0
        %v1287 = vadd.f32 0.0, %v1286
        %v1288 = vpop.f32.mrb[0].mxu0
        %1289 = vmatprep.mubr.f32.mxu0 0.0
        %1290 = vmatmul.mubr.f32.gmra.mrb[0].mxu0 %v1117
        %v1291 = vpop.f32.mrb[0].mxu0
        %v1292 = vadd.f32 0.0, %v1291
        %v1293 = vpop.f32.mrb[0].mxu0
        %1294 = vmatprep.mubr.f32.mxu0 0.0
        %1295 = vmatmul.mubr.f32.gmra.mrb[0].mxu0 %v1120
        %v1296 = vpop.f32.mrb[0].mxu0
        %v1297 = vadd.f32 0.0, %v1296
        %v1298 = vpop.f32.mrb[0].mxu0
        %1299 = vmatprep.mubr.f32.mxu0 0.0
        %1300 = vmatmul.mubr.f32.gmra.mrb[0].mxu0 %v1123
        %v1301 = vpop.f32.mrb[0].mxu0
        %v1302 = vadd.f32 0.0, %v1301
        %v1303 = vpop.f32.mrb[0].mxu0
        %1304 = vmatprep.mubr.f32.mxu0 0.0
        %1305 = vmatmul.mubr.f32.gmra.mrb[0].mxu0 %v1126
        %v1306 = vpop.f32.mrb[0].mxu0
        %v1307 = vadd.f32 0.0, %v1306
        %v1308 = vpop.f32.mrb[0].mxu0
        %1309 = vmatprep.mubr.f32.mxu0 0.0
        %1310 = vmatmul.mubr.f32.gmra.mrb[0].mxu0 %v1129
        %v1311 = vpop.f32.mrb[0].mxu0
        %v1312 = vadd.f32 0.0, %v1311
        %v1313 = vpop.f32.mrb[0].mxu0
        %1314 = vmatprep.mubr.f32.mxu0 0.0
        %1315 = vmatmul.mubr.f32.gmra.mrb[0].mxu0 %v1132
        %v1316 = vpop.f32.mrb[0].mxu0
        %v1317 = vadd.f32 0.0, %v1316
        %v1318 = vpop.f32.mrb[0].mxu0
        %1319 = vmatprep.mubr.f32.mxu0 0.0
        %1320 = vmatmul.mubr.f32.gmra.mrb[0].mxu0 %v1135
        %v1321 = vpop.f32.mrb[0].mxu0
        %v1322 = vadd.f32 0.0, %v1321
        %v1323 = vpop.f32.mrb[0].mxu0
        %1324 = vmatprep.mubr.f32.mxu0 0.0
        %1325 = vmatmul.mubr.f32.gmra.mrb[0].mxu0 %v1138
        %v1326 = vpop.f32.mrb[0].mxu0
        %v1327 = vadd.f32 0.0, %v1326
        %v1328 = vpop.f32.mrb[0].mxu0
        %1329 = vmatprep.mubr.f32.mxu0 0.0
        %1330 = vmatmul.mubr.f32.gmra.mrb[0].mxu0 %v1141
        %v1331 = vpop.f32.mrb[0].mxu0
        %v1332 = vadd.f32 0.0, %v1331
        %v1333 = vpop.f32.mrb[0].mxu0
        %1334 = vmatprep.mubr.f32.mxu0 0.0
        %1335 = vmatmul.mubr.f32.gmra.mrb[0].mxu0 %v1144
        %v1336 = vpop.f32.mrb[0].mxu0
        %v1337 = vadd.f32 0.0, %v1336
        %v1338 = vpop.f32.mrb[0].mxu0
        %1339 = vmatprep.mubr.f32.mxu0 0.0
        %1340 = vmatmul.mubr.f32.gmra.mrb[0].mxu0 %v1147
        %v1341 = vpop.f32.mrb[0].mxu0
        %v1342 = vadd.f32 0.0, %v1341
        %v1343 = vpop.f32.mrb[0].mxu0
        %1344 = vmatprep.mubr.f32.mxu0 0.0
        %1345 = vmatmul.mubr.f32.gmra.mrb[0].mxu0 %v1150
        %v1346 = vpop.f32.mrb[0].mxu0
        %v1347 = vadd.f32 0.0, %v1346
        %v1348 = vpop.f32.mrb[0].mxu0
        %1349 = vmatprep.mubr.f32.mxu0 0.0
        %1350 = vmatmul.mubr.f32.gmra.mrb[0].mxu0 %v1153
        %v1351 = vpop.f32.mrb[0].mxu0
        %v1352 = vadd.f32 0.0, %v1351
        %v1353 = vpop.f32.mrb[0].mxu0
        %1354 = vmatprep.mubr.f32.mxu0 0.0
        %1355 = vmatmul.mubr.f32.gmra.mrb[0].mxu0 %v1156
        %v1356 = vpop.f32.mrb[0].mxu0
        %v1357 = vadd.f32 0.0, %v1356
        %v1358 = vpop.f32.mrb[0].mxu0
        %1359 = vmatprep.mubr.f32.mxu0 0.0
        %1360 = vmatmul.mubr.f32.gmra.mrb[0].mxu0 %v1159
        %v1361 = vpop.f32.mrb[0].mxu0
        %v1362 = vadd.f32 0.0, %v1361
        %v1363 = vpop.f32.mrb[0].mxu0
        %1364 = vmatprep.mubr.f32.mxu0 0.0
        %1365 = vmatmul.mubr.f32.gmra.mrb[0].mxu0 %v1162
        %v1366 = vpop.f32.mrb[0].mxu0
        %v1367 = vadd.f32 0.0, %v1366
        %v1368 = vpop.f32.mrb[0].mxu0
        %1369 = vmatprep.mubr.f32.mxu0 0.0
        %1370 = vmatmul.mubr.f32.gmra.mrb[0].mxu0 %v1165
        %v1371 = vpop.f32.mrb[0].mxu0
        %v1372 = vadd.f32 0.0, %v1371
        %v1373 = vpop.f32.mrb[0].mxu0
        %1374 = vmatprep.mubr.f32.mxu0 0.0
        %1375 = vmatmul.mubr.f32.gmra.mrb[0].mxu0 %v1168
        %v1376 = vpop.f32.mrb[0].mxu0
        %v1377 = vadd.f32 0.0, %v1376
        %v1378 = vpop.f32.mrb[0].mxu0
        %1379 = vmatprep.mubr.f32.mxu0 0.0
        %1380 = vmatmul.mubr.f32.gmra.mrb[0].mxu0 %v1171
        %v1381 = vpop.f32.mrb[0].mxu0
        %v1382 = vadd.f32 0.0, %v1381
        %v1383 = vpop.f32.mrb[0].mxu0
        %1384 = vmatprep.mubr.f32.mxu0 0.0
        %1385 = vmatmul.mubr.f32.gmra.mrb[0].mxu0 %v1174
        %v1386 = vpop.f32.mrb[0].mxu0
        %v1387 = vadd.f32 0.0, %v1386
        %v1388 = vpop.f32.mrb[0].mxu0
        %1389 = vmatprep.mubr.f32.mxu0 0.0
        %1390 = vmatmul.mubr.f32.gmra.mrb[0].mxu0 %v1177
        %v1391 = vpop.f32.mrb[0].mxu0
        %v1392 = vadd.f32 0.0, %v1391
        %v1393 = vpop.f32.mrb[0].mxu0
        %1394 = vmatprep.mubr.f32.mxu0 0.0
        %1395 = vmatmul.mubr.f32.gmra.mrb[0].mxu0 %v1180
        %v1396 = vpop.f32.mrb[0].mxu0
        %v1397 = vadd.f32 0.0, %v1396
        %v1398 = vpop.f32.mrb[0].mxu0
        %1399 = vmatprep.mubr.f32.mxu0 0.0
        %1400 = vmatmul.mubr.f32.gmra.mrb[0].mxu0 %v1183
        %v1401 = vpop.f32.mrb[0].mxu0
        %v1402 = vadd.f32 0.0, %v1401
        %v1403 = vpop.f32.mrb[0].mxu0
        %1404 = vmatprep.mubr.f32.mxu0 0.0
        %1405 = vmatmul.mubr.f32.gmra.mrb[0].mxu0 %v1186
        %v1406 = vpop.f32.mrb[0].mxu0
        %v1407 = vadd.f32 0.0, %v1406
        %v1408 = vpop.f32.mrb[0].mxu0
        %1409 = vmatprep.mubr.f32.mxu0 0.0
        %1410 = vmatmul.mubr.f32.gmra.mrb[0].mxu0 %v1189
        %v1411 = vpop.f32.mrb[0].mxu0
        %v1412 = vadd.f32 0.0, %v1411
        %v1413 = vpop.f32.mrb[0].mxu0
        %1414 = vmatprep.mubr.f32.mxu0 0.0
        %1415 = vmatmul.mubr.f32.gmra.mrb[0].mxu0 %v1192
        %v1416 = vpop.f32.mrb[0].mxu0
        %v1417 = vadd.f32 0.0, %v1416
        %v1418 = vpop.f32.mrb[0].mxu0
        %1419 = vmatprep.mubr.f32.mxu0 0.0
        %1420 = vmatmul.mubr.f32.gmra.mrb[0].mxu0 %v1195
        %v1421 = vpop.f32.mrb[0].mxu0
        %v1422 = vadd.f32 0.0, %v1421
        %v1423 = vpop.f32.mrb[0].mxu0
        %1424 = vdwg.mxu0
        %v1425 = vadd.f32 %v909, %v1267
        %v1426 = vadd.f32 %v914, %v1272
        %v1427 = vadd.f32 %v919, %v1277
        %v1428 = vadd.f32 %v924, %v1282
        %v1429 = vadd.f32 %v929, %v1287
        %v1430 = vadd.f32 %v934, %v1292
        %v1431 = vadd.f32 %v939, %v1297
        %v1432 = vadd.f32 %v944, %v1302
        %v1433 = vadd.f32 %v949, %v1307
        %v1434 = vadd.f32 %v954, %v1312
        %v1435 = vadd.f32 %v959, %v1317
        %v1436 = vadd.f32 %v964, %v1322
        %v1437 = vadd.f32 %v969, %v1327
        %v1438 = vadd.f32 %v974, %v1332
        %v1439 = vadd.f32 %v979, %v1337
        %v1440 = vadd.f32 %v984, %v1342
        %v1441 = vadd.f32 %v989, %v1347
        %v1442 = vadd.f32 %v994, %v1352
        %v1443 = vadd.f32 %v999, %v1357
        %v1444 = vadd.f32 %v1004, %v1362
        %v1445 = vadd.f32 %v1009, %v1367
        %v1446 = vadd.f32 %v1014, %v1372
        %v1447 = vadd.f32 %v1019, %v1377
        %v1448 = vadd.f32 %v1024, %v1382
        %v1449 = vadd.f32 %v1029, %v1387
        %v1450 = vadd.f32 %v1034, %v1392
        %v1451 = vadd.f32 %v1039, %v1397
        %v1452 = vadd.f32 %v1044, %v1402
        %v1453 = vadd.f32 %v1049, %v1407
        %v1454 = vadd.f32 %v1054, %v1412
        %v1455 = vadd.f32 %v1059, %v1417
        %v1456 = vadd.f32 %v1064, %v1422
        %v1457 = vld [vmem:[%s318] sm:$0xff]
        %v1458 = vld [vmem:[%s318 + $0x8] sm:$0xff]
        %v1459 = vld [vmem:[%s318 + $0x18] sm:$0xff]
        %v1460 = vld [vmem:[%s318 + $0x20] sm:$0xff]
        %v1461 = vld [vmem:[%s318 + $0x30] sm:$0xff]
        %v1462 = vld [vmem:[%s318 + $0x38] sm:$0xff]
        %v1463 = vld [vmem:[%s318 + $0x48] sm:$0xff]
        %v1464 = vld [vmem:[%s318 + $0x50] sm:$0xff]
        %v1465 = vld [vmem:[%s318 + $0x60] sm:$0xff]
        %v1466 = vld [vmem:[%s318 + $0x68] sm:$0xff]
        %v1467 = vld [vmem:[%s318 + $0x78] sm:$0xff]
        %v1468 = vld [vmem:[%s318 + $0x80] sm:$0xff]
        %v1469 = vld [vmem:[%s318 + $0x90] sm:$0xff]
        %v1470 = vld [vmem:[%s318 + $0x98] sm:$0xff]
        %v1471 = vld [vmem:[%s318 + $0xa8] sm:$0xff]
        %v1472 = vld [vmem:[%s318 + $0xb0] sm:$0xff]
        %v1473 = vld [vmem:[%s318 + $0xc0] sm:$0xff]
        %v1474 = vld [vmem:[%s318 + $0xc8] sm:$0xff]
        %v1475 = vld [vmem:[%s318 + $0xd8] sm:$0xff]
        %v1476 = vld [vmem:[%s318 + $0xe0] sm:$0xff]
        %v1477 = vld [vmem:[%s318 + $0xf0] sm:$0xff]
        %v1478 = vld [vmem:[%s318 + $0xf8] sm:$0xff]
        %v1479 = vld [vmem:[%s318 + $0x108] sm:$0xff]
        %v1480 = vld [vmem:[%s318 + $0x110] sm:$0xff]
        %v1481 = vld [vmem:[%s318 + $0x120] sm:$0xff]
        %v1482 = vld [vmem:[%s318 + $0x128] sm:$0xff]
        %v1483 = vld [vmem:[%s318 + $0x138] sm:$0xff]
        %v1484 = vld [vmem:[%s318 + $0x140] sm:$0xff]
        %v1485 = vld [vmem:[%s318 + $0x150] sm:$0xff]
        %v1486 = vld [vmem:[%s318 + $0x158] sm:$0xff]
        %v1487 = vld [vmem:[%s318 + $0x168] sm:$0xff]
        %v1488 = vld [vmem:[%s318 + $0x170] sm:$0xff]
        %s1489 = scalar_lea.vmem [#allocation3], 12
        %v1490 = vld [vmem:[%s1489] sm:$0xf]
        %v1492 = vsel %vm230, %v1457, 0
        %v1495 = vsel %vm230, %v1458, 0
        %v1498 = vsel %vm230, %v1459, 0
        %v1501 = vsel %vm230, %v1460, 0
        %v1504 = vsel %vm230, %v1461, 0
        %v1507 = vsel %vm230, %v1462, 0
        %v1510 = vsel %vm230, %v1463, 0
        %v1513 = vsel %vm230, %v1464, 0
        %v1516 = vsel %vm230, %v1465, 0
        %v1519 = vsel %vm230, %v1466, 0
        %v1522 = vsel %vm230, %v1467, 0
        %v1525 = vsel %vm230, %v1468, 0
        %v1528 = vsel %vm230, %v1469, 0
        %v1531 = vsel %vm230, %v1470, 0
        %v1534 = vsel %vm230, %v1471, 0
        %v1537 = vsel %vm230, %v1472, 0
        %v1540 = vsel %vm230, %v1473, 0
        %v1543 = vsel %vm230, %v1474, 0
        %v1546 = vsel %vm230, %v1475, 0
        %v1549 = vsel %vm230, %v1476, 0
        %v1552 = vsel %vm230, %v1477, 0
        %v1555 = vsel %vm230, %v1478, 0
        %v1558 = vsel %vm230, %v1479, 0
        %v1561 = vsel %vm230, %v1480, 0
        %v1564 = vsel %vm230, %v1481, 0
        %v1567 = vsel %vm230, %v1482, 0
        %v1570 = vsel %vm230, %v1483, 0
        %v1573 = vsel %vm230, %v1484, 0
        %v1576 = vsel %vm230, %v1485, 0
        %v1579 = vsel %vm230, %v1486, 0
        %v1582 = vsel %vm230, %v1487, 0
        %v1585 = vsel %vm230, %v1488, 0
        %v1588 = vsel %vm514, %v1490, 0
        %1590 = vmatprep.subr.mxu0 0.0
        %1591 = vmatpush1.msra.mxu0 %v1588
        %1592 = vmatprep.subr.mxu0 0.0
        %1593 = vmatpush1.msra.mxu0 0.0
        %1594 = vmatprep.subr.mxu0 0.0
        %1595 = vmatpush1.msra.mxu0 0.0
        %1596 = vmatprep.subr.mxu0 0.0
        %1597 = vmatpush1.msra.mxu0 0.0
        %1598 = vmatprep.subr.mxu0 0.0
        %1599 = vmatpush1.msra.mxu0 0.0
        %1600 = vmatprep.subr.mxu0 0.0
        %1601 = vmatpush1.msra.mxu0 0.0
        %1602 = vmatprep.subr.mxu0 0.0
        %1603 = vmatpush1.msra.mxu0 0.0
        %1604 = vmatprep.subr.mxu0 0.0
        %1605 = vmatpush1.msra.mxu0 0.0
        %1606 = vmatprep.subr.mxu0 0.0
        %1607 = vmatpush1.msra.mxu0 0.0
        %1608 = vmatprep.subr.mxu0 0.0
        %1609 = vmatpush1.msra.mxu0 0.0
        %1610 = vmatprep.subr.mxu0 0.0
        %1611 = vmatpush1.msra.mxu0 0.0
        %1612 = vmatprep.subr.mxu0 0.0
        %1613 = vmatpush1.msra.mxu0 0.0
        %1614 = vmatprep.subr.mxu0 0.0
        %1615 = vmatpush1.msra.mxu0 0.0
        %1616 = vmatprep.subr.mxu0 0.0
        %1617 = vmatpush1.msra.mxu0 0.0
        %1618 = vmatprep.subr.mxu0 0.0
        %1619 = vmatpush1.msra.mxu0 0.0
        %1620 = vmatprep.subr.mxu0 0.0
        %1621 = vmatpush1.msra.mxu0 0.0
        %1622 = vmatprep.subr.mxu0 0.0
        %1623 = vmatpush1.msra.mxu0 0.0
        %1624 = vmatprep.subr.mxu0 0.0
        %1625 = vmatpush1.msra.mxu0 0.0
        %1626 = vmatprep.subr.mxu0 0.0
        %1627 = vmatpush1.msra.mxu0 0.0
        %1628 = vmatprep.subr.mxu0 0.0
        %1629 = vmatpush1.msra.mxu0 0.0
        %1630 = vmatprep.subr.mxu0 0.0
        %1631 = vmatpush1.msra.mxu0 0.0
        %1632 = vmatprep.subr.mxu0 0.0
        %1633 = vmatpush1.msra.mxu0 0.0
        %1634 = vmatprep.subr.mxu0 0.0
        %1635 = vmatpush1.msra.mxu0 0.0
        %1636 = vmatprep.subr.mxu0 0.0
        %1637 = vmatpush1.msra.mxu0 0.0
        %1638 = vmatprep.subr.mxu0 0.0
        %1639 = vmatpush1.msra.mxu0 0.0
        %1640 = vmatprep.subr.mxu0 0.0
        %1641 = vmatpush1.msra.mxu0 0.0
        %1642 = vmatprep.subr.mxu0 0.0
        %1643 = vmatpush1.msra.mxu0 0.0
        %1644 = vmatprep.subr.mxu0 0.0
        %1645 = vmatpush1.msra.mxu0 0.0
        %1646 = vmatprep.subr.mxu0 0.0
        %1647 = vmatpush1.msra.mxu0 0.0
        %1648 = vmatprep.subr.mxu0 0.0
        %1649 = vmatpush1.msra.mxu0 0.0
        %1650 = vmatprep.subr.mxu0 0.0
        %1651 = vmatpush1.msra.mxu0 0.0
        %1652 = vmatprep.subr.mxu0 0.0
        %1653 = vmatpush1.msra.mxu0 0.0
        %1654 = vmatprep.mubr.f32.mxu0 0.0
        %1655 = vmatmul.mubr.f32.gmra.mrb[0].mxu0 %v1492
        %v1656 = vpop.f32.mrb[0].mxu0
        %v1657 = vadd.f32 0.0, %v1656
        %v1658 = vpop.f32.mrb[0].mxu0
        %1659 = vmatprep.mubr.f32.mxu0 0.0
        %1660 = vmatmul.mubr.f32.gmra.mrb[0].mxu0 %v1495
        %v1661 = vpop.f32.mrb[0].mxu0
        %v1662 = vadd.f32 0.0, %v1661
        %v1663 = vpop.f32.mrb[0].mxu0
        %1664 = vmatprep.mubr.f32.mxu0 0.0
        %1665 = vmatmul.mubr.f32.gmra.mrb[0].mxu0 %v1498
        %v1666 = vpop.f32.mrb[0].mxu0
        %v1667 = vadd.f32 0.0, %v1666
        %v1668 = vpop.f32.mrb[0].mxu0
        %1669 = vmatprep.mubr.f32.mxu0 0.0
        %1670 = vmatmul.mubr.f32.gmra.mrb[0].mxu0 %v1501
        %v1671 = vpop.f32.mrb[0].mxu0
        %v1672 = vadd.f32 0.0, %v1671
        %v1673 = vpop.f32.mrb[0].mxu0
        %1674 = vmatprep.mubr.f32.mxu0 0.0
        %1675 = vmatmul.mubr.f32.gmra.mrb[0].mxu0 %v1504
        %v1676 = vpop.f32.mrb[0].mxu0
        %v1677 = vadd.f32 0.0, %v1676
        %v1678 = vpop.f32.mrb[0].mxu0
        %1679 = vmatprep.mubr.f32.mxu0 0.0
        %1680 = vmatmul.mubr.f32.gmra.mrb[0].mxu0 %v1507
        %v1681 = vpop.f32.mrb[0].mxu0
        %v1682 = vadd.f32 0.0, %v1681
        %v1683 = vpop.f32.mrb[0].mxu0
        %1684 = vmatprep.mubr.f32.mxu0 0.0
        %1685 = vmatmul.mubr.f32.gmra.mrb[0].mxu0 %v1510
        %v1686 = vpop.f32.mrb[0].mxu0
        %v1687 = vadd.f32 0.0, %v1686
        %v1688 = vpop.f32.mrb[0].mxu0
        %1689 = vmatprep.mubr.f32.mxu0 0.0
        %1690 = vmatmul.mubr.f32.gmra.mrb[0].mxu0 %v1513
        %v1691 = vpop.f32.mrb[0].mxu0
        %v1692 = vadd.f32 0.0, %v1691
        %v1693 = vpop.f32.mrb[0].mxu0
        %1694 = vmatprep.mubr.f32.mxu0 0.0
        %1695 = vmatmul.mubr.f32.gmra.mrb[0].mxu0 %v1516
        %v1696 = vpop.f32.mrb[0].mxu0
        %v1697 = vadd.f32 0.0, %v1696
        %v1698 = vpop.f32.mrb[0].mxu0
        %1699 = vmatprep.mubr.f32.mxu0 0.0
        %1700 = vmatmul.mubr.f32.gmra.mrb[0].mxu0 %v1519
        %v1701 = vpop.f32.mrb[0].mxu0
        %v1702 = vadd.f32 0.0, %v1701
        %v1703 = vpop.f32.mrb[0].mxu0
        %1704 = vmatprep.mubr.f32.mxu0 0.0
        %1705 = vmatmul.mubr.f32.gmra.mrb[0].mxu0 %v1522
        %v1706 = vpop.f32.mrb[0].mxu0
        %v1707 = vadd.f32 0.0, %v1706
        %v1708 = vpop.f32.mrb[0].mxu0
        %1709 = vmatprep.mubr.f32.mxu0 0.0
        %1710 = vmatmul.mubr.f32.gmra.mrb[0].mxu0 %v1525
        %v1711 = vpop.f32.mrb[0].mxu0
        %v1712 = vadd.f32 0.0, %v1711
        %v1713 = vpop.f32.mrb[0].mxu0
        %1714 = vmatprep.mubr.f32.mxu0 0.0
        %1715 = vmatmul.mubr.f32.gmra.mrb[0].mxu0 %v1528
        %v1716 = vpop.f32.mrb[0].mxu0
        %v1717 = vadd.f32 0.0, %v1716
        %v1718 = vpop.f32.mrb[0].mxu0
        %1719 = vmatprep.mubr.f32.mxu0 0.0
        %1720 = vmatmul.mubr.f32.gmra.mrb[0].mxu0 %v1531
        %v1721 = vpop.f32.mrb[0].mxu0
        %v1722 = vadd.f32 0.0, %v1721
        %v1723 = vpop.f32.mrb[0].mxu0
        %1724 = vmatprep.mubr.f32.mxu0 0.0
        %1725 = vmatmul.mubr.f32.gmra.mrb[0].mxu0 %v1534
        %v1726 = vpop.f32.mrb[0].mxu0
        %v1727 = vadd.f32 0.0, %v1726
        %v1728 = vpop.f32.mrb[0].mxu0
        %1729 = vmatprep.mubr.f32.mxu0 0.0
        %1730 = vmatmul.mubr.f32.gmra.mrb[0].mxu0 %v1537
        %v1731 = vpop.f32.mrb[0].mxu0
        %v1732 = vadd.f32 0.0, %v1731
        %v1733 = vpop.f32.mrb[0].mxu0
        %1734 = vmatprep.mubr.f32.mxu0 0.0
        %1735 = vmatmul.mubr.f32.gmra.mrb[0].mxu0 %v1540
        %v1736 = vpop.f32.mrb[0].mxu0
        %v1737 = vadd.f32 0.0, %v1736
        %v1738 = vpop.f32.mrb[0].mxu0
        %1739 = vmatprep.mubr.f32.mxu0 0.0
        %1740 = vmatmul.mubr.f32.gmra.mrb[0].mxu0 %v1543
        %v1741 = vpop.f32.mrb[0].mxu0
        %v1742 = vadd.f32 0.0, %v1741
        %v1743 = vpop.f32.mrb[0].mxu0
        %1744 = vmatprep.mubr.f32.mxu0 0.0
        %1745 = vmatmul.mubr.f32.gmra.mrb[0].mxu0 %v1546
        %v1746 = vpop.f32.mrb[0].mxu0
        %v1747 = vadd.f32 0.0, %v1746
        %v1748 = vpop.f32.mrb[0].mxu0
        %1749 = vmatprep.mubr.f32.mxu0 0.0
        %1750 = vmatmul.mubr.f32.gmra.mrb[0].mxu0 %v1549
        %v1751 = vpop.f32.mrb[0].mxu0
        %v1752 = vadd.f32 0.0, %v1751
        %v1753 = vpop.f32.mrb[0].mxu0
        %1754 = vmatprep.mubr.f32.mxu0 0.0
        %1755 = vmatmul.mubr.f32.gmra.mrb[0].mxu0 %v1552
        %v1756 = vpop.f32.mrb[0].mxu0
        %v1757 = vadd.f32 0.0, %v1756
        %v1758 = vpop.f32.mrb[0].mxu0
        %1759 = vmatprep.mubr.f32.mxu0 0.0
        %1760 = vmatmul.mubr.f32.gmra.mrb[0].mxu0 %v1555
        %v1761 = vpop.f32.mrb[0].mxu0
        %v1762 = vadd.f32 0.0, %v1761
        %v1763 = vpop.f32.mrb[0].mxu0
        %1764 = vmatprep.mubr.f32.mxu0 0.0
        %1765 = vmatmul.mubr.f32.gmra.mrb[0].mxu0 %v1558
        %v1766 = vpop.f32.mrb[0].mxu0
        %v1767 = vadd.f32 0.0, %v1766
        %v1768 = vpop.f32.mrb[0].mxu0
        %1769 = vmatprep.mubr.f32.mxu0 0.0
        %1770 = vmatmul.mubr.f32.gmra.mrb[0].mxu0 %v1561
        %v1771 = vpop.f32.mrb[0].mxu0
        %v1772 = vadd.f32 0.0, %v1771
        %v1773 = vpop.f32.mrb[0].mxu0
        %1774 = vmatprep.mubr.f32.mxu0 0.0
        %1775 = vmatmul.mubr.f32.gmra.mrb[0].mxu0 %v1564
        %v1776 = vpop.f32.mrb[0].mxu0
        %v1777 = vadd.f32 0.0, %v1776
        %v1778 = vpop.f32.mrb[0].mxu0
        %1779 = vmatprep.mubr.f32.mxu0 0.0
        %1780 = vmatmul.mubr.f32.gmra.mrb[0].mxu0 %v1567
        %v1781 = vpop.f32.mrb[0].mxu0
        %v1782 = vadd.f32 0.0, %v1781
        %v1783 = vpop.f32.mrb[0].mxu0
        %1784 = vmatprep.mubr.f32.mxu0 0.0
        %1785 = vmatmul.mubr.f32.gmra.mrb[0].mxu0 %v1570
        %v1786 = vpop.f32.mrb[0].mxu0
        %v1787 = vadd.f32 0.0, %v1786
        %v1788 = vpop.f32.mrb[0].mxu0
        %1789 = vmatprep.mubr.f32.mxu0 0.0
        %1790 = vmatmul.mubr.f32.gmra.mrb[0].mxu0 %v1573
        %v1791 = vpop.f32.mrb[0].mxu0
        %v1792 = vadd.f32 0.0, %v1791
        %v1793 = vpop.f32.mrb[0].mxu0
        %1794 = vmatprep.mubr.f32.mxu0 0.0
        %1795 = vmatmul.mubr.f32.gmra.mrb[0].mxu0 %v1576
        %v1796 = vpop.f32.mrb[0].mxu0
        %v1797 = vadd.f32 0.0, %v1796
        %v1798 = vpop.f32.mrb[0].mxu0
        %1799 = vmatprep.mubr.f32.mxu0 0.0
        %1800 = vmatmul.mubr.f32.gmra.mrb[0].mxu0 %v1579
        %v1801 = vpop.f32.mrb[0].mxu0
        %v1802 = vadd.f32 0.0, %v1801
        %v1803 = vpop.f32.mrb[0].mxu0
        %1804 = vmatprep.mubr.f32.mxu0 0.0
        %1805 = vmatmul.mubr.f32.gmra.mrb[0].mxu0 %v1582
        %v1806 = vpop.f32.mrb[0].mxu0
        %v1807 = vadd.f32 0.0, %v1806
        %v1808 = vpop.f32.mrb[0].mxu0
        %1809 = vmatprep.mubr.f32.mxu0 0.0
        %1810 = vmatmul.mubr.f32.gmra.mrb[0].mxu0 %v1585
        %v1811 = vpop.f32.mrb[0].mxu0
        %v1812 = vadd.f32 0.0, %v1811
        %v1813 = vpop.f32.mrb[0].mxu0
        %1814 = vdwg.mxu0
        %v1815 = vadd.f32 %v1425, %v1657
        %v1816 = vadd.f32 %v1426, %v1662
        %v1817 = vadd.f32 %v1427, %v1667
        %v1818 = vadd.f32 %v1428, %v1672
        %v1819 = vadd.f32 %v1429, %v1677
        %v1820 = vadd.f32 %v1430, %v1682
        %v1821 = vadd.f32 %v1431, %v1687
        %v1822 = vadd.f32 %v1432, %v1692
        %v1823 = vadd.f32 %v1433, %v1697
        %v1824 = vadd.f32 %v1434, %v1702
        %v1825 = vadd.f32 %v1435, %v1707
        %v1826 = vadd.f32 %v1436, %v1712
        %v1827 = vadd.f32 %v1437, %v1717
        %v1828 = vadd.f32 %v1438, %v1722
        %v1829 = vadd.f32 %v1439, %v1727
        %v1830 = vadd.f32 %v1440, %v1732
        %v1831 = vadd.f32 %v1441, %v1737
        %v1832 = vadd.f32 %v1442, %v1742
        %v1833 = vadd.f32 %v1443, %v1747
        %v1834 = vadd.f32 %v1444, %v1752
        %v1835 = vadd.f32 %v1445, %v1757
        %v1836 = vadd.f32 %v1446, %v1762
        %v1837 = vadd.f32 %v1447, %v1767
        %v1838 = vadd.f32 %v1448, %v1772
        %v1839 = vadd.f32 %v1449, %v1777
        %v1840 = vadd.f32 %v1450, %v1782
        %v1841 = vadd.f32 %v1451, %v1787
        %v1842 = vadd.f32 %v1452, %v1792
        %v1843 = vadd.f32 %v1453, %v1797
        %v1844 = vadd.f32 %v1454, %v1802
        %v1845 = vadd.f32 %v1455, %v1807
        %v1846 = vadd.f32 %v1456, %v1812
        %v1847 = vld [vmem:[%s318 + $0x1] sm:$0xff]
        %v1848 = vld [vmem:[%s318 + $0x9] sm:$0xff]
        %v1849 = vld [vmem:[%s318 + $0x19] sm:$0xff]
        %v1850 = vld [vmem:[%s318 + $0x21] sm:$0xff]
        %v1851 = vld [vmem:[%s318 + $0x31] sm:$0xff]
        %v1852 = vld [vmem:[%s318 + $0x39] sm:$0xff]
        %v1853 = vld [vmem:[%s318 + $0x49] sm:$0xff]
        %v1854 = vld [vmem:[%s318 + $0x51] sm:$0xff]
        %v1855 = vld [vmem:[%s318 + $0x61] sm:$0xff]
        %v1856 = vld [vmem:[%s318 + $0x69] sm:$0xff]
        %v1857 = vld [vmem:[%s318 + $0x79] sm:$0xff]
        %v1858 = vld [vmem:[%s318 + $0x81] sm:$0xff]
        %v1859 = vld [vmem:[%s318 + $0x91] sm:$0xff]
        %v1860 = vld [vmem:[%s318 + $0x99] sm:$0xff]
        %v1861 = vld [vmem:[%s318 + $0xa9] sm:$0xff]
        %v1862 = vld [vmem:[%s318 + $0xb1] sm:$0xff]
        %v1863 = vld [vmem:[%s318 + $0xc1] sm:$0xff]
        %v1864 = vld [vmem:[%s318 + $0xc9] sm:$0xff]
        %v1865 = vld [vmem:[%s318 + $0xd9] sm:$0xff]
        %v1866 = vld [vmem:[%s318 + $0xe1] sm:$0xff]
        %v1867 = vld [vmem:[%s318 + $0xf1] sm:$0xff]
        %v1868 = vld [vmem:[%s318 + $0xf9] sm:$0xff]
        %v1869 = vld [vmem:[%s318 + $0x109] sm:$0xff]
        %v1870 = vld [vmem:[%s318 + $0x111] sm:$0xff]
        %v1871 = vld [vmem:[%s318 + $0x121] sm:$0xff]
        %v1872 = vld [vmem:[%s318 + $0x129] sm:$0xff]
        %v1873 = vld [vmem:[%s318 + $0x139] sm:$0xff]
        %v1874 = vld [vmem:[%s318 + $0x141] sm:$0xff]
        %v1875 = vld [vmem:[%s318 + $0x151] sm:$0xff]
        %v1876 = vld [vmem:[%s318 + $0x159] sm:$0xff]
        %v1877 = vld [vmem:[%s318 + $0x169] sm:$0xff]
        %v1878 = vld [vmem:[%s318 + $0x171] sm:$0xff]
        %s1879 = scalar_lea.vmem [#allocation3], 16
        %v1880 = vld [vmem:[%s1879] sm:$0xf]
        %v1882 = vsel %vm230, %v1847, 0
        %v1885 = vsel %vm230, %v1848, 0
        %v1888 = vsel %vm230, %v1849, 0
        %v1891 = vsel %vm230, %v1850, 0
        %v1894 = vsel %vm230, %v1851, 0
        %v1897 = vsel %vm230, %v1852, 0
        %v1900 = vsel %vm230, %v1853, 0
        %v1903 = vsel %vm230, %v1854, 0
        %v1906 = vsel %vm230, %v1855, 0
        %v1909 = vsel %vm230, %v1856, 0
        %v1912 = vsel %vm230, %v1857, 0
        %v1915 = vsel %vm230, %v1858, 0
        %v1918 = vsel %vm230, %v1859, 0
        %v1921 = vsel %vm230, %v1860, 0
        %v1924 = vsel %vm230, %v1861, 0
        %v1927 = vsel %vm230, %v1862, 0
        %v1930 = vsel %vm230, %v1863, 0
        %v1933 = vsel %vm230, %v1864, 0
        %v1936 = vsel %vm230, %v1865, 0
        %v1939 = vsel %vm230, %v1866, 0
        %v1942 = vsel %vm230, %v1867, 0
        %v1945 = vsel %vm230, %v1868, 0
        %v1948 = vsel %vm230, %v1869, 0
        %v1951 = vsel %vm230, %v1870, 0
        %v1954 = vsel %vm230, %v1871, 0
        %v1957 = vsel %vm230, %v1872, 0
        %v1960 = vsel %vm230, %v1873, 0
        %v1963 = vsel %vm230, %v1874, 0
        %v1966 = vsel %vm230, %v1875, 0
        %v1969 = vsel %vm230, %v1876, 0
        %v1972 = vsel %vm230, %v1877, 0
        %v1975 = vsel %vm230, %v1878, 0
        %v1978 = vsel %vm514, %v1880, 0
        %1980 = vmatprep.subr.mxu0 0.0
        %1981 = vmatpush1.msra.mxu0 %v1978
        %1982 = vmatprep.subr.mxu0 0.0
        %1983 = vmatpush1.msra.mxu0 0.0
        %1984 = vmatprep.subr.mxu0 0.0
        %1985 = vmatpush1.msra.mxu0 0.0
        %1986 = vmatprep.subr.mxu0 0.0
        %1987 = vmatpush1.msra.mxu0 0.0
        %1988 = vmatprep.subr.mxu0 0.0
        %1989 = vmatpush1.msra.mxu0 0.0
        %1990 = vmatprep.subr.mxu0 0.0
        %1991 = vmatpush1.msra.mxu0 0.0
        %1992 = vmatprep.subr.mxu0 0.0
        %1993 = vmatpush1.msra.mxu0 0.0
        %1994 = vmatprep.subr.mxu0 0.0
        %1995 = vmatpush1.msra.mxu0 0.0
        %1996 = vmatprep.subr.mxu0 0.0
        %1997 = vmatpush1.msra.mxu0 0.0
        %1998 = vmatprep.subr.mxu0 0.0
        %1999 = vmatpush1.msra.mxu0 0.0
        %2000 = vmatprep.subr.mxu0 0.0
        %2001 = vmatpush1.msra.mxu0 0.0
        %2002 = vmatprep.subr.mxu0 0.0
        %2003 = vmatpush1.msra.mxu0 0.0
        %2004 = vmatprep.subr.mxu0 0.0
        %2005 = vmatpush1.msra.mxu0 0.0
        %2006 = vmatprep.subr.mxu0 0.0
        %2007 = vmatpush1.msra.mxu0 0.0
        %2008 = vmatprep.subr.mxu0 0.0
        %2009 = vmatpush1.msra.mxu0 0.0
        %2010 = vmatprep.subr.mxu0 0.0
        %2011 = vmatpush1.msra.mxu0 0.0
        %2012 = vmatprep.subr.mxu0 0.0
        %2013 = vmatpush1.msra.mxu0 0.0
        %2014 = vmatprep.subr.mxu0 0.0
        %2015 = vmatpush1.msra.mxu0 0.0
        %2016 = vmatprep.subr.mxu0 0.0
        %2017 = vmatpush1.msra.mxu0 0.0
        %2018 = vmatprep.subr.mxu0 0.0
        %2019 = vmatpush1.msra.mxu0 0.0
        %2020 = vmatprep.subr.mxu0 0.0
        %2021 = vmatpush1.msra.mxu0 0.0
        %2022 = vmatprep.subr.mxu0 0.0
        %2023 = vmatpush1.msra.mxu0 0.0
        %2024 = vmatprep.subr.mxu0 0.0
        %2025 = vmatpush1.msra.mxu0 0.0
        %2026 = vmatprep.subr.mxu0 0.0
        %2027 = vmatpush1.msra.mxu0 0.0
        %2028 = vmatprep.subr.mxu0 0.0
        %2029 = vmatpush1.msra.mxu0 0.0
        %2030 = vmatprep.subr.mxu0 0.0
        %2031 = vmatpush1.msra.mxu0 0.0
        %2032 = vmatprep.subr.mxu0 0.0
        %2033 = vmatpush1.msra.mxu0 0.0
        %2034 = vmatprep.subr.mxu0 0.0
        %2035 = vmatpush1.msra.mxu0 0.0
        %2036 = vmatprep.subr.mxu0 0.0
        %2037 = vmatpush1.msra.mxu0 0.0
        %2038 = vmatprep.subr.mxu0 0.0
        %2039 = vmatpush1.msra.mxu0 0.0
        %2040 = vmatprep.subr.mxu0 0.0
        %2041 = vmatpush1.msra.mxu0 0.0
        %2042 = vmatprep.subr.mxu0 0.0
        %2043 = vmatpush1.msra.mxu0 0.0
        %2044 = vmatprep.mubr.f32.mxu0 0.0
        %2045 = vmatmul.mubr.f32.gmra.mrb[0].mxu0 %v1882
        %v2046 = vpop.f32.mrb[0].mxu0
        %v2047 = vadd.f32 0.0, %v2046
        %v2048 = vpop.f32.mrb[0].mxu0
        %2049 = vmatprep.mubr.f32.mxu0 0.0
        %2050 = vmatmul.mubr.f32.gmra.mrb[0].mxu0 %v1885
        %v2051 = vpop.f32.mrb[0].mxu0
        %v2052 = vadd.f32 0.0, %v2051
        %v2053 = vpop.f32.mrb[0].mxu0
        %2054 = vmatprep.mubr.f32.mxu0 0.0
        %2055 = vmatmul.mubr.f32.gmra.mrb[0].mxu0 %v1888
        %v2056 = vpop.f32.mrb[0].mxu0
        %v2057 = vadd.f32 0.0, %v2056
        %v2058 = vpop.f32.mrb[0].mxu0
        %2059 = vmatprep.mubr.f32.mxu0 0.0
        %2060 = vmatmul.mubr.f32.gmra.mrb[0].mxu0 %v1891
        %v2061 = vpop.f32.mrb[0].mxu0
        %v2062 = vadd.f32 0.0, %v2061
        %v2063 = vpop.f32.mrb[0].mxu0
        %2064 = vmatprep.mubr.f32.mxu0 0.0
        %2065 = vmatmul.mubr.f32.gmra.mrb[0].mxu0 %v1894
        %v2066 = vpop.f32.mrb[0].mxu0
        %v2067 = vadd.f32 0.0, %v2066
        %v2068 = vpop.f32.mrb[0].mxu0
        %2069 = vmatprep.mubr.f32.mxu0 0.0
        %2070 = vmatmul.mubr.f32.gmra.mrb[0].mxu0 %v1897
        %v2071 = vpop.f32.mrb[0].mxu0
        %v2072 = vadd.f32 0.0, %v2071
        %v2073 = vpop.f32.mrb[0].mxu0
        %2074 = vmatprep.mubr.f32.mxu0 0.0
        %2075 = vmatmul.mubr.f32.gmra.mrb[0].mxu0 %v1900
        %v2076 = vpop.f32.mrb[0].mxu0
        %v2077 = vadd.f32 0.0, %v2076
        %v2078 = vpop.f32.mrb[0].mxu0
        %2079 = vmatprep.mubr.f32.mxu0 0.0
        %2080 = vmatmul.mubr.f32.gmra.mrb[0].mxu0 %v1903
        %v2081 = vpop.f32.mrb[0].mxu0
        %v2082 = vadd.f32 0.0, %v2081
        %v2083 = vpop.f32.mrb[0].mxu0
        %2084 = vmatprep.mubr.f32.mxu0 0.0
        %2085 = vmatmul.mubr.f32.gmra.mrb[0].mxu0 %v1906
        %v2086 = vpop.f32.mrb[0].mxu0
        %v2087 = vadd.f32 0.0, %v2086
        %v2088 = vpop.f32.mrb[0].mxu0
        %2089 = vmatprep.mubr.f32.mxu0 0.0
        %2090 = vmatmul.mubr.f32.gmra.mrb[0].mxu0 %v1909
        %v2091 = vpop.f32.mrb[0].mxu0
        %v2092 = vadd.f32 0.0, %v2091
        %v2093 = vpop.f32.mrb[0].mxu0
        %2094 = vmatprep.mubr.f32.mxu0 0.0
        %2095 = vmatmul.mubr.f32.gmra.mrb[0].mxu0 %v1912
        %v2096 = vpop.f32.mrb[0].mxu0
        %v2097 = vadd.f32 0.0, %v2096
        %v2098 = vpop.f32.mrb[0].mxu0
        %2099 = vmatprep.mubr.f32.mxu0 0.0
        %2100 = vmatmul.mubr.f32.gmra.mrb[0].mxu0 %v1915
        %v2101 = vpop.f32.mrb[0].mxu0
        %v2102 = vadd.f32 0.0, %v2101
        %v2103 = vpop.f32.mrb[0].mxu0
        %2104 = vmatprep.mubr.f32.mxu0 0.0
        %2105 = vmatmul.mubr.f32.gmra.mrb[0].mxu0 %v1918
        %v2106 = vpop.f32.mrb[0].mxu0
        %v2107 = vadd.f32 0.0, %v2106
        %v2108 = vpop.f32.mrb[0].mxu0
        %2109 = vmatprep.mubr.f32.mxu0 0.0
        %2110 = vmatmul.mubr.f32.gmra.mrb[0].mxu0 %v1921
        %v2111 = vpop.f32.mrb[0].mxu0
        %v2112 = vadd.f32 0.0, %v2111
        %v2113 = vpop.f32.mrb[0].mxu0
        %2114 = vmatprep.mubr.f32.mxu0 0.0
        %2115 = vmatmul.mubr.f32.gmra.mrb[0].mxu0 %v1924
        %v2116 = vpop.f32.mrb[0].mxu0
        %v2117 = vadd.f32 0.0, %v2116
        %v2118 = vpop.f32.mrb[0].mxu0
        %2119 = vmatprep.mubr.f32.mxu0 0.0
        %2120 = vmatmul.mubr.f32.gmra.mrb[0].mxu0 %v1927
        %v2121 = vpop.f32.mrb[0].mxu0
        %v2122 = vadd.f32 0.0, %v2121
        %v2123 = vpop.f32.mrb[0].mxu0
        %2124 = vmatprep.mubr.f32.mxu0 0.0
        %2125 = vmatmul.mubr.f32.gmra.mrb[0].mxu0 %v1930
        %v2126 = vpop.f32.mrb[0].mxu0
        %v2127 = vadd.f32 0.0, %v2126
        %v2128 = vpop.f32.mrb[0].mxu0
        %2129 = vmatprep.mubr.f32.mxu0 0.0
        %2130 = vmatmul.mubr.f32.gmra.mrb[0].mxu0 %v1933
        %v2131 = vpop.f32.mrb[0].mxu0
        %v2132 = vadd.f32 0.0, %v2131
        %v2133 = vpop.f32.mrb[0].mxu0
        %2134 = vmatprep.mubr.f32.mxu0 0.0
        %2135 = vmatmul.mubr.f32.gmra.mrb[0].mxu0 %v1936
        %v2136 = vpop.f32.mrb[0].mxu0
        %v2137 = vadd.f32 0.0, %v2136
        %v2138 = vpop.f32.mrb[0].mxu0
        %2139 = vmatprep.mubr.f32.mxu0 0.0
        %2140 = vmatmul.mubr.f32.gmra.mrb[0].mxu0 %v1939
        %v2141 = vpop.f32.mrb[0].mxu0
        %v2142 = vadd.f32 0.0, %v2141
        %v2143 = vpop.f32.mrb[0].mxu0
        %2144 = vmatprep.mubr.f32.mxu0 0.0
        %2145 = vmatmul.mubr.f32.gmra.mrb[0].mxu0 %v1942
        %v2146 = vpop.f32.mrb[0].mxu0
        %v2147 = vadd.f32 0.0, %v2146
        %v2148 = vpop.f32.mrb[0].mxu0
        %2149 = vmatprep.mubr.f32.mxu0 0.0
        %2150 = vmatmul.mubr.f32.gmra.mrb[0].mxu0 %v1945
        %v2151 = vpop.f32.mrb[0].mxu0
        %v2152 = vadd.f32 0.0, %v2151
        %v2153 = vpop.f32.mrb[0].mxu0
        %2154 = vmatprep.mubr.f32.mxu0 0.0
        %2155 = vmatmul.mubr.f32.gmra.mrb[0].mxu0 %v1948
        %v2156 = vpop.f32.mrb[0].mxu0
        %v2157 = vadd.f32 0.0, %v2156
        %v2158 = vpop.f32.mrb[0].mxu0
        %2159 = vmatprep.mubr.f32.mxu0 0.0
        %2160 = vmatmul.mubr.f32.gmra.mrb[0].mxu0 %v1951
        %v2161 = vpop.f32.mrb[0].mxu0
        %v2162 = vadd.f32 0.0, %v2161
        %v2163 = vpop.f32.mrb[0].mxu0
        %2164 = vmatprep.mubr.f32.mxu0 0.0
        %2165 = vmatmul.mubr.f32.gmra.mrb[0].mxu0 %v1954
        %v2166 = vpop.f32.mrb[0].mxu0
        %v2167 = vadd.f32 0.0, %v2166
        %v2168 = vpop.f32.mrb[0].mxu0
        %2169 = vmatprep.mubr.f32.mxu0 0.0
        %2170 = vmatmul.mubr.f32.gmra.mrb[0].mxu0 %v1957
        %v2171 = vpop.f32.mrb[0].mxu0
        %v2172 = vadd.f32 0.0, %v2171
        %v2173 = vpop.f32.mrb[0].mxu0
        %2174 = vmatprep.mubr.f32.mxu0 0.0
        %2175 = vmatmul.mubr.f32.gmra.mrb[0].mxu0 %v1960
        %v2176 = vpop.f32.mrb[0].mxu0
        %v2177 = vadd.f32 0.0, %v2176
        %v2178 = vpop.f32.mrb[0].mxu0
        %2179 = vmatprep.mubr.f32.mxu0 0.0
        %2180 = vmatmul.mubr.f32.gmra.mrb[0].mxu0 %v1963
        %v2181 = vpop.f32.mrb[0].mxu0
        %v2182 = vadd.f32 0.0, %v2181
        %v2183 = vpop.f32.mrb[0].mxu0
        %2184 = vmatprep.mubr.f32.mxu0 0.0
        %2185 = vmatmul.mubr.f32.gmra.mrb[0].mxu0 %v1966
        %v2186 = vpop.f32.mrb[0].mxu0
        %v2187 = vadd.f32 0.0, %v2186
        %v2188 = vpop.f32.mrb[0].mxu0
        %2189 = vmatprep.mubr.f32.mxu0 0.0
        %2190 = vmatmul.mubr.f32.gmra.mrb[0].mxu0 %v1969
        %v2191 = vpop.f32.mrb[0].mxu0
        %v2192 = vadd.f32 0.0, %v2191
        %v2193 = vpop.f32.mrb[0].mxu0
        %2194 = vmatprep.mubr.f32.mxu0 0.0
        %2195 = vmatmul.mubr.f32.gmra.mrb[0].mxu0 %v1972
        %v2196 = vpop.f32.mrb[0].mxu0
        %v2197 = vadd.f32 0.0, %v2196
        %v2198 = vpop.f32.mrb[0].mxu0
        %2199 = vmatprep.mubr.f32.mxu0 0.0
        %2200 = vmatmul.mubr.f32.gmra.mrb[0].mxu0 %v1975
        %v2201 = vpop.f32.mrb[0].mxu0
        %v2202 = vadd.f32 0.0, %v2201
        %v2203 = vpop.f32.mrb[0].mxu0
        %2204 = vdwg.mxu0
        %v2205 = vadd.f32 %v1815, %v2047
        %v2206 = vadd.f32 %v1816, %v2052
        %v2207 = vadd.f32 %v1817, %v2057
        %v2208 = vadd.f32 %v1818, %v2062
        %v2209 = vadd.f32 %v1819, %v2067
        %v2210 = vadd.f32 %v1820, %v2072
        %v2211 = vadd.f32 %v1821, %v2077
        %v2212 = vadd.f32 %v1822, %v2082
        %v2213 = vadd.f32 %v1823, %v2087
        %v2214 = vadd.f32 %v1824, %v2092
        %v2215 = vadd.f32 %v1825, %v2097
        %v2216 = vadd.f32 %v1826, %v2102
        %v2217 = vadd.f32 %v1827, %v2107
        %v2218 = vadd.f32 %v1828, %v2112
        %v2219 = vadd.f32 %v1829, %v2117
        %v2220 = vadd.f32 %v1830, %v2122
        %v2221 = vadd.f32 %v1831, %v2127
        %v2222 = vadd.f32 %v1832, %v2132
        %v2223 = vadd.f32 %v1833, %v2137
        %v2224 = vadd.f32 %v1834, %v2142
        %v2225 = vadd.f32 %v1835, %v2147
        %v2226 = vadd.f32 %v1836, %v2152
        %v2227 = vadd.f32 %v1837, %v2157
        %v2228 = vadd.f32 %v1838, %v2162
        %v2229 = vadd.f32 %v1839, %v2167
        %v2230 = vadd.f32 %v1840, %v2172
        %v2231 = vadd.f32 %v1841, %v2177
        %v2232 = vadd.f32 %v1842, %v2182
        %v2233 = vadd.f32 %v1843, %v2187
        %v2234 = vadd.f32 %v1844, %v2192
        %v2235 = vadd.f32 %v1845, %v2197
        %v2236 = vadd.f32 %v1846, %v2202
        %v2237 = vld [vmem:[%s318 + $0x2] sm:$0xff]
        %v2238 = vld [vmem:[%s318 + $0xa] sm:$0xff]
        %v2239 = vld [vmem:[%s318 + $0x1a] sm:$0xff]
        %v2240 = vld [vmem:[%s318 + $0x22] sm:$0xff]
        %v2241 = vld [vmem:[%s318 + $0x32] sm:$0xff]
        %v2242 = vld [vmem:[%s318 + $0x3a] sm:$0xff]
        %v2243 = vld [vmem:[%s318 + $0x4a] sm:$0xff]
        %v2244 = vld [vmem:[%s318 + $0x52] sm:$0xff]
        %v2245 = vld [vmem:[%s318 + $0x62] sm:$0xff]
        %v2246 = vld [vmem:[%s318 + $0x6a] sm:$0xff]
        %v2247 = vld [vmem:[%s318 + $0x7a] sm:$0xff]
        %v2248 = vld [vmem:[%s318 + $0x82] sm:$0xff]
        %v2249 = vld [vmem:[%s318 + $0x92] sm:$0xff]
        %v2250 = vld [vmem:[%s318 + $0x9a] sm:$0xff]
        %v2251 = vld [vmem:[%s318 + $0xaa] sm:$0xff]
        %v2252 = vld [vmem:[%s318 + $0xb2] sm:$0xff]
        %v2253 = vld [vmem:[%s318 + $0xc2] sm:$0xff]
        %v2254 = vld [vmem:[%s318 + $0xca] sm:$0xff]
        %v2255 = vld [vmem:[%s318 + $0xda] sm:$0xff]
        %v2256 = vld [vmem:[%s318 + $0xe2] sm:$0xff]
        %v2257 = vld [vmem:[%s318 + $0xf2] sm:$0xff]
        %v2258 = vld [vmem:[%s318 + $0xfa] sm:$0xff]
        %v2259 = vld [vmem:[%s318 + $0x10a] sm:$0xff]
        %v2260 = vld [vmem:[%s318 + $0x112] sm:$0xff]
        %v2261 = vld [vmem:[%s318 + $0x122] sm:$0xff]
        %v2262 = vld [vmem:[%s318 + $0x12a] sm:$0xff]
        %v2263 = vld [vmem:[%s318 + $0x13a] sm:$0xff]
        %v2264 = vld [vmem:[%s318 + $0x142] sm:$0xff]
        %v2265 = vld [vmem:[%s318 + $0x152] sm:$0xff]
        %v2266 = vld [vmem:[%s318 + $0x15a] sm:$0xff]
        %v2267 = vld [vmem:[%s318 + $0x16a] sm:$0xff]
        %v2268 = vld [vmem:[%s318 + $0x172] sm:$0xff]
        %s2269 = scalar_lea.vmem [#allocation3], 20
        %v2270 = vld [vmem:[%s2269] sm:$0xf]
        %v2272 = vsel %vm230, %v2237, 0
        %v2275 = vsel %vm230, %v2238, 0
        %v2278 = vsel %vm230, %v2239, 0
        %v2281 = vsel %vm230, %v2240, 0
        %v2284 = vsel %vm230, %v2241, 0
        %v2287 = vsel %vm230, %v2242, 0
        %v2290 = vsel %vm230, %v2243, 0
        %v2293 = vsel %vm230, %v2244, 0
        %v2296 = vsel %vm230, %v2245, 0
        %v2299 = vsel %vm230, %v2246, 0
        %v2302 = vsel %vm230, %v2247, 0
        %v2305 = vsel %vm230, %v2248, 0
        %v2308 = vsel %vm230, %v2249, 0
        %v2311 = vsel %vm230, %v2250, 0
        %v2314 = vsel %vm230, %v2251, 0
        %v2317 = vsel %vm230, %v2252, 0
        %v2320 = vsel %vm230, %v2253, 0
        %v2323 = vsel %vm230, %v2254, 0
        %v2326 = vsel %vm230, %v2255, 0
        %v2329 = vsel %vm230, %v2256, 0
        %v2332 = vsel %vm230, %v2257, 0
        %v2335 = vsel %vm230, %v2258, 0
        %v2338 = vsel %vm230, %v2259, 0
        %v2341 = vsel %vm230, %v2260, 0
        %v2344 = vsel %vm230, %v2261, 0
        %v2347 = vsel %vm230, %v2262, 0
        %v2350 = vsel %vm230, %v2263, 0
        %v2353 = vsel %vm230, %v2264, 0
        %v2356 = vsel %vm230, %v2265, 0
        %v2359 = vsel %vm230, %v2266, 0
        %v2362 = vsel %vm230, %v2267, 0
        %v2365 = vsel %vm230, %v2268, 0
        %v2368 = vsel %vm514, %v2270, 0
        %2370 = vmatprep.subr.mxu0 0.0
        %2371 = vmatpush1.msra.mxu0 %v2368
        %2372 = vmatprep.subr.mxu0 0.0
        %2373 = vmatpush1.msra.mxu0 0.0
        %2374 = vmatprep.subr.mxu0 0.0
        %2375 = vmatpush1.msra.mxu0 0.0
        %2376 = vmatprep.subr.mxu0 0.0
        %2377 = vmatpush1.msra.mxu0 0.0
        %2378 = vmatprep.subr.mxu0 0.0
        %2379 = vmatpush1.msra.mxu0 0.0
        %2380 = vmatprep.subr.mxu0 0.0
        %2381 = vmatpush1.msra.mxu0 0.0
        %2382 = vmatprep.subr.mxu0 0.0
        %2383 = vmatpush1.msra.mxu0 0.0
        %2384 = vmatprep.subr.mxu0 0.0
        %2385 = vmatpush1.msra.mxu0 0.0
        %2386 = vmatprep.subr.mxu0 0.0
        %2387 = vmatpush1.msra.mxu0 0.0
        %2388 = vmatprep.subr.mxu0 0.0
        %2389 = vmatpush1.msra.mxu0 0.0
        %2390 = vmatprep.subr.mxu0 0.0
        %2391 = vmatpush1.msra.mxu0 0.0
        %2392 = vmatprep.subr.mxu0 0.0
        %2393 = vmatpush1.msra.mxu0 0.0
        %2394 = vmatprep.subr.mxu0 0.0
        %2395 = vmatpush1.msra.mxu0 0.0
        %2396 = vmatprep.subr.mxu0 0.0
        %2397 = vmatpush1.msra.mxu0 0.0
        %2398 = vmatprep.subr.mxu0 0.0
        %2399 = vmatpush1.msra.mxu0 0.0
        %2400 = vmatprep.subr.mxu0 0.0
        %2401 = vmatpush1.msra.mxu0 0.0
        %2402 = vmatprep.subr.mxu0 0.0
        %2403 = vmatpush1.msra.mxu0 0.0
        %2404 = vmatprep.subr.mxu0 0.0
        %2405 = vmatpush1.msra.mxu0 0.0
        %2406 = vmatprep.subr.mxu0 0.0
        %2407 = vmatpush1.msra.mxu0 0.0
        %2408 = vmatprep.subr.mxu0 0.0
        %2409 = vmatpush1.msra.mxu0 0.0
        %2410 = vmatprep.subr.mxu0 0.0
        %2411 = vmatpush1.msra.mxu0 0.0
        %2412 = vmatprep.subr.mxu0 0.0
        %2413 = vmatpush1.msra.mxu0 0.0
        %2414 = vmatprep.subr.mxu0 0.0
        %2415 = vmatpush1.msra.mxu0 0.0
        %2416 = vmatprep.subr.mxu0 0.0
        %2417 = vmatpush1.msra.mxu0 0.0
        %2418 = vmatprep.subr.mxu0 0.0
        %2419 = vmatpush1.msra.mxu0 0.0
        %2420 = vmatprep.subr.mxu0 0.0
        %2421 = vmatpush1.msra.mxu0 0.0
        %2422 = vmatprep.subr.mxu0 0.0
        %2423 = vmatpush1.msra.mxu0 0.0
        %2424 = vmatprep.subr.mxu0 0.0
        %2425 = vmatpush1.msra.mxu0 0.0
        %2426 = vmatprep.subr.mxu0 0.0
        %2427 = vmatpush1.msra.mxu0 0.0
        %2428 = vmatprep.subr.mxu0 0.0
        %2429 = vmatpush1.msra.mxu0 0.0
        %2430 = vmatprep.subr.mxu0 0.0
        %2431 = vmatpush1.msra.mxu0 0.0
        %2432 = vmatprep.subr.mxu0 0.0
        %2433 = vmatpush1.msra.mxu0 0.0
        %2434 = vmatprep.mubr.f32.mxu0 0.0
        %2435 = vmatmul.mubr.f32.gmra.mrb[0].mxu0 %v2272
        %v2436 = vpop.f32.mrb[0].mxu0
        %v2437 = vadd.f32 0.0, %v2436
        %v2438 = vpop.f32.mrb[0].mxu0
        %2439 = vmatprep.mubr.f32.mxu0 0.0
        %2440 = vmatmul.mubr.f32.gmra.mrb[0].mxu0 %v2275
        %v2441 = vpop.f32.mrb[0].mxu0
        %v2442 = vadd.f32 0.0, %v2441
        %v2443 = vpop.f32.mrb[0].mxu0
        %2444 = vmatprep.mubr.f32.mxu0 0.0
        %2445 = vmatmul.mubr.f32.gmra.mrb[0].mxu0 %v2278
        %v2446 = vpop.f32.mrb[0].mxu0
        %v2447 = vadd.f32 0.0, %v2446
        %v2448 = vpop.f32.mrb[0].mxu0
        %2449 = vmatprep.mubr.f32.mxu0 0.0
        %2450 = vmatmul.mubr.f32.gmra.mrb[0].mxu0 %v2281
        %v2451 = vpop.f32.mrb[0].mxu0
        %v2452 = vadd.f32 0.0, %v2451
        %v2453 = vpop.f32.mrb[0].mxu0
        %2454 = vmatprep.mubr.f32.mxu0 0.0
        %2455 = vmatmul.mubr.f32.gmra.mrb[0].mxu0 %v2284
        %v2456 = vpop.f32.mrb[0].mxu0
        %v2457 = vadd.f32 0.0, %v2456
        %v2458 = vpop.f32.mrb[0].mxu0
        %2459 = vmatprep.mubr.f32.mxu0 0.0
        %2460 = vmatmul.mubr.f32.gmra.mrb[0].mxu0 %v2287
        %v2461 = vpop.f32.mrb[0].mxu0
        %v2462 = vadd.f32 0.0, %v2461
        %v2463 = vpop.f32.mrb[0].mxu0
        %2464 = vmatprep.mubr.f32.mxu0 0.0
        %2465 = vmatmul.mubr.f32.gmra.mrb[0].mxu0 %v2290
        %v2466 = vpop.f32.mrb[0].mxu0
        %v2467 = vadd.f32 0.0, %v2466
        %v2468 = vpop.f32.mrb[0].mxu0
        %2469 = vmatprep.mubr.f32.mxu0 0.0
        %2470 = vmatmul.mubr.f32.gmra.mrb[0].mxu0 %v2293
        %v2471 = vpop.f32.mrb[0].mxu0
        %v2472 = vadd.f32 0.0, %v2471
        %v2473 = vpop.f32.mrb[0].mxu0
        %2474 = vmatprep.mubr.f32.mxu0 0.0
        %2475 = vmatmul.mubr.f32.gmra.mrb[0].mxu0 %v2296
        %v2476 = vpop.f32.mrb[0].mxu0
        %v2477 = vadd.f32 0.0, %v2476
        %v2478 = vpop.f32.mrb[0].mxu0
        %2479 = vmatprep.mubr.f32.mxu0 0.0
        %2480 = vmatmul.mubr.f32.gmra.mrb[0].mxu0 %v2299
        %v2481 = vpop.f32.mrb[0].mxu0
        %v2482 = vadd.f32 0.0, %v2481
        %v2483 = vpop.f32.mrb[0].mxu0
        %2484 = vmatprep.mubr.f32.mxu0 0.0
        %2485 = vmatmul.mubr.f32.gmra.mrb[0].mxu0 %v2302
        %v2486 = vpop.f32.mrb[0].mxu0
        %v2487 = vadd.f32 0.0, %v2486
        %v2488 = vpop.f32.mrb[0].mxu0
        %2489 = vmatprep.mubr.f32.mxu0 0.0
        %2490 = vmatmul.mubr.f32.gmra.mrb[0].mxu0 %v2305
        %v2491 = vpop.f32.mrb[0].mxu0
        %v2492 = vadd.f32 0.0, %v2491
        %v2493 = vpop.f32.mrb[0].mxu0
        %2494 = vmatprep.mubr.f32.mxu0 0.0
        %2495 = vmatmul.mubr.f32.gmra.mrb[0].mxu0 %v2308
        %v2496 = vpop.f32.mrb[0].mxu0
        %v2497 = vadd.f32 0.0, %v2496
        %v2498 = vpop.f32.mrb[0].mxu0
        %2499 = vmatprep.mubr.f32.mxu0 0.0
        %2500 = vmatmul.mubr.f32.gmra.mrb[0].mxu0 %v2311
        %v2501 = vpop.f32.mrb[0].mxu0
        %v2502 = vadd.f32 0.0, %v2501
        %v2503 = vpop.f32.mrb[0].mxu0
        %2504 = vmatprep.mubr.f32.mxu0 0.0
        %2505 = vmatmul.mubr.f32.gmra.mrb[0].mxu0 %v2314
        %v2506 = vpop.f32.mrb[0].mxu0
        %v2507 = vadd.f32 0.0, %v2506
        %v2508 = vpop.f32.mrb[0].mxu0
        %2509 = vmatprep.mubr.f32.mxu0 0.0
        %2510 = vmatmul.mubr.f32.gmra.mrb[0].mxu0 %v2317
        %v2511 = vpop.f32.mrb[0].mxu0
        %v2512 = vadd.f32 0.0, %v2511
        %v2513 = vpop.f32.mrb[0].mxu0
        %2514 = vmatprep.mubr.f32.mxu0 0.0
        %2515 = vmatmul.mubr.f32.gmra.mrb[0].mxu0 %v2320
        %v2516 = vpop.f32.mrb[0].mxu0
        %v2517 = vadd.f32 0.0, %v2516
        %v2518 = vpop.f32.mrb[0].mxu0
        %2519 = vmatprep.mubr.f32.mxu0 0.0
        %2520 = vmatmul.mubr.f32.gmra.mrb[0].mxu0 %v2323
        %v2521 = vpop.f32.mrb[0].mxu0
        %v2522 = vadd.f32 0.0, %v2521
        %v2523 = vpop.f32.mrb[0].mxu0
        %2524 = vmatprep.mubr.f32.mxu0 0.0
        %2525 = vmatmul.mubr.f32.gmra.mrb[0].mxu0 %v2326
        %v2526 = vpop.f32.mrb[0].mxu0
        %v2527 = vadd.f32 0.0, %v2526
        %v2528 = vpop.f32.mrb[0].mxu0
        %2529 = vmatprep.mubr.f32.mxu0 0.0
        %2530 = vmatmul.mubr.f32.gmra.mrb[0].mxu0 %v2329
        %v2531 = vpop.f32.mrb[0].mxu0
        %v2532 = vadd.f32 0.0, %v2531
        %v2533 = vpop.f32.mrb[0].mxu0
        %2534 = vmatprep.mubr.f32.mxu0 0.0
        %2535 = vmatmul.mubr.f32.gmra.mrb[0].mxu0 %v2332
        %v2536 = vpop.f32.mrb[0].mxu0
        %v2537 = vadd.f32 0.0, %v2536
        %v2538 = vpop.f32.mrb[0].mxu0
        %2539 = vmatprep.mubr.f32.mxu0 0.0
        %2540 = vmatmul.mubr.f32.gmra.mrb[0].mxu0 %v2335
        %v2541 = vpop.f32.mrb[0].mxu0
        %v2542 = vadd.f32 0.0, %v2541
        %v2543 = vpop.f32.mrb[0].mxu0
        %2544 = vmatprep.mubr.f32.mxu0 0.0
        %2545 = vmatmul.mubr.f32.gmra.mrb[0].mxu0 %v2338
        %v2546 = vpop.f32.mrb[0].mxu0
        %v2547 = vadd.f32 0.0, %v2546
        %v2548 = vpop.f32.mrb[0].mxu0
        %2549 = vmatprep.mubr.f32.mxu0 0.0
        %2550 = vmatmul.mubr.f32.gmra.mrb[0].mxu0 %v2341
        %v2551 = vpop.f32.mrb[0].mxu0
        %v2552 = vadd.f32 0.0, %v2551
        %v2553 = vpop.f32.mrb[0].mxu0
        %2554 = vmatprep.mubr.f32.mxu0 0.0
        %2555 = vmatmul.mubr.f32.gmra.mrb[0].mxu0 %v2344
        %v2556 = vpop.f32.mrb[0].mxu0
        %v2557 = vadd.f32 0.0, %v2556
        %v2558 = vpop.f32.mrb[0].mxu0
        %2559 = vmatprep.mubr.f32.mxu0 0.0
        %2560 = vmatmul.mubr.f32.gmra.mrb[0].mxu0 %v2347
        %v2561 = vpop.f32.mrb[0].mxu0
        %v2562 = vadd.f32 0.0, %v2561
        %v2563 = vpop.f32.mrb[0].mxu0
        %2564 = vmatprep.mubr.f32.mxu0 0.0
        %2565 = vmatmul.mubr.f32.gmra.mrb[0].mxu0 %v2350
        %v2566 = vpop.f32.mrb[0].mxu0
        %v2567 = vadd.f32 0.0, %v2566
        %v2568 = vpop.f32.mrb[0].mxu0
        %2569 = vmatprep.mubr.f32.mxu0 0.0
        %2570 = vmatmul.mubr.f32.gmra.mrb[0].mxu0 %v2353
        %v2571 = vpop.f32.mrb[0].mxu0
        %v2572 = vadd.f32 0.0, %v2571
        %v2573 = vpop.f32.mrb[0].mxu0
        %2574 = vmatprep.mubr.f32.mxu0 0.0
        %2575 = vmatmul.mubr.f32.gmra.mrb[0].mxu0 %v2356
        %v2576 = vpop.f32.mrb[0].mxu0
        %v2577 = vadd.f32 0.0, %v2576
        %v2578 = vpop.f32.mrb[0].mxu0
        %2579 = vmatprep.mubr.f32.mxu0 0.0
        %2580 = vmatmul.mubr.f32.gmra.mrb[0].mxu0 %v2359
        %v2581 = vpop.f32.mrb[0].mxu0
        %v2582 = vadd.f32 0.0, %v2581
        %v2583 = vpop.f32.mrb[0].mxu0
        %2584 = vmatprep.mubr.f32.mxu0 0.0
        %2585 = vmatmul.mubr.f32.gmra.mrb[0].mxu0 %v2362
        %v2586 = vpop.f32.mrb[0].mxu0
        %v2587 = vadd.f32 0.0, %v2586
        %v2588 = vpop.f32.mrb[0].mxu0
        %2589 = vmatprep.mubr.f32.mxu0 0.0
        %2590 = vmatmul.mubr.f32.gmra.mrb[0].mxu0 %v2365
        %v2591 = vpop.f32.mrb[0].mxu0
        %v2592 = vadd.f32 0.0, %v2591
        %v2593 = vpop.f32.mrb[0].mxu0
        %2594 = vdwg.mxu0
        %v2595 = vadd.f32 %v2205, %v2437
        %v2596 = vadd.f32 %v2206, %v2442
        %v2597 = vadd.f32 %v2207, %v2447
        %v2598 = vadd.f32 %v2208, %v2452
        %v2599 = vadd.f32 %v2209, %v2457
        %v2600 = vadd.f32 %v2210, %v2462
        %v2601 = vadd.f32 %v2211, %v2467
        %v2602 = vadd.f32 %v2212, %v2472
        %v2603 = vadd.f32 %v2213, %v2477
        %v2604 = vadd.f32 %v2214, %v2482
        %v2605 = vadd.f32 %v2215, %v2487
        %v2606 = vadd.f32 %v2216, %v2492
        %v2607 = vadd.f32 %v2217, %v2497
        %v2608 = vadd.f32 %v2218, %v2502
        %v2609 = vadd.f32 %v2219, %v2507
        %v2610 = vadd.f32 %v2220, %v2512
        %v2611 = vadd.f32 %v2221, %v2517
        %v2612 = vadd.f32 %v2222, %v2522
        %v2613 = vadd.f32 %v2223, %v2527
        %v2614 = vadd.f32 %v2224, %v2532
        %v2615 = vadd.f32 %v2225, %v2537
        %v2616 = vadd.f32 %v2226, %v2542
        %v2617 = vadd.f32 %v2227, %v2547
        %v2618 = vadd.f32 %v2228, %v2552
        %v2619 = vadd.f32 %v2229, %v2557
        %v2620 = vadd.f32 %v2230, %v2562
        %v2621 = vadd.f32 %v2231, %v2567
        %v2622 = vadd.f32 %v2232, %v2572
        %v2623 = vadd.f32 %v2233, %v2577
        %v2624 = vadd.f32 %v2234, %v2582
        %v2625 = vadd.f32 %v2235, %v2587
        %v2626 = vadd.f32 %v2236, %v2592
        %s2627 = scalar_lea.vmem [#allocation2], 48
        %v2628 = vld [vmem:[%s2627] sm:$0xff]
        %v2629 = vld [vmem:[%s2627 + $0x8] sm:$0xff]
        %v2630 = vld [vmem:[%s2627 + $0x18] sm:$0xff]
        %v2631 = vld [vmem:[%s2627 + $0x20] sm:$0xff]
        %v2632 = vld [vmem:[%s2627 + $0x30] sm:$0xff]
        %v2633 = vld [vmem:[%s2627 + $0x38] sm:$0xff]
        %v2634 = vld [vmem:[%s2627 + $0x48] sm:$0xff]
        %v2635 = vld [vmem:[%s2627 + $0x50] sm:$0xff]
        %v2636 = vld [vmem:[%s2627 + $0x60] sm:$0xff]
        %v2637 = vld [vmem:[%s2627 + $0x68] sm:$0xff]
        %v2638 = vld [vmem:[%s2627 + $0x78] sm:$0xff]
        %v2639 = vld [vmem:[%s2627 + $0x80] sm:$0xff]
        %v2640 = vld [vmem:[%s2627 + $0x90] sm:$0xff]
        %v2641 = vld [vmem:[%s2627 + $0x98] sm:$0xff]
        %v2642 = vld [vmem:[%s2627 + $0xa8] sm:$0xff]
        %v2643 = vld [vmem:[%s2627 + $0xb0] sm:$0xff]
        %v2644 = vld [vmem:[%s2627 + $0xc0] sm:$0xff]
        %v2645 = vld [vmem:[%s2627 + $0xc8] sm:$0xff]
        %v2646 = vld [vmem:[%s2627 + $0xd8] sm:$0xff]
        %v2647 = vld [vmem:[%s2627 + $0xe0] sm:$0xff]
        %v2648 = vld [vmem:[%s2627 + $0xf0] sm:$0xff]
        %v2649 = vld [vmem:[%s2627 + $0xf8] sm:$0xff]
        %v2650 = vld [vmem:[%s2627 + $0x108] sm:$0xff]
        %v2651 = vld [vmem:[%s2627 + $0x110] sm:$0xff]
        %v2652 = vld [vmem:[%s2627 + $0x120] sm:$0xff]
        %v2653 = vld [vmem:[%s2627 + $0x128] sm:$0xff]
        %v2654 = vld [vmem:[%s2627 + $0x138] sm:$0xff]
        %v2655 = vld [vmem:[%s2627 + $0x140] sm:$0xff]
        %v2656 = vld [vmem:[%s2627 + $0x150] sm:$0xff]
        %v2657 = vld [vmem:[%s2627 + $0x158] sm:$0xff]
        %v2658 = vld [vmem:[%s2627 + $0x168] sm:$0xff]
        %v2659 = vld [vmem:[%s2627 + $0x170] sm:$0xff]
        %s2660 = scalar_lea.vmem [#allocation3], 24
        %v2661 = vld [vmem:[%s2660] sm:$0xf]
        %v2663 = vsel %vm230, %v2628, 0
        %v2666 = vsel %vm230, %v2629, 0
        %v2669 = vsel %vm230, %v2630, 0
        %v2672 = vsel %vm230, %v2631, 0
        %v2675 = vsel %vm230, %v2632, 0
        %v2678 = vsel %vm230, %v2633, 0
        %v2681 = vsel %vm230, %v2634, 0
        %v2684 = vsel %vm230, %v2635, 0
        %v2687 = vsel %vm230, %v2636, 0
        %v2690 = vsel %vm230, %v2637, 0
        %v2693 = vsel %vm230, %v2638, 0
        %v2696 = vsel %vm230, %v2639, 0
        %v2699 = vsel %vm230, %v2640, 0
        %v2702 = vsel %vm230, %v2641, 0
        %v2705 = vsel %vm230, %v2642, 0
        %v2708 = vsel %vm230, %v2643, 0
        %v2711 = vsel %vm230, %v2644, 0
        %v2714 = vsel %vm230, %v2645, 0
        %v2717 = vsel %vm230, %v2646, 0
        %v2720 = vsel %vm230, %v2647, 0
        %v2723 = vsel %vm230, %v2648, 0
        %v2726 = vsel %vm230, %v2649, 0
        %v2729 = vsel %vm230, %v2650, 0
        %v2732 = vsel %vm230, %v2651, 0
        %v2735 = vsel %vm230, %v2652, 0
        %v2738 = vsel %vm230, %v2653, 0
        %v2741 = vsel %vm230, %v2654, 0
        %v2744 = vsel %vm230, %v2655, 0
        %v2747 = vsel %vm230, %v2656, 0
        %v2750 = vsel %vm230, %v2657, 0
        %v2753 = vsel %vm230, %v2658, 0
        %v2756 = vsel %vm230, %v2659, 0
        %v2759 = vsel %vm514, %v2661, 0
        %2761 = vmatprep.subr.mxu0 0.0
        %2762 = vmatpush1.msra.mxu0 %v2759
        %2763 = vmatprep.subr.mxu0 0.0
        %2764 = vmatpush1.msra.mxu0 0.0
        %2765 = vmatprep.subr.mxu0 0.0
        %2766 = vmatpush1.msra.mxu0 0.0
        %2767 = vmatprep.subr.mxu0 0.0
        %2768 = vmatpush1.msra.mxu0 0.0
        %2769 = vmatprep.subr.mxu0 0.0
        %2770 = vmatpush1.msra.mxu0 0.0
        %2771 = vmatprep.subr.mxu0 0.0
        %2772 = vmatpush1.msra.mxu0 0.0
        %2773 = vmatprep.subr.mxu0 0.0
        %2774 = vmatpush1.msra.mxu0 0.0
        %2775 = vmatprep.subr.mxu0 0.0
        %2776 = vmatpush1.msra.mxu0 0.0
        %2777 = vmatprep.subr.mxu0 0.0
        %2778 = vmatpush1.msra.mxu0 0.0
        %2779 = vmatprep.subr.mxu0 0.0
        %2780 = vmatpush1.msra.mxu0 0.0
        %2781 = vmatprep.subr.mxu0 0.0
        %2782 = vmatpush1.msra.mxu0 0.0
        %2783 = vmatprep.subr.mxu0 0.0
        %2784 = vmatpush1.msra.mxu0 0.0
        %2785 = vmatprep.subr.mxu0 0.0
        %2786 = vmatpush1.msra.mxu0 0.0
        %2787 = vmatprep.subr.mxu0 0.0
        %2788 = vmatpush1.msra.mxu0 0.0
        %2789 = vmatprep.subr.mxu0 0.0
        %2790 = vmatpush1.msra.mxu0 0.0
        %2791 = vmatprep.subr.mxu0 0.0
        %2792 = vmatpush1.msra.mxu0 0.0
        %2793 = vmatprep.subr.mxu0 0.0
        %2794 = vmatpush1.msra.mxu0 0.0
        %2795 = vmatprep.subr.mxu0 0.0
        %2796 = vmatpush1.msra.mxu0 0.0
        %2797 = vmatprep.subr.mxu0 0.0
        %2798 = vmatpush1.msra.mxu0 0.0
        %2799 = vmatprep.subr.mxu0 0.0
        %2800 = vmatpush1.msra.mxu0 0.0
        %2801 = vmatprep.subr.mxu0 0.0
        %2802 = vmatpush1.msra.mxu0 0.0
        %2803 = vmatprep.subr.mxu0 0.0
        %2804 = vmatpush1.msra.mxu0 0.0
        %2805 = vmatprep.subr.mxu0 0.0
        %2806 = vmatpush1.msra.mxu0 0.0
        %2807 = vmatprep.subr.mxu0 0.0
        %2808 = vmatpush1.msra.mxu0 0.0
        %2809 = vmatprep.subr.mxu0 0.0
        %2810 = vmatpush1.msra.mxu0 0.0
        %2811 = vmatprep.subr.mxu0 0.0
        %2812 = vmatpush1.msra.mxu0 0.0
        %2813 = vmatprep.subr.mxu0 0.0
        %2814 = vmatpush1.msra.mxu0 0.0
        %2815 = vmatprep.subr.mxu0 0.0
        %2816 = vmatpush1.msra.mxu0 0.0
        %2817 = vmatprep.subr.mxu0 0.0
        %2818 = vmatpush1.msra.mxu0 0.0
        %2819 = vmatprep.subr.mxu0 0.0
        %2820 = vmatpush1.msra.mxu0 0.0
        %2821 = vmatprep.subr.mxu0 0.0
        %2822 = vmatpush1.msra.mxu0 0.0
        %2823 = vmatprep.subr.mxu0 0.0
        %2824 = vmatpush1.msra.mxu0 0.0
        %2825 = vmatprep.mubr.f32.mxu0 0.0
        %2826 = vmatmul.mubr.f32.gmra.mrb[0].mxu0 %v2663
        %v2827 = vpop.f32.mrb[0].mxu0
        %v2828 = vadd.f32 0.0, %v2827
        %v2829 = vpop.f32.mrb[0].mxu0
        %2830 = vmatprep.mubr.f32.mxu0 0.0
        %2831 = vmatmul.mubr.f32.gmra.mrb[0].mxu0 %v2666
        %v2832 = vpop.f32.mrb[0].mxu0
        %v2833 = vadd.f32 0.0, %v2832
        %v2834 = vpop.f32.mrb[0].mxu0
        %2835 = vmatprep.mubr.f32.mxu0 0.0
        %2836 = vmatmul.mubr.f32.gmra.mrb[0].mxu0 %v2669
        %v2837 = vpop.f32.mrb[0].mxu0
        %v2838 = vadd.f32 0.0, %v2837
        %v2839 = vpop.f32.mrb[0].mxu0
        %2840 = vmatprep.mubr.f32.mxu0 0.0
        %2841 = vmatmul.mubr.f32.gmra.mrb[0].mxu0 %v2672
        %v2842 = vpop.f32.mrb[0].mxu0
        %v2843 = vadd.f32 0.0, %v2842
        %v2844 = vpop.f32.mrb[0].mxu0
        %2845 = vmatprep.mubr.f32.mxu0 0.0
        %2846 = vmatmul.mubr.f32.gmra.mrb[0].mxu0 %v2675
        %v2847 = vpop.f32.mrb[0].mxu0
        %v2848 = vadd.f32 0.0, %v2847
        %v2849 = vpop.f32.mrb[0].mxu0
        %2850 = vmatprep.mubr.f32.mxu0 0.0
        %2851 = vmatmul.mubr.f32.gmra.mrb[0].mxu0 %v2678
        %v2852 = vpop.f32.mrb[0].mxu0
        %v2853 = vadd.f32 0.0, %v2852
        %v2854 = vpop.f32.mrb[0].mxu0
        %2855 = vmatprep.mubr.f32.mxu0 0.0
        %2856 = vmatmul.mubr.f32.gmra.mrb[0].mxu0 %v2681
        %v2857 = vpop.f32.mrb[0].mxu0
        %v2858 = vadd.f32 0.0, %v2857
        %v2859 = vpop.f32.mrb[0].mxu0
        %2860 = vmatprep.mubr.f32.mxu0 0.0
        %2861 = vmatmul.mubr.f32.gmra.mrb[0].mxu0 %v2684
        %v2862 = vpop.f32.mrb[0].mxu0
        %v2863 = vadd.f32 0.0, %v2862
        %v2864 = vpop.f32.mrb[0].mxu0
        %2865 = vmatprep.mubr.f32.mxu0 0.0
        %2866 = vmatmul.mubr.f32.gmra.mrb[0].mxu0 %v2687
        %v2867 = vpop.f32.mrb[0].mxu0
        %v2868 = vadd.f32 0.0, %v2867
        %v2869 = vpop.f32.mrb[0].mxu0
        %2870 = vmatprep.mubr.f32.mxu0 0.0
        %2871 = vmatmul.mubr.f32.gmra.mrb[0].mxu0 %v2690
        %v2872 = vpop.f32.mrb[0].mxu0
        %v2873 = vadd.f32 0.0, %v2872
        %v2874 = vpop.f32.mrb[0].mxu0
        %2875 = vmatprep.mubr.f32.mxu0 0.0
        %2876 = vmatmul.mubr.f32.gmra.mrb[0].mxu0 %v2693
        %v2877 = vpop.f32.mrb[0].mxu0
        %v2878 = vadd.f32 0.0, %v2877
        %v2879 = vpop.f32.mrb[0].mxu0
        %2880 = vmatprep.mubr.f32.mxu0 0.0
        %2881 = vmatmul.mubr.f32.gmra.mrb[0].mxu0 %v2696
        %v2882 = vpop.f32.mrb[0].mxu0
        %v2883 = vadd.f32 0.0, %v2882
        %v2884 = vpop.f32.mrb[0].mxu0
        %2885 = vmatprep.mubr.f32.mxu0 0.0
        %2886 = vmatmul.mubr.f32.gmra.mrb[0].mxu0 %v2699
        %v2887 = vpop.f32.mrb[0].mxu0
        %v2888 = vadd.f32 0.0, %v2887
        %v2889 = vpop.f32.mrb[0].mxu0
        %2890 = vmatprep.mubr.f32.mxu0 0.0
        %2891 = vmatmul.mubr.f32.gmra.mrb[0].mxu0 %v2702
        %v2892 = vpop.f32.mrb[0].mxu0
        %v2893 = vadd.f32 0.0, %v2892
        %v2894 = vpop.f32.mrb[0].mxu0
        %2895 = vmatprep.mubr.f32.mxu0 0.0
        %2896 = vmatmul.mubr.f32.gmra.mrb[0].mxu0 %v2705
        %v2897 = vpop.f32.mrb[0].mxu0
        %v2898 = vadd.f32 0.0, %v2897
        %v2899 = vpop.f32.mrb[0].mxu0
        %2900 = vmatprep.mubr.f32.mxu0 0.0
        %2901 = vmatmul.mubr.f32.gmra.mrb[0].mxu0 %v2708
        %v2902 = vpop.f32.mrb[0].mxu0
        %v2903 = vadd.f32 0.0, %v2902
        %v2904 = vpop.f32.mrb[0].mxu0
        %2905 = vmatprep.mubr.f32.mxu0 0.0
        %2906 = vmatmul.mubr.f32.gmra.mrb[0].mxu0 %v2711
        %v2907 = vpop.f32.mrb[0].mxu0
        %v2908 = vadd.f32 0.0, %v2907
        %v2909 = vpop.f32.mrb[0].mxu0
        %2910 = vmatprep.mubr.f32.mxu0 0.0
        %2911 = vmatmul.mubr.f32.gmra.mrb[0].mxu0 %v2714
        %v2912 = vpop.f32.mrb[0].mxu0
        %v2913 = vadd.f32 0.0, %v2912
        %v2914 = vpop.f32.mrb[0].mxu0
        %2915 = vmatprep.mubr.f32.mxu0 0.0
        %2916 = vmatmul.mubr.f32.gmra.mrb[0].mxu0 %v2717
        %v2917 = vpop.f32.mrb[0].mxu0
        %v2918 = vadd.f32 0.0, %v2917
        %v2919 = vpop.f32.mrb[0].mxu0
        %2920 = vmatprep.mubr.f32.mxu0 0.0
        %2921 = vmatmul.mubr.f32.gmra.mrb[0].mxu0 %v2720
        %v2922 = vpop.f32.mrb[0].mxu0
        %v2923 = vadd.f32 0.0, %v2922
        %v2924 = vpop.f32.mrb[0].mxu0
        %2925 = vmatprep.mubr.f32.mxu0 0.0
        %2926 = vmatmul.mubr.f32.gmra.mrb[0].mxu0 %v2723
        %v2927 = vpop.f32.mrb[0].mxu0
        %v2928 = vadd.f32 0.0, %v2927
        %v2929 = vpop.f32.mrb[0].mxu0
        %2930 = vmatprep.mubr.f32.mxu0 0.0
        %2931 = vmatmul.mubr.f32.gmra.mrb[0].mxu0 %v2726
        %v2932 = vpop.f32.mrb[0].mxu0
        %v2933 = vadd.f32 0.0, %v2932
        %v2934 = vpop.f32.mrb[0].mxu0
        %2935 = vmatprep.mubr.f32.mxu0 0.0
        %2936 = vmatmul.mubr.f32.gmra.mrb[0].mxu0 %v2729
        %v2937 = vpop.f32.mrb[0].mxu0
        %v2938 = vadd.f32 0.0, %v2937
        %v2939 = vpop.f32.mrb[0].mxu0
        %2940 = vmatprep.mubr.f32.mxu0 0.0
        %2941 = vmatmul.mubr.f32.gmra.mrb[0].mxu0 %v2732
        %v2942 = vpop.f32.mrb[0].mxu0
        %v2943 = vadd.f32 0.0, %v2942
        %v2944 = vpop.f32.mrb[0].mxu0
        %2945 = vmatprep.mubr.f32.mxu0 0.0
        %2946 = vmatmul.mubr.f32.gmra.mrb[0].mxu0 %v2735
        %v2947 = vpop.f32.mrb[0].mxu0
        %v2948 = vadd.f32 0.0, %v2947
        %v2949 = vpop.f32.mrb[0].mxu0
        %2950 = vmatprep.mubr.f32.mxu0 0.0
        %2951 = vmatmul.mubr.f32.gmra.mrb[0].mxu0 %v2738
        %v2952 = vpop.f32.mrb[0].mxu0
        %v2953 = vadd.f32 0.0, %v2952
        %v2954 = vpop.f32.mrb[0].mxu0
        %2955 = vmatprep.mubr.f32.mxu0 0.0
        %2956 = vmatmul.mubr.f32.gmra.mrb[0].mxu0 %v2741
        %v2957 = vpop.f32.mrb[0].mxu0
        %v2958 = vadd.f32 0.0, %v2957
        %v2959 = vpop.f32.mrb[0].mxu0
        %2960 = vmatprep.mubr.f32.mxu0 0.0
        %2961 = vmatmul.mubr.f32.gmra.mrb[0].mxu0 %v2744
        %v2962 = vpop.f32.mrb[0].mxu0
        %v2963 = vadd.f32 0.0, %v2962
        %v2964 = vpop.f32.mrb[0].mxu0
        %2965 = vmatprep.mubr.f32.mxu0 0.0
        %2966 = vmatmul.mubr.f32.gmra.mrb[0].mxu0 %v2747
        %v2967 = vpop.f32.mrb[0].mxu0
        %v2968 = vadd.f32 0.0, %v2967
        %v2969 = vpop.f32.mrb[0].mxu0
        %2970 = vmatprep.mubr.f32.mxu0 0.0
        %2971 = vmatmul.mubr.f32.gmra.mrb[0].mxu0 %v2750
        %v2972 = vpop.f32.mrb[0].mxu0
        %v2973 = vadd.f32 0.0, %v2972
        %v2974 = vpop.f32.mrb[0].mxu0
        %2975 = vmatprep.mubr.f32.mxu0 0.0
        %2976 = vmatmul.mubr.f32.gmra.mrb[0].mxu0 %v2753
        %v2977 = vpop.f32.mrb[0].mxu0
        %v2978 = vadd.f32 0.0, %v2977
        %v2979 = vpop.f32.mrb[0].mxu0
        %2980 = vmatprep.mubr.f32.mxu0 0.0
        %2981 = vmatmul.mubr.f32.gmra.mrb[0].mxu0 %v2756
        %v2982 = vpop.f32.mrb[0].mxu0
        %v2983 = vadd.f32 0.0, %v2982
        %v2984 = vpop.f32.mrb[0].mxu0
        %2985 = vdwg.mxu0
        %v2986 = vadd.f32 %v2595, %v2828
        %v2987 = vadd.f32 %v2596, %v2833
        %v2988 = vadd.f32 %v2597, %v2838
        %v2989 = vadd.f32 %v2598, %v2843
        %v2990 = vadd.f32 %v2599, %v2848
        %v2991 = vadd.f32 %v2600, %v2853
        %v2992 = vadd.f32 %v2601, %v2858
        %v2993 = vadd.f32 %v2602, %v2863
        %v2994 = vadd.f32 %v2603, %v2868
        %v2995 = vadd.f32 %v2604, %v2873
        %v2996 = vadd.f32 %v2605, %v2878
        %v2997 = vadd.f32 %v2606, %v2883
        %v2998 = vadd.f32 %v2607, %v2888
        %v2999 = vadd.f32 %v2608, %v2893
        %v3000 = vadd.f32 %v2609, %v2898
        %v3001 = vadd.f32 %v2610, %v2903
        %v3002 = vadd.f32 %v2611, %v2908
        %v3003 = vadd.f32 %v2612, %v2913
        %v3004 = vadd.f32 %v2613, %v2918
        %v3005 = vadd.f32 %v2614, %v2923
        %v3006 = vadd.f32 %v2615, %v2928
        %v3007 = vadd.f32 %v2616, %v2933
        %v3008 = vadd.f32 %v2617, %v2938
        %v3009 = vadd.f32 %v2618, %v2943
        %v3010 = vadd.f32 %v2619, %v2948
        %v3011 = vadd.f32 %v2620, %v2953
        %v3012 = vadd.f32 %v2621, %v2958
        %v3013 = vadd.f32 %v2622, %v2963
        %v3014 = vadd.f32 %v2623, %v2968
        %v3015 = vadd.f32 %v2624, %v2973
        %v3016 = vadd.f32 %v2625, %v2978
        %v3017 = vadd.f32 %v2626, %v2983
        %v3018 = vld [vmem:[%s2627 + $0x1] sm:$0xff]
        %v3019 = vld [vmem:[%s2627 + $0x9] sm:$0xff]
        %v3020 = vld [vmem:[%s2627 + $0x19] sm:$0xff]
        %v3021 = vld [vmem:[%s2627 + $0x21] sm:$0xff]
        %v3022 = vld [vmem:[%s2627 + $0x31] sm:$0xff]
        %v3023 = vld [vmem:[%s2627 + $0x39] sm:$0xff]
        %v3024 = vld [vmem:[%s2627 + $0x49] sm:$0xff]
        %v3025 = vld [vmem:[%s2627 + $0x51] sm:$0xff]
        %v3026 = vld [vmem:[%s2627 + $0x61] sm:$0xff]
        %v3027 = vld [vmem:[%s2627 + $0x69] sm:$0xff]
        %v3028 = vld [vmem:[%s2627 + $0x79] sm:$0xff]
        %v3029 = vld [vmem:[%s2627 + $0x81] sm:$0xff]
        %v3030 = vld [vmem:[%s2627 + $0x91] sm:$0xff]
        %v3031 = vld [vmem:[%s2627 + $0x99] sm:$0xff]
        %v3032 = vld [vmem:[%s2627 + $0xa9] sm:$0xff]
        %v3033 = vld [vmem:[%s2627 + $0xb1] sm:$0xff]
        %v3034 = vld [vmem:[%s2627 + $0xc1] sm:$0xff]
        %v3035 = vld [vmem:[%s2627 + $0xc9] sm:$0xff]
        %v3036 = vld [vmem:[%s2627 + $0xd9] sm:$0xff]
        %v3037 = vld [vmem:[%s2627 + $0xe1] sm:$0xff]
        %v3038 = vld [vmem:[%s2627 + $0xf1] sm:$0xff]
        %v3039 = vld [vmem:[%s2627 + $0xf9] sm:$0xff]
        %v3040 = vld [vmem:[%s2627 + $0x109] sm:$0xff]
        %v3041 = vld [vmem:[%s2627 + $0x111] sm:$0xff]
        %v3042 = vld [vmem:[%s2627 + $0x121] sm:$0xff]
        %v3043 = vld [vmem:[%s2627 + $0x129] sm:$0xff]
        %v3044 = vld [vmem:[%s2627 + $0x139] sm:$0xff]
        %v3045 = vld [vmem:[%s2627 + $0x141] sm:$0xff]
        %v3046 = vld [vmem:[%s2627 + $0x151] sm:$0xff]
        %v3047 = vld [vmem:[%s2627 + $0x159] sm:$0xff]
        %v3048 = vld [vmem:[%s2627 + $0x169] sm:$0xff]
        %v3049 = vld [vmem:[%s2627 + $0x171] sm:$0xff]
        %s3050 = scalar_lea.vmem [#allocation3], 28
        %v3051 = vld [vmem:[%s3050] sm:$0xf]
        %v3053 = vsel %vm230, %v3018, 0
        %v3056 = vsel %vm230, %v3019, 0
        %v3059 = vsel %vm230, %v3020, 0
        %v3062 = vsel %vm230, %v3021, 0
        %v3065 = vsel %vm230, %v3022, 0
        %v3068 = vsel %vm230, %v3023, 0
        %v3071 = vsel %vm230, %v3024, 0
        %v3074 = vsel %vm230, %v3025, 0
        %v3077 = vsel %vm230, %v3026, 0
        %v3080 = vsel %vm230, %v3027, 0
        %v3083 = vsel %vm230, %v3028, 0
        %v3086 = vsel %vm230, %v3029, 0
        %v3089 = vsel %vm230, %v3030, 0
        %v3092 = vsel %vm230, %v3031, 0
        %v3095 = vsel %vm230, %v3032, 0
        %v3098 = vsel %vm230, %v3033, 0
        %v3101 = vsel %vm230, %v3034, 0
        %v3104 = vsel %vm230, %v3035, 0
        %v3107 = vsel %vm230, %v3036, 0
        %v3110 = vsel %vm230, %v3037, 0
        %v3113 = vsel %vm230, %v3038, 0
        %v3116 = vsel %vm230, %v3039, 0
        %v3119 = vsel %vm230, %v3040, 0
        %v3122 = vsel %vm230, %v3041, 0
        %v3125 = vsel %vm230, %v3042, 0
        %v3128 = vsel %vm230, %v3043, 0
        %v3131 = vsel %vm230, %v3044, 0
        %v3134 = vsel %vm230, %v3045, 0
        %v3137 = vsel %vm230, %v3046, 0
        %v3140 = vsel %vm230, %v3047, 0
        %v3143 = vsel %vm230, %v3048, 0
        %v3146 = vsel %vm230, %v3049, 0
        %v3149 = vsel %vm514, %v3051, 0
        %3151 = vmatprep.subr.mxu0 0.0
        %3152 = vmatpush1.msra.mxu0 %v3149
        %3153 = vmatprep.subr.mxu0 0.0
        %3154 = vmatpush1.msra.mxu0 0.0
        %3155 = vmatprep.subr.mxu0 0.0
        %3156 = vmatpush1.msra.mxu0 0.0
        %3157 = vmatprep.subr.mxu0 0.0
        %3158 = vmatpush1.msra.mxu0 0.0
        %3159 = vmatprep.subr.mxu0 0.0
        %3160 = vmatpush1.msra.mxu0 0.0
        %3161 = vmatprep.subr.mxu0 0.0
        %3162 = vmatpush1.msra.mxu0 0.0
        %3163 = vmatprep.subr.mxu0 0.0
        %3164 = vmatpush1.msra.mxu0 0.0
        %3165 = vmatprep.subr.mxu0 0.0
        %3166 = vmatpush1.msra.mxu0 0.0
        %3167 = vmatprep.subr.mxu0 0.0
        %3168 = vmatpush1.msra.mxu0 0.0
        %3169 = vmatprep.subr.mxu0 0.0
        %3170 = vmatpush1.msra.mxu0 0.0
        %3171 = vmatprep.subr.mxu0 0.0
        %3172 = vmatpush1.msra.mxu0 0.0
        %3173 = vmatprep.subr.mxu0 0.0
        %3174 = vmatpush1.msra.mxu0 0.0
        %3175 = vmatprep.subr.mxu0 0.0
        %3176 = vmatpush1.msra.mxu0 0.0
        %3177 = vmatprep.subr.mxu0 0.0
        %3178 = vmatpush1.msra.mxu0 0.0
        %3179 = vmatprep.subr.mxu0 0.0
        %3180 = vmatpush1.msra.mxu0 0.0
        %3181 = vmatprep.subr.mxu0 0.0
        %3182 = vmatpush1.msra.mxu0 0.0
        %3183 = vmatprep.subr.mxu0 0.0
        %3184 = vmatpush1.msra.mxu0 0.0
        %3185 = vmatprep.subr.mxu0 0.0
        %3186 = vmatpush1.msra.mxu0 0.0
        %3187 = vmatprep.subr.mxu0 0.0
        %3188 = vmatpush1.msra.mxu0 0.0
        %3189 = vmatprep.subr.mxu0 0.0
        %3190 = vmatpush1.msra.mxu0 0.0
        %3191 = vmatprep.subr.mxu0 0.0
        %3192 = vmatpush1.msra.mxu0 0.0
        %3193 = vmatprep.subr.mxu0 0.0
        %3194 = vmatpush1.msra.mxu0 0.0
        %3195 = vmatprep.subr.mxu0 0.0
        %3196 = vmatpush1.msra.mxu0 0.0
        %3197 = vmatprep.subr.mxu0 0.0
        %3198 = vmatpush1.msra.mxu0 0.0
        %3199 = vmatprep.subr.mxu0 0.0
        %3200 = vmatpush1.msra.mxu0 0.0
        %3201 = vmatprep.subr.mxu0 0.0
        %3202 = vmatpush1.msra.mxu0 0.0
        %3203 = vmatprep.subr.mxu0 0.0
        %3204 = vmatpush1.msra.mxu0 0.0
        %3205 = vmatprep.subr.mxu0 0.0
        %3206 = vmatpush1.msra.mxu0 0.0
        %3207 = vmatprep.subr.mxu0 0.0
        %3208 = vmatpush1.msra.mxu0 0.0
        %3209 = vmatprep.subr.mxu0 0.0
        %3210 = vmatpush1.msra.mxu0 0.0
        %3211 = vmatprep.subr.mxu0 0.0
        %3212 = vmatpush1.msra.mxu0 0.0
        %3213 = vmatprep.subr.mxu0 0.0
        %3214 = vmatpush1.msra.mxu0 0.0
        %3215 = vmatprep.mubr.f32.mxu0 0.0
        %3216 = vmatmul.mubr.f32.gmra.mrb[0].mxu0 %v3053
        %v3217 = vpop.f32.mrb[0].mxu0
        %v3218 = vadd.f32 0.0, %v3217
        %v3219 = vpop.f32.mrb[0].mxu0
        %3220 = vmatprep.mubr.f32.mxu0 0.0
        %3221 = vmatmul.mubr.f32.gmra.mrb[0].mxu0 %v3056
        %v3222 = vpop.f32.mrb[0].mxu0
        %v3223 = vadd.f32 0.0, %v3222
        %v3224 = vpop.f32.mrb[0].mxu0
        %3225 = vmatprep.mubr.f32.mxu0 0.0
        %3226 = vmatmul.mubr.f32.gmra.mrb[0].mxu0 %v3059
        %v3227 = vpop.f32.mrb[0].mxu0
        %v3228 = vadd.f32 0.0, %v3227
        %v3229 = vpop.f32.mrb[0].mxu0
        %3230 = vmatprep.mubr.f32.mxu0 0.0
        %3231 = vmatmul.mubr.f32.gmra.mrb[0].mxu0 %v3062
        %v3232 = vpop.f32.mrb[0].mxu0
        %v3233 = vadd.f32 0.0, %v3232
        %v3234 = vpop.f32.mrb[0].mxu0
        %3235 = vmatprep.mubr.f32.mxu0 0.0
        %3236 = vmatmul.mubr.f32.gmra.mrb[0].mxu0 %v3065
        %v3237 = vpop.f32.mrb[0].mxu0
        %v3238 = vadd.f32 0.0, %v3237
        %v3239 = vpop.f32.mrb[0].mxu0
        %3240 = vmatprep.mubr.f32.mxu0 0.0
        %3241 = vmatmul.mubr.f32.gmra.mrb[0].mxu0 %v3068
        %v3242 = vpop.f32.mrb[0].mxu0
        %v3243 = vadd.f32 0.0, %v3242
        %v3244 = vpop.f32.mrb[0].mxu0
        %3245 = vmatprep.mubr.f32.mxu0 0.0
        %3246 = vmatmul.mubr.f32.gmra.mrb[0].mxu0 %v3071
        %v3247 = vpop.f32.mrb[0].mxu0
        %v3248 = vadd.f32 0.0, %v3247
        %v3249 = vpop.f32.mrb[0].mxu0
        %3250 = vmatprep.mubr.f32.mxu0 0.0
        %3251 = vmatmul.mubr.f32.gmra.mrb[0].mxu0 %v3074
        %v3252 = vpop.f32.mrb[0].mxu0
        %v3253 = vadd.f32 0.0, %v3252
        %v3254 = vpop.f32.mrb[0].mxu0
        %3255 = vmatprep.mubr.f32.mxu0 0.0
        %3256 = vmatmul.mubr.f32.gmra.mrb[0].mxu0 %v3077
        %v3257 = vpop.f32.mrb[0].mxu0
        %v3258 = vadd.f32 0.0, %v3257
        %v3259 = vpop.f32.mrb[0].mxu0
        %3260 = vmatprep.mubr.f32.mxu0 0.0
        %3261 = vmatmul.mubr.f32.gmra.mrb[0].mxu0 %v3080
        %v3262 = vpop.f32.mrb[0].mxu0
        %v3263 = vadd.f32 0.0, %v3262
        %v3264 = vpop.f32.mrb[0].mxu0
        %3265 = vmatprep.mubr.f32.mxu0 0.0
        %3266 = vmatmul.mubr.f32.gmra.mrb[0].mxu0 %v3083
        %v3267 = vpop.f32.mrb[0].mxu0
        %v3268 = vadd.f32 0.0, %v3267
        %v3269 = vpop.f32.mrb[0].mxu0
        %3270 = vmatprep.mubr.f32.mxu0 0.0
        %3271 = vmatmul.mubr.f32.gmra.mrb[0].mxu0 %v3086
        %v3272 = vpop.f32.mrb[0].mxu0
        %v3273 = vadd.f32 0.0, %v3272
        %v3274 = vpop.f32.mrb[0].mxu0
        %3275 = vmatprep.mubr.f32.mxu0 0.0
        %3276 = vmatmul.mubr.f32.gmra.mrb[0].mxu0 %v3089
        %v3277 = vpop.f32.mrb[0].mxu0
        %v3278 = vadd.f32 0.0, %v3277
        %v3279 = vpop.f32.mrb[0].mxu0
        %3280 = vmatprep.mubr.f32.mxu0 0.0
        %3281 = vmatmul.mubr.f32.gmra.mrb[0].mxu0 %v3092
        %v3282 = vpop.f32.mrb[0].mxu0
        %v3283 = vadd.f32 0.0, %v3282
        %v3284 = vpop.f32.mrb[0].mxu0
        %3285 = vmatprep.mubr.f32.mxu0 0.0
        %3286 = vmatmul.mubr.f32.gmra.mrb[0].mxu0 %v3095
        %v3287 = vpop.f32.mrb[0].mxu0
        %v3288 = vadd.f32 0.0, %v3287
        %v3289 = vpop.f32.mrb[0].mxu0
        %3290 = vmatprep.mubr.f32.mxu0 0.0
        %3291 = vmatmul.mubr.f32.gmra.mrb[0].mxu0 %v3098
        %v3292 = vpop.f32.mrb[0].mxu0
        %v3293 = vadd.f32 0.0, %v3292
        %v3294 = vpop.f32.mrb[0].mxu0
        %3295 = vmatprep.mubr.f32.mxu0 0.0
        %3296 = vmatmul.mubr.f32.gmra.mrb[0].mxu0 %v3101
        %v3297 = vpop.f32.mrb[0].mxu0
        %v3298 = vadd.f32 0.0, %v3297
        %v3299 = vpop.f32.mrb[0].mxu0
        %3300 = vmatprep.mubr.f32.mxu0 0.0
        %3301 = vmatmul.mubr.f32.gmra.mrb[0].mxu0 %v3104
        %v3302 = vpop.f32.mrb[0].mxu0
        %v3303 = vadd.f32 0.0, %v3302
        %v3304 = vpop.f32.mrb[0].mxu0
        %3305 = vmatprep.mubr.f32.mxu0 0.0
        %3306 = vmatmul.mubr.f32.gmra.mrb[0].mxu0 %v3107
        %v3307 = vpop.f32.mrb[0].mxu0
        %v3308 = vadd.f32 0.0, %v3307
        %v3309 = vpop.f32.mrb[0].mxu0
        %3310 = vmatprep.mubr.f32.mxu0 0.0
        %3311 = vmatmul.mubr.f32.gmra.mrb[0].mxu0 %v3110
        %v3312 = vpop.f32.mrb[0].mxu0
        %v3313 = vadd.f32 0.0, %v3312
        %v3314 = vpop.f32.mrb[0].mxu0
        %3315 = vmatprep.mubr.f32.mxu0 0.0
        %3316 = vmatmul.mubr.f32.gmra.mrb[0].mxu0 %v3113
        %v3317 = vpop.f32.mrb[0].mxu0
        %v3318 = vadd.f32 0.0, %v3317
        %v3319 = vpop.f32.mrb[0].mxu0
        %3320 = vmatprep.mubr.f32.mxu0 0.0
        %3321 = vmatmul.mubr.f32.gmra.mrb[0].mxu0 %v3116
        %v3322 = vpop.f32.mrb[0].mxu0
        %v3323 = vadd.f32 0.0, %v3322
        %v3324 = vpop.f32.mrb[0].mxu0
        %3325 = vmatprep.mubr.f32.mxu0 0.0
        %3326 = vmatmul.mubr.f32.gmra.mrb[0].mxu0 %v3119
        %v3327 = vpop.f32.mrb[0].mxu0
        %v3328 = vadd.f32 0.0, %v3327
        %v3329 = vpop.f32.mrb[0].mxu0
        %3330 = vmatprep.mubr.f32.mxu0 0.0
        %3331 = vmatmul.mubr.f32.gmra.mrb[0].mxu0 %v3122
        %v3332 = vpop.f32.mrb[0].mxu0
        %v3333 = vadd.f32 0.0, %v3332
        %v3334 = vpop.f32.mrb[0].mxu0
        %3335 = vmatprep.mubr.f32.mxu0 0.0
        %3336 = vmatmul.mubr.f32.gmra.mrb[0].mxu0 %v3125
        %v3337 = vpop.f32.mrb[0].mxu0
        %v3338 = vadd.f32 0.0, %v3337
        %v3339 = vpop.f32.mrb[0].mxu0
        %3340 = vmatprep.mubr.f32.mxu0 0.0
        %3341 = vmatmul.mubr.f32.gmra.mrb[0].mxu0 %v3128
        %v3342 = vpop.f32.mrb[0].mxu0
        %v3343 = vadd.f32 0.0, %v3342
        %v3344 = vpop.f32.mrb[0].mxu0
        %3345 = vmatprep.mubr.f32.mxu0 0.0
        %3346 = vmatmul.mubr.f32.gmra.mrb[0].mxu0 %v3131
        %v3347 = vpop.f32.mrb[0].mxu0
        %v3348 = vadd.f32 0.0, %v3347
        %v3349 = vpop.f32.mrb[0].mxu0
        %3350 = vmatprep.mubr.f32.mxu0 0.0
        %3351 = vmatmul.mubr.f32.gmra.mrb[0].mxu0 %v3134
        %v3352 = vpop.f32.mrb[0].mxu0
        %v3353 = vadd.f32 0.0, %v3352
        %v3354 = vpop.f32.mrb[0].mxu0
        %3355 = vmatprep.mubr.f32.mxu0 0.0
        %3356 = vmatmul.mubr.f32.gmra.mrb[0].mxu0 %v3137
        %v3357 = vpop.f32.mrb[0].mxu0
        %v3358 = vadd.f32 0.0, %v3357
        %v3359 = vpop.f32.mrb[0].mxu0
        %3360 = vmatprep.mubr.f32.mxu0 0.0
        %3361 = vmatmul.mubr.f32.gmra.mrb[0].mxu0 %v3140
        %v3362 = vpop.f32.mrb[0].mxu0
        %v3363 = vadd.f32 0.0, %v3362
        %v3364 = vpop.f32.mrb[0].mxu0
        %3365 = vmatprep.mubr.f32.mxu0 0.0
        %3366 = vmatmul.mubr.f32.gmra.mrb[0].mxu0 %v3143
        %v3367 = vpop.f32.mrb[0].mxu0
        %v3368 = vadd.f32 0.0, %v3367
        %v3369 = vpop.f32.mrb[0].mxu0
        %3370 = vmatprep.mubr.f32.mxu0 0.0
        %3371 = vmatmul.mubr.f32.gmra.mrb[0].mxu0 %v3146
        %v3372 = vpop.f32.mrb[0].mxu0
        %v3373 = vadd.f32 0.0, %v3372
        %v3374 = vpop.f32.mrb[0].mxu0
        %3375 = vdwg.mxu0
        %v3376 = vadd.f32 %v2986, %v3218
        %v3377 = vadd.f32 %v2987, %v3223
        %v3378 = vadd.f32 %v2988, %v3228
        %v3379 = vadd.f32 %v2989, %v3233
        %v3380 = vadd.f32 %v2990, %v3238
        %v3381 = vadd.f32 %v2991, %v3243
        %v3382 = vadd.f32 %v2992, %v3248
        %v3383 = vadd.f32 %v2993, %v3253
        %v3384 = vadd.f32 %v2994, %v3258
        %v3385 = vadd.f32 %v2995, %v3263
        %v3386 = vadd.f32 %v2996, %v3268
        %v3387 = vadd.f32 %v2997, %v3273
        %v3388 = vadd.f32 %v2998, %v3278
        %v3389 = vadd.f32 %v2999, %v3283
        %v3390 = vadd.f32 %v3000, %v3288
        %v3391 = vadd.f32 %v3001, %v3293
        %v3392 = vadd.f32 %v3002, %v3298
        %v3393 = vadd.f32 %v3003, %v3303
        %v3394 = vadd.f32 %v3004, %v3308
        %v3395 = vadd.f32 %v3005, %v3313
        %v3396 = vadd.f32 %v3006, %v3318
        %v3397 = vadd.f32 %v3007, %v3323
        %v3398 = vadd.f32 %v3008, %v3328
        %v3399 = vadd.f32 %v3009, %v3333
        %v3400 = vadd.f32 %v3010, %v3338
        %v3401 = vadd.f32 %v3011, %v3343
        %v3402 = vadd.f32 %v3012, %v3348
        %v3403 = vadd.f32 %v3013, %v3353
        %v3404 = vadd.f32 %v3014, %v3358
        %v3405 = vadd.f32 %v3015, %v3363
        %v3406 = vadd.f32 %v3016, %v3368
        %v3407 = vadd.f32 %v3017, %v3373
        %v3408 = vld [vmem:[%s2627 + $0x2] sm:$0xff]
        %v3409 = vld [vmem:[%s2627 + $0xa] sm:$0xff]
        %v3410 = vld [vmem:[%s2627 + $0x1a] sm:$0xff]
        %v3411 = vld [vmem:[%s2627 + $0x22] sm:$0xff]
        %v3412 = vld [vmem:[%s2627 + $0x32] sm:$0xff]
        %v3413 = vld [vmem:[%s2627 + $0x3a] sm:$0xff]
        %v3414 = vld [vmem:[%s2627 + $0x4a] sm:$0xff]
        %v3415 = vld [vmem:[%s2627 + $0x52] sm:$0xff]
        %v3416 = vld [vmem:[%s2627 + $0x62] sm:$0xff]
        %v3417 = vld [vmem:[%s2627 + $0x6a] sm:$0xff]
        %v3418 = vld [vmem:[%s2627 + $0x7a] sm:$0xff]
        %v3419 = vld [vmem:[%s2627 + $0x82] sm:$0xff]
        %v3420 = vld [vmem:[%s2627 + $0x92] sm:$0xff]
        %v3421 = vld [vmem:[%s2627 + $0x9a] sm:$0xff]
        %v3422 = vld [vmem:[%s2627 + $0xaa] sm:$0xff]
        %v3423 = vld [vmem:[%s2627 + $0xb2] sm:$0xff]
        %v3424 = vld [vmem:[%s2627 + $0xc2] sm:$0xff]
        %v3425 = vld [vmem:[%s2627 + $0xca] sm:$0xff]
        %v3426 = vld [vmem:[%s2627 + $0xda] sm:$0xff]
        %v3427 = vld [vmem:[%s2627 + $0xe2] sm:$0xff]
        %v3428 = vld [vmem:[%s2627 + $0xf2] sm:$0xff]
        %v3429 = vld [vmem:[%s2627 + $0xfa] sm:$0xff]
        %v3430 = vld [vmem:[%s2627 + $0x10a] sm:$0xff]
        %v3431 = vld [vmem:[%s2627 + $0x112] sm:$0xff]
        %v3432 = vld [vmem:[%s2627 + $0x122] sm:$0xff]
        %v3433 = vld [vmem:[%s2627 + $0x12a] sm:$0xff]
        %v3434 = vld [vmem:[%s2627 + $0x13a] sm:$0xff]
        %v3435 = vld [vmem:[%s2627 + $0x142] sm:$0xff]
        %v3436 = vld [vmem:[%s2627 + $0x152] sm:$0xff]
        %v3437 = vld [vmem:[%s2627 + $0x15a] sm:$0xff]
        %v3438 = vld [vmem:[%s2627 + $0x16a] sm:$0xff]
        %v3439 = vld [vmem:[%s2627 + $0x172] sm:$0xff]
        %s3440 = scalar_lea.vmem [#allocation3], 32
        %v3441 = vld [vmem:[%s3440] sm:$0xf]
        %v3443 = vsel %vm230, %v3408, 0
        %v3446 = vsel %vm230, %v3409, 0
        %v3449 = vsel %vm230, %v3410, 0
        %v3452 = vsel %vm230, %v3411, 0
        %v3455 = vsel %vm230, %v3412, 0
        %v3458 = vsel %vm230, %v3413, 0
        %v3461 = vsel %vm230, %v3414, 0
        %v3464 = vsel %vm230, %v3415, 0
        %v3467 = vsel %vm230, %v3416, 0
        %v3470 = vsel %vm230, %v3417, 0
        %v3473 = vsel %vm230, %v3418, 0
        %v3476 = vsel %vm230, %v3419, 0
        %v3479 = vsel %vm230, %v3420, 0
        %v3482 = vsel %vm230, %v3421, 0
        %v3485 = vsel %vm230, %v3422, 0
        %v3488 = vsel %vm230, %v3423, 0
        %v3491 = vsel %vm230, %v3424, 0
        %v3494 = vsel %vm230, %v3425, 0
        %v3497 = vsel %vm230, %v3426, 0
        %v3500 = vsel %vm230, %v3427, 0
        %v3503 = vsel %vm230, %v3428, 0
        %v3506 = vsel %vm230, %v3429, 0
        %v3509 = vsel %vm230, %v3430, 0
        %v3512 = vsel %vm230, %v3431, 0
        %v3515 = vsel %vm230, %v3432, 0
        %v3518 = vsel %vm230, %v3433, 0
        %v3521 = vsel %vm230, %v3434, 0
        %v3524 = vsel %vm230, %v3435, 0
        %v3527 = vsel %vm230, %v3436, 0
        %v3530 = vsel %vm230, %v3437, 0
        %v3533 = vsel %vm230, %v3438, 0
        %v3536 = vsel %vm230, %v3439, 0
        %v3539 = vsel %vm514, %v3441, 0
        %3541 = vmatprep.subr.mxu0 0.0
        %3542 = vmatpush1.msra.mxu0 %v3539
        %3543 = vmatprep.subr.mxu0 0.0
        %3544 = vmatpush1.msra.mxu0 0.0
        %3545 = vmatprep.subr.mxu0 0.0
        %3546 = vmatpush1.msra.mxu0 0.0
        %3547 = vmatprep.subr.mxu0 0.0
        %3548 = vmatpush1.msra.mxu0 0.0
        %3549 = vmatprep.subr.mxu0 0.0
        %3550 = vmatpush1.msra.mxu0 0.0
        %3551 = vmatprep.subr.mxu0 0.0
        %3552 = vmatpush1.msra.mxu0 0.0
        %3553 = vmatprep.subr.mxu0 0.0
        %3554 = vmatpush1.msra.mxu0 0.0
        %3555 = vmatprep.subr.mxu0 0.0
        %3556 = vmatpush1.msra.mxu0 0.0
        %3557 = vmatprep.subr.mxu0 0.0
        %3558 = vmatpush1.msra.mxu0 0.0
        %3559 = vmatprep.subr.mxu0 0.0
        %3560 = vmatpush1.msra.mxu0 0.0
        %3561 = vmatprep.subr.mxu0 0.0
        %3562 = vmatpush1.msra.mxu0 0.0
        %3563 = vmatprep.subr.mxu0 0.0
        %3564 = vmatpush1.msra.mxu0 0.0
        %3565 = vmatprep.subr.mxu0 0.0
        %3566 = vmatpush1.msra.mxu0 0.0
        %3567 = vmatprep.subr.mxu0 0.0
        %3568 = vmatpush1.msra.mxu0 0.0
        %3569 = vmatprep.subr.mxu0 0.0
        %3570 = vmatpush1.msra.mxu0 0.0
        %3571 = vmatprep.subr.mxu0 0.0
        %3572 = vmatpush1.msra.mxu0 0.0
        %3573 = vmatprep.subr.mxu0 0.0
        %3574 = vmatpush1.msra.mxu0 0.0
        %3575 = vmatprep.subr.mxu0 0.0
        %3576 = vmatpush1.msra.mxu0 0.0
        %3577 = vmatprep.subr.mxu0 0.0
        %3578 = vmatpush1.msra.mxu0 0.0
        %3579 = vmatprep.subr.mxu0 0.0
        %3580 = vmatpush1.msra.mxu0 0.0
        %3581 = vmatprep.subr.mxu0 0.0
        %3582 = vmatpush1.msra.mxu0 0.0
        %3583 = vmatprep.subr.mxu0 0.0
        %3584 = vmatpush1.msra.mxu0 0.0
        %3585 = vmatprep.subr.mxu0 0.0
        %3586 = vmatpush1.msra.mxu0 0.0
        %3587 = vmatprep.subr.mxu0 0.0
        %3588 = vmatpush1.msra.mxu0 0.0
        %3589 = vmatprep.subr.mxu0 0.0
        %3590 = vmatpush1.msra.mxu0 0.0
        %3591 = vmatprep.subr.mxu0 0.0
        %3592 = vmatpush1.msra.mxu0 0.0
        %3593 = vmatprep.subr.mxu0 0.0
        %3594 = vmatpush1.msra.mxu0 0.0
        %3595 = vmatprep.subr.mxu0 0.0
        %3596 = vmatpush1.msra.mxu0 0.0
        %3597 = vmatprep.subr.mxu0 0.0
        %3598 = vmatpush1.msra.mxu0 0.0
        %3599 = vmatprep.subr.mxu0 0.0
        %3600 = vmatpush1.msra.mxu0 0.0
        %3601 = vmatprep.subr.mxu0 0.0
        %3602 = vmatpush1.msra.mxu0 0.0
        %3603 = vmatprep.subr.mxu0 0.0
        %3604 = vmatpush1.msra.mxu0 0.0
        %3605 = vmatprep.mubr.f32.mxu0 0.0
        %3606 = vmatmul.mubr.f32.gmra.mrb[0].mxu0 %v3443
        %v3607 = vpop.f32.mrb[0].mxu0
        %v3608 = vadd.f32 0.0, %v3607
        %v3609 = vpop.f32.mrb[0].mxu0
        %3610 = vmatprep.mubr.f32.mxu0 0.0
        %3611 = vmatmul.mubr.f32.gmra.mrb[0].mxu0 %v3446
        %v3612 = vpop.f32.mrb[0].mxu0
        %v3613 = vadd.f32 0.0, %v3612
        %v3614 = vpop.f32.mrb[0].mxu0
        %3615 = vmatprep.mubr.f32.mxu0 0.0
        %3616 = vmatmul.mubr.f32.gmra.mrb[0].mxu0 %v3449
        %v3617 = vpop.f32.mrb[0].mxu0
        %v3618 = vadd.f32 0.0, %v3617
        %v3619 = vpop.f32.mrb[0].mxu0
        %3620 = vmatprep.mubr.f32.mxu0 0.0
        %3621 = vmatmul.mubr.f32.gmra.mrb[0].mxu0 %v3452
        %v3622 = vpop.f32.mrb[0].mxu0
        %v3623 = vadd.f32 0.0, %v3622
        %v3624 = vpop.f32.mrb[0].mxu0
        %3625 = vmatprep.mubr.f32.mxu0 0.0
        %3626 = vmatmul.mubr.f32.gmra.mrb[0].mxu0 %v3455
        %v3627 = vpop.f32.mrb[0].mxu0
        %v3628 = vadd.f32 0.0, %v3627
        %v3629 = vpop.f32.mrb[0].mxu0
        %3630 = vmatprep.mubr.f32.mxu0 0.0
        %3631 = vmatmul.mubr.f32.gmra.mrb[0].mxu0 %v3458
        %v3632 = vpop.f32.mrb[0].mxu0
        %v3633 = vadd.f32 0.0, %v3632
        %v3634 = vpop.f32.mrb[0].mxu0
        %3635 = vmatprep.mubr.f32.mxu0 0.0
        %3636 = vmatmul.mubr.f32.gmra.mrb[0].mxu0 %v3461
        %v3637 = vpop.f32.mrb[0].mxu0
        %v3638 = vadd.f32 0.0, %v3637
        %v3639 = vpop.f32.mrb[0].mxu0
        %3640 = vmatprep.mubr.f32.mxu0 0.0
        %3641 = vmatmul.mubr.f32.gmra.mrb[0].mxu0 %v3464
        %v3642 = vpop.f32.mrb[0].mxu0
        %v3643 = vadd.f32 0.0, %v3642
        %v3644 = vpop.f32.mrb[0].mxu0
        %3645 = vmatprep.mubr.f32.mxu0 0.0
        %3646 = vmatmul.mubr.f32.gmra.mrb[0].mxu0 %v3467
        %v3647 = vpop.f32.mrb[0].mxu0
        %v3648 = vadd.f32 0.0, %v3647
        %v3649 = vpop.f32.mrb[0].mxu0
        %3650 = vmatprep.mubr.f32.mxu0 0.0
        %3651 = vmatmul.mubr.f32.gmra.mrb[0].mxu0 %v3470
        %v3652 = vpop.f32.mrb[0].mxu0
        %v3653 = vadd.f32 0.0, %v3652
        %v3654 = vpop.f32.mrb[0].mxu0
        %3655 = vmatprep.mubr.f32.mxu0 0.0
        %3656 = vmatmul.mubr.f32.gmra.mrb[0].mxu0 %v3473
        %v3657 = vpop.f32.mrb[0].mxu0
        %v3658 = vadd.f32 0.0, %v3657
        %v3659 = vpop.f32.mrb[0].mxu0
        %3660 = vmatprep.mubr.f32.mxu0 0.0
        %3661 = vmatmul.mubr.f32.gmra.mrb[0].mxu0 %v3476
        %v3662 = vpop.f32.mrb[0].mxu0
        %v3663 = vadd.f32 0.0, %v3662
        %v3664 = vpop.f32.mrb[0].mxu0
        %3665 = vmatprep.mubr.f32.mxu0 0.0
        %3666 = vmatmul.mubr.f32.gmra.mrb[0].mxu0 %v3479
        %v3667 = vpop.f32.mrb[0].mxu0
        %v3668 = vadd.f32 0.0, %v3667
        %v3669 = vpop.f32.mrb[0].mxu0
        %3670 = vmatprep.mubr.f32.mxu0 0.0
        %3671 = vmatmul.mubr.f32.gmra.mrb[0].mxu0 %v3482
        %v3672 = vpop.f32.mrb[0].mxu0
        %v3673 = vadd.f32 0.0, %v3672
        %v3674 = vpop.f32.mrb[0].mxu0
        %3675 = vmatprep.mubr.f32.mxu0 0.0
        %3676 = vmatmul.mubr.f32.gmra.mrb[0].mxu0 %v3485
        %v3677 = vpop.f32.mrb[0].mxu0
        %v3678 = vadd.f32 0.0, %v3677
        %v3679 = vpop.f32.mrb[0].mxu0
        %3680 = vmatprep.mubr.f32.mxu0 0.0
        %3681 = vmatmul.mubr.f32.gmra.mrb[0].mxu0 %v3488
        %v3682 = vpop.f32.mrb[0].mxu0
        %v3683 = vadd.f32 0.0, %v3682
        %v3684 = vpop.f32.mrb[0].mxu0
        %3685 = vmatprep.mubr.f32.mxu0 0.0
        %3686 = vmatmul.mubr.f32.gmra.mrb[0].mxu0 %v3491
        %v3687 = vpop.f32.mrb[0].mxu0
        %v3688 = vadd.f32 0.0, %v3687
        %v3689 = vpop.f32.mrb[0].mxu0
        %3690 = vmatprep.mubr.f32.mxu0 0.0
        %3691 = vmatmul.mubr.f32.gmra.mrb[0].mxu0 %v3494
        %v3692 = vpop.f32.mrb[0].mxu0
        %v3693 = vadd.f32 0.0, %v3692
        %v3694 = vpop.f32.mrb[0].mxu0
        %3695 = vmatprep.mubr.f32.mxu0 0.0
        %3696 = vmatmul.mubr.f32.gmra.mrb[0].mxu0 %v3497
        %v3697 = vpop.f32.mrb[0].mxu0
        %v3698 = vadd.f32 0.0, %v3697
        %v3699 = vpop.f32.mrb[0].mxu0
        %3700 = vmatprep.mubr.f32.mxu0 0.0
        %3701 = vmatmul.mubr.f32.gmra.mrb[0].mxu0 %v3500
        %v3702 = vpop.f32.mrb[0].mxu0
        %v3703 = vadd.f32 0.0, %v3702
        %v3704 = vpop.f32.mrb[0].mxu0
        %3705 = vmatprep.mubr.f32.mxu0 0.0
        %3706 = vmatmul.mubr.f32.gmra.mrb[0].mxu0 %v3503
        %v3707 = vpop.f32.mrb[0].mxu0
        %v3708 = vadd.f32 0.0, %v3707
        %v3709 = vpop.f32.mrb[0].mxu0
        %3710 = vmatprep.mubr.f32.mxu0 0.0
        %3711 = vmatmul.mubr.f32.gmra.mrb[0].mxu0 %v3506
        %v3712 = vpop.f32.mrb[0].mxu0
        %v3713 = vadd.f32 0.0, %v3712
        %v3714 = vpop.f32.mrb[0].mxu0
        %3715 = vmatprep.mubr.f32.mxu0 0.0
        %3716 = vmatmul.mubr.f32.gmra.mrb[0].mxu0 %v3509
        %v3717 = vpop.f32.mrb[0].mxu0
        %v3718 = vadd.f32 0.0, %v3717
        %v3719 = vpop.f32.mrb[0].mxu0
        %3720 = vmatprep.mubr.f32.mxu0 0.0
        %3721 = vmatmul.mubr.f32.gmra.mrb[0].mxu0 %v3512
        %v3722 = vpop.f32.mrb[0].mxu0
        %v3723 = vadd.f32 0.0, %v3722
        %v3724 = vpop.f32.mrb[0].mxu0
        %3725 = vmatprep.mubr.f32.mxu0 0.0
        %3726 = vmatmul.mubr.f32.gmra.mrb[0].mxu0 %v3515
        %v3727 = vpop.f32.mrb[0].mxu0
        %v3728 = vadd.f32 0.0, %v3727
        %v3729 = vpop.f32.mrb[0].mxu0
        %3730 = vmatprep.mubr.f32.mxu0 0.0
        %3731 = vmatmul.mubr.f32.gmra.mrb[0].mxu0 %v3518
        %v3732 = vpop.f32.mrb[0].mxu0
        %v3733 = vadd.f32 0.0, %v3732
        %v3734 = vpop.f32.mrb[0].mxu0
        %3735 = vmatprep.mubr.f32.mxu0 0.0
        %3736 = vmatmul.mubr.f32.gmra.mrb[0].mxu0 %v3521
        %v3737 = vpop.f32.mrb[0].mxu0
        %v3738 = vadd.f32 0.0, %v3737
        %v3739 = vpop.f32.mrb[0].mxu0
        %3740 = vmatprep.mubr.f32.mxu0 0.0
        %3741 = vmatmul.mubr.f32.gmra.mrb[0].mxu0 %v3524
        %v3742 = vpop.f32.mrb[0].mxu0
        %v3743 = vadd.f32 0.0, %v3742
        %v3744 = vpop.f32.mrb[0].mxu0
        %3745 = vmatprep.mubr.f32.mxu0 0.0
        %3746 = vmatmul.mubr.f32.gmra.mrb[0].mxu0 %v3527
        %v3747 = vpop.f32.mrb[0].mxu0
        %v3748 = vadd.f32 0.0, %v3747
        %v3749 = vpop.f32.mrb[0].mxu0
        %3750 = vmatprep.mubr.f32.mxu0 0.0
        %3751 = vmatmul.mubr.f32.gmra.mrb[0].mxu0 %v3530
        %v3752 = vpop.f32.mrb[0].mxu0
        %v3753 = vadd.f32 0.0, %v3752
        %v3754 = vpop.f32.mrb[0].mxu0
        %3755 = vmatprep.mubr.f32.mxu0 0.0
        %3756 = vmatmul.mubr.f32.gmra.mrb[0].mxu0 %v3533
        %v3757 = vpop.f32.mrb[0].mxu0
        %v3758 = vadd.f32 0.0, %v3757
        %v3759 = vpop.f32.mrb[0].mxu0
        %3760 = vmatprep.mubr.f32.mxu0 0.0
        %3761 = vmatmul.mubr.f32.gmra.mrb[0].mxu0 %v3536
        %v3762 = vpop.f32.mrb[0].mxu0
        %v3763 = vadd.f32 0.0, %v3762
        %v3764 = vpop.f32.mrb[0].mxu0
        %3765 = vdwg.mxu0
        %v3766 = vadd.f32 %v3376, %v3608
        %v3767 = vadd.f32 %v3377, %v3613
        %v3768 = vadd.f32 %v3378, %v3618
        %v3769 = vadd.f32 %v3379, %v3623
        %v3770 = vadd.f32 %v3380, %v3628
        %v3771 = vadd.f32 %v3381, %v3633
        %v3772 = vadd.f32 %v3382, %v3638
        %v3773 = vadd.f32 %v3383, %v3643
        %v3774 = vadd.f32 %v3384, %v3648
        %v3775 = vadd.f32 %v3385, %v3653
        %v3776 = vadd.f32 %v3386, %v3658
        %v3777 = vadd.f32 %v3387, %v3663
        %v3778 = vadd.f32 %v3388, %v3668
        %v3779 = vadd.f32 %v3389, %v3673
        %v3780 = vadd.f32 %v3390, %v3678
        %v3781 = vadd.f32 %v3391, %v3683
        %v3782 = vadd.f32 %v3392, %v3688
        %v3783 = vadd.f32 %v3393, %v3693
        %v3784 = vadd.f32 %v3394, %v3698
        %v3785 = vadd.f32 %v3395, %v3703
        %v3786 = vadd.f32 %v3396, %v3708
        %v3787 = vadd.f32 %v3397, %v3713
        %v3788 = vadd.f32 %v3398, %v3718
        %v3789 = vadd.f32 %v3399, %v3723
        %v3790 = vadd.f32 %v3400, %v3728
        %v3791 = vadd.f32 %v3401, %v3733
        %v3792 = vadd.f32 %v3402, %v3738
        %v3793 = vadd.f32 %v3403, %v3743
        %v3794 = vadd.f32 %v3404, %v3748
        %v3795 = vadd.f32 %v3405, %v3753
        %v3796 = vadd.f32 %v3406, %v3758
        %v3797 = vadd.f32 %v3407, %v3763
        %3798 = vst [vmem:[%s223] sm:$0xff] %v3766
        %3799 = vst [vmem:[%s223 + $0x8] sm:$0xff] %v3767
        %3800 = vst [vmem:[%s223 + $0x10] sm:$0xff] %v3768
        %3801 = vst [vmem:[%s223 + $0x18] sm:$0xff] %v3769
        %3802 = vst [vmem:[%s223 + $0x20] sm:$0xff] %v3770
        %3803 = vst [vmem:[%s223 + $0x28] sm:$0xff] %v3771
        %3804 = vst [vmem:[%s223 + $0x30] sm:$0xff] %v3772
        %3805 = vst [vmem:[%s223 + $0x38] sm:$0xff] %v3773
        %3806 = vst [vmem:[%s223 + $0x40] sm:$0xff] %v3774
        %3807 = vst [vmem:[%s223 + $0x48] sm:$0xff] %v3775
        %3808 = vst [vmem:[%s223 + $0x50] sm:$0xff] %v3776
        %3809 = vst [vmem:[%s223 + $0x58] sm:$0xff] %v3777
        %3810 = vst [vmem:[%s223 + $0x60] sm:$0xff] %v3778
        %3811 = vst [vmem:[%s223 + $0x68] sm:$0xff] %v3779
        %3812 = vst [vmem:[%s223 + $0x70] sm:$0xff] %v3780
        %3813 = vst [vmem:[%s223 + $0x78] sm:$0xff] %v3781
        %3814 = vst [vmem:[%s223 + $0x80] sm:$0xff] %v3782
        %3815 = vst [vmem:[%s223 + $0x88] sm:$0xff] %v3783
        %3816 = vst [vmem:[%s223 + $0x90] sm:$0xff] %v3784
        %3817 = vst [vmem:[%s223 + $0x98] sm:$0xff] %v3785
        %3818 = vst [vmem:[%s223 + $0xa0] sm:$0xff] %v3786
        %3819 = vst [vmem:[%s223 + $0xa8] sm:$0xff] %v3787
        %3820 = vst [vmem:[%s223 + $0xb0] sm:$0xff] %v3788
        %3821 = vst [vmem:[%s223 + $0xb8] sm:$0xff] %v3789
        %3822 = vst [vmem:[%s223 + $0xc0] sm:$0xff] %v3790
        %3823 = vst [vmem:[%s223 + $0xc8] sm:$0xff] %v3791
        %3824 = vst [vmem:[%s223 + $0xd0] sm:$0xff] %v3792
        %3825 = vst [vmem:[%s223 + $0xd8] sm:$0xff] %v3793
        %3826 = vst [vmem:[%s223 + $0xe0] sm:$0xff] %v3794
        %3827 = vst [vmem:[%s223 + $0xe8] sm:$0xff] %v3795
        %3828 = vst [vmem:[%s223 + $0xf0] sm:$0xff] %v3796
        %3829 = vst [vmem:[%s223 + $0xf8] sm:$0xff] %v3797
        %v3830 = vadd.f32 %v3766, %v3767
        %v3831 = vadd.f32 %v3830, %v3768
        %v3832 = vadd.f32 %v3831, %v3769
        %v3833 = vadd.f32 %v3832, %v3770
        %v3834 = vadd.f32 %v3833, %v3771
        %v3835 = vadd.f32 %v3834, %v3772
        %v3836 = vadd.f32 %v3835, %v3773
        %v3837 = vadd.f32 %v3836, %v3774
        %v3838 = vadd.f32 %v3837, %v3775
        %v3839 = vadd.f32 %v3838, %v3776
        %v3840 = vadd.f32 %v3839, %v3777
        %v3841 = vadd.f32 %v3840, %v3778
        %v3842 = vadd.f32 %v3841, %v3779
        %v3843 = vadd.f32 %v3842, %v3780
        %v3844 = vadd.f32 %v3843, %v3781
        %v3845 = vadd.f32 %v3844, %v3782
        %v3846 = vadd.f32 %v3845, %v3783
        %v3847 = vadd.f32 %v3846, %v3784
        %v3848 = vadd.f32 %v3847, %v3785
        %v3849 = vadd.f32 %v3848, %v3786
        %v3850 = vadd.f32 %v3849, %v3787
        %v3851 = vadd.f32 %v3850, %v3788
        %v3852 = vadd.f32 %v3851, %v3789
        %v3853 = vadd.f32 %v3852, %v3790
        %v3854 = vadd.f32 %v3853, %v3791
        %v3855 = vadd.f32 %v3854, %v3792
        %v3856 = vadd.f32 %v3855, %v3793
        %v3857 = vadd.f32 %v3856, %v3794
        %v3858 = vadd.f32 %v3857, %v3795
        %v3859 = vadd.f32 %v3858, %v3796
        %v3860 = vadd.f32 %v3859, %v3797
        %v3861 = vrot.slane %v3860, 4
        %v3862 = vadd.f32 %v3860, %v3861
        %v3863 = vrot.slane %v3862, 2
        %v3864 = vadd.f32 %v3862, %v3863
        %v3865 = vrot.slane %v3864, 1
        %v3866 = vadd.f32 %v3864, %v3865
        %3867 = vst [vmem:[%s226] sm:$0x1] %v3866
        %v3868 = vmul.f32 %v3766, %v3766
        %v3869 = vmul.f32 %v3767, %v3767
        %v3870 = vmul.f32 %v3768, %v3768
        %v3871 = vmul.f32 %v3769, %v3769
        %v3872 = vmul.f32 %v3770, %v3770
        %v3873 = vmul.f32 %v3771, %v3771
        %v3874 = vmul.f32 %v3772, %v3772
        %v3875 = vmul.f32 %v3773, %v3773
        %v3876 = vmul.f32 %v3774, %v3774
        %v3877 = vmul.f32 %v3775, %v3775
        %v3878 = vmul.f32 %v3776, %v3776
        %v3879 = vmul.f32 %v3777, %v3777
        %v3880 = vmul.f32 %v3778, %v3778
        %v3881 = vmul.f32 %v3779, %v3779
        %v3882 = vmul.f32 %v3780, %v3780
        %v3883 = vmul.f32 %v3781, %v3781
        %v3884 = vmul.f32 %v3782, %v3782
        %v3885 = vmul.f32 %v3783, %v3783
        %v3886 = vmul.f32 %v3784, %v3784
        %v3887 = vmul.f32 %v3785, %v3785
        %v3888 = vmul.f32 %v3786, %v3786
        %v3889 = vmul.f32 %v3787, %v3787
        %v3890 = vmul.f32 %v3788, %v3788
        %v3891 = vmul.f32 %v3789, %v3789
        %v3892 = vmul.f32 %v3790, %v3790
        %v3893 = vmul.f32 %v3791, %v3791
        %v3894 = vmul.f32 %v3792, %v3792
        %v3895 = vmul.f32 %v3793, %v3793
        %v3896 = vmul.f32 %v3794, %v3794
        %v3897 = vmul.f32 %v3795, %v3795
        %v3898 = vmul.f32 %v3796, %v3796
        %v3899 = vmul.f32 %v3797, %v3797
        %v3900 = vadd.f32 %v3868, %v3869
        %v3901 = vadd.f32 %v3900, %v3870
        %v3902 = vadd.f32 %v3901, %v3871
        %v3903 = vadd.f32 %v3902, %v3872
        %v3904 = vadd.f32 %v3903, %v3873
        %v3905 = vadd.f32 %v3904, %v3874
        %v3906 = vadd.f32 %v3905, %v3875
        %v3907 = vadd.f32 %v3906, %v3876
        %v3908 = vadd.f32 %v3907, %v3877
        %v3909 = vadd.f32 %v3908, %v3878
        %v3910 = vadd.f32 %v3909, %v3879
        %v3911 = vadd.f32 %v3910, %v3880
        %v3912 = vadd.f32 %v3911, %v3881
        %v3913 = vadd.f32 %v3912, %v3882
        %v3914 = vadd.f32 %v3913, %v3883
        %v3915 = vadd.f32 %v3914, %v3884
        %v3916 = vadd.f32 %v3915, %v3885
        %v3917 = vadd.f32 %v3916, %v3886
        %v3918 = vadd.f32 %v3917, %v3887
        %v3919 = vadd.f32 %v3918, %v3888
        %v3920 = vadd.f32 %v3919, %v3889
        %v3921 = vadd.f32 %v3920, %v3890
        %v3922 = vadd.f32 %v3921, %v3891
        %v3923 = vadd.f32 %v3922, %v3892
        %v3924 = vadd.f32 %v3923, %v3893
        %v3925 = vadd.f32 %v3924, %v3894
        %v3926 = vadd.f32 %v3925, %v3895
        %v3927 = vadd.f32 %v3926, %v3896
        %v3928 = vadd.f32 %v3927, %v3897
        %v3929 = vadd.f32 %v3928, %v3898
        %v3930 = vadd.f32 %v3929, %v3899
        %v3931 = vrot.slane %v3930, 4
        %v3932 = vadd.f32 %v3930, %v3931
        %v3933 = vrot.slane %v3932, 2
        %v3934 = vadd.f32 %v3932, %v3933
        %v3935 = vrot.slane %v3934, 1
        %v3936 = vadd.f32 %v3934, %v3935
        %3937 = vst [vmem:[%s229] sm:$0x1] %v3936
        %p3938 = scmp.lt.s32.totalorder %s17, 1
        %s3939 = scalar_select %p3938, %s17, 1
        %s3940 = smul.addr %s3939, 32
        %s3941 = smul.addr %s3940, 8
        %s3942 = scalar_lea.vmem %s2, %s3941
        %p3943 = scmp.lt.s32.totalorder %s17, 1
        %s3944 = scalar_select %p3943, %s17, 1
        %s3945 = scalar_lea.vmem %s3, %s3944
        %p3946 = scmp.lt.s32.totalorder %s17, 1
        %s3947 = scalar_select %p3946, %s17, 1
        %s3948 = scalar_lea.vmem %s4, %s3947
        // Predicated region
        $region33: #{encoder_block_forward.3} parent=27 // pred_check
          %p3949 = pneg %p82
        $region34: #{encoder_block_forward.3} parent=27 // pred_check_branch
          %3951 = sbr.rel (%p3949) target = $region36
        $region35: #{encoder_block_forward.3} parent=27 // pred_region
          _
        $region36: #{encoder_block_forward.3} parent=27 // pred_fallthru
          _
        // Predicated region
        $region37: #{encoder_block_forward.3} parent=27 // pred_check
          %p3952 = pneg %p108
        $region38: #{encoder_block_forward.3} parent=27 // pred_check_branch
          %3954 = sbr.rel (%p3952) target = $region40
        $region39: #{encoder_block_forward.3} parent=27 // pred_region
          _
        $region40: #{encoder_block_forward.3} parent=27 // pred_fallthru
          _
        // Predicated region
        $region41: #{encoder_block_forward.3} parent=27 // pred_check
          %p3955 = pneg %p134
        $region42: #{encoder_block_forward.3} parent=27 // pred_check_branch
          %3957 = sbr.rel (%p3955) target = $region44
        $region43: #{encoder_block_forward.3} parent=27 // pred_region
          _
        $region44: #{encoder_block_forward.3} parent=27 // pred_fallthru
          _
      $region28: #{encoder_block_forward.3} parent=5 // pred_fallthru
        _
      %p3958 = scmp.le.s32.totalorder 2, %s12
      // Predicated region
      $region45: #{encoder_block_forward.3} parent=5 // pred_check
        %p3959 = pneg %p3958
      $region46: #{encoder_block_forward.3} parent=5 // pred_check_branch
        %3961 = sbr.rel (%p3959) target = $region48
      $region47: #{encoder_block_forward.3} parent=5 // pred_region
        %s3962 = ssub.s32 %s12, 2
        // Predicated region
        $region49: #{encoder_block_forward.3} parent=47 // pred_check
          %p3963 = pneg %p88
        $region50: #{encoder_block_forward.3} parent=47 // pred_check_branch
          %3965 = sbr.rel (%p3963) target = $region52
        $region51: #{encoder_block_forward.3} parent=47 // pred_region
          %p3966 = scmp.lt.s32.totalorder %s18, 1
          %s3967 = scalar_select %p3966, %s18, 1
          %s3968 = smul.addr %s3967, 32
          %s3969 = smul.addr %s3968, 8
          %s3970 = scalar_lea.vmem %s2, %s3969
        $region52: #{encoder_block_forward.3} parent=47 // pred_fallthru
          _
        // Predicated region
        $region53: #{encoder_block_forward.3} parent=47 // pred_check
          %p3971 = pneg %p114
        $region54: #{encoder_block_forward.3} parent=47 // pred_check_branch
          %3973 = sbr.rel (%p3971) target = $region56
        $region55: #{encoder_block_forward.3} parent=47 // pred_region
          %p3974 = scmp.lt.s32.totalorder %s18, 1
          %s3975 = scalar_select %p3974, %s18, 1
          %s3976 = scalar_lea.vmem %s3, %s3975
        $region56: #{encoder_block_forward.3} parent=47 // pred_fallthru
          _
        // Predicated region
        $region57: #{encoder_block_forward.3} parent=47 // pred_check
          %p3977 = pneg %p140
        $region58: #{encoder_block_forward.3} parent=47 // pred_check_branch
          %3979 = sbr.rel (%p3977) target = $region60
        $region59: #{encoder_block_forward.3} parent=47 // pred_region
          %p3980 = scmp.lt.s32.totalorder %s18, 1
          %s3981 = scalar_select %p3980, %s18, 1
          %s3982 = scalar_lea.vmem %s4, %s3981
        $region60: #{encoder_block_forward.3} parent=47 // pred_fallthru
          _
      $region48: #{encoder_block_forward.3} parent=5 // pred_fallthru
        _
    $region6: #{encoder_block_forward.3} parent=1 // loop_footer
      %s16 = sadd.s32 1, %s12
    $region7: #{encoder_block_forward.3} parent=1 // loop_footer_branch
      %11 = sbr.rel target = $region3
    $region8: #{encoder_block_forward.3} parent=1 // loop_exit
      _
    %3983 = vsyncpa [#allocation4], 1
    %s3984 = scalar_lea.sflag [#allocation4], 1
    %3985 = vsyncpa %s3984, 1

// kernel: encoder_block_forward.4
$region0: #{encoder_block_forward.4}
  #allocation0 [shape = 'u32[]', space=smem, size = 0x4, offset = 0x4, fixed_abs, tag = 'smem constant byte address 0x4 - core index']
  #allocation1 [shape = 'u32[144,128]{1,0:T(1,128)}', space=vmem, size = 0x12000, scoped, tag = 'internal scratch']
  #allocation2 [shape = 'f32[1,18,18,128]{3,2,1,0:T(8,128)}', space=vmem, size = 0x36000, scoped, tag = 'scratch operand']
  %s0 = inlined_call_operand.vmem [shape: f32[2,16,16,128], index: 0, kind: input, shape index: {}]
  %s1 = inlined_call_operand.vmem [shape: f32[1,128], index: 1, kind: input, shape index: {}]
  %s2 = inlined_call_operand.vmem [shape: f32[1,128], index: 2, kind: input, shape index: {}]
  %s3 = inlined_call_operand.vmem [shape: f32[9,128,128], index: 3, kind: input, shape index: {}]
  %s4 = inlined_call_operand.vmem [shape: f32[2,256,128], index: 4, kind: output, shape index: {0}]
  %s5 = inlined_call_operand.vmem [shape: f32[2,1,128], index: 5, kind: output, shape index: {1}]
  %s6 = inlined_call_operand.vmem [shape: f32[2,1,128], index: 6, kind: output, shape index: {2}]
  %7 = xla_tuple %s4, %s5, %s6
  %s8 = sld [smem:[#allocation0]]
  $region65: #{encoder_block_forward.4} parent=0
    _
  %s10 = ssub.s32 1, %s8
  %s11 = scalar_select 0, %s10, %s8
  loop: start=0, step=1, limit=4
  $region2: #{encoder_block_forward.4} parent=0 // loop_pre_header
    _
  $region3: #{encoder_block_forward.4} parent=0 // loop_header
    %s13 = sphi 0, %s17
    %p14 = scmp.ge.s32.totalorder %s13, 4
    %s23 = sphi 0, %s25
    %s26 = sphi 0, %s23
    %s27 = sphi 0, %s26
    %s43 = sphi 0, %s27
    %s47 = sphi 0, %s47
    %s49 = sphi 0, %s47
    %s50 = sphi 0, %s49
    %s64 = sphi 0, %s50
    %s68 = sphi 0, %s68
    %s70 = sphi 0, %s68
    %s71 = sphi 0, %s70
    %s85 = sphi 0, %s71
    %s89 = sphi 0, %s89
    %s91 = sphi 0, %s89
    %s92 = sphi 0, %s91
    %s106 = sphi 0, %s92
    %s112 = sphi 0, %s114
    %s115 = sphi 0, %s112
    %s116 = sphi 0, %s115
    %s132 = sphi 0, %s116
    %s138 = sphi 0, %s140
    %s141 = sphi 0, %s138
    %s142 = sphi 0, %s141
    %s158 = sphi 0, %s142
    %s164 = sphi 0, %s166
    %s167 = sphi 0, %s164
    %s168 = sphi 0, %s167
    %s184 = sphi 0, %s168
  $region4: #{encoder_block_forward.4} parent=0 // loop_header_branch
    %16 = sbr.rel (%p14) target = $region8
  $region5: #{encoder_block_forward.4} parent=0 // loop_body
    %s18 = ssub.s32 %s13, 1
    %s19 = ssub.s32 %s13, 2
    %s20 = sadd.s32 %s13, 1
    %s21 = ssub.s32 %s13, %s20
    %p22 = scmp.eq.s32.totalorder %s21, 0
    %s24 = sadd.s32 %s23, 1
    %s25 = scalar_select %p22, %s23, %s24
    %p28 = pneg %p22
    %p29 = scmp.eq.s32.totalorder %s13, 1
    %p30 = por %p28, %p29
    %p31 = scmp.ne.s32.totalorder %s23, %s26
    %p32 = scmp.eq.s32.totalorder %s13, 0
    %p33 = por %p31, %p32
    %p34 = scmp.ne.s32.totalorder %s23, %s26
    %p35 = scmp.eq.s32.totalorder %s18, 1
    %p36 = por %p34, %p35
    %p37 = scmp.ne.s32.totalorder %s26, %s27
    %p38 = scmp.eq.s32.totalorder %s18, 0
    %p39 = por %p37, %p38
    %p40 = scmp.ne.s32.totalorder %s26, %s27
    %p41 = scmp.eq.s32.totalorder %s19, 1
    %p42 = por %p40, %p41
    %p44 = scmp.ne.s32.totalorder %s27, %s43
    %p45 = scmp.eq.s32.totalorder %s19, 0
    %p46 = por %p44, %p45
    %s48 = sadd.s32 %s47, 1
    %p51 = scmp.eq.s32.totalorder %s13, 1
    %p52 = scmp.ne.s32.totalorder %s47, %s49
    %p53 = scmp.eq.s32.totalorder %s13, 0
    %p54 = por %p52, %p53
    %p55 = scmp.ne.s32.totalorder %s47, %s49
    %p56 = scmp.eq.s32.totalorder %s18, 1
    %p57 = por %p55, %p56
    %p58 = scmp.ne.s32.totalorder %s49, %s50
    %p59 = scmp.eq.s32.totalorder %s18, 0
    %p60 = por %p58, %p59
    %p61 = scmp.ne.s32.totalorder %s49, %s50
    %p62 = scmp.eq.s32.totalorder %s19, 1
    %p63 = por %p61, %p62
    %p65 = scmp.ne.s32.totalorder %s50, %s64
    %p66 = scmp.eq.s32.totalorder %s19, 0
    %p67 = por %p65, %p66
    %s69 = sadd.s32 %s68, 1
    %p72 = scmp.eq.s32.totalorder %s13, 1
    %p73 = scmp.ne.s32.totalorder %s68, %s70
    %p74 = scmp.eq.s32.totalorder %s13, 0
    %p75 = por %p73, %p74
    %p76 = scmp.ne.s32.totalorder %s68, %s70
    %p77 = scmp.eq.s32.totalorder %s18, 1
    %p78 = por %p76, %p77
    %p79 = scmp.ne.s32.totalorder %s70, %s71
    %p80 = scmp.eq.s32.totalorder %s18, 0
    %p81 = por %p79, %p80
    %p82 = scmp.ne.s32.totalorder %s70, %s71
    %p83 = scmp.eq.s32.totalorder %s19, 1
    %p84 = por %p82, %p83
    %p86 = scmp.ne.s32.totalorder %s71, %s85
    %p87 = scmp.eq.s32.totalorder %s19, 0
    %p88 = por %p86, %p87
    %s90 = sadd.s32 %s89, 1
    %p93 = scmp.eq.s32.totalorder %s13, 1
    %p94 = scmp.ne.s32.totalorder %s89, %s91
    %p95 = scmp.eq.s32.totalorder %s13, 0
    %p96 = por %p94, %p95
    %p97 = scmp.ne.s32.totalorder %s89, %s91
    %p98 = scmp.eq.s32.totalorder %s18, 1
    %p99 = por %p97, %p98
    %p100 = scmp.ne.s32.totalorder %s91, %s92
    %p101 = scmp.eq.s32.totalorder %s18, 0
    %p102 = por %p100, %p101
    %p103 = scmp.ne.s32.totalorder %s91, %s92
    %p104 = scmp.eq.s32.totalorder %s19, 1
    %p105 = por %p103, %p104
    %p107 = scmp.ne.s32.totalorder %s92, %s106
    %p108 = scmp.eq.s32.totalorder %s19, 0
    %p109 = por %p107, %p108
    %s110 = ssub.s32 %s13, %s20
    %p111 = scmp.eq.s32.totalorder %s110, 0
    %s113 = sadd.s32 %s112, 1
    %s114 = scalar_select %p111, %s112, %s113
    %p117 = pneg %p111
    %p118 = scmp.eq.s32.totalorder %s13, 1
    %p119 = por %p117, %p118
    %p120 = scmp.ne.s32.totalorder %s112, %s115
    %p121 = scmp.eq.s32.totalorder %s13, 0
    %p122 = por %p120, %p121
    %p123 = scmp.ne.s32.totalorder %s112, %s115
    %p124 = scmp.eq.s32.totalorder %s18, 1
    %p125 = por %p123, %p124
    %p126 = scmp.ne.s32.totalorder %s115, %s116
    %p127 = scmp.eq.s32.totalorder %s18, 0
    %p128 = por %p126, %p127
    %p129 = scmp.ne.s32.totalorder %s115, %s116
    %p130 = scmp.eq.s32.totalorder %s19, 1
    %p131 = por %p129, %p130
    %p133 = scmp.ne.s32.totalorder %s116, %s132
    %p134 = scmp.eq.s32.totalorder %s19, 0
    %p135 = por %p133, %p134
    %s136 = ssub.s32 %s13, %s20
    %p137 = scmp.eq.s32.totalorder %s136, 0
    %s139 = sadd.s32 %s138, 1
    %s140 = scalar_select %p137, %s138, %s139
    %p143 = pneg %p137
    %p144 = scmp.eq.s32.totalorder %s13, 1
    %p145 = por %p143, %p144
    %p146 = scmp.ne.s32.totalorder %s138, %s141
    %p147 = scmp.eq.s32.totalorder %s13, 0
    %p148 = por %p146, %p147
    %p149 = scmp.ne.s32.totalorder %s138, %s141
    %p150 = scmp.eq.s32.totalorder %s18, 1
    %p151 = por %p149, %p150
    %p152 = scmp.ne.s32.totalorder %s141, %s142
    %p153 = scmp.eq.s32.totalorder %s18, 0
    %p154 = por %p152, %p153
    %p155 = scmp.ne.s32.totalorder %s141, %s142
    %p156 = scmp.eq.s32.totalorder %s19, 1
    %p157 = por %p155, %p156
    %p159 = scmp.ne.s32.totalorder %s142, %s158
    %p160 = scmp.eq.s32.totalorder %s19, 0
    %p161 = por %p159, %p160
    %s162 = ssub.s32 %s13, %s20
    %p163 = scmp.eq.s32.totalorder %s162, 0
    %s165 = sadd.s32 %s164, 1
    %s166 = scalar_select %p163, %s164, %s165
    %p169 = pneg %p163
    %p170 = scmp.eq.s32.totalorder %s13, 1
    %p171 = por %p169, %p170
    %p172 = scmp.ne.s32.totalorder %s164, %s167
    %p173 = scmp.eq.s32.totalorder %s13, 0
    %p174 = por %p172, %p173
    %p175 = scmp.ne.s32.totalorder %s164, %s167
    %p176 = scmp.eq.s32.totalorder %s18, 1
    %p177 = por %p175, %p176
    %p178 = scmp.ne.s32.totalorder %s167, %s168
    %p179 = scmp.eq.s32.totalorder %s18, 0
    %p180 = por %p178, %p179
    %p181 = scmp.ne.s32.totalorder %s167, %s168
    %p182 = scmp.eq.s32.totalorder %s19, 1
    %p183 = por %p181, %p182
    %p185 = scmp.ne.s32.totalorder %s168, %s184
    %p186 = scmp.eq.s32.totalorder %s19, 0
    %p187 = por %p185, %p186
    %p188 = scmp.le.s32.totalorder 1, %s13
    %p189 = scmp.lt.s32.totalorder %s13, 3
    %p190 = pnand %p188, %p189
    %p191 = pneg %p190
    // Predicated region
    $region9: #{encoder_block_forward.4} parent=5 // pred_check
      _
    $region10: #{encoder_block_forward.4} parent=5 // pred_check_branch
      %193 = sbr.rel (%p190) target = $region12
    $region11: #{encoder_block_forward.4} parent=5 // pred_region
      %s194 = ssub.s32 %s13, 1
      // Predicated region
      $region13: #{encoder_block_forward.4} parent=11 // pred_check
        %p195 = pneg %p60
      $region14: #{encoder_block_forward.4} parent=11 // pred_check_branch
        %197 = sbr.rel (%p195) target = $region16
      $region15: #{encoder_block_forward.4} parent=11 // pred_region
        _
      $region16: #{encoder_block_forward.4} parent=11 // pred_fallthru
        _
      // Predicated region
      $region17: #{encoder_block_forward.4} parent=11 // pred_check
        %p198 = pneg %p81
      $region18: #{encoder_block_forward.4} parent=11 // pred_check_branch
        %200 = sbr.rel (%p198) target = $region20
      $region19: #{encoder_block_forward.4} parent=11 // pred_region
        _
      $region20: #{encoder_block_forward.4} parent=11 // pred_fallthru
        _
      // Predicated region
      $region21: #{encoder_block_forward.4} parent=11 // pred_check
        %p201 = pneg %p102
      $region22: #{encoder_block_forward.4} parent=11 // pred_check_branch
        %203 = sbr.rel (%p201) target = $region24
      $region23: #{encoder_block_forward.4} parent=11 // pred_region
        _
      $region24: #{encoder_block_forward.4} parent=11 // pred_fallthru
        _
    $region12: #{encoder_block_forward.4} parent=5 // pred_fallthru
      _
    %p204 = scmp.lt.s32.totalorder %s13, 2
    // Predicated region
    $region25: #{encoder_block_forward.4} parent=5 // pred_check
      %p205 = pneg %p204
    $region26: #{encoder_block_forward.4} parent=5 // pred_check_branch
      %207 = sbr.rel (%p205) target = $region28
    $region27: #{encoder_block_forward.4} parent=5 // pred_region
      // Predicated region
      $region29: #{encoder_block_forward.4} parent=27 // pred_check
        %p208 = pneg %p33
      $region30: #{encoder_block_forward.4} parent=27 // pred_check_branch
        %210 = sbr.rel (%p208) target = $region32
      $region31: #{encoder_block_forward.4} parent=27 // pred_region
        %p211 = scmp.lt.s32.totalorder %s13, 1
        %s212 = scalar_select %p211, %s13, 1
        %s213 = smul.addr %s212, 32
        %s214 = smul.addr %s213, 8
        %s215 = scalar_lea.vmem %s0, %s214
      $region32: #{encoder_block_forward.4} parent=27 // pred_fallthru
        _
    $region28: #{encoder_block_forward.4} parent=5 // pred_fallthru
      _
    %p216 = scmp.le.s32.totalorder 1, %s13
    %p217 = scmp.lt.s32.totalorder %s13, 3
    %p218 = pnand %p216, %p217
    %p219 = pneg %p218
    // Predicated region
    $region33: #{encoder_block_forward.4} parent=5 // pred_check
      _
    $region34: #{encoder_block_forward.4} parent=5 // pred_check_branch
      %221 = sbr.rel (%p218) target = $region36
    $region35: #{encoder_block_forward.4} parent=5 // pred_region
      %s222 = ssub.s32 %s13, 1
      %p223 = scmp.lt.s32.totalorder %s18, 1
      %s224 = scalar_select %p223, %s18, 1
      %s225 = smul.addr %s224, 32
      %s226 = smul.addr %s225, 8
      %s227 = scalar_lea.vmem %s0, %s226
      %p228 = pneg %p39
      %p229 = pneg %p36
      %p230 = pneg %p60
      %p231 = pneg %p57
      %p232 = pneg %p81
      %p233 = pneg %p78
      %p234 = pneg %p102
      %p235 = pneg %p99
      %p236 = pneg %p128
      %p237 = pneg %p125
      %p238 = scmp.lt.s32.totalorder %s18, 1
      %s239 = scalar_select %p238, %s18, 1
      %s240 = smul.addr %s239, 32
      %s241 = smul.addr %s240, 8
      %s242 = scalar_lea.vmem %s4, %s241
      %p243 = pneg %p154
      %p244 = pneg %p151
      %p245 = scmp.lt.s32.totalorder %s18, 1
      %s246 = scalar_select %p245, %s18, 1
      %s247 = scalar_lea.vmem %s5, %s246
      %p248 = pneg %p180
      %p249 = pneg %p177
      %p250 = scmp.lt.s32.totalorder %s18, 1
      %s251 = scalar_select %p250, %s18, 1
      %s252 = scalar_lea.vmem %s6, %s251
      %p253 = scmp.lt.s32.totalorder %s18, 1
      %s254 = scalar_select %p253, %s18, 1
      %s255 = smul.addr %s254, 32
      %s256 = smul.addr %s255, 8
      %s257 = scalar_lea.vmem %s0, %s256
      %p258 = scmp.lt.s32.totalorder %s18, 1
      %s259 = scalar_select %p258, %s18, 1
      %s260 = smul.addr %s259, 32
      %s261 = smul.addr %s260, 8
      %s262 = scalar_lea.vmem %s4, %s261
      %p263 = scmp.lt.s32.totalorder %s18, 1
      %s264 = scalar_select %p263, %s18, 1
      %s265 = scalar_lea.vmem %s5, %s264
      %p266 = scmp.lt.s32.totalorder %s18, 1
      %s267 = scalar_select %p266, %s18, 1
      %s268 = scalar_lea.vmem %s6, %s267
      %v269 = vld [vmem:[%s257] sm:$0xff]
      %v270 = vld [vmem:[%s257 + $0x8] sm:$0xff]
      %v271 = vld [vmem:[%s257 + $0x10] sm:$0xff]
      %v272 = vld [vmem:[%s257 + $0x18] sm:$0xff]
      %v273 = vld [vmem:[%s257 + $0x20] sm:$0xff]
      %v274 = vld [vmem:[%s257 + $0x28] sm:$0xff]
      %v275 = vld [vmem:[%s257 + $0x30] sm:$0xff]
      %v276 = vld [vmem:[%s257 + $0x38] sm:$0xff]
      %v277 = vld [vmem:[%s257 + $0x40] sm:$0xff]
      %v278 = vld [vmem:[%s257 + $0x48] sm:$0xff]
      %v279 = vld [vmem:[%s257 + $0x50] sm:$0xff]
      %v280 = vld [vmem:[%s257 + $0x58] sm:$0xff]
      %v281 = vld [vmem:[%s257 + $0x60] sm:$0xff]
      %v282 = vld [vmem:[%s257 + $0x68] sm:$0xff]
      %v283 = vld [vmem:[%s257 + $0x70] sm:$0xff]
      %v284 = vld [vmem:[%s257 + $0x78] sm:$0xff]
      %v285 = vld [vmem:[%s257 + $0x80] sm:$0xff]
      %v286 = vld [vmem:[%s257 + $0x88] sm:$0xff]
      %v287 = vld [vmem:[%s257 + $0x90] sm:$0xff]
      %v288 = vld [vmem:[%s257 + $0x98] sm:$0xff]
      %v289 = vld [vmem:[%s257 + $0xa0] sm:$0xff]
      %v290 = vld [vmem:[%s257 + $0xa8] sm:$0xff]
      %v291 = vld [vmem:[%s257 + $0xb0] sm:$0xff]
      %v292 = vld [vmem:[%s257 + $0xb8] sm:$0xff]
      %v293 = vld [vmem:[%s257 + $0xc0] sm:$0xff]
      %v294 = vld [vmem:[%s257 + $0xc8] sm:$0xff]
      %v295 = vld [vmem:[%s257 + $0xd0] sm:$0xff]
      %v296 = vld [vmem:[%s257 + $0xd8] sm:$0xff]
      %v297 = vld [vmem:[%s257 + $0xe0] sm:$0xff]
      %v298 = vld [vmem:[%s257 + $0xe8] sm:$0xff]
      %v299 = vld [vmem:[%s257 + $0xf0] sm:$0xff]
      %v300 = vld [vmem:[%s257 + $0xf8] sm:$0xff]
      %v301 = vld [vmem:[%s1] sm:$0x1]
      %v303 = vlaneseq
      %v304 = vshrl.u32 %v303, 7
      %v305 = vsub.s32 0, %v304
      %v306 = vrot.slane %v301, %v305
      %v308 = vmul.f32 %v269, %v306
      %v309 = vmul.f32 %v270, %v306
      %v310 = vmul.f32 %v271, %v306
      %v311 = vmul.f32 %v272, %v306
      %v312 = vmul.f32 %v273, %v306
      %v313 = vmul.f32 %v274, %v306
      %v314 = vmul.f32 %v275, %v306
      %v315 = vmul.f32 %v276, %v306
      %v316 = vmul.f32 %v277, %v306
      %v317 = vmul.f32 %v278, %v306
      %v318 = vmul.f32 %v279, %v306
      %v319 = vmul.f32 %v280, %v306
      %v320 = vmul.f32 %v281, %v306
      %v321 = vmul.f32 %v282, %v306
      %v322 = vmul.f32 %v283, %v306
      %v323 = vmul.f32 %v284, %v306
      %v324 = vmul.f32 %v285, %v306
      %v325 = vmul.f32 %v286, %v306
      %v326 = vmul.f32 %v287, %v306
      %v327 = vmul.f32 %v288, %v306
      %v328 = vmul.f32 %v289, %v306
      %v329 = vmul.f32 %v290, %v306
      %v330 = vmul.f32 %v291, %v306
      %v331 = vmul.f32 %v292, %v306
      %v332 = vmul.f32 %v293, %v306
      %v333 = vmul.f32 %v294, %v306
      %v334 = vmul.f32 %v295, %v306
      %v335 = vmul.f32 %v296, %v306
      %v336 = vmul.f32 %v297, %v306
      %v337 = vmul.f32 %v298, %v306
      %v338 = vmul.f32 %v299, %v306
      %v339 = vmul.f32 %v300, %v306
      %v340 = vld [vmem:[%s2] sm:$0x1]
      %v342 = vlaneseq
      %v343 = vshrl.u32 %v342, 7
      %v344 = vsub.s32 0, %v343
      %v345 = vrot.slane %v340, %v344
      %v347 = vadd.f32 %v308, %v345
      %v348 = vadd.f32 %v309, %v345
      %v349 = vadd.f32 %v310, %v345
      %v350 = vadd.f32 %v311, %v345
      %v351 = vadd.f32 %v312, %v345
      %v352 = vadd.f32 %v313, %v345
      %v353 = vadd.f32 %v314, %v345
      %v354 = vadd.f32 %v315, %v345
      %v355 = vadd.f32 %v316, %v345
      %v356 = vadd.f32 %v317, %v345
      %v357 = vadd.f32 %v318, %v345
      %v358 = vadd.f32 %v319, %v345
      %v359 = vadd.f32 %v320, %v345
      %v360 = vadd.f32 %v321, %v345
      %v361 = vadd.f32 %v322, %v345
      %v362 = vadd.f32 %v323, %v345
      %v363 = vadd.f32 %v324, %v345
      %v364 = vadd.f32 %v325, %v345
      %v365 = vadd.f32 %v326, %v345
      %v366 = vadd.f32 %v327, %v345
      %v367 = vadd.f32 %v328, %v345
      %v368 = vadd.f32 %v329, %v345
      %v369 = vadd.f32 %v330, %v345
      %v370 = vadd.f32 %v331, %v345
      %v371 = vadd.f32 %v332, %v345
      %v372 = vadd.f32 %v333, %v345
      %v373 = vadd.f32 %v334, %v345
      %v374 = vadd.f32 %v335, %v345
      %v375 = vadd.f32 %v336, %v345
      %v376 = vadd.f32 %v337, %v345
      %v377 = vadd.f32 %v338, %v345
      %v378 = vadd.f32 %v339, %v345
      %v379 = vmax.f32 %v347, 0.0
      %v380 = vmax.f32 %v348, 0.0
      %v381 = vmax.f32 %v349, 0.0
      %v382 = vmax.f32 %v350, 0.0
      %v383 = vmax.f32 %v351, 0.0
      %v384 = vmax.f32 %v352, 0.0
      %v385 = vmax.f32 %v353, 0.0
      %v386 = vmax.f32 %v354, 0.0
      %v387 = vmax.f32 %v355, 0.0
      %v388 = vmax.f32 %v356, 0.0
      %v389 = vmax.f32 %v357, 0.0
      %v390 = vmax.f32 %v358, 0.0
      %v391 = vmax.f32 %v359, 0.0
      %v392 = vmax.f32 %v360, 0.0
      %v393 = vmax.f32 %v361, 0.0
      %v394 = vmax.f32 %v362, 0.0
      %v395 = vmax.f32 %v363, 0.0
      %v396 = vmax.f32 %v364, 0.0
      %v397 = vmax.f32 %v365, 0.0
      %v398 = vmax.f32 %v366, 0.0
      %v399 = vmax.f32 %v367, 0.0
      %v400 = vmax.f32 %v368, 0.0
      %v401 = vmax.f32 %v369, 0.0
      %v402 = vmax.f32 %v370, 0.0
      %v403 = vmax.f32 %v371, 0.0
      %v404 = vmax.f32 %v372, 0.0
      %v405 = vmax.f32 %v373, 0.0
      %v406 = vmax.f32 %v374, 0.0
      %v407 = vmax.f32 %v375, 0.0
      %v408 = vmax.f32 %v376, 0.0
      %v409 = vmax.f32 %v377, 0.0
      %v410 = vmax.f32 %v378, 0.0
      %411 = vst [vmem:[#allocation2] sm:$0xff] 0.0
      %412 = vst [vmem:[#allocation2 + $0x8] sm:$0xff] 0.0
      %413 = vst [vmem:[#allocation2 + $0x10] sm:$0x3] 0.0
      %414 = vst [vmem:[#allocation2 + $0x18] sm:$0xff] 0.0
      %415 = vst [vmem:[#allocation2 + $0x20] sm:$0xff] 0.0
      %416 = vst [vmem:[#allocation2 + $0x28] sm:$0x3] 0.0
      %417 = vst [vmem:[#allocation2 + $0x30] sm:$0xff] 0.0
      %418 = vst [vmem:[#allocation2 + $0x38] sm:$0xff] 0.0
      %419 = vst [vmem:[#allocation2 + $0x40] sm:$0x3] 0.0
      %420 = vst [vmem:[#allocation2 + $0x48] sm:$0xff] 0.0
      %421 = vst [vmem:[#allocation2 + $0x50] sm:$0xff] 0.0
      %422 = vst [vmem:[#allocation2 + $0x58] sm:$0x3] 0.0
      %423 = vst [vmem:[#allocation2 + $0x60] sm:$0xff] 0.0
      %424 = vst [vmem:[#allocation2 + $0x68] sm:$0xff] 0.0
      %425 = vst [vmem:[#allocation2 + $0x70] sm:$0x3] 0.0
      %426 = vst [vmem:[#allocation2 + $0x78] sm:$0xff] 0.0
      %427 = vst [vmem:[#allocation2 + $0x80] sm:$0xff] 0.0
      %428 = vst [vmem:[#allocation2 + $0x88] sm:$0x3] 0.0
      %429 = vst [vmem:[#allocation2 + $0x90] sm:$0xff] 0.0
      %430 = vst [vmem:[#allocation2 + $0x98] sm:$0xff] 0.0
      %431 = vst [vmem:[#allocation2 + $0xa0] sm:$0x3] 0.0
      %432 = vst [vmem:[#allocation2 + $0xa8] sm:$0xff] 0.0
      %433 = vst [vmem:[#allocation2 + $0xb0] sm:$0xff] 0.0
      %434 = vst [vmem:[#allocation2 + $0xb8] sm:$0x3] 0.0
      %435 = vst [vmem:[#allocation2 + $0xc0] sm:$0xff] 0.0
      %436 = vst [vmem:[#allocation2 + $0xc8] sm:$0xff] 0.0
      %437 = vst [vmem:[#allocation2 + $0xd0] sm:$0x3] 0.0
      %438 = vst [vmem:[#allocation2 + $0xd8] sm:$0xff] 0.0
      %439 = vst [vmem:[#allocation2 + $0xe0] sm:$0xff] 0.0
      %440 = vst [vmem:[#allocation2 + $0xe8] sm:$0x3] 0.0
      %441 = vst [vmem:[#allocation2 + $0xf0] sm:$0xff] 0.0
      %442 = vst [vmem:[#allocation2 + $0xf8] sm:$0xff] 0.0
      %443 = vst [vmem:[#allocation2 + $0x100] sm:$0x3] 0.0
      %444 = vst [vmem:[#allocation2 + $0x108] sm:$0xff] 0.0
      %445 = vst [vmem:[#allocation2 + $0x110] sm:$0xff] 0.0
      %446 = vst [vmem:[#allocation2 + $0x118] sm:$0x3] 0.0
      %447 = vst [vmem:[#allocation2 + $0x120] sm:$0xff] 0.0
      %448 = vst [vmem:[#allocation2 + $0x128] sm:$0xff] 0.0
      %449 = vst [vmem:[#allocation2 + $0x130] sm:$0x3] 0.0
      %450 = vst [vmem:[#allocation2 + $0x138] sm:$0xff] 0.0
      %451 = vst [vmem:[#allocation2 + $0x140] sm:$0xff] 0.0
      %452 = vst [vmem:[#allocation2 + $0x148] sm:$0x3] 0.0
      %453 = vst [vmem:[#allocation2 + $0x150] sm:$0xff] 0.0
      %454 = vst [vmem:[#allocation2 + $0x158] sm:$0xff] 0.0
      %455 = vst [vmem:[#allocation2 + $0x160] sm:$0x3] 0.0
      %456 = vst [vmem:[#allocation2 + $0x168] sm:$0xff] 0.0
      %457 = vst [vmem:[#allocation2 + $0x170] sm:$0xff] 0.0
      %458 = vst [vmem:[#allocation2 + $0x178] sm:$0x3] 0.0
      %459 = vst [vmem:[#allocation2 + $0x180] sm:$0xff] 0.0
      %460 = vst [vmem:[#allocation2 + $0x188] sm:$0xff] 0.0
      %461 = vst [vmem:[#allocation2 + $0x190] sm:$0x3] 0.0
      %462 = vst [vmem:[#allocation2 + $0x198] sm:$0xff] 0.0
      %463 = vst [vmem:[#allocation2 + $0x1a0] sm:$0xff] 0.0
      %464 = vst [vmem:[#allocation2 + $0x1a8] sm:$0x3] 0.0
      %s465 = scalar_lea.vmem [#allocation2], 24
      %466 = vst [vmem:[%s465 + $0x1] sm:$0xff] %v379
      %467 = vst [vmem:[%s465 + $0x9] sm:$0xff] %v380
      %468 = vst [vmem:[%s465 + $0x19] sm:$0xff] %v381
      %469 = vst [vmem:[%s465 + $0x21] sm:$0xff] %v382
      %470 = vst [vmem:[%s465 + $0x31] sm:$0xff] %v383
      %471 = vst [vmem:[%s465 + $0x39] sm:$0xff] %v384
      %472 = vst [vmem:[%s465 + $0x49] sm:$0xff] %v385
      %473 = vst [vmem:[%s465 + $0x51] sm:$0xff] %v386
      %474 = vst [vmem:[%s465 + $0x61] sm:$0xff] %v387
      %475 = vst [vmem:[%s465 + $0x69] sm:$0xff] %v388
      %476 = vst [vmem:[%s465 + $0x79] sm:$0xff] %v389
      %477 = vst [vmem:[%s465 + $0x81] sm:$0xff] %v390
      %478 = vst [vmem:[%s465 + $0x91] sm:$0xff] %v391
      %479 = vst [vmem:[%s465 + $0x99] sm:$0xff] %v392
      %480 = vst [vmem:[%s465 + $0xa9] sm:$0xff] %v393
      %481 = vst [vmem:[%s465 + $0xb1] sm:$0xff] %v394
      %482 = vst [vmem:[%s465 + $0xc1] sm:$0xff] %v395
      %483 = vst [vmem:[%s465 + $0xc9] sm:$0xff] %v396
      %484 = vst [vmem:[%s465 + $0xd9] sm:$0xff] %v397
      %485 = vst [vmem:[%s465 + $0xe1] sm:$0xff] %v398
      %486 = vst [vmem:[%s465 + $0xf1] sm:$0xff] %v399
      %487 = vst [vmem:[%s465 + $0xf9] sm:$0xff] %v400
      %488 = vst [vmem:[%s465 + $0x109] sm:$0xff] %v401
      %489 = vst [vmem:[%s465 + $0x111] sm:$0xff] %v402
      %490 = vst [vmem:[%s465 + $0x121] sm:$0xff] %v403
      %491 = vst [vmem:[%s465 + $0x129] sm:$0xff] %v404
      %492 = vst [vmem:[%s465 + $0x139] sm:$0xff] %v405
      %493 = vst [vmem:[%s465 + $0x141] sm:$0xff] %v406
      %494 = vst [vmem:[%s465 + $0x151] sm:$0xff] %v407
      %495 = vst [vmem:[%s465 + $0x159] sm:$0xff] %v408
      %496 = vst [vmem:[%s465 + $0x169] sm:$0xff] %v409
      %497 = vst [vmem:[%s465 + $0x171] sm:$0xff] %v410
      %v498 = vld [vmem:[#allocation2] sm:$0xff]
      %v499 = vld [vmem:[#allocation2 + $0x8] sm:$0xff]
      %v500 = vld [vmem:[#allocation2 + $0x18] sm:$0xff]
      %v501 = vld [vmem:[#allocation2 + $0x20] sm:$0xff]
      %v502 = vld [vmem:[#allocation2 + $0x30] sm:$0xff]
      %v503 = vld [vmem:[#allocation2 + $0x38] sm:$0xff]
      %v504 = vld [vmem:[#allocation2 + $0x48] sm:$0xff]
      %v505 = vld [vmem:[#allocation2 + $0x50] sm:$0xff]
      %v506 = vld [vmem:[#allocation2 + $0x60] sm:$0xff]
      %v507 = vld [vmem:[#allocation2 + $0x68] sm:$0xff]
      %v508 = vld [vmem:[#allocation2 + $0x78] sm:$0xff]
      %v509 = vld [vmem:[#allocation2 + $0x80] sm:$0xff]
      %v510 = vld [vmem:[#allocation2 + $0x90] sm:$0xff]
      %v511 = vld [vmem:[#allocation2 + $0x98] sm:$0xff]
      %v512 = vld [vmem:[#allocation2 + $0xa8] sm:$0xff]
      %v513 = vld [vmem:[#allocation2 + $0xb0] sm:$0xff]
      %v514 = vld [vmem:[#allocation2 + $0xc0] sm:$0xff]
      %v515 = vld [vmem:[#allocation2 + $0xc8] sm:$0xff]
      %v516 = vld [vmem:[#allocation2 + $0xd8] sm:$0xff]
      %v517 = vld [vmem:[#allocation2 + $0xe0] sm:$0xff]
      %v518 = vld [vmem:[#allocation2 + $0xf0] sm:$0xff]
      %v519 = vld [vmem:[#allocation2 + $0xf8] sm:$0xff]
      %v520 = vld [vmem:[#allocation2 + $0x108] sm:$0xff]
      %v521 = vld [vmem:[#allocation2 + $0x110] sm:$0xff]
      %v522 = vld [vmem:[#allocation2 + $0x120] sm:$0xff]
      %v523 = vld [vmem:[#allocation2 + $0x128] sm:$0xff]
      %v524 = vld [vmem:[#allocation2 + $0x138] sm:$0xff]
      %v525 = vld [vmem:[#allocation2 + $0x140] sm:$0xff]
      %v526 = vld [vmem:[#allocation2 + $0x150] sm:$0xff]
      %v527 = vld [vmem:[#allocation2 + $0x158] sm:$0xff]
      %v528 = vld [vmem:[#allocation2 + $0x168] sm:$0xff]
      %v529 = vld [vmem:[#allocation2 + $0x170] sm:$0xff]
      %v530 = vld [vmem:[%s3] sm:$0xff]
      %v531 = vld [vmem:[%s3 + $0x8] sm:$0xff]
      %v532 = vld [vmem:[%s3 + $0x10] sm:$0xff]
      %v533 = vld [vmem:[%s3 + $0x18] sm:$0xff]
      %v534 = vld [vmem:[%s3 + $0x20] sm:$0xff]
      %v535 = vld [vmem:[%s3 + $0x28] sm:$0xff]
      %v536 = vld [vmem:[%s3 + $0x30] sm:$0xff]
      %v537 = vld [vmem:[%s3 + $0x38] sm:$0xff]
      %v538 = vld [vmem:[%s3 + $0x40] sm:$0xff]
      %v539 = vld [vmem:[%s3 + $0x48] sm:$0xff]
      %v540 = vld [vmem:[%s3 + $0x50] sm:$0xff]
      %v541 = vld [vmem:[%s3 + $0x58] sm:$0xff]
      %v542 = vld [vmem:[%s3 + $0x60] sm:$0xff]
      %v543 = vld [vmem:[%s3 + $0x68] sm:$0xff]
      %v544 = vld [vmem:[%s3 + $0x70] sm:$0xff]
      %v545 = vld [vmem:[%s3 + $0x78] sm:$0xff]
      %v546 = vld [vmem:[#allocation2 + $0x1] sm:$0xff]
      %v547 = vld [vmem:[#allocation2 + $0x9] sm:$0xff]
      %v548 = vld [vmem:[#allocation2 + $0x19] sm:$0xff]
      %v549 = vld [vmem:[#allocation2 + $0x21] sm:$0xff]
      %v550 = vld [vmem:[#allocation2 + $0x31] sm:$0xff]
      %v551 = vld [vmem:[#allocation2 + $0x39] sm:$0xff]
      %v552 = vld [vmem:[#allocation2 + $0x49] sm:$0xff]
      %v553 = vld [vmem:[#allocation2 + $0x51] sm:$0xff]
      %v554 = vld [vmem:[#allocation2 + $0x61] sm:$0xff]
      %v555 = vld [vmem:[#allocation2 + $0x69] sm:$0xff]
      %v556 = vld [vmem:[#allocation2 + $0x79] sm:$0xff]
      %v557 = vld [vmem:[#allocation2 + $0x81] sm:$0xff]
      %v558 = vld [vmem:[#allocation2 + $0x91] sm:$0xff]
      %v559 = vld [vmem:[#allocation2 + $0x99] sm:$0xff]
      %v560 = vld [vmem:[#allocation2 + $0xa9] sm:$0xff]
      %v561 = vld [vmem:[#allocation2 + $0xb1] sm:$0xff]
      %v562 = vld [vmem:[#allocation2 + $0xc1] sm:$0xff]
      %v563 = vld [vmem:[#allocation2 + $0xc9] sm:$0xff]
      %v564 = vld [vmem:[#allocation2 + $0xd9] sm:$0xff]
      %v565 = vld [vmem:[#allocation2 + $0xe1] sm:$0xff]
      %v566 = vld [vmem:[#allocation2 + $0xf1] sm:$0xff]
      %v567 = vld [vmem:[#allocation2 + $0xf9] sm:$0xff]
      %v568 = vld [vmem:[#allocation2 + $0x109] sm:$0xff]
      %v569 = vld [vmem:[#allocation2 + $0x111] sm:$0xff]
      %v570 = vld [vmem:[#allocation2 + $0x121] sm:$0xff]
      %v571 = vld [vmem:[#allocation2 + $0x129] sm:$0xff]
      %v572 = vld [vmem:[#allocation2 + $0x139] sm:$0xff]
      %v573 = vld [vmem:[#allocation2 + $0x141] sm:$0xff]
      %v574 = vld [vmem:[#allocation2 + $0x151] sm:$0xff]
      %v575 = vld [vmem:[#allocation2 + $0x159] sm:$0xff]
      %v576 = vld [vmem:[#allocation2 + $0x169] sm:$0xff]
      %v577 = vld [vmem:[#allocation2 + $0x171] sm:$0xff]
      %s578 = scalar_lea.vmem %s3, 128
      %v579 = vld [vmem:[%s578] sm:$0xff]
      %v580 = vld [vmem:[%s578 + $0x8] sm:$0xff]
      %v581 = vld [vmem:[%s578 + $0x10] sm:$0xff]
      %v582 = vld [vmem:[%s578 + $0x18] sm:$0xff]
      %v583 = vld [vmem:[%s578 + $0x20] sm:$0xff]
      %v584 = vld [vmem:[%s578 + $0x28] sm:$0xff]
      %v585 = vld [vmem:[%s578 + $0x30] sm:$0xff]
      %v586 = vld [vmem:[%s578 + $0x38] sm:$0xff]
      %v587 = vld [vmem:[%s578 + $0x40] sm:$0xff]
      %v588 = vld [vmem:[%s578 + $0x48] sm:$0xff]
      %v589 = vld [vmem:[%s578 + $0x50] sm:$0xff]
      %v590 = vld [vmem:[%s578 + $0x58] sm:$0xff]
      %v591 = vld [vmem:[%s578 + $0x60] sm:$0xff]
      %v592 = vld [vmem:[%s578 + $0x68] sm:$0xff]
      %v593 = vld [vmem:[%s578 + $0x70] sm:$0xff]
      %v594 = vld [vmem:[%s578 + $0x78] sm:$0xff]
      %595 = vmatprep.subr.mxu0 0.0
      %596 = vmatpush1.msra.mxu0 %v579
      %597 = vmatprep.subr.mxu0 0.0
      %598 = vmatpush1.msra.mxu0 %v580
      %599 = vmatprep.subr.mxu0 0.0
      %600 = vmatpush1.msra.mxu0 %v581
      %601 = vmatprep.subr.mxu0 0.0
      %602 = vmatpush1.msra.mxu0 %v582
      %603 = vmatprep.subr.mxu0 0.0
      %604 = vmatpush1.msra.mxu0 %v583
      %605 = vmatprep.subr.mxu0 0.0
      %606 = vmatpush1.msra.mxu0 %v584
      %607 = vmatprep.subr.mxu0 0.0
      %608 = vmatpush1.msra.mxu0 %v585
      %609 = vmatprep.subr.mxu0 0.0
      %610 = vmatpush1.msra.mxu0 %v586
      %611 = vmatprep.subr.mxu0 0.0
      %612 = vmatpush1.msra.mxu0 %v587
      %613 = vmatprep.subr.mxu0 0.0
      %614 = vmatpush1.msra.mxu0 %v588
      %615 = vmatprep.subr.mxu0 0.0
      %616 = vmatpush1.msra.mxu0 %v589
      %617 = vmatprep.subr.mxu0 0.0
      %618 = vmatpush1.msra.mxu0 %v590
      %619 = vmatprep.subr.mxu0 0.0
      %620 = vmatpush1.msra.mxu0 %v591
      %621 = vmatprep.subr.mxu0 0.0
      %622 = vmatpush1.msra.mxu0 %v592
      %623 = vmatprep.subr.mxu0 0.0
      %624 = vmatpush1.msra.mxu0 %v593
      %625 = vmatprep.subr.mxu0 0.0
      %626 = vmatpush1.msra.mxu0 %v594
      %627 = vmatprep.subr.mxu0 0.0
      %628 = vmatpush1.msra.mxu0 0.0
      %629 = vmatprep.subr.mxu0 0.0
      %630 = vmatpush1.msra.mxu0 0.0
      %631 = vmatprep.subr.mxu0 0.0
      %632 = vmatpush1.msra.mxu0 0.0
      %633 = vmatprep.subr.mxu0 0.0
      %634 = vmatpush1.msra.mxu0 0.0
      %635 = vmatprep.subr.mxu0 0.0
      %636 = vmatpush1.msra.mxu0 0.0
      %637 = vmatprep.subr.mxu0 0.0
      %638 = vmatpush1.msra.mxu0 0.0
      %639 = vmatprep.subr.mxu0 0.0
      %640 = vmatpush1.msra.mxu0 0.0
      %641 = vmatprep.subr.mxu0 0.0
      %642 = vmatpush1.msra.mxu0 0.0
      %643 = vmatprep.subr.mxu0 0.0
      %644 = vmatpush1.msra.mxu0 0.0
      %645 = vmatprep.subr.mxu0 0.0
      %646 = vmatpush1.msra.mxu0 0.0
      %647 = vmatprep.subr.mxu0 0.0
      %648 = vmatpush1.msra.mxu0 0.0
      %649 = vmatprep.subr.mxu0 0.0
      %650 = vmatpush1.msra.mxu0 0.0
      %651 = vmatprep.subr.mxu0 0.0
      %652 = vmatpush1.msra.mxu0 0.0
      %653 = vmatprep.subr.mxu0 0.0
      %654 = vmatpush1.msra.mxu0 0.0
      %655 = vmatprep.subr.mxu0 0.0
      %656 = vmatpush1.msra.mxu0 0.0
      %657 = vmatprep.subr.mxu0 0.0
      %658 = vmatpush1.msra.mxu0 0.0
      %659 = vmatprep.mubr.f32.mxu0 0.0
      %660 = vmatmul.mubr.f32.gmra.mrb[0].mxu0 %v546
      %v661 = vpop.f32.mrb[0].mxu0
      %v662 = vadd.f32 0.0, %v661
      %v663 = vpop.f32.mrb[0].mxu0
      %664 = vmatprep.mubr.f32.mxu0 0.0
      %665 = vmatmul.mubr.f32.gmra.mrb[0].mxu0 %v547
      %v666 = vpop.f32.mrb[0].mxu0
      %v667 = vadd.f32 0.0, %v666
      %v668 = vpop.f32.mrb[0].mxu0
      %669 = vmatprep.mubr.f32.mxu0 0.0
      %670 = vmatmul.mubr.f32.gmra.mrb[0].mxu0 %v548
      %v671 = vpop.f32.mrb[0].mxu0
      %v672 = vadd.f32 0.0, %v671
      %v673 = vpop.f32.mrb[0].mxu0
      %674 = vmatprep.mubr.f32.mxu0 0.0
      %675 = vmatmul.mubr.f32.gmra.mrb[0].mxu0 %v549
      %v676 = vpop.f32.mrb[0].mxu0
      %v677 = vadd.f32 0.0, %v676
      %v678 = vpop.f32.mrb[0].mxu0
      %679 = vmatprep.mubr.f32.mxu0 0.0
      %680 = vmatmul.mubr.f32.gmra.mrb[0].mxu0 %v550
      %v681 = vpop.f32.mrb[0].mxu0
      %v682 = vadd.f32 0.0, %v681
      %v683 = vpop.f32.mrb[0].mxu0
      %684 = vmatprep.mubr.f32.mxu0 0.0
      %685 = vmatmul.mubr.f32.gmra.mrb[0].mxu0 %v551
      %v686 = vpop.f32.mrb[0].mxu0
      %v687 = vadd.f32 0.0, %v686
      %v688 = vpop.f32.mrb[0].mxu0
      %689 = vmatprep.mubr.f32.mxu0 0.0
      %690 = vmatmul.mubr.f32.gmra.mrb[0].mxu0 %v552
      %v691 = vpop.f32.mrb[0].mxu0
      %v692 = vadd.f32 0.0, %v691
      %v693 = vpop.f32.mrb[0].mxu0
      %694 = vmatprep.mubr.f32.mxu0 0.0
      %695 = vmatmul.mubr.f32.gmra.mrb[0].mxu0 %v553
      %v696 = vpop.f32.mrb[0].mxu0
      %v697 = vadd.f32 0.0, %v696
      %v698 = vpop.f32.mrb[0].mxu0
      %699 = vmatprep.mubr.f32.mxu0 0.0
      %700 = vmatmul.mubr.f32.gmra.mrb[0].mxu0 %v554
      %v701 = vpop.f32.mrb[0].mxu0
      %v702 = vadd.f32 0.0, %v701
      %v703 = vpop.f32.mrb[0].mxu0
      %704 = vmatprep.mubr.f32.mxu0 0.0
      %705 = vmatmul.mubr.f32.gmra.mrb[0].mxu0 %v555
      %v706 = vpop.f32.mrb[0].mxu0
      %v707 = vadd.f32 0.0, %v706
      %v708 = vpop.f32.mrb[0].mxu0
      %709 = vmatprep.mubr.f32.mxu0 0.0
      %710 = vmatmul.mubr.f32.gmra.mrb[0].mxu0 %v556
      %v711 = vpop.f32.mrb[0].mxu0
      %v712 = vadd.f32 0.0, %v711
      %v713 = vpop.f32.mrb[0].mxu0
      %714 = vmatprep.mubr.f32.mxu0 0.0
      %715 = vmatmul.mubr.f32.gmra.mrb[0].mxu0 %v557
      %v716 = vpop.f32.mrb[0].mxu0
      %v717 = vadd.f32 0.0, %v716
      %v718 = vpop.f32.mrb[0].mxu0
      %719 = vmatprep.mubr.f32.mxu0 0.0
      %720 = vmatmul.mubr.f32.gmra.mrb[0].mxu0 %v558
      %v721 = vpop.f32.mrb[0].mxu0
      %v722 = vadd.f32 0.0, %v721
      %v723 = vpop.f32.mrb[0].mxu0
      %724 = vmatprep.mubr.f32.mxu0 0.0
      %725 = vmatmul.mubr.f32.gmra.mrb[0].mxu0 %v559
      %v726 = vpop.f32.mrb[0].mxu0
      %v727 = vadd.f32 0.0, %v726
      %v728 = vpop.f32.mrb[0].mxu0
      %729 = vmatprep.mubr.f32.mxu0 0.0
      %730 = vmatmul.mubr.f32.gmra.mrb[0].mxu0 %v560
      %v731 = vpop.f32.mrb[0].mxu0
      %v732 = vadd.f32 0.0, %v731
      %v733 = vpop.f32.mrb[0].mxu0
      %734 = vmatprep.mubr.f32.mxu0 0.0
      %735 = vmatmul.mubr.f32.gmra.mrb[0].mxu0 %v561
      %v736 = vpop.f32.mrb[0].mxu0
      %v737 = vadd.f32 0.0, %v736
      %v738 = vpop.f32.mrb[0].mxu0
      %739 = vmatprep.mubr.f32.mxu0 0.0
      %740 = vmatmul.mubr.f32.gmra.mrb[0].mxu0 %v562
      %v741 = vpop.f32.mrb[0].mxu0
      %v742 = vadd.f32 0.0, %v741
      %v743 = vpop.f32.mrb[0].mxu0
      %744 = vmatprep.mubr.f32.mxu0 0.0
      %745 = vmatmul.mubr.f32.gmra.mrb[0].mxu0 %v563
      %v746 = vpop.f32.mrb[0].mxu0
      %v747 = vadd.f32 0.0, %v746
      %v748 = vpop.f32.mrb[0].mxu0
      %749 = vmatprep.mubr.f32.mxu0 0.0
      %750 = vmatmul.mubr.f32.gmra.mrb[0].mxu0 %v564
      %v751 = vpop.f32.mrb[0].mxu0
      %v752 = vadd.f32 0.0, %v751
      %v753 = vpop.f32.mrb[0].mxu0
      %754 = vmatprep.mubr.f32.mxu0 0.0
      %755 = vmatmul.mubr.f32.gmra.mrb[0].mxu0 %v565
      %v756 = vpop.f32.mrb[0].mxu0
      %v757 = vadd.f32 0.0, %v756
      %v758 = vpop.f32.mrb[0].mxu0
      %759 = vmatprep.mubr.f32.mxu0 0.0
      %760 = vmatmul.mubr.f32.gmra.mrb[0].mxu0 %v566
      %v761 = vpop.f32.mrb[0].mxu0
      %v762 = vadd.f32 0.0, %v761
      %v763 = vpop.f32.mrb[0].mxu0
      %764 = vmatprep.mubr.f32.mxu0 0.0
      %765 = vmatmul.mubr.f32.gmra.mrb[0].mxu0 %v567
      %v766 = vpop.f32.mrb[0].mxu0
      %v767 = vadd.f32 0.0, %v766
      %v768 = vpop.f32.mrb[0].mxu0
      %769 = vmatprep.mubr.f32.mxu0 0.0
      %770 = vmatmul.mubr.f32.gmra.mrb[0].mxu0 %v568
      %v771 = vpop.f32.mrb[0].mxu0
      %v772 = vadd.f32 0.0, %v771
      %v773 = vpop.f32.mrb[0].mxu0
      %774 = vmatprep.mubr.f32.mxu0 0.0
      %775 = vmatmul.mubr.f32.gmra.mrb[0].mxu0 %v569
      %v776 = vpop.f32.mrb[0].mxu0
      %v777 = vadd.f32 0.0, %v776
      %v778 = vpop.f32.mrb[0].mxu0
      %779 = vmatprep.mubr.f32.mxu0 0.0
      %780 = vmatmul.mubr.f32.gmra.mrb[0].mxu0 %v570
      %v781 = vpop.f32.mrb[0].mxu0
      %v782 = vadd.f32 0.0, %v781
      %v783 = vpop.f32.mrb[0].mxu0
      %784 = vmatprep.mubr.f32.mxu0 0.0
      %785 = vmatmul.mubr.f32.gmra.mrb[0].mxu0 %v571
      %v786 = vpop.f32.mrb[0].mxu0
      %v787 = vadd.f32 0.0, %v786
      %v788 = vpop.f32.mrb[0].mxu0
      %789 = vmatprep.mubr.f32.mxu0 0.0
      %790 = vmatmul.mubr.f32.gmra.mrb[0].mxu0 %v572
      %v791 = vpop.f32.mrb[0].mxu0
      %v792 = vadd.f32 0.0, %v791
      %v793 = vpop.f32.mrb[0].mxu0
      %794 = vmatprep.mubr.f32.mxu0 0.0
      %795 = vmatmul.mubr.f32.gmra.mrb[0].mxu0 %v573
      %v796 = vpop.f32.mrb[0].mxu0
      %v797 = vadd.f32 0.0, %v796
      %v798 = vpop.f32.mrb[0].mxu0
      %799 = vmatprep.mubr.f32.mxu0 0.0
      %800 = vmatmul.mubr.f32.gmra.mrb[0].mxu0 %v574
      %v801 = vpop.f32.mrb[0].mxu0
      %v802 = vadd.f32 0.0, %v801
      %v803 = vpop.f32.mrb[0].mxu0
      %804 = vmatprep.mubr.f32.mxu0 0.0
      %805 = vmatmul.mubr.f32.gmra.mrb[0].mxu0 %v575
      %v806 = vpop.f32.mrb[0].mxu0
      %v807 = vadd.f32 0.0, %v806
      %v808 = vpop.f32.mrb[0].mxu0
      %809 = vmatprep.mubr.f32.mxu0 0.0
      %810 = vmatmul.mubr.f32.gmra.mrb[0].mxu0 %v576
      %v811 = vpop.f32.mrb[0].mxu0
      %v812 = vadd.f32 0.0, %v811
      %v813 = vpop.f32.mrb[0].mxu0
      %814 = vmatprep.mubr.f32.mxu0 0.0
      %815 = vmatmul.mubr.f32.gmra.mrb[0].mxu0 %v577
      %v816 = vpop.f32.mrb[0].mxu0
      %v817 = vadd.f32 0.0, %v816
      %v818 = vpop.f32.mrb[0].mxu0
      %819 = vdwg.mxu0
      %820 = vmatprep.subr.mxu0 0.0
      %821 = vmatpush1.msra.mxu0 %v530
      %822 = vmatprep.subr.mxu0 0.0
      %823 = vmatpush1.msra.mxu0 %v531
      %824 = vmatprep.subr.mxu0 0.0
      %825 = vmatpush1.msra.mxu0 %v532
      %826 = vmatprep.subr.mxu0 0.0
      %827 = vmatpush1.msra.mxu0 %v533
      %828 = vmatprep.subr.mxu0 0.0
      %829 = vmatpush1.msra.mxu0 %v534
      %830 = vmatprep.subr.mxu0 0.0
      %831 = vmatpush1.msra.mxu0 %v535
      %832 = vmatprep.subr.mxu0 0.0
      %833 = vmatpush1.msra.mxu0 %v536
      %834 = vmatprep.subr.mxu0 0.0
      %835 = vmatpush1.msra.mxu0 %v537
      %836 = vmatprep.subr.mxu0 0.0
      %837 = vmatpush1.msra.mxu0 %v538
      %838 = vmatprep.subr.mxu0 0.0
      %839 = vmatpush1.msra.mxu0 %v539
      %840 = vmatprep.subr.mxu0 0.0
      %841 = vmatpush1.msra.mxu0 %v540
      %842 = vmatprep.subr.mxu0 0.0
      %843 = vmatpush1.msra.mxu0 %v541
      %844 = vmatprep.subr.mxu0 0.0
      %845 = vmatpush1.msra.mxu0 %v542
      %846 = vmatprep.subr.mxu0 0.0
      %847 = vmatpush1.msra.mxu0 %v543
      %848 = vmatprep.subr.mxu0 0.0
      %849 = vmatpush1.msra.mxu0 %v544
      %850 = vmatprep.subr.mxu0 0.0
      %851 = vmatpush1.msra.mxu0 %v545
      %852 = vmatprep.subr.mxu0 0.0
      %853 = vmatpush1.msra.mxu0 0.0
      %854 = vmatprep.subr.mxu0 0.0
      %855 = vmatpush1.msra.mxu0 0.0
      %856 = vmatprep.subr.mxu0 0.0
      %857 = vmatpush1.msra.mxu0 0.0
      %858 = vmatprep.subr.mxu0 0.0
      %859 = vmatpush1.msra.mxu0 0.0
      %860 = vmatprep.subr.mxu0 0.0
      %861 = vmatpush1.msra.mxu0 0.0
      %862 = vmatprep.subr.mxu0 0.0
      %863 = vmatpush1.msra.mxu0 0.0
      %864 = vmatprep.subr.mxu0 0.0
      %865 = vmatpush1.msra.mxu0 0.0
      %866 = vmatprep.subr.mxu0 0.0
      %867 = vmatpush1.msra.mxu0 0.0
      %868 = vmatprep.subr.mxu0 0.0
      %869 = vmatpush1.msra.mxu0 0.0
      %870 = vmatprep.subr.mxu0 0.0
      %871 = vmatpush1.msra.mxu0 0.0
      %872 = vmatprep.subr.mxu0 0.0
      %873 = vmatpush1.msra.mxu0 0.0
      %874 = vmatprep.subr.mxu0 0.0
      %875 = vmatpush1.msra.mxu0 0.0
      %876 = vmatprep.subr.mxu0 0.0
      %877 = vmatpush1.msra.mxu0 0.0
      %878 = vmatprep.subr.mxu0 0.0
      %879 = vmatpush1.msra.mxu0 0.0
      %880 = vmatprep.subr.mxu0 0.0
      %881 = vmatpush1.msra.mxu0 0.0
      %882 = vmatprep.subr.mxu0 0.0
      %883 = vmatpush1.msra.mxu0 0.0
      %884 = vmatprep.mubr.f32.mxu0 0.0
      %885 = vmatmul.mubr.f32.gmra.mrb[0].mxu0 %v498
      %v886 = vpop.f32.mrb[0].mxu0
      %v887 = vadd.f32 %v662, %v886
      %v888 = vpop.f32.mrb[0].mxu0
      %889 = vmatprep.mubr.f32.mxu0 0.0
      %890 = vmatmul.mubr.f32.gmra.mrb[0].mxu0 %v499
      %v891 = vpop.f32.mrb[0].mxu0
      %v892 = vadd.f32 %v667, %v891
      %v893 = vpop.f32.mrb[0].mxu0
      %894 = vmatprep.mubr.f32.mxu0 0.0
      %895 = vmatmul.mubr.f32.gmra.mrb[0].mxu0 %v500
      %v896 = vpop.f32.mrb[0].mxu0
      %v897 = vadd.f32 %v672, %v896
      %v898 = vpop.f32.mrb[0].mxu0
      %899 = vmatprep.mubr.f32.mxu0 0.0
      %900 = vmatmul.mubr.f32.gmra.mrb[0].mxu0 %v501
      %v901 = vpop.f32.mrb[0].mxu0
      %v902 = vadd.f32 %v677, %v901
      %v903 = vpop.f32.mrb[0].mxu0
      %904 = vmatprep.mubr.f32.mxu0 0.0
      %905 = vmatmul.mubr.f32.gmra.mrb[0].mxu0 %v502
      %v906 = vpop.f32.mrb[0].mxu0
      %v907 = vadd.f32 %v682, %v906
      %v908 = vpop.f32.mrb[0].mxu0
      %909 = vmatprep.mubr.f32.mxu0 0.0
      %910 = vmatmul.mubr.f32.gmra.mrb[0].mxu0 %v503
      %v911 = vpop.f32.mrb[0].mxu0
      %v912 = vadd.f32 %v687, %v911
      %v913 = vpop.f32.mrb[0].mxu0
      %914 = vmatprep.mubr.f32.mxu0 0.0
      %915 = vmatmul.mubr.f32.gmra.mrb[0].mxu0 %v504
      %v916 = vpop.f32.mrb[0].mxu0
      %v917 = vadd.f32 %v692, %v916
      %v918 = vpop.f32.mrb[0].mxu0
      %919 = vmatprep.mubr.f32.mxu0 0.0
      %920 = vmatmul.mubr.f32.gmra.mrb[0].mxu0 %v505
      %v921 = vpop.f32.mrb[0].mxu0
      %v922 = vadd.f32 %v697, %v921
      %v923 = vpop.f32.mrb[0].mxu0
      %924 = vmatprep.mubr.f32.mxu0 0.0
      %925 = vmatmul.mubr.f32.gmra.mrb[0].mxu0 %v506
      %v926 = vpop.f32.mrb[0].mxu0
      %v927 = vadd.f32 %v702, %v926
      %v928 = vpop.f32.mrb[0].mxu0
      %929 = vmatprep.mubr.f32.mxu0 0.0
      %930 = vmatmul.mubr.f32.gmra.mrb[0].mxu0 %v507
      %v931 = vpop.f32.mrb[0].mxu0
      %v932 = vadd.f32 %v707, %v931
      %v933 = vpop.f32.mrb[0].mxu0
      %934 = vmatprep.mubr.f32.mxu0 0.0
      %935 = vmatmul.mubr.f32.gmra.mrb[0].mxu0 %v508
      %v936 = vpop.f32.mrb[0].mxu0
      %v937 = vadd.f32 %v712, %v936
      %v938 = vpop.f32.mrb[0].mxu0
      %939 = vmatprep.mubr.f32.mxu0 0.0
      %940 = vmatmul.mubr.f32.gmra.mrb[0].mxu0 %v509
      %v941 = vpop.f32.mrb[0].mxu0
      %v942 = vadd.f32 %v717, %v941
      %v943 = vpop.f32.mrb[0].mxu0
      %944 = vmatprep.mubr.f32.mxu0 0.0
      %945 = vmatmul.mubr.f32.gmra.mrb[0].mxu0 %v510
      %v946 = vpop.f32.mrb[0].mxu0
      %v947 = vadd.f32 %v722, %v946
      %v948 = vpop.f32.mrb[0].mxu0
      %949 = vmatprep.mubr.f32.mxu0 0.0
      %950 = vmatmul.mubr.f32.gmra.mrb[0].mxu0 %v511
      %v951 = vpop.f32.mrb[0].mxu0
      %v952 = vadd.f32 %v727, %v951
      %v953 = vpop.f32.mrb[0].mxu0
      %954 = vmatprep.mubr.f32.mxu0 0.0
      %955 = vmatmul.mubr.f32.gmra.mrb[0].mxu0 %v512
      %v956 = vpop.f32.mrb[0].mxu0
      %v957 = vadd.f32 %v732, %v956
      %v958 = vpop.f32.mrb[0].mxu0
      %959 = vmatprep.mubr.f32.mxu0 0.0
      %960 = vmatmul.mubr.f32.gmra.mrb[0].mxu0 %v513
      %v961 = vpop.f32.mrb[0].mxu0
      %v962 = vadd.f32 %v737, %v961
      %v963 = vpop.f32.mrb[0].mxu0
      %964 = vmatprep.mubr.f32.mxu0 0.0
      %965 = vmatmul.mubr.f32.gmra.mrb[0].mxu0 %v514
      %v966 = vpop.f32.mrb[0].mxu0
      %v967 = vadd.f32 %v742, %v966
      %v968 = vpop.f32.mrb[0].mxu0
      %969 = vmatprep.mubr.f32.mxu0 0.0
      %970 = vmatmul.mubr.f32.gmra.mrb[0].mxu0 %v515
      %v971 = vpop.f32.mrb[0].mxu0
      %v972 = vadd.f32 %v747, %v971
      %v973 = vpop.f32.mrb[0].mxu0
      %974 = vmatprep.mubr.f32.mxu0 0.0
      %975 = vmatmul.mubr.f32.gmra.mrb[0].mxu0 %v516
      %v976 = vpop.f32.mrb[0].mxu0
      %v977 = vadd.f32 %v752, %v976
      %v978 = vpop.f32.mrb[0].mxu0
      %979 = vmatprep.mubr.f32.mxu0 0.0
      %980 = vmatmul.mubr.f32.gmra.mrb[0].mxu0 %v517
      %v981 = vpop.f32.mrb[0].mxu0
      %v982 = vadd.f32 %v757, %v981
      %v983 = vpop.f32.mrb[0].mxu0
      %984 = vmatprep.mubr.f32.mxu0 0.0
      %985 = vmatmul.mubr.f32.gmra.mrb[0].mxu0 %v518
      %v986 = vpop.f32.mrb[0].mxu0
      %v987 = vadd.f32 %v762, %v986
      %v988 = vpop.f32.mrb[0].mxu0
      %989 = vmatprep.mubr.f32.mxu0 0.0
      %990 = vmatmul.mubr.f32.gmra.mrb[0].mxu0 %v519
      %v991 = vpop.f32.mrb[0].mxu0
      %v992 = vadd.f32 %v767, %v991
      %v993 = vpop.f32.mrb[0].mxu0
      %994 = vmatprep.mubr.f32.mxu0 0.0
      %995 = vmatmul.mubr.f32.gmra.mrb[0].mxu0 %v520
      %v996 = vpop.f32.mrb[0].mxu0
      %v997 = vadd.f32 %v772, %v996
      %v998 = vpop.f32.mrb[0].mxu0
      %999 = vmatprep.mubr.f32.mxu0 0.0
      %1000 = vmatmul.mubr.f32.gmra.mrb[0].mxu0 %v521
      %v1001 = vpop.f32.mrb[0].mxu0
      %v1002 = vadd.f32 %v777, %v1001
      %v1003 = vpop.f32.mrb[0].mxu0
      %1004 = vmatprep.mubr.f32.mxu0 0.0
      %1005 = vmatmul.mubr.f32.gmra.mrb[0].mxu0 %v522
      %v1006 = vpop.f32.mrb[0].mxu0
      %v1007 = vadd.f32 %v782, %v1006
      %v1008 = vpop.f32.mrb[0].mxu0
      %1009 = vmatprep.mubr.f32.mxu0 0.0
      %1010 = vmatmul.mubr.f32.gmra.mrb[0].mxu0 %v523
      %v1011 = vpop.f32.mrb[0].mxu0
      %v1012 = vadd.f32 %v787, %v1011
      %v1013 = vpop.f32.mrb[0].mxu0
      %1014 = vmatprep.mubr.f32.mxu0 0.0
      %1015 = vmatmul.mubr.f32.gmra.mrb[0].mxu0 %v524
      %v1016 = vpop.f32.mrb[0].mxu0
      %v1017 = vadd.f32 %v792, %v1016
      %v1018 = vpop.f32.mrb[0].mxu0
      %1019 = vmatprep.mubr.f32.mxu0 0.0
      %1020 = vmatmul.mubr.f32.gmra.mrb[0].mxu0 %v525
      %v1021 = vpop.f32.mrb[0].mxu0
      %v1022 = vadd.f32 %v797, %v1021
      %v1023 = vpop.f32.mrb[0].mxu0
      %1024 = vmatprep.mubr.f32.mxu0 0.0
      %1025 = vmatmul.mubr.f32.gmra.mrb[0].mxu0 %v526
      %v1026 = vpop.f32.mrb[0].mxu0
      %v1027 = vadd.f32 %v802, %v1026
      %v1028 = vpop.f32.mrb[0].mxu0
      %1029 = vmatprep.mubr.f32.mxu0 0.0
      %1030 = vmatmul.mubr.f32.gmra.mrb[0].mxu0 %v527
      %v1031 = vpop.f32.mrb[0].mxu0
      %v1032 = vadd.f32 %v807, %v1031
      %v1033 = vpop.f32.mrb[0].mxu0
      %1034 = vmatprep.mubr.f32.mxu0 0.0
      %1035 = vmatmul.mubr.f32.gmra.mrb[0].mxu0 %v528
      %v1036 = vpop.f32.mrb[0].mxu0
      %v1037 = vadd.f32 %v812, %v1036
      %v1038 = vpop.f32.mrb[0].mxu0
      %1039 = vmatprep.mubr.f32.mxu0 0.0
      %1040 = vmatmul.mubr.f32.gmra.mrb[0].mxu0 %v529
      %v1041 = vpop.f32.mrb[0].mxu0
      %v1042 = vadd.f32 %v817, %v1041
      %v1043 = vpop.f32.mrb[0].mxu0
      %1044 = vdwg.mxu0
      %v1045 = vld [vmem:[#allocation2 + $0x2] sm:$0xff]
      %v1046 = vld [vmem:[#allocation2 + $0xa] sm:$0xff]
      %v1047 = vld [vmem:[#allocation2 + $0x1a] sm:$0xff]
      %v1048 = vld [vmem:[#allocation2 + $0x22] sm:$0xff]
      %v1049 = vld [vmem:[#allocation2 + $0x32] sm:$0xff]
      %v1050 = vld [vmem:[#allocation2 + $0x3a] sm:$0xff]
      %v1051 = vld [vmem:[#allocation2 + $0x4a] sm:$0xff]
      %v1052 = vld [vmem:[#allocation2 + $0x52] sm:$0xff]
      %v1053 = vld [vmem:[#allocation2 + $0x62] sm:$0xff]
      %v1054 = vld [vmem:[#allocation2 + $0x6a] sm:$0xff]
      %v1055 = vld [vmem:[#allocation2 + $0x7a] sm:$0xff]
      %v1056 = vld [vmem:[#allocation2 + $0x82] sm:$0xff]
      %v1057 = vld [vmem:[#allocation2 + $0x92] sm:$0xff]
      %v1058 = vld [vmem:[#allocation2 + $0x9a] sm:$0xff]
      %v1059 = vld [vmem:[#allocation2 + $0xaa] sm:$0xff]
      %v1060 = vld [vmem:[#allocation2 + $0xb2] sm:$0xff]
      %v1061 = vld [vmem:[#allocation2 + $0xc2] sm:$0xff]
      %v1062 = vld [vmem:[#allocation2 + $0xca] sm:$0xff]
      %v1063 = vld [vmem:[#allocation2 + $0xda] sm:$0xff]
      %v1064 = vld [vmem:[#allocation2 + $0xe2] sm:$0xff]
      %v1065 = vld [vmem:[#allocation2 + $0xf2] sm:$0xff]
      %v1066 = vld [vmem:[#allocation2 + $0xfa] sm:$0xff]
      %v1067 = vld [vmem:[#allocation2 + $0x10a] sm:$0xff]
      %v1068 = vld [vmem:[#allocation2 + $0x112] sm:$0xff]
      %v1069 = vld [vmem:[#allocation2 + $0x122] sm:$0xff]
      %v1070 = vld [vmem:[#allocation2 + $0x12a] sm:$0xff]
      %v1071 = vld [vmem:[#allocation2 + $0x13a] sm:$0xff]
      %v1072 = vld [vmem:[#allocation2 + $0x142] sm:$0xff]
      %v1073 = vld [vmem:[#allocation2 + $0x152] sm:$0xff]
      %v1074 = vld [vmem:[#allocation2 + $0x15a] sm:$0xff]
      %v1075 = vld [vmem:[#allocation2 + $0x16a] sm:$0xff]
      %v1076 = vld [vmem:[#allocation2 + $0x172] sm:$0xff]
      %s1077 = scalar_lea.vmem %s3, 256
      %v1078 = vld [vmem:[%s1077] sm:$0xff]
      %v1079 = vld [vmem:[%s1077 + $0x8] sm:$0xff]
      %v1080 = vld [vmem:[%s1077 + $0x10] sm:$0xff]
      %v1081 = vld [vmem:[%s1077 + $0x18] sm:$0xff]
      %v1082 = vld [vmem:[%s1077 + $0x20] sm:$0xff]
      %v1083 = vld [vmem:[%s1077 + $0x28] sm:$0xff]
      %v1084 = vld [vmem:[%s1077 + $0x30] sm:$0xff]
      %v1085 = vld [vmem:[%s1077 + $0x38] sm:$0xff]
      %v1086 = vld [vmem:[%s1077 + $0x40] sm:$0xff]
      %v1087 = vld [vmem:[%s1077 + $0x48] sm:$0xff]
      %v1088 = vld [vmem:[%s1077 + $0x50] sm:$0xff]
      %v1089 = vld [vmem:[%s1077 + $0x58] sm:$0xff]
      %v1090 = vld [vmem:[%s1077 + $0x60] sm:$0xff]
      %v1091 = vld [vmem:[%s1077 + $0x68] sm:$0xff]
      %v1092 = vld [vmem:[%s1077 + $0x70] sm:$0xff]
      %v1093 = vld [vmem:[%s1077 + $0x78] sm:$0xff]
      %1094 = vmatprep.subr.mxu0 0.0
      %1095 = vmatpush1.msra.mxu0 %v1078
      %1096 = vmatprep.subr.mxu0 0.0
      %1097 = vmatpush1.msra.mxu0 %v1079
      %1098 = vmatprep.subr.mxu0 0.0
      %1099 = vmatpush1.msra.mxu0 %v1080
      %1100 = vmatprep.subr.mxu0 0.0
      %1101 = vmatpush1.msra.mxu0 %v1081
      %1102 = vmatprep.subr.mxu0 0.0
      %1103 = vmatpush1.msra.mxu0 %v1082
      %1104 = vmatprep.subr.mxu0 0.0
      %1105 = vmatpush1.msra.mxu0 %v1083
      %1106 = vmatprep.subr.mxu0 0.0
      %1107 = vmatpush1.msra.mxu0 %v1084
      %1108 = vmatprep.subr.mxu0 0.0
      %1109 = vmatpush1.msra.mxu0 %v1085
      %1110 = vmatprep.subr.mxu0 0.0
      %1111 = vmatpush1.msra.mxu0 %v1086
      %1112 = vmatprep.subr.mxu0 0.0
      %1113 = vmatpush1.msra.mxu0 %v1087
      %1114 = vmatprep.subr.mxu0 0.0
      %1115 = vmatpush1.msra.mxu0 %v1088
      %1116 = vmatprep.subr.mxu0 0.0
      %1117 = vmatpush1.msra.mxu0 %v1089
      %1118 = vmatprep.subr.mxu0 0.0
      %1119 = vmatpush1.msra.mxu0 %v1090
      %1120 = vmatprep.subr.mxu0 0.0
      %1121 = vmatpush1.msra.mxu0 %v1091
      %1122 = vmatprep.subr.mxu0 0.0
      %1123 = vmatpush1.msra.mxu0 %v1092
      %1124 = vmatprep.subr.mxu0 0.0
      %1125 = vmatpush1.msra.mxu0 %v1093
      %1126 = vmatprep.subr.mxu0 0.0
      %1127 = vmatpush1.msra.mxu0 0.0
      %1128 = vmatprep.subr.mxu0 0.0
      %1129 = vmatpush1.msra.mxu0 0.0
      %1130 = vmatprep.subr.mxu0 0.0
      %1131 = vmatpush1.msra.mxu0 0.0
      %1132 = vmatprep.subr.mxu0 0.0
      %1133 = vmatpush1.msra.mxu0 0.0
      %1134 = vmatprep.subr.mxu0 0.0
      %1135 = vmatpush1.msra.mxu0 0.0
      %1136 = vmatprep.subr.mxu0 0.0
      %1137 = vmatpush1.msra.mxu0 0.0
      %1138 = vmatprep.subr.mxu0 0.0
      %1139 = vmatpush1.msra.mxu0 0.0
      %1140 = vmatprep.subr.mxu0 0.0
      %1141 = vmatpush1.msra.mxu0 0.0
      %1142 = vmatprep.subr.mxu0 0.0
      %1143 = vmatpush1.msra.mxu0 0.0
      %1144 = vmatprep.subr.mxu0 0.0
      %1145 = vmatpush1.msra.mxu0 0.0
      %1146 = vmatprep.subr.mxu0 0.0
      %1147 = vmatpush1.msra.mxu0 0.0
      %1148 = vmatprep.subr.mxu0 0.0
      %1149 = vmatpush1.msra.mxu0 0.0
      %1150 = vmatprep.subr.mxu0 0.0
      %1151 = vmatpush1.msra.mxu0 0.0
      %1152 = vmatprep.subr.mxu0 0.0
      %1153 = vmatpush1.msra.mxu0 0.0
      %1154 = vmatprep.subr.mxu0 0.0
      %1155 = vmatpush1.msra.mxu0 0.0
      %1156 = vmatprep.subr.mxu0 0.0
      %1157 = vmatpush1.msra.mxu0 0.0
      %1158 = vmatprep.mubr.f32.mxu0 0.0
      %1159 = vmatmul.mubr.f32.gmra.mrb[0].mxu0 %v1045
      %v1160 = vpop.f32.mrb[0].mxu0
      %v1161 = vadd.f32 0.0, %v1160
      %v1162 = vpop.f32.mrb[0].mxu0
      %1163 = vmatprep.mubr.f32.mxu0 0.0
      %1164 = vmatmul.mubr.f32.gmra.mrb[0].mxu0 %v1046
      %v1165 = vpop.f32.mrb[0].mxu0
      %v1166 = vadd.f32 0.0, %v1165
      %v1167 = vpop.f32.mrb[0].mxu0
      %1168 = vmatprep.mubr.f32.mxu0 0.0
      %1169 = vmatmul.mubr.f32.gmra.mrb[0].mxu0 %v1047
      %v1170 = vpop.f32.mrb[0].mxu0
      %v1171 = vadd.f32 0.0, %v1170
      %v1172 = vpop.f32.mrb[0].mxu0
      %1173 = vmatprep.mubr.f32.mxu0 0.0
      %1174 = vmatmul.mubr.f32.gmra.mrb[0].mxu0 %v1048
      %v1175 = vpop.f32.mrb[0].mxu0
      %v1176 = vadd.f32 0.0, %v1175
      %v1177 = vpop.f32.mrb[0].mxu0
      %1178 = vmatprep.mubr.f32.mxu0 0.0
      %1179 = vmatmul.mubr.f32.gmra.mrb[0].mxu0 %v1049
      %v1180 = vpop.f32.mrb[0].mxu0
      %v1181 = vadd.f32 0.0, %v1180
      %v1182 = vpop.f32.mrb[0].mxu0
      %1183 = vmatprep.mubr.f32.mxu0 0.0
      %1184 = vmatmul.mubr.f32.gmra.mrb[0].mxu0 %v1050
      %v1185 = vpop.f32.mrb[0].mxu0
      %v1186 = vadd.f32 0.0, %v1185
      %v1187 = vpop.f32.mrb[0].mxu0
      %1188 = vmatprep.mubr.f32.mxu0 0.0
      %1189 = vmatmul.mubr.f32.gmra.mrb[0].mxu0 %v1051
      %v1190 = vpop.f32.mrb[0].mxu0
      %v1191 = vadd.f32 0.0, %v1190
      %v1192 = vpop.f32.mrb[0].mxu0
      %1193 = vmatprep.mubr.f32.mxu0 0.0
      %1194 = vmatmul.mubr.f32.gmra.mrb[0].mxu0 %v1052
      %v1195 = vpop.f32.mrb[0].mxu0
      %v1196 = vadd.f32 0.0, %v1195
      %v1197 = vpop.f32.mrb[0].mxu0
      %1198 = vmatprep.mubr.f32.mxu0 0.0
      %1199 = vmatmul.mubr.f32.gmra.mrb[0].mxu0 %v1053
      %v1200 = vpop.f32.mrb[0].mxu0
      %v1201 = vadd.f32 0.0, %v1200
      %v1202 = vpop.f32.mrb[0].mxu0
      %1203 = vmatprep.mubr.f32.mxu0 0.0
      %1204 = vmatmul.mubr.f32.gmra.mrb[0].mxu0 %v1054
      %v1205 = vpop.f32.mrb[0].mxu0
      %v1206 = vadd.f32 0.0, %v1205
      %v1207 = vpop.f32.mrb[0].mxu0
      %1208 = vmatprep.mubr.f32.mxu0 0.0
      %1209 = vmatmul.mubr.f32.gmra.mrb[0].mxu0 %v1055
      %v1210 = vpop.f32.mrb[0].mxu0
      %v1211 = vadd.f32 0.0, %v1210
      %v1212 = vpop.f32.mrb[0].mxu0
      %1213 = vmatprep.mubr.f32.mxu0 0.0
      %1214 = vmatmul.mubr.f32.gmra.mrb[0].mxu0 %v1056
      %v1215 = vpop.f32.mrb[0].mxu0
      %v1216 = vadd.f32 0.0, %v1215
      %v1217 = vpop.f32.mrb[0].mxu0
      %1218 = vmatprep.mubr.f32.mxu0 0.0
      %1219 = vmatmul.mubr.f32.gmra.mrb[0].mxu0 %v1057
      %v1220 = vpop.f32.mrb[0].mxu0
      %v1221 = vadd.f32 0.0, %v1220
      %v1222 = vpop.f32.mrb[0].mxu0
      %1223 = vmatprep.mubr.f32.mxu0 0.0
      %1224 = vmatmul.mubr.f32.gmra.mrb[0].mxu0 %v1058
      %v1225 = vpop.f32.mrb[0].mxu0
      %v1226 = vadd.f32 0.0, %v1225
      %v1227 = vpop.f32.mrb[0].mxu0
      %1228 = vmatprep.mubr.f32.mxu0 0.0
      %1229 = vmatmul.mubr.f32.gmra.mrb[0].mxu0 %v1059
      %v1230 = vpop.f32.mrb[0].mxu0
      %v1231 = vadd.f32 0.0, %v1230
      %v1232 = vpop.f32.mrb[0].mxu0
      %1233 = vmatprep.mubr.f32.mxu0 0.0
      %1234 = vmatmul.mubr.f32.gmra.mrb[0].mxu0 %v1060
      %v1235 = vpop.f32.mrb[0].mxu0
      %v1236 = vadd.f32 0.0, %v1235
      %v1237 = vpop.f32.mrb[0].mxu0
      %1238 = vmatprep.mubr.f32.mxu0 0.0
      %1239 = vmatmul.mubr.f32.gmra.mrb[0].mxu0 %v1061
      %v1240 = vpop.f32.mrb[0].mxu0
      %v1241 = vadd.f32 0.0, %v1240
      %v1242 = vpop.f32.mrb[0].mxu0
      %1243 = vmatprep.mubr.f32.mxu0 0.0
      %1244 = vmatmul.mubr.f32.gmra.mrb[0].mxu0 %v1062
      %v1245 = vpop.f32.mrb[0].mxu0
      %v1246 = vadd.f32 0.0, %v1245
      %v1247 = vpop.f32.mrb[0].mxu0
      %1248 = vmatprep.mubr.f32.mxu0 0.0
      %1249 = vmatmul.mubr.f32.gmra.mrb[0].mxu0 %v1063
      %v1250 = vpop.f32.mrb[0].mxu0
      %v1251 = vadd.f32 0.0, %v1250
      %v1252 = vpop.f32.mrb[0].mxu0
      %1253 = vmatprep.mubr.f32.mxu0 0.0
      %1254 = vmatmul.mubr.f32.gmra.mrb[0].mxu0 %v1064
      %v1255 = vpop.f32.mrb[0].mxu0
      %v1256 = vadd.f32 0.0, %v1255
      %v1257 = vpop.f32.mrb[0].mxu0
      %1258 = vmatprep.mubr.f32.mxu0 0.0
      %1259 = vmatmul.mubr.f32.gmra.mrb[0].mxu0 %v1065
      %v1260 = vpop.f32.mrb[0].mxu0
      %v1261 = vadd.f32 0.0, %v1260
      %v1262 = vpop.f32.mrb[0].mxu0
      %1263 = vmatprep.mubr.f32.mxu0 0.0
      %1264 = vmatmul.mubr.f32.gmra.mrb[0].mxu0 %v1066
      %v1265 = vpop.f32.mrb[0].mxu0
      %v1266 = vadd.f32 0.0, %v1265
      %v1267 = vpop.f32.mrb[0].mxu0
      %1268 = vmatprep.mubr.f32.mxu0 0.0
      %1269 = vmatmul.mubr.f32.gmra.mrb[0].mxu0 %v1067
      %v1270 = vpop.f32.mrb[0].mxu0
      %v1271 = vadd.f32 0.0, %v1270
      %v1272 = vpop.f32.mrb[0].mxu0
      %1273 = vmatprep.mubr.f32.mxu0 0.0
      %1274 = vmatmul.mubr.f32.gmra.mrb[0].mxu0 %v1068
      %v1275 = vpop.f32.mrb[0].mxu0
      %v1276 = vadd.f32 0.0, %v1275
      %v1277 = vpop.f32.mrb[0].mxu0
      %1278 = vmatprep.mubr.f32.mxu0 0.0
      %1279 = vmatmul.mubr.f32.gmra.mrb[0].mxu0 %v1069
      %v1280 = vpop.f32.mrb[0].mxu0
      %v1281 = vadd.f32 0.0, %v1280
      %v1282 = vpop.f32.mrb[0].mxu0
      %1283 = vmatprep.mubr.f32.mxu0 0.0
      %1284 = vmatmul.mubr.f32.gmra.mrb[0].mxu0 %v1070
      %v1285 = vpop.f32.mrb[0].mxu0
      %v1286 = vadd.f32 0.0, %v1285
      %v1287 = vpop.f32.mrb[0].mxu0
      %1288 = vmatprep.mubr.f32.mxu0 0.0
      %1289 = vmatmul.mubr.f32.gmra.mrb[0].mxu0 %v1071
      %v1290 = vpop.f32.mrb[0].mxu0
      %v1291 = vadd.f32 0.0, %v1290
      %v1292 = vpop.f32.mrb[0].mxu0
      %1293 = vmatprep.mubr.f32.mxu0 0.0
      %1294 = vmatmul.mubr.f32.gmra.mrb[0].mxu0 %v1072
      %v1295 = vpop.f32.mrb[0].mxu0
      %v1296 = vadd.f32 0.0, %v1295
      %v1297 = vpop.f32.mrb[0].mxu0
      %1298 = vmatprep.mubr.f32.mxu0 0.0
      %1299 = vmatmul.mubr.f32.gmra.mrb[0].mxu0 %v1073
      %v1300 = vpop.f32.mrb[0].mxu0
      %v1301 = vadd.f32 0.0, %v1300
      %v1302 = vpop.f32.mrb[0].mxu0
      %1303 = vmatprep.mubr.f32.mxu0 0.0
      %1304 = vmatmul.mubr.f32.gmra.mrb[0].mxu0 %v1074
      %v1305 = vpop.f32.mrb[0].mxu0
      %v1306 = vadd.f32 0.0, %v1305
      %v1307 = vpop.f32.mrb[0].mxu0
      %1308 = vmatprep.mubr.f32.mxu0 0.0
      %1309 = vmatmul.mubr.f32.gmra.mrb[0].mxu0 %v1075
      %v1310 = vpop.f32.mrb[0].mxu0
      %v1311 = vadd.f32 0.0, %v1310
      %v1312 = vpop.f32.mrb[0].mxu0
      %1313 = vmatprep.mubr.f32.mxu0 0.0
      %1314 = vmatmul.mubr.f32.gmra.mrb[0].mxu0 %v1076
      %v1315 = vpop.f32.mrb[0].mxu0
      %v1316 = vadd.f32 0.0, %v1315
      %v1317 = vpop.f32.mrb[0].mxu0
      %1318 = vdwg.mxu0
      %v1319 = vadd.f32 %v887, %v1161
      %v1320 = vadd.f32 %v892, %v1166
      %v1321 = vadd.f32 %v897, %v1171
      %v1322 = vadd.f32 %v902, %v1176
      %v1323 = vadd.f32 %v907, %v1181
      %v1324 = vadd.f32 %v912, %v1186
      %v1325 = vadd.f32 %v917, %v1191
      %v1326 = vadd.f32 %v922, %v1196
      %v1327 = vadd.f32 %v927, %v1201
      %v1328 = vadd.f32 %v932, %v1206
      %v1329 = vadd.f32 %v937, %v1211
      %v1330 = vadd.f32 %v942, %v1216
      %v1331 = vadd.f32 %v947, %v1221
      %v1332 = vadd.f32 %v952, %v1226
      %v1333 = vadd.f32 %v957, %v1231
      %v1334 = vadd.f32 %v962, %v1236
      %v1335 = vadd.f32 %v967, %v1241
      %v1336 = vadd.f32 %v972, %v1246
      %v1337 = vadd.f32 %v977, %v1251
      %v1338 = vadd.f32 %v982, %v1256
      %v1339 = vadd.f32 %v987, %v1261
      %v1340 = vadd.f32 %v992, %v1266
      %v1341 = vadd.f32 %v997, %v1271
      %v1342 = vadd.f32 %v1002, %v1276
      %v1343 = vadd.f32 %v1007, %v1281
      %v1344 = vadd.f32 %v1012, %v1286
      %v1345 = vadd.f32 %v1017, %v1291
      %v1346 = vadd.f32 %v1022, %v1296
      %v1347 = vadd.f32 %v1027, %v1301
      %v1348 = vadd.f32 %v1032, %v1306
      %v1349 = vadd.f32 %v1037, %v1311
      %v1350 = vadd.f32 %v1042, %v1316
      %v1351 = vld [vmem:[%s465] sm:$0xff]
      %v1352 = vld [vmem:[%s465 + $0x8] sm:$0xff]
      %v1353 = vld [vmem:[%s465 + $0x18] sm:$0xff]
      %v1354 = vld [vmem:[%s465 + $0x20] sm:$0xff]
      %v1355 = vld [vmem:[%s465 + $0x30] sm:$0xff]
      %v1356 = vld [vmem:[%s465 + $0x38] sm:$0xff]
      %v1357 = vld [vmem:[%s465 + $0x48] sm:$0xff]
      %v1358 = vld [vmem:[%s465 + $0x50] sm:$0xff]
      %v1359 = vld [vmem:[%s465 + $0x60] sm:$0xff]
      %v1360 = vld [vmem:[%s465 + $0x68] sm:$0xff]
      %v1361 = vld [vmem:[%s465 + $0x78] sm:$0xff]
      %v1362 = vld [vmem:[%s465 + $0x80] sm:$0xff]
      %v1363 = vld [vmem:[%s465 + $0x90] sm:$0xff]
      %v1364 = vld [vmem:[%s465 + $0x98] sm:$0xff]
      %v1365 = vld [vmem:[%s465 + $0xa8] sm:$0xff]
      %v1366 = vld [vmem:[%s465 + $0xb0] sm:$0xff]
      %v1367 = vld [vmem:[%s465 + $0xc0] sm:$0xff]
      %v1368 = vld [vmem:[%s465 + $0xc8] sm:$0xff]
      %v1369 = vld [vmem:[%s465 + $0xd8] sm:$0xff]
      %v1370 = vld [vmem:[%s465 + $0xe0] sm:$0xff]
      %v1371 = vld [vmem:[%s465 + $0xf0] sm:$0xff]
      %v1372 = vld [vmem:[%s465 + $0xf8] sm:$0xff]
      %v1373 = vld [vmem:[%s465 + $0x108] sm:$0xff]
      %v1374 = vld [vmem:[%s465 + $0x110] sm:$0xff]
      %v1375 = vld [vmem:[%s465 + $0x120] sm:$0xff]
      %v1376 = vld [vmem:[%s465 + $0x128] sm:$0xff]
      %v1377 = vld [vmem:[%s465 + $0x138] sm:$0xff]
      %v1378 = vld [vmem:[%s465 + $0x140] sm:$0xff]
      %v1379 = vld [vmem:[%s465 + $0x150] sm:$0xff]
      %v1380 = vld [vmem:[%s465 + $0x158] sm:$0xff]
      %v1381 = vld [vmem:[%s465 + $0x168] sm:$0xff]
      %v1382 = vld [vmem:[%s465 + $0x170] sm:$0xff]
      %s1383 = scalar_lea.vmem %s3, 384
      %v1384 = vld [vmem:[%s1383] sm:$0xff]
      %v1385 = vld [vmem:[%s1383 + $0x8] sm:$0xff]
      %v1386 = vld [vmem:[%s1383 + $0x10] sm:$0xff]
      %v1387 = vld [vmem:[%s1383 + $0x18] sm:$0xff]
      %v1388 = vld [vmem:[%s1383 + $0x20] sm:$0xff]
      %v1389 = vld [vmem:[%s1383 + $0x28] sm:$0xff]
      %v1390 = vld [vmem:[%s1383 + $0x30] sm:$0xff]
      %v1391 = vld [vmem:[%s1383 + $0x38] sm:$0xff]
      %v1392 = vld [vmem:[%s1383 + $0x40] sm:$0xff]
      %v1393 = vld [vmem:[%s1383 + $0x48] sm:$0xff]
      %v1394 = vld [vmem:[%s1383 + $0x50] sm:$0xff]
      %v1395 = vld [vmem:[%s1383 + $0x58] sm:$0xff]
      %v1396 = vld [vmem:[%s1383 + $0x60] sm:$0xff]
      %v1397 = vld [vmem:[%s1383 + $0x68] sm:$0xff]
      %v1398 = vld [vmem:[%s1383 + $0x70] sm:$0xff]
      %v1399 = vld [vmem:[%s1383 + $0x78] sm:$0xff]
      %1400 = vmatprep.subr.mxu0 0.0
      %1401 = vmatpush1.msra.mxu0 %v1384
      %1402 = vmatprep.subr.mxu0 0.0
      %1403 = vmatpush1.msra.mxu0 %v1385
      %1404 = vmatprep.subr.mxu0 0.0
      %1405 = vmatpush1.msra.mxu0 %v1386
      %1406 = vmatprep.subr.mxu0 0.0
      %1407 = vmatpush1.msra.mxu0 %v1387
      %1408 = vmatprep.subr.mxu0 0.0
      %1409 = vmatpush1.msra.mxu0 %v1388
      %1410 = vmatprep.subr.mxu0 0.0
      %1411 = vmatpush1.msra.mxu0 %v1389
      %1412 = vmatprep.subr.mxu0 0.0
      %1413 = vmatpush1.msra.mxu0 %v1390
      %1414 = vmatprep.subr.mxu0 0.0
      %1415 = vmatpush1.msra.mxu0 %v1391
      %1416 = vmatprep.subr.mxu0 0.0
      %1417 = vmatpush1.msra.mxu0 %v1392
      %1418 = vmatprep.subr.mxu0 0.0
      %1419 = vmatpush1.msra.mxu0 %v1393
      %1420 = vmatprep.subr.mxu0 0.0
      %1421 = vmatpush1.msra.mxu0 %v1394
      %1422 = vmatprep.subr.mxu0 0.0
      %1423 = vmatpush1.msra.mxu0 %v1395
      %1424 = vmatprep.subr.mxu0 0.0
      %1425 = vmatpush1.msra.mxu0 %v1396
      %1426 = vmatprep.subr.mxu0 0.0
      %1427 = vmatpush1.msra.mxu0 %v1397
      %1428 = vmatprep.subr.mxu0 0.0
      %1429 = vmatpush1.msra.mxu0 %v1398
      %1430 = vmatprep.subr.mxu0 0.0
      %1431 = vmatpush1.msra.mxu0 %v1399
      %1432 = vmatprep.subr.mxu0 0.0
      %1433 = vmatpush1.msra.mxu0 0.0
      %1434 = vmatprep.subr.mxu0 0.0
      %1435 = vmatpush1.msra.mxu0 0.0
      %1436 = vmatprep.subr.mxu0 0.0
      %1437 = vmatpush1.msra.mxu0 0.0
      %1438 = vmatprep.subr.mxu0 0.0
      %1439 = vmatpush1.msra.mxu0 0.0
      %1440 = vmatprep.subr.mxu0 0.0
      %1441 = vmatpush1.msra.mxu0 0.0
      %1442 = vmatprep.subr.mxu0 0.0
      %1443 = vmatpush1.msra.mxu0 0.0
      %1444 = vmatprep.subr.mxu0 0.0
      %1445 = vmatpush1.msra.mxu0 0.0
      %1446 = vmatprep.subr.mxu0 0.0
      %1447 = vmatpush1.msra.mxu0 0.0
      %1448 = vmatprep.subr.mxu0 0.0
      %1449 = vmatpush1.msra.mxu0 0.0
      %1450 = vmatprep.subr.mxu0 0.0
      %1451 = vmatpush1.msra.mxu0 0.0
      %1452 = vmatprep.subr.mxu0 0.0
      %1453 = vmatpush1.msra.mxu0 0.0
      %1454 = vmatprep.subr.mxu0 0.0
      %1455 = vmatpush1.msra.mxu0 0.0
      %1456 = vmatprep.subr.mxu0 0.0
      %1457 = vmatpush1.msra.mxu0 0.0
      %1458 = vmatprep.subr.mxu0 0.0
      %1459 = vmatpush1.msra.mxu0 0.0
      %1460 = vmatprep.subr.mxu0 0.0
      %1461 = vmatpush1.msra.mxu0 0.0
      %1462 = vmatprep.subr.mxu0 0.0
      %1463 = vmatpush1.msra.mxu0 0.0
      %1464 = vmatprep.mubr.f32.mxu0 0.0
      %1465 = vmatmul.mubr.f32.gmra.mrb[0].mxu0 %v1351
      %v1466 = vpop.f32.mrb[0].mxu0
      %v1467 = vadd.f32 0.0, %v1466
      %v1468 = vpop.f32.mrb[0].mxu0
      %1469 = vmatprep.mubr.f32.mxu0 0.0
      %1470 = vmatmul.mubr.f32.gmra.mrb[0].mxu0 %v1352
      %v1471 = vpop.f32.mrb[0].mxu0
      %v1472 = vadd.f32 0.0, %v1471
      %v1473 = vpop.f32.mrb[0].mxu0
      %1474 = vmatprep.mubr.f32.mxu0 0.0
      %1475 = vmatmul.mubr.f32.gmra.mrb[0].mxu0 %v1353
      %v1476 = vpop.f32.mrb[0].mxu0
      %v1477 = vadd.f32 0.0, %v1476
      %v1478 = vpop.f32.mrb[0].mxu0
      %1479 = vmatprep.mubr.f32.mxu0 0.0
      %1480 = vmatmul.mubr.f32.gmra.mrb[0].mxu0 %v1354
      %v1481 = vpop.f32.mrb[0].mxu0
      %v1482 = vadd.f32 0.0, %v1481
      %v1483 = vpop.f32.mrb[0].mxu0
      %1484 = vmatprep.mubr.f32.mxu0 0.0
      %1485 = vmatmul.mubr.f32.gmra.mrb[0].mxu0 %v1355
      %v1486 = vpop.f32.mrb[0].mxu0
      %v1487 = vadd.f32 0.0, %v1486
      %v1488 = vpop.f32.mrb[0].mxu0
      %1489 = vmatprep.mubr.f32.mxu0 0.0
      %1490 = vmatmul.mubr.f32.gmra.mrb[0].mxu0 %v1356
      %v1491 = vpop.f32.mrb[0].mxu0
      %v1492 = vadd.f32 0.0, %v1491
      %v1493 = vpop.f32.mrb[0].mxu0
      %1494 = vmatprep.mubr.f32.mxu0 0.0
      %1495 = vmatmul.mubr.f32.gmra.mrb[0].mxu0 %v1357
      %v1496 = vpop.f32.mrb[0].mxu0
      %v1497 = vadd.f32 0.0, %v1496
      %v1498 = vpop.f32.mrb[0].mxu0
      %1499 = vmatprep.mubr.f32.mxu0 0.0
      %1500 = vmatmul.mubr.f32.gmra.mrb[0].mxu0 %v1358
      %v1501 = vpop.f32.mrb[0].mxu0
      %v1502 = vadd.f32 0.0, %v1501
      %v1503 = vpop.f32.mrb[0].mxu0
      %1504 = vmatprep.mubr.f32.mxu0 0.0
      %1505 = vmatmul.mubr.f32.gmra.mrb[0].mxu0 %v1359
      %v1506 = vpop.f32.mrb[0].mxu0
      %v1507 = vadd.f32 0.0, %v1506
      %v1508 = vpop.f32.mrb[0].mxu0
      %1509 = vmatprep.mubr.f32.mxu0 0.0
      %1510 = vmatmul.mubr.f32.gmra.mrb[0].mxu0 %v1360
      %v1511 = vpop.f32.mrb[0].mxu0
      %v1512 = vadd.f32 0.0, %v1511
      %v1513 = vpop.f32.mrb[0].mxu0
      %1514 = vmatprep.mubr.f32.mxu0 0.0
      %1515 = vmatmul.mubr.f32.gmra.mrb[0].mxu0 %v1361
      %v1516 = vpop.f32.mrb[0].mxu0
      %v1517 = vadd.f32 0.0, %v1516
      %v1518 = vpop.f32.mrb[0].mxu0
      %1519 = vmatprep.mubr.f32.mxu0 0.0
      %1520 = vmatmul.mubr.f32.gmra.mrb[0].mxu0 %v1362
      %v1521 = vpop.f32.mrb[0].mxu0
      %v1522 = vadd.f32 0.0, %v1521
      %v1523 = vpop.f32.mrb[0].mxu0
      %1524 = vmatprep.mubr.f32.mxu0 0.0
      %1525 = vmatmul.mubr.f32.gmra.mrb[0].mxu0 %v1363
      %v1526 = vpop.f32.mrb[0].mxu0
      %v1527 = vadd.f32 0.0, %v1526
      %v1528 = vpop.f32.mrb[0].mxu0
      %1529 = vmatprep.mubr.f32.mxu0 0.0
      %1530 = vmatmul.mubr.f32.gmra.mrb[0].mxu0 %v1364
      %v1531 = vpop.f32.mrb[0].mxu0
      %v1532 = vadd.f32 0.0, %v1531
      %v1533 = vpop.f32.mrb[0].mxu0
      %1534 = vmatprep.mubr.f32.mxu0 0.0
      %1535 = vmatmul.mubr.f32.gmra.mrb[0].mxu0 %v1365
      %v1536 = vpop.f32.mrb[0].mxu0
      %v1537 = vadd.f32 0.0, %v1536
      %v1538 = vpop.f32.mrb[0].mxu0
      %1539 = vmatprep.mubr.f32.mxu0 0.0
      %1540 = vmatmul.mubr.f32.gmra.mrb[0].mxu0 %v1366
      %v1541 = vpop.f32.mrb[0].mxu0
      %v1542 = vadd.f32 0.0, %v1541
      %v1543 = vpop.f32.mrb[0].mxu0
      %1544 = vmatprep.mubr.f32.mxu0 0.0
      %1545 = vmatmul.mubr.f32.gmra.mrb[0].mxu0 %v1367
      %v1546 = vpop.f32.mrb[0].mxu0
      %v1547 = vadd.f32 0.0, %v1546
      %v1548 = vpop.f32.mrb[0].mxu0
      %1549 = vmatprep.mubr.f32.mxu0 0.0
      %1550 = vmatmul.mubr.f32.gmra.mrb[0].mxu0 %v1368
      %v1551 = vpop.f32.mrb[0].mxu0
      %v1552 = vadd.f32 0.0, %v1551
      %v1553 = vpop.f32.mrb[0].mxu0
      %1554 = vmatprep.mubr.f32.mxu0 0.0
      %1555 = vmatmul.mubr.f32.gmra.mrb[0].mxu0 %v1369
      %v1556 = vpop.f32.mrb[0].mxu0
      %v1557 = vadd.f32 0.0, %v1556
      %v1558 = vpop.f32.mrb[0].mxu0
      %1559 = vmatprep.mubr.f32.mxu0 0.0
      %1560 = vmatmul.mubr.f32.gmra.mrb[0].mxu0 %v1370
      %v1561 = vpop.f32.mrb[0].mxu0
      %v1562 = vadd.f32 0.0, %v1561
      %v1563 = vpop.f32.mrb[0].mxu0
      %1564 = vmatprep.mubr.f32.mxu0 0.0
      %1565 = vmatmul.mubr.f32.gmra.mrb[0].mxu0 %v1371
      %v1566 = vpop.f32.mrb[0].mxu0
      %v1567 = vadd.f32 0.0, %v1566
      %v1568 = vpop.f32.mrb[0].mxu0
      %1569 = vmatprep.mubr.f32.mxu0 0.0
      %1570 = vmatmul.mubr.f32.gmra.mrb[0].mxu0 %v1372
      %v1571 = vpop.f32.mrb[0].mxu0
      %v1572 = vadd.f32 0.0, %v1571
      %v1573 = vpop.f32.mrb[0].mxu0
      %1574 = vmatprep.mubr.f32.mxu0 0.0
      %1575 = vmatmul.mubr.f32.gmra.mrb[0].mxu0 %v1373
      %v1576 = vpop.f32.mrb[0].mxu0
      %v1577 = vadd.f32 0.0, %v1576
      %v1578 = vpop.f32.mrb[0].mxu0
      %1579 = vmatprep.mubr.f32.mxu0 0.0
      %1580 = vmatmul.mubr.f32.gmra.mrb[0].mxu0 %v1374
      %v1581 = vpop.f32.mrb[0].mxu0
      %v1582 = vadd.f32 0.0, %v1581
      %v1583 = vpop.f32.mrb[0].mxu0
      %1584 = vmatprep.mubr.f32.mxu0 0.0
      %1585 = vmatmul.mubr.f32.gmra.mrb[0].mxu0 %v1375
      %v1586 = vpop.f32.mrb[0].mxu0
      %v1587 = vadd.f32 0.0, %v1586
      %v1588 = vpop.f32.mrb[0].mxu0
      %1589 = vmatprep.mubr.f32.mxu0 0.0
      %1590 = vmatmul.mubr.f32.gmra.mrb[0].mxu0 %v1376
      %v1591 = vpop.f32.mrb[0].mxu0
      %v1592 = vadd.f32 0.0, %v1591
      %v1593 = vpop.f32.mrb[0].mxu0
      %1594 = vmatprep.mubr.f32.mxu0 0.0
      %1595 = vmatmul.mubr.f32.gmra.mrb[0].mxu0 %v1377
      %v1596 = vpop.f32.mrb[0].mxu0
      %v1597 = vadd.f32 0.0, %v1596
      %v1598 = vpop.f32.mrb[0].mxu0
      %1599 = vmatprep.mubr.f32.mxu0 0.0
      %1600 = vmatmul.mubr.f32.gmra.mrb[0].mxu0 %v1378
      %v1601 = vpop.f32.mrb[0].mxu0
      %v1602 = vadd.f32 0.0, %v1601
      %v1603 = vpop.f32.mrb[0].mxu0
      %1604 = vmatprep.mubr.f32.mxu0 0.0
      %1605 = vmatmul.mubr.f32.gmra.mrb[0].mxu0 %v1379
      %v1606 = vpop.f32.mrb[0].mxu0
      %v1607 = vadd.f32 0.0, %v1606
      %v1608 = vpop.f32.mrb[0].mxu0
      %1609 = vmatprep.mubr.f32.mxu0 0.0
      %1610 = vmatmul.mubr.f32.gmra.mrb[0].mxu0 %v1380
      %v1611 = vpop.f32.mrb[0].mxu0
      %v1612 = vadd.f32 0.0, %v1611
      %v1613 = vpop.f32.mrb[0].mxu0
      %1614 = vmatprep.mubr.f32.mxu0 0.0
      %1615 = vmatmul.mubr.f32.gmra.mrb[0].mxu0 %v1381
      %v1616 = vpop.f32.mrb[0].mxu0
      %v1617 = vadd.f32 0.0, %v1616
      %v1618 = vpop.f32.mrb[0].mxu0
      %1619 = vmatprep.mubr.f32.mxu0 0.0
      %1620 = vmatmul.mubr.f32.gmra.mrb[0].mxu0 %v1382
      %v1621 = vpop.f32.mrb[0].mxu0
      %v1622 = vadd.f32 0.0, %v1621
      %v1623 = vpop.f32.mrb[0].mxu0
      %1624 = vdwg.mxu0
      %v1625 = vadd.f32 %v1319, %v1467
      %v1626 = vadd.f32 %v1320, %v1472
      %v1627 = vadd.f32 %v1321, %v1477
      %v1628 = vadd.f32 %v1322, %v1482
      %v1629 = vadd.f32 %v1323, %v1487
      %v1630 = vadd.f32 %v1324, %v1492
      %v1631 = vadd.f32 %v1325, %v1497
      %v1632 = vadd.f32 %v1326, %v1502
      %v1633 = vadd.f32 %v1327, %v1507
      %v1634 = vadd.f32 %v1328, %v1512
      %v1635 = vadd.f32 %v1329, %v1517
      %v1636 = vadd.f32 %v1330, %v1522
      %v1637 = vadd.f32 %v1331, %v1527
      %v1638 = vadd.f32 %v1332, %v1532
      %v1639 = vadd.f32 %v1333, %v1537
      %v1640 = vadd.f32 %v1334, %v1542
      %v1641 = vadd.f32 %v1335, %v1547
      %v1642 = vadd.f32 %v1336, %v1552
      %v1643 = vadd.f32 %v1337, %v1557
      %v1644 = vadd.f32 %v1338, %v1562
      %v1645 = vadd.f32 %v1339, %v1567
      %v1646 = vadd.f32 %v1340, %v1572
      %v1647 = vadd.f32 %v1341, %v1577
      %v1648 = vadd.f32 %v1342, %v1582
      %v1649 = vadd.f32 %v1343, %v1587
      %v1650 = vadd.f32 %v1344, %v1592
      %v1651 = vadd.f32 %v1345, %v1597
      %v1652 = vadd.f32 %v1346, %v1602
      %v1653 = vadd.f32 %v1347, %v1607
      %v1654 = vadd.f32 %v1348, %v1612
      %v1655 = vadd.f32 %v1349, %v1617
      %v1656 = vadd.f32 %v1350, %v1622
      %v1657 = vld [vmem:[%s465 + $0x1] sm:$0xff]
      %v1658 = vld [vmem:[%s465 + $0x9] sm:$0xff]
      %v1659 = vld [vmem:[%s465 + $0x19] sm:$0xff]
      %v1660 = vld [vmem:[%s465 + $0x21] sm:$0xff]
      %v1661 = vld [vmem:[%s465 + $0x31] sm:$0xff]
      %v1662 = vld [vmem:[%s465 + $0x39] sm:$0xff]
      %v1663 = vld [vmem:[%s465 + $0x49] sm:$0xff]
      %v1664 = vld [vmem:[%s465 + $0x51] sm:$0xff]
      %v1665 = vld [vmem:[%s465 + $0x61] sm:$0xff]
      %v1666 = vld [vmem:[%s465 + $0x69] sm:$0xff]
      %v1667 = vld [vmem:[%s465 + $0x79] sm:$0xff]
      %v1668 = vld [vmem:[%s465 + $0x81] sm:$0xff]
      %v1669 = vld [vmem:[%s465 + $0x91] sm:$0xff]
      %v1670 = vld [vmem:[%s465 + $0x99] sm:$0xff]
      %v1671 = vld [vmem:[%s465 + $0xa9] sm:$0xff]
      %v1672 = vld [vmem:[%s465 + $0xb1] sm:$0xff]
      %v1673 = vld [vmem:[%s465 + $0xc1] sm:$0xff]
      %v1674 = vld [vmem:[%s465 + $0xc9] sm:$0xff]
      %v1675 = vld [vmem:[%s465 + $0xd9] sm:$0xff]
      %v1676 = vld [vmem:[%s465 + $0xe1] sm:$0xff]
      %v1677 = vld [vmem:[%s465 + $0xf1] sm:$0xff]
      %v1678 = vld [vmem:[%s465 + $0xf9] sm:$0xff]
      %v1679 = vld [vmem:[%s465 + $0x109] sm:$0xff]
      %v1680 = vld [vmem:[%s465 + $0x111] sm:$0xff]
      %v1681 = vld [vmem:[%s465 + $0x121] sm:$0xff]
      %v1682 = vld [vmem:[%s465 + $0x129] sm:$0xff]
      %v1683 = vld [vmem:[%s465 + $0x139] sm:$0xff]
      %v1684 = vld [vmem:[%s465 + $0x141] sm:$0xff]
      %v1685 = vld [vmem:[%s465 + $0x151] sm:$0xff]
      %v1686 = vld [vmem:[%s465 + $0x159] sm:$0xff]
      %v1687 = vld [vmem:[%s465 + $0x169] sm:$0xff]
      %v1688 = vld [vmem:[%s465 + $0x171] sm:$0xff]
      %s1689 = scalar_lea.vmem %s3, 512
      %v1690 = vld [vmem:[%s1689] sm:$0xff]
      %v1691 = vld [vmem:[%s1689 + $0x8] sm:$0xff]
      %v1692 = vld [vmem:[%s1689 + $0x10] sm:$0xff]
      %v1693 = vld [vmem:[%s1689 + $0x18] sm:$0xff]
      %v1694 = vld [vmem:[%s1689 + $0x20] sm:$0xff]
      %v1695 = vld [vmem:[%s1689 + $0x28] sm:$0xff]
      %v1696 = vld [vmem:[%s1689 + $0x30] sm:$0xff]
      %v1697 = vld [vmem:[%s1689 + $0x38] sm:$0xff]
      %v1698 = vld [vmem:[%s1689 + $0x40] sm:$0xff]
      %v1699 = vld [vmem:[%s1689 + $0x48] sm:$0xff]
      %v1700 = vld [vmem:[%s1689 + $0x50] sm:$0xff]
      %v1701 = vld [vmem:[%s1689 + $0x58] sm:$0xff]
      %v1702 = vld [vmem:[%s1689 + $0x60] sm:$0xff]
      %v1703 = vld [vmem:[%s1689 + $0x68] sm:$0xff]
      %v1704 = vld [vmem:[%s1689 + $0x70] sm:$0xff]
      %v1705 = vld [vmem:[%s1689 + $0x78] sm:$0xff]
      %1706 = vmatprep.subr.mxu0 0.0
      %1707 = vmatpush1.msra.mxu0 %v1690
      %1708 = vmatprep.subr.mxu0 0.0
      %1709 = vmatpush1.msra.mxu0 %v1691
      %1710 = vmatprep.subr.mxu0 0.0
      %1711 = vmatpush1.msra.mxu0 %v1692
      %1712 = vmatprep.subr.mxu0 0.0
      %1713 = vmatpush1.msra.mxu0 %v1693
      %1714 = vmatprep.subr.mxu0 0.0
      %1715 = vmatpush1.msra.mxu0 %v1694
      %1716 = vmatprep.subr.mxu0 0.0
      %1717 = vmatpush1.msra.mxu0 %v1695
      %1718 = vmatprep.subr.mxu0 0.0
      %1719 = vmatpush1.msra.mxu0 %v1696
      %1720 = vmatprep.subr.mxu0 0.0
      %1721 = vmatpush1.msra.mxu0 %v1697
      %1722 = vmatprep.subr.mxu0 0.0
      %1723 = vmatpush1.msra.mxu0 %v1698
      %1724 = vmatprep.subr.mxu0 0.0
      %1725 = vmatpush1.msra.mxu0 %v1699
      %1726 = vmatprep.subr.mxu0 0.0
      %1727 = vmatpush1.msra.mxu0 %v1700
      %1728 = vmatprep.subr.mxu0 0.0
      %1729 = vmatpush1.msra.mxu0 %v1701
      %1730 = vmatprep.subr.mxu0 0.0
      %1731 = vmatpush1.msra.mxu0 %v1702
      %1732 = vmatprep.subr.mxu0 0.0
      %1733 = vmatpush1.msra.mxu0 %v1703
      %1734 = vmatprep.subr.mxu0 0.0
      %1735 = vmatpush1.msra.mxu0 %v1704
      %1736 = vmatprep.subr.mxu0 0.0
      %1737 = vmatpush1.msra.mxu0 %v1705
      %1738 = vmatprep.subr.mxu0 0.0
      %1739 = vmatpush1.msra.mxu0 0.0
      %1740 = vmatprep.subr.mxu0 0.0
      %1741 = vmatpush1.msra.mxu0 0.0
      %1742 = vmatprep.subr.mxu0 0.0
      %1743 = vmatpush1.msra.mxu0 0.0
      %1744 = vmatprep.subr.mxu0 0.0
      %1745 = vmatpush1.msra.mxu0 0.0
      %1746 = vmatprep.subr.mxu0 0.0
      %1747 = vmatpush1.msra.mxu0 0.0
      %1748 = vmatprep.subr.mxu0 0.0
      %1749 = vmatpush1.msra.mxu0 0.0
      %1750 = vmatprep.subr.mxu0 0.0
      %1751 = vmatpush1.msra.mxu0 0.0
      %1752 = vmatprep.subr.mxu0 0.0
      %1753 = vmatpush1.msra.mxu0 0.0
      %1754 = vmatprep.subr.mxu0 0.0
      %1755 = vmatpush1.msra.mxu0 0.0
      %1756 = vmatprep.subr.mxu0 0.0
      %1757 = vmatpush1.msra.mxu0 0.0
      %1758 = vmatprep.subr.mxu0 0.0
      %1759 = vmatpush1.msra.mxu0 0.0
      %1760 = vmatprep.subr.mxu0 0.0
      %1761 = vmatpush1.msra.mxu0 0.0
      %1762 = vmatprep.subr.mxu0 0.0
      %1763 = vmatpush1.msra.mxu0 0.0
      %1764 = vmatprep.subr.mxu0 0.0
      %1765 = vmatpush1.msra.mxu0 0.0
      %1766 = vmatprep.subr.mxu0 0.0
      %1767 = vmatpush1.msra.mxu0 0.0
      %1768 = vmatprep.subr.mxu0 0.0
      %1769 = vmatpush1.msra.mxu0 0.0
      %1770 = vmatprep.mubr.f32.mxu0 0.0
      %1771 = vmatmul.mubr.f32.gmra.mrb[0].mxu0 %v1657
      %v1772 = vpop.f32.mrb[0].mxu0
      %v1773 = vadd.f32 0.0, %v1772
      %v1774 = vpop.f32.mrb[0].mxu0
      %1775 = vmatprep.mubr.f32.mxu0 0.0
      %1776 = vmatmul.mubr.f32.gmra.mrb[0].mxu0 %v1658
      %v1777 = vpop.f32.mrb[0].mxu0
      %v1778 = vadd.f32 0.0, %v1777
      %v1779 = vpop.f32.mrb[0].mxu0
      %1780 = vmatprep.mubr.f32.mxu0 0.0
      %1781 = vmatmul.mubr.f32.gmra.mrb[0].mxu0 %v1659
      %v1782 = vpop.f32.mrb[0].mxu0
      %v1783 = vadd.f32 0.0, %v1782
      %v1784 = vpop.f32.mrb[0].mxu0
      %1785 = vmatprep.mubr.f32.mxu0 0.0
      %1786 = vmatmul.mubr.f32.gmra.mrb[0].mxu0 %v1660
      %v1787 = vpop.f32.mrb[0].mxu0
      %v1788 = vadd.f32 0.0, %v1787
      %v1789 = vpop.f32.mrb[0].mxu0
      %1790 = vmatprep.mubr.f32.mxu0 0.0
      %1791 = vmatmul.mubr.f32.gmra.mrb[0].mxu0 %v1661
      %v1792 = vpop.f32.mrb[0].mxu0
      %v1793 = vadd.f32 0.0, %v1792
      %v1794 = vpop.f32.mrb[0].mxu0
      %1795 = vmatprep.mubr.f32.mxu0 0.0
      %1796 = vmatmul.mubr.f32.gmra.mrb[0].mxu0 %v1662
      %v1797 = vpop.f32.mrb[0].mxu0
      %v1798 = vadd.f32 0.0, %v1797
      %v1799 = vpop.f32.mrb[0].mxu0
      %1800 = vmatprep.mubr.f32.mxu0 0.0
      %1801 = vmatmul.mubr.f32.gmra.mrb[0].mxu0 %v1663
      %v1802 = vpop.f32.mrb[0].mxu0
      %v1803 = vadd.f32 0.0, %v1802
      %v1804 = vpop.f32.mrb[0].mxu0
      %1805 = vmatprep.mubr.f32.mxu0 0.0
      %1806 = vmatmul.mubr.f32.gmra.mrb[0].mxu0 %v1664
      %v1807 = vpop.f32.mrb[0].mxu0
      %v1808 = vadd.f32 0.0, %v1807
      %v1809 = vpop.f32.mrb[0].mxu0
      %1810 = vmatprep.mubr.f32.mxu0 0.0
      %1811 = vmatmul.mubr.f32.gmra.mrb[0].mxu0 %v1665
      %v1812 = vpop.f32.mrb[0].mxu0
      %v1813 = vadd.f32 0.0, %v1812
      %v1814 = vpop.f32.mrb[0].mxu0
      %1815 = vmatprep.mubr.f32.mxu0 0.0
      %1816 = vmatmul.mubr.f32.gmra.mrb[0].mxu0 %v1666
      %v1817 = vpop.f32.mrb[0].mxu0
      %v1818 = vadd.f32 0.0, %v1817
      %v1819 = vpop.f32.mrb[0].mxu0
      %1820 = vmatprep.mubr.f32.mxu0 0.0
      %1821 = vmatmul.mubr.f32.gmra.mrb[0].mxu0 %v1667
      %v1822 = vpop.f32.mrb[0].mxu0
      %v1823 = vadd.f32 0.0, %v1822
      %v1824 = vpop.f32.mrb[0].mxu0
      %1825 = vmatprep.mubr.f32.mxu0 0.0
      %1826 = vmatmul.mubr.f32.gmra.mrb[0].mxu0 %v1668
      %v1827 = vpop.f32.mrb[0].mxu0
      %v1828 = vadd.f32 0.0, %v1827
      %v1829 = vpop.f32.mrb[0].mxu0
      %1830 = vmatprep.mubr.f32.mxu0 0.0
      %1831 = vmatmul.mubr.f32.gmra.mrb[0].mxu0 %v1669
      %v1832 = vpop.f32.mrb[0].mxu0
      %v1833 = vadd.f32 0.0, %v1832
      %v1834 = vpop.f32.mrb[0].mxu0
      %1835 = vmatprep.mubr.f32.mxu0 0.0
      %1836 = vmatmul.mubr.f32.gmra.mrb[0].mxu0 %v1670
      %v1837 = vpop.f32.mrb[0].mxu0
      %v1838 = vadd.f32 0.0, %v1837
      %v1839 = vpop.f32.mrb[0].mxu0
      %1840 = vmatprep.mubr.f32.mxu0 0.0
      %1841 = vmatmul.mubr.f32.gmra.mrb[0].mxu0 %v1671
      %v1842 = vpop.f32.mrb[0].mxu0
      %v1843 = vadd.f32 0.0, %v1842
      %v1844 = vpop.f32.mrb[0].mxu0
      %1845 = vmatprep.mubr.f32.mxu0 0.0
      %1846 = vmatmul.mubr.f32.gmra.mrb[0].mxu0 %v1672
      %v1847 = vpop.f32.mrb[0].mxu0
      %v1848 = vadd.f32 0.0, %v1847
      %v1849 = vpop.f32.mrb[0].mxu0
      %1850 = vmatprep.mubr.f32.mxu0 0.0
      %1851 = vmatmul.mubr.f32.gmra.mrb[0].mxu0 %v1673
      %v1852 = vpop.f32.mrb[0].mxu0
      %v1853 = vadd.f32 0.0, %v1852
      %v1854 = vpop.f32.mrb[0].mxu0
      %1855 = vmatprep.mubr.f32.mxu0 0.0
      %1856 = vmatmul.mubr.f32.gmra.mrb[0].mxu0 %v1674
      %v1857 = vpop.f32.mrb[0].mxu0
      %v1858 = vadd.f32 0.0, %v1857
      %v1859 = vpop.f32.mrb[0].mxu0
      %1860 = vmatprep.mubr.f32.mxu0 0.0
      %1861 = vmatmul.mubr.f32.gmra.mrb[0].mxu0 %v1675
      %v1862 = vpop.f32.mrb[0].mxu0
      %v1863 = vadd.f32 0.0, %v1862
      %v1864 = vpop.f32.mrb[0].mxu0
      %1865 = vmatprep.mubr.f32.mxu0 0.0
      %1866 = vmatmul.mubr.f32.gmra.mrb[0].mxu0 %v1676
      %v1867 = vpop.f32.mrb[0].mxu0
      %v1868 = vadd.f32 0.0, %v1867
      %v1869 = vpop.f32.mrb[0].mxu0
      %1870 = vmatprep.mubr.f32.mxu0 0.0
      %1871 = vmatmul.mubr.f32.gmra.mrb[0].mxu0 %v1677
      %v1872 = vpop.f32.mrb[0].mxu0
      %v1873 = vadd.f32 0.0, %v1872
      %v1874 = vpop.f32.mrb[0].mxu0
      %1875 = vmatprep.mubr.f32.mxu0 0.0
      %1876 = vmatmul.mubr.f32.gmra.mrb[0].mxu0 %v1678
      %v1877 = vpop.f32.mrb[0].mxu0
      %v1878 = vadd.f32 0.0, %v1877
      %v1879 = vpop.f32.mrb[0].mxu0
      %1880 = vmatprep.mubr.f32.mxu0 0.0
      %1881 = vmatmul.mubr.f32.gmra.mrb[0].mxu0 %v1679
      %v1882 = vpop.f32.mrb[0].mxu0
      %v1883 = vadd.f32 0.0, %v1882
      %v1884 = vpop.f32.mrb[0].mxu0
      %1885 = vmatprep.mubr.f32.mxu0 0.0
      %1886 = vmatmul.mubr.f32.gmra.mrb[0].mxu0 %v1680
      %v1887 = vpop.f32.mrb[0].mxu0
      %v1888 = vadd.f32 0.0, %v1887
      %v1889 = vpop.f32.mrb[0].mxu0
      %1890 = vmatprep.mubr.f32.mxu0 0.0
      %1891 = vmatmul.mubr.f32.gmra.mrb[0].mxu0 %v1681
      %v1892 = vpop.f32.mrb[0].mxu0
      %v1893 = vadd.f32 0.0, %v1892
      %v1894 = vpop.f32.mrb[0].mxu0
      %1895 = vmatprep.mubr.f32.mxu0 0.0
      %1896 = vmatmul.mubr.f32.gmra.mrb[0].mxu0 %v1682
      %v1897 = vpop.f32.mrb[0].mxu0
      %v1898 = vadd.f32 0.0, %v1897
      %v1899 = vpop.f32.mrb[0].mxu0
      %1900 = vmatprep.mubr.f32.mxu0 0.0
      %1901 = vmatmul.mubr.f32.gmra.mrb[0].mxu0 %v1683
      %v1902 = vpop.f32.mrb[0].mxu0
      %v1903 = vadd.f32 0.0, %v1902
      %v1904 = vpop.f32.mrb[0].mxu0
      %1905 = vmatprep.mubr.f32.mxu0 0.0
      %1906 = vmatmul.mubr.f32.gmra.mrb[0].mxu0 %v1684
      %v1907 = vpop.f32.mrb[0].mxu0
      %v1908 = vadd.f32 0.0, %v1907
      %v1909 = vpop.f32.mrb[0].mxu0
      %1910 = vmatprep.mubr.f32.mxu0 0.0
      %1911 = vmatmul.mubr.f32.gmra.mrb[0].mxu0 %v1685
      %v1912 = vpop.f32.mrb[0].mxu0
      %v1913 = vadd.f32 0.0, %v1912
      %v1914 = vpop.f32.mrb[0].mxu0
      %1915 = vmatprep.mubr.f32.mxu0 0.0
      %1916 = vmatmul.mubr.f32.gmra.mrb[0].mxu0 %v1686
      %v1917 = vpop.f32.mrb[0].mxu0
      %v1918 = vadd.f32 0.0, %v1917
      %v1919 = vpop.f32.mrb[0].mxu0
      %1920 = vmatprep.mubr.f32.mxu0 0.0
      %1921 = vmatmul.mubr.f32.gmra.mrb[0].mxu0 %v1687
      %v1922 = vpop.f32.mrb[0].mxu0
      %v1923 = vadd.f32 0.0, %v1922
      %v1924 = vpop.f32.mrb[0].mxu0
      %1925 = vmatprep.mubr.f32.mxu0 0.0
      %1926 = vmatmul.mubr.f32.gmra.mrb[0].mxu0 %v1688
      %v1927 = vpop.f32.mrb[0].mxu0
      %v1928 = vadd.f32 0.0, %v1927
      %v1929 = vpop.f32.mrb[0].mxu0
      %1930 = vdwg.mxu0
      %v1931 = vadd.f32 %v1625, %v1773
      %v1932 = vadd.f32 %v1626, %v1778
      %v1933 = vadd.f32 %v1627, %v1783
      %v1934 = vadd.f32 %v1628, %v1788
      %v1935 = vadd.f32 %v1629, %v1793
      %v1936 = vadd.f32 %v1630, %v1798
      %v1937 = vadd.f32 %v1631, %v1803
      %v1938 = vadd.f32 %v1632, %v1808
      %v1939 = vadd.f32 %v1633, %v1813
      %v1940 = vadd.f32 %v1634, %v1818
      %v1941 = vadd.f32 %v1635, %v1823
      %v1942 = vadd.f32 %v1636, %v1828
      %v1943 = vadd.f32 %v1637, %v1833
      %v1944 = vadd.f32 %v1638, %v1838
      %v1945 = vadd.f32 %v1639, %v1843
      %v1946 = vadd.f32 %v1640, %v1848
      %v1947 = vadd.f32 %v1641, %v1853
      %v1948 = vadd.f32 %v1642, %v1858
      %v1949 = vadd.f32 %v1643, %v1863
      %v1950 = vadd.f32 %v1644, %v1868
      %v1951 = vadd.f32 %v1645, %v1873
      %v1952 = vadd.f32 %v1646, %v1878
      %v1953 = vadd.f32 %v1647, %v1883
      %v1954 = vadd.f32 %v1648, %v1888
      %v1955 = vadd.f32 %v1649, %v1893
      %v1956 = vadd.f32 %v1650, %v1898
      %v1957 = vadd.f32 %v1651, %v1903
      %v1958 = vadd.f32 %v1652, %v1908
      %v1959 = vadd.f32 %v1653, %v1913
      %v1960 = vadd.f32 %v1654, %v1918
      %v1961 = vadd.f32 %v1655, %v1923
      %v1962 = vadd.f32 %v1656, %v1928
      %v1963 = vld [vmem:[%s465 + $0x2] sm:$0xff]
      %v1964 = vld [vmem:[%s465 + $0xa] sm:$0xff]
      %v1965 = vld [vmem:[%s465 + $0x1a] sm:$0xff]
      %v1966 = vld [vmem:[%s465 + $0x22] sm:$0xff]
      %v1967 = vld [vmem:[%s465 + $0x32] sm:$0xff]
      %v1968 = vld [vmem:[%s465 + $0x3a] sm:$0xff]
      %v1969 = vld [vmem:[%s465 + $0x4a] sm:$0xff]
      %v1970 = vld [vmem:[%s465 + $0x52] sm:$0xff]
      %v1971 = vld [vmem:[%s465 + $0x62] sm:$0xff]
      %v1972 = vld [vmem:[%s465 + $0x6a] sm:$0xff]
      %v1973 = vld [vmem:[%s465 + $0x7a] sm:$0xff]
      %v1974 = vld [vmem:[%s465 + $0x82] sm:$0xff]
      %v1975 = vld [vmem:[%s465 + $0x92] sm:$0xff]
      %v1976 = vld [vmem:[%s465 + $0x9a] sm:$0xff]
      %v1977 = vld [vmem:[%s465 + $0xaa] sm:$0xff]
      %v1978 = vld [vmem:[%s465 + $0xb2] sm:$0xff]
      %v1979 = vld [vmem:[%s465 + $0xc2] sm:$0xff]
      %v1980 = vld [vmem:[%s465 + $0xca] sm:$0xff]
      %v1981 = vld [vmem:[%s465 + $0xda] sm:$0xff]
      %v1982 = vld [vmem:[%s465 + $0xe2] sm:$0xff]
      %v1983 = vld [vmem:[%s465 + $0xf2] sm:$0xff]
      %v1984 = vld [vmem:[%s465 + $0xfa] sm:$0xff]
      %v1985 = vld [vmem:[%s465 + $0x10a] sm:$0xff]
      %v1986 = vld [vmem:[%s465 + $0x112] sm:$0xff]
      %v1987 = vld [vmem:[%s465 + $0x122] sm:$0xff]
      %v1988 = vld [vmem:[%s465 + $0x12a] sm:$0xff]
      %v1989 = vld [vmem:[%s465 + $0x13a] sm:$0xff]
      %v1990 = vld [vmem:[%s465 + $0x142] sm:$0xff]
      %v1991 = vld [vmem:[%s465 + $0x152] sm:$0xff]
      %v1992 = vld [vmem:[%s465 + $0x15a] sm:$0xff]
      %v1993 = vld [vmem:[%s465 + $0x16a] sm:$0xff]
      %v1994 = vld [vmem:[%s465 + $0x172] sm:$0xff]
      %s1995 = scalar_lea.vmem %s3, 640
      %v1996 = vld [vmem:[%s1995] sm:$0xff]
      %v1997 = vld [vmem:[%s1995 + $0x8] sm:$0xff]
      %v1998 = vld [vmem:[%s1995 + $0x10] sm:$0xff]
      %v1999 = vld [vmem:[%s1995 + $0x18] sm:$0xff]
      %v2000 = vld [vmem:[%s1995 + $0x20] sm:$0xff]
      %v2001 = vld [vmem:[%s1995 + $0x28] sm:$0xff]
      %v2002 = vld [vmem:[%s1995 + $0x30] sm:$0xff]
      %v2003 = vld [vmem:[%s1995 + $0x38] sm:$0xff]
      %v2004 = vld [vmem:[%s1995 + $0x40] sm:$0xff]
      %v2005 = vld [vmem:[%s1995 + $0x48] sm:$0xff]
      %v2006 = vld [vmem:[%s1995 + $0x50] sm:$0xff]
      %v2007 = vld [vmem:[%s1995 + $0x58] sm:$0xff]
      %v2008 = vld [vmem:[%s1995 + $0x60] sm:$0xff]
      %v2009 = vld [vmem:[%s1995 + $0x68] sm:$0xff]
      %v2010 = vld [vmem:[%s1995 + $0x70] sm:$0xff]
      %v2011 = vld [vmem:[%s1995 + $0x78] sm:$0xff]
      %2012 = vmatprep.subr.mxu0 0.0
      %2013 = vmatpush1.msra.mxu0 %v1996
      %2014 = vmatprep.subr.mxu0 0.0
      %2015 = vmatpush1.msra.mxu0 %v1997
      %2016 = vmatprep.subr.mxu0 0.0
      %2017 = vmatpush1.msra.mxu0 %v1998
      %2018 = vmatprep.subr.mxu0 0.0
      %2019 = vmatpush1.msra.mxu0 %v1999
      %2020 = vmatprep.subr.mxu0 0.0
      %2021 = vmatpush1.msra.mxu0 %v2000
      %2022 = vmatprep.subr.mxu0 0.0
      %2023 = vmatpush1.msra.mxu0 %v2001
      %2024 = vmatprep.subr.mxu0 0.0
      %2025 = vmatpush1.msra.mxu0 %v2002
      %2026 = vmatprep.subr.mxu0 0.0
      %2027 = vmatpush1.msra.mxu0 %v2003
      %2028 = vmatprep.subr.mxu0 0.0
      %2029 = vmatpush1.msra.mxu0 %v2004
      %2030 = vmatprep.subr.mxu0 0.0
      %2031 = vmatpush1.msra.mxu0 %v2005
      %2032 = vmatprep.subr.mxu0 0.0
      %2033 = vmatpush1.msra.mxu0 %v2006
      %2034 = vmatprep.subr.mxu0 0.0
      %2035 = vmatpush1.msra.mxu0 %v2007
      %2036 = vmatprep.subr.mxu0 0.0
      %2037 = vmatpush1.msra.mxu0 %v2008
      %2038 = vmatprep.subr.mxu0 0.0
      %2039 = vmatpush1.msra.mxu0 %v2009
      %2040 = vmatprep.subr.mxu0 0.0
      %2041 = vmatpush1.msra.mxu0 %v2010
      %2042 = vmatprep.subr.mxu0 0.0
      %2043 = vmatpush1.msra.mxu0 %v2011
      %2044 = vmatprep.subr.mxu0 0.0
      %2045 = vmatpush1.msra.mxu0 0.0
      %2046 = vmatprep.subr.mxu0 0.0
      %2047 = vmatpush1.msra.mxu0 0.0
      %2048 = vmatprep.subr.mxu0 0.0
      %2049 = vmatpush1.msra.mxu0 0.0
      %2050 = vmatprep.subr.mxu0 0.0
      %2051 = vmatpush1.msra.mxu0 0.0
      %2052 = vmatprep.subr.mxu0 0.0
      %2053 = vmatpush1.msra.mxu0 0.0
      %2054 = vmatprep.subr.mxu0 0.0
      %2055 = vmatpush1.msra.mxu0 0.0
      %2056 = vmatprep.subr.mxu0 0.0
      %2057 = vmatpush1.msra.mxu0 0.0
      %2058 = vmatprep.subr.mxu0 0.0
      %2059 = vmatpush1.msra.mxu0 0.0
      %2060 = vmatprep.subr.mxu0 0.0
      %2061 = vmatpush1.msra.mxu0 0.0
      %2062 = vmatprep.subr.mxu0 0.0
      %2063 = vmatpush1.msra.mxu0 0.0
      %2064 = vmatprep.subr.mxu0 0.0
      %2065 = vmatpush1.msra.mxu0 0.0
      %2066 = vmatprep.subr.mxu0 0.0
      %2067 = vmatpush1.msra.mxu0 0.0
      %2068 = vmatprep.subr.mxu0 0.0
      %2069 = vmatpush1.msra.mxu0 0.0
      %2070 = vmatprep.subr.mxu0 0.0
      %2071 = vmatpush1.msra.mxu0 0.0
      %2072 = vmatprep.subr.mxu0 0.0
      %2073 = vmatpush1.msra.mxu0 0.0
      %2074 = vmatprep.subr.mxu0 0.0
      %2075 = vmatpush1.msra.mxu0 0.0
      %2076 = vmatprep.mubr.f32.mxu0 0.0
      %2077 = vmatmul.mubr.f32.gmra.mrb[0].mxu0 %v1963
      %v2078 = vpop.f32.mrb[0].mxu0
      %v2079 = vadd.f32 0.0, %v2078
      %v2080 = vpop.f32.mrb[0].mxu0
      %2081 = vmatprep.mubr.f32.mxu0 0.0
      %2082 = vmatmul.mubr.f32.gmra.mrb[0].mxu0 %v1964
      %v2083 = vpop.f32.mrb[0].mxu0
      %v2084 = vadd.f32 0.0, %v2083
      %v2085 = vpop.f32.mrb[0].mxu0
      %2086 = vmatprep.mubr.f32.mxu0 0.0
      %2087 = vmatmul.mubr.f32.gmra.mrb[0].mxu0 %v1965
      %v2088 = vpop.f32.mrb[0].mxu0
      %v2089 = vadd.f32 0.0, %v2088
      %v2090 = vpop.f32.mrb[0].mxu0
      %2091 = vmatprep.mubr.f32.mxu0 0.0
      %2092 = vmatmul.mubr.f32.gmra.mrb[0].mxu0 %v1966
      %v2093 = vpop.f32.mrb[0].mxu0
      %v2094 = vadd.f32 0.0, %v2093
      %v2095 = vpop.f32.mrb[0].mxu0
      %2096 = vmatprep.mubr.f32.mxu0 0.0
      %2097 = vmatmul.mubr.f32.gmra.mrb[0].mxu0 %v1967
      %v2098 = vpop.f32.mrb[0].mxu0
      %v2099 = vadd.f32 0.0, %v2098
      %v2100 = vpop.f32.mrb[0].mxu0
      %2101 = vmatprep.mubr.f32.mxu0 0.0
      %2102 = vmatmul.mubr.f32.gmra.mrb[0].mxu0 %v1968
      %v2103 = vpop.f32.mrb[0].mxu0
      %v2104 = vadd.f32 0.0, %v2103
      %v2105 = vpop.f32.mrb[0].mxu0
      %2106 = vmatprep.mubr.f32.mxu0 0.0
      %2107 = vmatmul.mubr.f32.gmra.mrb[0].mxu0 %v1969
      %v2108 = vpop.f32.mrb[0].mxu0
      %v2109 = vadd.f32 0.0, %v2108
      %v2110 = vpop.f32.mrb[0].mxu0
      %2111 = vmatprep.mubr.f32.mxu0 0.0
      %2112 = vmatmul.mubr.f32.gmra.mrb[0].mxu0 %v1970
      %v2113 = vpop.f32.mrb[0].mxu0
      %v2114 = vadd.f32 0.0, %v2113
      %v2115 = vpop.f32.mrb[0].mxu0
      %2116 = vmatprep.mubr.f32.mxu0 0.0
      %2117 = vmatmul.mubr.f32.gmra.mrb[0].mxu0 %v1971
      %v2118 = vpop.f32.mrb[0].mxu0
      %v2119 = vadd.f32 0.0, %v2118
      %v2120 = vpop.f32.mrb[0].mxu0
      %2121 = vmatprep.mubr.f32.mxu0 0.0
      %2122 = vmatmul.mubr.f32.gmra.mrb[0].mxu0 %v1972
      %v2123 = vpop.f32.mrb[0].mxu0
      %v2124 = vadd.f32 0.0, %v2123
      %v2125 = vpop.f32.mrb[0].mxu0
      %2126 = vmatprep.mubr.f32.mxu0 0.0
      %2127 = vmatmul.mubr.f32.gmra.mrb[0].mxu0 %v1973
      %v2128 = vpop.f32.mrb[0].mxu0
      %v2129 = vadd.f32 0.0, %v2128
      %v2130 = vpop.f32.mrb[0].mxu0
      %2131 = vmatprep.mubr.f32.mxu0 0.0
      %2132 = vmatmul.mubr.f32.gmra.mrb[0].mxu0 %v1974
      %v2133 = vpop.f32.mrb[0].mxu0
      %v2134 = vadd.f32 0.0, %v2133
      %v2135 = vpop.f32.mrb[0].mxu0
      %2136 = vmatprep.mubr.f32.mxu0 0.0
      %2137 = vmatmul.mubr.f32.gmra.mrb[0].mxu0 %v1975
      %v2138 = vpop.f32.mrb[0].mxu0
      %v2139 = vadd.f32 0.0, %v2138
      %v2140 = vpop.f32.mrb[0].mxu0
      %2141 = vmatprep.mubr.f32.mxu0 0.0
      %2142 = vmatmul.mubr.f32.gmra.mrb[0].mxu0 %v1976
      %v2143 = vpop.f32.mrb[0].mxu0
      %v2144 = vadd.f32 0.0, %v2143
      %v2145 = vpop.f32.mrb[0].mxu0
      %2146 = vmatprep.mubr.f32.mxu0 0.0
      %2147 = vmatmul.mubr.f32.gmra.mrb[0].mxu0 %v1977
      %v2148 = vpop.f32.mrb[0].mxu0
      %v2149 = vadd.f32 0.0, %v2148
      %v2150 = vpop.f32.mrb[0].mxu0
      %2151 = vmatprep.mubr.f32.mxu0 0.0
      %2152 = vmatmul.mubr.f32.gmra.mrb[0].mxu0 %v1978
      %v2153 = vpop.f32.mrb[0].mxu0
      %v2154 = vadd.f32 0.0, %v2153
      %v2155 = vpop.f32.mrb[0].mxu0
      %2156 = vmatprep.mubr.f32.mxu0 0.0
      %2157 = vmatmul.mubr.f32.gmra.mrb[0].mxu0 %v1979
      %v2158 = vpop.f32.mrb[0].mxu0
      %v2159 = vadd.f32 0.0, %v2158
      %v2160 = vpop.f32.mrb[0].mxu0
      %2161 = vmatprep.mubr.f32.mxu0 0.0
      %2162 = vmatmul.mubr.f32.gmra.mrb[0].mxu0 %v1980
      %v2163 = vpop.f32.mrb[0].mxu0
      %v2164 = vadd.f32 0.0, %v2163
      %v2165 = vpop.f32.mrb[0].mxu0
      %2166 = vmatprep.mubr.f32.mxu0 0.0
      %2167 = vmatmul.mubr.f32.gmra.mrb[0].mxu0 %v1981
      %v2168 = vpop.f32.mrb[0].mxu0
      %v2169 = vadd.f32 0.0, %v2168
      %v2170 = vpop.f32.mrb[0].mxu0
      %2171 = vmatprep.mubr.f32.mxu0 0.0
      %2172 = vmatmul.mubr.f32.gmra.mrb[0].mxu0 %v1982
      %v2173 = vpop.f32.mrb[0].mxu0
      %v2174 = vadd.f32 0.0, %v2173
      %v2175 = vpop.f32.mrb[0].mxu0
      %2176 = vmatprep.mubr.f32.mxu0 0.0
      %2177 = vmatmul.mubr.f32.gmra.mrb[0].mxu0 %v1983
      %v2178 = vpop.f32.mrb[0].mxu0
      %v2179 = vadd.f32 0.0, %v2178
      %v2180 = vpop.f32.mrb[0].mxu0
      %2181 = vmatprep.mubr.f32.mxu0 0.0
      %2182 = vmatmul.mubr.f32.gmra.mrb[0].mxu0 %v1984
      %v2183 = vpop.f32.mrb[0].mxu0
      %v2184 = vadd.f32 0.0, %v2183
      %v2185 = vpop.f32.mrb[0].mxu0
      %2186 = vmatprep.mubr.f32.mxu0 0.0
      %2187 = vmatmul.mubr.f32.gmra.mrb[0].mxu0 %v1985
      %v2188 = vpop.f32.mrb[0].mxu0
      %v2189 = vadd.f32 0.0, %v2188
      %v2190 = vpop.f32.mrb[0].mxu0
      %2191 = vmatprep.mubr.f32.mxu0 0.0
      %2192 = vmatmul.mubr.f32.gmra.mrb[0].mxu0 %v1986
      %v2193 = vpop.f32.mrb[0].mxu0
      %v2194 = vadd.f32 0.0, %v2193
      %v2195 = vpop.f32.mrb[0].mxu0
      %2196 = vmatprep.mubr.f32.mxu0 0.0
      %2197 = vmatmul.mubr.f32.gmra.mrb[0].mxu0 %v1987
      %v2198 = vpop.f32.mrb[0].mxu0
      %v2199 = vadd.f32 0.0, %v2198
      %v2200 = vpop.f32.mrb[0].mxu0
      %2201 = vmatprep.mubr.f32.mxu0 0.0
      %2202 = vmatmul.mubr.f32.gmra.mrb[0].mxu0 %v1988
      %v2203 = vpop.f32.mrb[0].mxu0
      %v2204 = vadd.f32 0.0, %v2203
      %v2205 = vpop.f32.mrb[0].mxu0
      %2206 = vmatprep.mubr.f32.mxu0 0.0
      %2207 = vmatmul.mubr.f32.gmra.mrb[0].mxu0 %v1989
      %v2208 = vpop.f32.mrb[0].mxu0
      %v2209 = vadd.f32 0.0, %v2208
      %v2210 = vpop.f32.mrb[0].mxu0
      %2211 = vmatprep.mubr.f32.mxu0 0.0
      %2212 = vmatmul.mubr.f32.gmra.mrb[0].mxu0 %v1990
      %v2213 = vpop.f32.mrb[0].mxu0
      %v2214 = vadd.f32 0.0, %v2213
      %v2215 = vpop.f32.mrb[0].mxu0
      %2216 = vmatprep.mubr.f32.mxu0 0.0
      %2217 = vmatmul.mubr.f32.gmra.mrb[0].mxu0 %v1991
      %v2218 = vpop.f32.mrb[0].mxu0
      %v2219 = vadd.f32 0.0, %v2218
      %v2220 = vpop.f32.mrb[0].mxu0
      %2221 = vmatprep.mubr.f32.mxu0 0.0
      %2222 = vmatmul.mubr.f32.gmra.mrb[0].mxu0 %v1992
      %v2223 = vpop.f32.mrb[0].mxu0
      %v2224 = vadd.f32 0.0, %v2223
      %v2225 = vpop.f32.mrb[0].mxu0
      %2226 = vmatprep.mubr.f32.mxu0 0.0
      %2227 = vmatmul.mubr.f32.gmra.mrb[0].mxu0 %v1993
      %v2228 = vpop.f32.mrb[0].mxu0
      %v2229 = vadd.f32 0.0, %v2228
      %v2230 = vpop.f32.mrb[0].mxu0
      %2231 = vmatprep.mubr.f32.mxu0 0.0
      %2232 = vmatmul.mubr.f32.gmra.mrb[0].mxu0 %v1994
      %v2233 = vpop.f32.mrb[0].mxu0
      %v2234 = vadd.f32 0.0, %v2233
      %v2235 = vpop.f32.mrb[0].mxu0
      %2236 = vdwg.mxu0
      %v2237 = vadd.f32 %v1931, %v2079
      %v2238 = vadd.f32 %v1932, %v2084
      %v2239 = vadd.f32 %v1933, %v2089
      %v2240 = vadd.f32 %v1934, %v2094
      %v2241 = vadd.f32 %v1935, %v2099
      %v2242 = vadd.f32 %v1936, %v2104
      %v2243 = vadd.f32 %v1937, %v2109
      %v2244 = vadd.f32 %v1938, %v2114
      %v2245 = vadd.f32 %v1939, %v2119
      %v2246 = vadd.f32 %v1940, %v2124
      %v2247 = vadd.f32 %v1941, %v2129
      %v2248 = vadd.f32 %v1942, %v2134
      %v2249 = vadd.f32 %v1943, %v2139
      %v2250 = vadd.f32 %v1944, %v2144
      %v2251 = vadd.f32 %v1945, %v2149
      %v2252 = vadd.f32 %v1946, %v2154
      %v2253 = vadd.f32 %v1947, %v2159
      %v2254 = vadd.f32 %v1948, %v2164
      %v2255 = vadd.f32 %v1949, %v2169
      %v2256 = vadd.f32 %v1950, %v2174
      %v2257 = vadd.f32 %v1951, %v2179
      %v2258 = vadd.f32 %v1952, %v2184
      %v2259 = vadd.f32 %v1953, %v2189
      %v2260 = vadd.f32 %v1954, %v2194
      %v2261 = vadd.f32 %v1955, %v2199
      %v2262 = vadd.f32 %v1956, %v2204
      %v2263 = vadd.f32 %v1957, %v2209
      %v2264 = vadd.f32 %v1958, %v2214
      %v2265 = vadd.f32 %v1959, %v2219
      %v2266 = vadd.f32 %v1960, %v2224
      %v2267 = vadd.f32 %v1961, %v2229
      %v2268 = vadd.f32 %v1962, %v2234
      %s2269 = scalar_lea.vmem [#allocation2], 48
      %v2270 = vld [vmem:[%s2269] sm:$0xff]
      %v2271 = vld [vmem:[%s2269 + $0x8] sm:$0xff]
      %v2272 = vld [vmem:[%s2269 + $0x18] sm:$0xff]
      %v2273 = vld [vmem:[%s2269 + $0x20] sm:$0xff]
      %v2274 = vld [vmem:[%s2269 + $0x30] sm:$0xff]
      %v2275 = vld [vmem:[%s2269 + $0x38] sm:$0xff]
      %v2276 = vld [vmem:[%s2269 + $0x48] sm:$0xff]
      %v2277 = vld [vmem:[%s2269 + $0x50] sm:$0xff]
      %v2278 = vld [vmem:[%s2269 + $0x60] sm:$0xff]
      %v2279 = vld [vmem:[%s2269 + $0x68] sm:$0xff]
      %v2280 = vld [vmem:[%s2269 + $0x78] sm:$0xff]
      %v2281 = vld [vmem:[%s2269 + $0x80] sm:$0xff]
      %v2282 = vld [vmem:[%s2269 + $0x90] sm:$0xff]
      %v2283 = vld [vmem:[%s2269 + $0x98] sm:$0xff]
      %v2284 = vld [vmem:[%s2269 + $0xa8] sm:$0xff]
      %v2285 = vld [vmem:[%s2269 + $0xb0] sm:$0xff]
      %v2286 = vld [vmem:[%s2269 + $0xc0] sm:$0xff]
      %v2287 = vld [vmem:[%s2269 + $0xc8] sm:$0xff]
      %v2288 = vld [vmem:[%s2269 + $0xd8] sm:$0xff]
      %v2289 = vld [vmem:[%s2269 + $0xe0] sm:$0xff]
      %v2290 = vld [vmem:[%s2269 + $0xf0] sm:$0xff]
      %v2291 = vld [vmem:[%s2269 + $0xf8] sm:$0xff]
      %v2292 = vld [vmem:[%s2269 + $0x108] sm:$0xff]
      %v2293 = vld [vmem:[%s2269 + $0x110] sm:$0xff]
      %v2294 = vld [vmem:[%s2269 + $0x120] sm:$0xff]
      %v2295 = vld [vmem:[%s2269 + $0x128] sm:$0xff]
      %v2296 = vld [vmem:[%s2269 + $0x138] sm:$0xff]
      %v2297 = vld [vmem:[%s2269 + $0x140] sm:$0xff]
      %v2298 = vld [vmem:[%s2269 + $0x150] sm:$0xff]
      %v2299 = vld [vmem:[%s2269 + $0x158] sm:$0xff]
      %v2300 = vld [vmem:[%s2269 + $0x168] sm:$0xff]
      %v2301 = vld [vmem:[%s2269 + $0x170] sm:$0xff]
      %s2302 = scalar_lea.vmem %s3, 768
      %v2303 = vld [vmem:[%s2302] sm:$0xff]
      %v2304 = vld [vmem:[%s2302 + $0x8] sm:$0xff]
      %v2305 = vld [vmem:[%s2302 + $0x10] sm:$0xff]
      %v2306 = vld [vmem:[%s2302 + $0x18] sm:$0xff]
      %v2307 = vld [vmem:[%s2302 + $0x20] sm:$0xff]
      %v2308 = vld [vmem:[%s2302 + $0x28] sm:$0xff]
      %v2309 = vld [vmem:[%s2302 + $0x30] sm:$0xff]
      %v2310 = vld [vmem:[%s2302 + $0x38] sm:$0xff]
      %v2311 = vld [vmem:[%s2302 + $0x40] sm:$0xff]
      %v2312 = vld [vmem:[%s2302 + $0x48] sm:$0xff]
      %v2313 = vld [vmem:[%s2302 + $0x50] sm:$0xff]
      %v2314 = vld [vmem:[%s2302 + $0x58] sm:$0xff]
      %v2315 = vld [vmem:[%s2302 + $0x60] sm:$0xff]
      %v2316 = vld [vmem:[%s2302 + $0x68] sm:$0xff]
      %v2317 = vld [vmem:[%s2302 + $0x70] sm:$0xff]
      %v2318 = vld [vmem:[%s2302 + $0x78] sm:$0xff]
      %2319 = vmatprep.subr.mxu0 0.0
      %2320 = vmatpush1.msra.mxu0 %v2303
      %2321 = vmatprep.subr.mxu0 0.0
      %2322 = vmatpush1.msra.mxu0 %v2304
      %2323 = vmatprep.subr.mxu0 0.0
      %2324 = vmatpush1.msra.mxu0 %v2305
      %2325 = vmatprep.subr.mxu0 0.0
      %2326 = vmatpush1.msra.mxu0 %v2306
      %2327 = vmatprep.subr.mxu0 0.0
      %2328 = vmatpush1.msra.mxu0 %v2307
      %2329 = vmatprep.subr.mxu0 0.0
      %2330 = vmatpush1.msra.mxu0 %v2308
      %2331 = vmatprep.subr.mxu0 0.0
      %2332 = vmatpush1.msra.mxu0 %v2309
      %2333 = vmatprep.subr.mxu0 0.0
      %2334 = vmatpush1.msra.mxu0 %v2310
      %2335 = vmatprep.subr.mxu0 0.0
      %2336 = vmatpush1.msra.mxu0 %v2311
      %2337 = vmatprep.subr.mxu0 0.0
      %2338 = vmatpush1.msra.mxu0 %v2312
      %2339 = vmatprep.subr.mxu0 0.0
      %2340 = vmatpush1.msra.mxu0 %v2313
      %2341 = vmatprep.subr.mxu0 0.0
      %2342 = vmatpush1.msra.mxu0 %v2314
      %2343 = vmatprep.subr.mxu0 0.0
      %2344 = vmatpush1.msra.mxu0 %v2315
      %2345 = vmatprep.subr.mxu0 0.0
      %2346 = vmatpush1.msra.mxu0 %v2316
      %2347 = vmatprep.subr.mxu0 0.0
      %2348 = vmatpush1.msra.mxu0 %v2317
      %2349 = vmatprep.subr.mxu0 0.0
      %2350 = vmatpush1.msra.mxu0 %v2318
      %2351 = vmatprep.subr.mxu0 0.0
      %2352 = vmatpush1.msra.mxu0 0.0
      %2353 = vmatprep.subr.mxu0 0.0
      %2354 = vmatpush1.msra.mxu0 0.0
      %2355 = vmatprep.subr.mxu0 0.0
      %2356 = vmatpush1.msra.mxu0 0.0
      %2357 = vmatprep.subr.mxu0 0.0
      %2358 = vmatpush1.msra.mxu0 0.0
      %2359 = vmatprep.subr.mxu0 0.0
      %2360 = vmatpush1.msra.mxu0 0.0
      %2361 = vmatprep.subr.mxu0 0.0
      %2362 = vmatpush1.msra.mxu0 0.0
      %2363 = vmatprep.subr.mxu0 0.0
      %2364 = vmatpush1.msra.mxu0 0.0
      %2365 = vmatprep.subr.mxu0 0.0
      %2366 = vmatpush1.msra.mxu0 0.0
      %2367 = vmatprep.subr.mxu0 0.0
      %2368 = vmatpush1.msra.mxu0 0.0
      %2369 = vmatprep.subr.mxu0 0.0
      %2370 = vmatpush1.msra.mxu0 0.0
      %2371 = vmatprep.subr.mxu0 0.0
      %2372 = vmatpush1.msra.mxu0 0.0
      %2373 = vmatprep.subr.mxu0 0.0
      %2374 = vmatpush1.msra.mxu0 0.0
      %2375 = vmatprep.subr.mxu0 0.0
      %2376 = vmatpush1.msra.mxu0 0.0
      %2377 = vmatprep.subr.mxu0 0.0
      %2378 = vmatpush1.msra.mxu0 0.0
      %2379 = vmatprep.subr.mxu0 0.0
      %2380 = vmatpush1.msra.mxu0 0.0
      %2381 = vmatprep.subr.mxu0 0.0
      %2382 = vmatpush1.msra.mxu0 0.0
      %2383 = vmatprep.mubr.f32.mxu0 0.0
      %2384 = vmatmul.mubr.f32.gmra.mrb[0].mxu0 %v2270
      %v2385 = vpop.f32.mrb[0].mxu0
      %v2386 = vadd.f32 0.0, %v2385
      %v2387 = vpop.f32.mrb[0].mxu0
      %2388 = vmatprep.mubr.f32.mxu0 0.0
      %2389 = vmatmul.mubr.f32.gmra.mrb[0].mxu0 %v2271
      %v2390 = vpop.f32.mrb[0].mxu0
      %v2391 = vadd.f32 0.0, %v2390
      %v2392 = vpop.f32.mrb[0].mxu0
      %2393 = vmatprep.mubr.f32.mxu0 0.0
      %2394 = vmatmul.mubr.f32.gmra.mrb[0].mxu0 %v2272
      %v2395 = vpop.f32.mrb[0].mxu0
      %v2396 = vadd.f32 0.0, %v2395
      %v2397 = vpop.f32.mrb[0].mxu0
      %2398 = vmatprep.mubr.f32.mxu0 0.0
      %2399 = vmatmul.mubr.f32.gmra.mrb[0].mxu0 %v2273
      %v2400 = vpop.f32.mrb[0].mxu0
      %v2401 = vadd.f32 0.0, %v2400
      %v2402 = vpop.f32.mrb[0].mxu0
      %2403 = vmatprep.mubr.f32.mxu0 0.0
      %2404 = vmatmul.mubr.f32.gmra.mrb[0].mxu0 %v2274
      %v2405 = vpop.f32.mrb[0].mxu0
      %v2406 = vadd.f32 0.0, %v2405
      %v2407 = vpop.f32.mrb[0].mxu0
      %2408 = vmatprep.mubr.f32.mxu0 0.0
      %2409 = vmatmul.mubr.f32.gmra.mrb[0].mxu0 %v2275
      %v2410 = vpop.f32.mrb[0].mxu0
      %v2411 = vadd.f32 0.0, %v2410
      %v2412 = vpop.f32.mrb[0].mxu0
      %2413 = vmatprep.mubr.f32.mxu0 0.0
      %2414 = vmatmul.mubr.f32.gmra.mrb[0].mxu0 %v2276
      %v2415 = vpop.f32.mrb[0].mxu0
      %v2416 = vadd.f32 0.0, %v2415
      %v2417 = vpop.f32.mrb[0].mxu0
      %2418 = vmatprep.mubr.f32.mxu0 0.0
      %2419 = vmatmul.mubr.f32.gmra.mrb[0].mxu0 %v2277
      %v2420 = vpop.f32.mrb[0].mxu0
      %v2421 = vadd.f32 0.0, %v2420
      %v2422 = vpop.f32.mrb[0].mxu0
      %2423 = vmatprep.mubr.f32.mxu0 0.0
      %2424 = vmatmul.mubr.f32.gmra.mrb[0].mxu0 %v2278
      %v2425 = vpop.f32.mrb[0].mxu0
      %v2426 = vadd.f32 0.0, %v2425
      %v2427 = vpop.f32.mrb[0].mxu0
      %2428 = vmatprep.mubr.f32.mxu0 0.0
      %2429 = vmatmul.mubr.f32.gmra.mrb[0].mxu0 %v2279
      %v2430 = vpop.f32.mrb[0].mxu0
      %v2431 = vadd.f32 0.0, %v2430
      %v2432 = vpop.f32.mrb[0].mxu0
      %2433 = vmatprep.mubr.f32.mxu0 0.0
      %2434 = vmatmul.mubr.f32.gmra.mrb[0].mxu0 %v2280
      %v2435 = vpop.f32.mrb[0].mxu0
      %v2436 = vadd.f32 0.0, %v2435
      %v2437 = vpop.f32.mrb[0].mxu0
      %2438 = vmatprep.mubr.f32.mxu0 0.0
      %2439 = vmatmul.mubr.f32.gmra.mrb[0].mxu0 %v2281
      %v2440 = vpop.f32.mrb[0].mxu0
      %v2441 = vadd.f32 0.0, %v2440
      %v2442 = vpop.f32.mrb[0].mxu0
      %2443 = vmatprep.mubr.f32.mxu0 0.0
      %2444 = vmatmul.mubr.f32.gmra.mrb[0].mxu0 %v2282
      %v2445 = vpop.f32.mrb[0].mxu0
      %v2446 = vadd.f32 0.0, %v2445
      %v2447 = vpop.f32.mrb[0].mxu0
      %2448 = vmatprep.mubr.f32.mxu0 0.0
      %2449 = vmatmul.mubr.f32.gmra.mrb[0].mxu0 %v2283
      %v2450 = vpop.f32.mrb[0].mxu0
      %v2451 = vadd.f32 0.0, %v2450
      %v2452 = vpop.f32.mrb[0].mxu0
      %2453 = vmatprep.mubr.f32.mxu0 0.0
      %2454 = vmatmul.mubr.f32.gmra.mrb[0].mxu0 %v2284
      %v2455 = vpop.f32.mrb[0].mxu0
      %v2456 = vadd.f32 0.0, %v2455
      %v2457 = vpop.f32.mrb[0].mxu0
      %2458 = vmatprep.mubr.f32.mxu0 0.0
      %2459 = vmatmul.mubr.f32.gmra.mrb[0].mxu0 %v2285
      %v2460 = vpop.f32.mrb[0].mxu0
      %v2461 = vadd.f32 0.0, %v2460
      %v2462 = vpop.f32.mrb[0].mxu0
      %2463 = vmatprep.mubr.f32.mxu0 0.0
      %2464 = vmatmul.mubr.f32.gmra.mrb[0].mxu0 %v2286
      %v2465 = vpop.f32.mrb[0].mxu0
      %v2466 = vadd.f32 0.0, %v2465
      %v2467 = vpop.f32.mrb[0].mxu0
      %2468 = vmatprep.mubr.f32.mxu0 0.0
      %2469 = vmatmul.mubr.f32.gmra.mrb[0].mxu0 %v2287
      %v2470 = vpop.f32.mrb[0].mxu0
      %v2471 = vadd.f32 0.0, %v2470
      %v2472 = vpop.f32.mrb[0].mxu0
      %2473 = vmatprep.mubr.f32.mxu0 0.0
      %2474 = vmatmul.mubr.f32.gmra.mrb[0].mxu0 %v2288
      %v2475 = vpop.f32.mrb[0].mxu0
      %v2476 = vadd.f32 0.0, %v2475
      %v2477 = vpop.f32.mrb[0].mxu0
      %2478 = vmatprep.mubr.f32.mxu0 0.0
      %2479 = vmatmul.mubr.f32.gmra.mrb[0].mxu0 %v2289
      %v2480 = vpop.f32.mrb[0].mxu0
      %v2481 = vadd.f32 0.0, %v2480
      %v2482 = vpop.f32.mrb[0].mxu0
      %2483 = vmatprep.mubr.f32.mxu0 0.0
      %2484 = vmatmul.mubr.f32.gmra.mrb[0].mxu0 %v2290
      %v2485 = vpop.f32.mrb[0].mxu0
      %v2486 = vadd.f32 0.0, %v2485
      %v2487 = vpop.f32.mrb[0].mxu0
      %2488 = vmatprep.mubr.f32.mxu0 0.0
      %2489 = vmatmul.mubr.f32.gmra.mrb[0].mxu0 %v2291
      %v2490 = vpop.f32.mrb[0].mxu0
      %v2491 = vadd.f32 0.0, %v2490
      %v2492 = vpop.f32.mrb[0].mxu0
      %2493 = vmatprep.mubr.f32.mxu0 0.0
      %2494 = vmatmul.mubr.f32.gmra.mrb[0].mxu0 %v2292
      %v2495 = vpop.f32.mrb[0].mxu0
      %v2496 = vadd.f32 0.0, %v2495
      %v2497 = vpop.f32.mrb[0].mxu0
      %2498 = vmatprep.mubr.f32.mxu0 0.0
      %2499 = vmatmul.mubr.f32.gmra.mrb[0].mxu0 %v2293
      %v2500 = vpop.f32.mrb[0].mxu0
      %v2501 = vadd.f32 0.0, %v2500
      %v2502 = vpop.f32.mrb[0].mxu0
      %2503 = vmatprep.mubr.f32.mxu0 0.0
      %2504 = vmatmul.mubr.f32.gmra.mrb[0].mxu0 %v2294
      %v2505 = vpop.f32.mrb[0].mxu0
      %v2506 = vadd.f32 0.0, %v2505
      %v2507 = vpop.f32.mrb[0].mxu0
      %2508 = vmatprep.mubr.f32.mxu0 0.0
      %2509 = vmatmul.mubr.f32.gmra.mrb[0].mxu0 %v2295
      %v2510 = vpop.f32.mrb[0].mxu0
      %v2511 = vadd.f32 0.0, %v2510
      %v2512 = vpop.f32.mrb[0].mxu0
      %2513 = vmatprep.mubr.f32.mxu0 0.0
      %2514 = vmatmul.mubr.f32.gmra.mrb[0].mxu0 %v2296
      %v2515 = vpop.f32.mrb[0].mxu0
      %v2516 = vadd.f32 0.0, %v2515
      %v2517 = vpop.f32.mrb[0].mxu0
      %2518 = vmatprep.mubr.f32.mxu0 0.0
      %2519 = vmatmul.mubr.f32.gmra.mrb[0].mxu0 %v2297
      %v2520 = vpop.f32.mrb[0].mxu0
      %v2521 = vadd.f32 0.0, %v2520
      %v2522 = vpop.f32.mrb[0].mxu0
      %2523 = vmatprep.mubr.f32.mxu0 0.0
      %2524 = vmatmul.mubr.f32.gmra.mrb[0].mxu0 %v2298
      %v2525 = vpop.f32.mrb[0].mxu0
      %v2526 = vadd.f32 0.0, %v2525
      %v2527 = vpop.f32.mrb[0].mxu0
      %2528 = vmatprep.mubr.f32.mxu0 0.0
      %2529 = vmatmul.mubr.f32.gmra.mrb[0].mxu0 %v2299
      %v2530 = vpop.f32.mrb[0].mxu0
      %v2531 = vadd.f32 0.0, %v2530
      %v2532 = vpop.f32.mrb[0].mxu0
      %2533 = vmatprep.mubr.f32.mxu0 0.0
      %2534 = vmatmul.mubr.f32.gmra.mrb[0].mxu0 %v2300
      %v2535 = vpop.f32.mrb[0].mxu0
      %v2536 = vadd.f32 0.0, %v2535
      %v2537 = vpop.f32.mrb[0].mxu0
      %2538 = vmatprep.mubr.f32.mxu0 0.0
      %2539 = vmatmul.mubr.f32.gmra.mrb[0].mxu0 %v2301
      %v2540 = vpop.f32.mrb[0].mxu0
      %v2541 = vadd.f32 0.0, %v2540
      %v2542 = vpop.f32.mrb[0].mxu0
      %2543 = vdwg.mxu0
      %v2544 = vadd.f32 %v2237, %v2386
      %v2545 = vadd.f32 %v2238, %v2391
      %v2546 = vadd.f32 %v2239, %v2396
      %v2547 = vadd.f32 %v2240, %v2401
      %v2548 = vadd.f32 %v2241, %v2406
      %v2549 = vadd.f32 %v2242, %v2411
      %v2550 = vadd.f32 %v2243, %v2416
      %v2551 = vadd.f32 %v2244, %v2421
      %v2552 = vadd.f32 %v2245, %v2426
      %v2553 = vadd.f32 %v2246, %v2431
      %v2554 = vadd.f32 %v2247, %v2436
      %v2555 = vadd.f32 %v2248, %v2441
      %v2556 = vadd.f32 %v2249, %v2446
      %v2557 = vadd.f32 %v2250, %v2451
      %v2558 = vadd.f32 %v2251, %v2456
      %v2559 = vadd.f32 %v2252, %v2461
      %v2560 = vadd.f32 %v2253, %v2466
      %v2561 = vadd.f32 %v2254, %v2471
      %v2562 = vadd.f32 %v2255, %v2476
      %v2563 = vadd.f32 %v2256, %v2481
      %v2564 = vadd.f32 %v2257, %v2486
      %v2565 = vadd.f32 %v2258, %v2491
      %v2566 = vadd.f32 %v2259, %v2496
      %v2567 = vadd.f32 %v2260, %v2501
      %v2568 = vadd.f32 %v2261, %v2506
      %v2569 = vadd.f32 %v2262, %v2511
      %v2570 = vadd.f32 %v2263, %v2516
      %v2571 = vadd.f32 %v2264, %v2521
      %v2572 = vadd.f32 %v2265, %v2526
      %v2573 = vadd.f32 %v2266, %v2531
      %v2574 = vadd.f32 %v2267, %v2536
      %v2575 = vadd.f32 %v2268, %v2541
      %v2576 = vld [vmem:[%s2269 + $0x1] sm:$0xff]
      %v2577 = vld [vmem:[%s2269 + $0x9] sm:$0xff]
      %v2578 = vld [vmem:[%s2269 + $0x19] sm:$0xff]
      %v2579 = vld [vmem:[%s2269 + $0x21] sm:$0xff]
      %v2580 = vld [vmem:[%s2269 + $0x31] sm:$0xff]
      %v2581 = vld [vmem:[%s2269 + $0x39] sm:$0xff]
      %v2582 = vld [vmem:[%s2269 + $0x49] sm:$0xff]
      %v2583 = vld [vmem:[%s2269 + $0x51] sm:$0xff]
      %v2584 = vld [vmem:[%s2269 + $0x61] sm:$0xff]
      %v2585 = vld [vmem:[%s2269 + $0x69] sm:$0xff]
      %v2586 = vld [vmem:[%s2269 + $0x79] sm:$0xff]
      %v2587 = vld [vmem:[%s2269 + $0x81] sm:$0xff]
      %v2588 = vld [vmem:[%s2269 + $0x91] sm:$0xff]
      %v2589 = vld [vmem:[%s2269 + $0x99] sm:$0xff]
      %v2590 = vld [vmem:[%s2269 + $0xa9] sm:$0xff]
      %v2591 = vld [vmem:[%s2269 + $0xb1] sm:$0xff]
      %v2592 = vld [vmem:[%s2269 + $0xc1] sm:$0xff]
      %v2593 = vld [vmem:[%s2269 + $0xc9] sm:$0xff]
      %v2594 = vld [vmem:[%s2269 + $0xd9] sm:$0xff]
      %v2595 = vld [vmem:[%s2269 + $0xe1] sm:$0xff]
      %v2596 = vld [vmem:[%s2269 + $0xf1] sm:$0xff]
      %v2597 = vld [vmem:[%s2269 + $0xf9] sm:$0xff]
      %v2598 = vld [vmem:[%s2269 + $0x109] sm:$0xff]
      %v2599 = vld [vmem:[%s2269 + $0x111] sm:$0xff]
      %v2600 = vld [vmem:[%s2269 + $0x121] sm:$0xff]
      %v2601 = vld [vmem:[%s2269 + $0x129] sm:$0xff]
      %v2602 = vld [vmem:[%s2269 + $0x139] sm:$0xff]
      %v2603 = vld [vmem:[%s2269 + $0x141] sm:$0xff]
      %v2604 = vld [vmem:[%s2269 + $0x151] sm:$0xff]
      %v2605 = vld [vmem:[%s2269 + $0x159] sm:$0xff]
      %v2606 = vld [vmem:[%s2269 + $0x169] sm:$0xff]
      %v2607 = vld [vmem:[%s2269 + $0x171] sm:$0xff]
      %s2608 = scalar_lea.vmem %s3, 896
      %v2609 = vld [vmem:[%s2608] sm:$0xff]
      %v2610 = vld [vmem:[%s2608 + $0x8] sm:$0xff]
      %v2611 = vld [vmem:[%s2608 + $0x10] sm:$0xff]
      %v2612 = vld [vmem:[%s2608 + $0x18] sm:$0xff]
      %v2613 = vld [vmem:[%s2608 + $0x20] sm:$0xff]
      %v2614 = vld [vmem:[%s2608 + $0x28] sm:$0xff]
      %v2615 = vld [vmem:[%s2608 + $0x30] sm:$0xff]
      %v2616 = vld [vmem:[%s2608 + $0x38] sm:$0xff]
      %v2617 = vld [vmem:[%s2608 + $0x40] sm:$0xff]
      %v2618 = vld [vmem:[%s2608 + $0x48] sm:$0xff]
      %v2619 = vld [vmem:[%s2608 + $0x50] sm:$0xff]
      %v2620 = vld [vmem:[%s2608 + $0x58] sm:$0xff]
      %v2621 = vld [vmem:[%s2608 + $0x60] sm:$0xff]
      %v2622 = vld [vmem:[%s2608 + $0x68] sm:$0xff]
      %v2623 = vld [vmem:[%s2608 + $0x70] sm:$0xff]
      %v2624 = vld [vmem:[%s2608 + $0x78] sm:$0xff]
      %2625 = vmatprep.subr.mxu0 0.0
      %2626 = vmatpush1.msra.mxu0 %v2609
      %2627 = vmatprep.subr.mxu0 0.0
      %2628 = vmatpush1.msra.mxu0 %v2610
      %2629 = vmatprep.subr.mxu0 0.0
      %2630 = vmatpush1.msra.mxu0 %v2611
      %2631 = vmatprep.subr.mxu0 0.0
      %2632 = vmatpush1.msra.mxu0 %v2612
      %2633 = vmatprep.subr.mxu0 0.0
      %2634 = vmatpush1.msra.mxu0 %v2613
      %2635 = vmatprep.subr.mxu0 0.0
      %2636 = vmatpush1.msra.mxu0 %v2614
      %2637 = vmatprep.subr.mxu0 0.0
      %2638 = vmatpush1.msra.mxu0 %v2615
      %2639 = vmatprep.subr.mxu0 0.0
      %2640 = vmatpush1.msra.mxu0 %v2616
      %2641 = vmatprep.subr.mxu0 0.0
      %2642 = vmatpush1.msra.mxu0 %v2617
      %2643 = vmatprep.subr.mxu0 0.0
      %2644 = vmatpush1.msra.mxu0 %v2618
      %2645 = vmatprep.subr.mxu0 0.0
      %2646 = vmatpush1.msra.mxu0 %v2619
      %2647 = vmatprep.subr.mxu0 0.0
      %2648 = vmatpush1.msra.mxu0 %v2620
      %2649 = vmatprep.subr.mxu0 0.0
      %2650 = vmatpush1.msra.mxu0 %v2621
      %2651 = vmatprep.subr.mxu0 0.0
      %2652 = vmatpush1.msra.mxu0 %v2622
      %2653 = vmatprep.subr.mxu0 0.0
      %2654 = vmatpush1.msra.mxu0 %v2623
      %2655 = vmatprep.subr.mxu0 0.0
      %2656 = vmatpush1.msra.mxu0 %v2624
      %2657 = vmatprep.subr.mxu0 0.0
      %2658 = vmatpush1.msra.mxu0 0.0
      %2659 = vmatprep.subr.mxu0 0.0
      %2660 = vmatpush1.msra.mxu0 0.0
      %2661 = vmatprep.subr.mxu0 0.0
      %2662 = vmatpush1.msra.mxu0 0.0
      %2663 = vmatprep.subr.mxu0 0.0
      %2664 = vmatpush1.msra.mxu0 0.0
      %2665 = vmatprep.subr.mxu0 0.0
      %2666 = vmatpush1.msra.mxu0 0.0
      %2667 = vmatprep.subr.mxu0 0.0
      %2668 = vmatpush1.msra.mxu0 0.0
      %2669 = vmatprep.subr.mxu0 0.0
      %2670 = vmatpush1.msra.mxu0 0.0
      %2671 = vmatprep.subr.mxu0 0.0
      %2672 = vmatpush1.msra.mxu0 0.0
      %2673 = vmatprep.subr.mxu0 0.0
      %2674 = vmatpush1.msra.mxu0 0.0
      %2675 = vmatprep.subr.mxu0 0.0
      %2676 = vmatpush1.msra.mxu0 0.0
      %2677 = vmatprep.subr.mxu0 0.0
      %2678 = vmatpush1.msra.mxu0 0.0
      %2679 = vmatprep.subr.mxu0 0.0
      %2680 = vmatpush1.msra.mxu0 0.0
      %2681 = vmatprep.subr.mxu0 0.0
      %2682 = vmatpush1.msra.mxu0 0.0
      %2683 = vmatprep.subr.mxu0 0.0
      %2684 = vmatpush1.msra.mxu0 0.0
      %2685 = vmatprep.subr.mxu0 0.0
      %2686 = vmatpush1.msra.mxu0 0.0
      %2687 = vmatprep.subr.mxu0 0.0
      %2688 = vmatpush1.msra.mxu0 0.0
      %2689 = vmatprep.mubr.f32.mxu0 0.0
      %2690 = vmatmul.mubr.f32.gmra.mrb[0].mxu0 %v2576
      %v2691 = vpop.f32.mrb[0].mxu0
      %v2692 = vadd.f32 0.0, %v2691
      %v2693 = vpop.f32.mrb[0].mxu0
      %2694 = vmatprep.mubr.f32.mxu0 0.0
      %2695 = vmatmul.mubr.f32.gmra.mrb[0].mxu0 %v2577
      %v2696 = vpop.f32.mrb[0].mxu0
      %v2697 = vadd.f32 0.0, %v2696
      %v2698 = vpop.f32.mrb[0].mxu0
      %2699 = vmatprep.mubr.f32.mxu0 0.0
      %2700 = vmatmul.mubr.f32.gmra.mrb[0].mxu0 %v2578
      %v2701 = vpop.f32.mrb[0].mxu0
      %v2702 = vadd.f32 0.0, %v2701
      %v2703 = vpop.f32.mrb[0].mxu0
      %2704 = vmatprep.mubr.f32.mxu0 0.0
      %2705 = vmatmul.mubr.f32.gmra.mrb[0].mxu0 %v2579
      %v2706 = vpop.f32.mrb[0].mxu0
      %v2707 = vadd.f32 0.0, %v2706
      %v2708 = vpop.f32.mrb[0].mxu0
      %2709 = vmatprep.mubr.f32.mxu0 0.0
      %2710 = vmatmul.mubr.f32.gmra.mrb[0].mxu0 %v2580
      %v2711 = vpop.f32.mrb[0].mxu0
      %v2712 = vadd.f32 0.0, %v2711
      %v2713 = vpop.f32.mrb[0].mxu0
      %2714 = vmatprep.mubr.f32.mxu0 0.0
      %2715 = vmatmul.mubr.f32.gmra.mrb[0].mxu0 %v2581
      %v2716 = vpop.f32.mrb[0].mxu0
      %v2717 = vadd.f32 0.0, %v2716
      %v2718 = vpop.f32.mrb[0].mxu0
      %2719 = vmatprep.mubr.f32.mxu0 0.0
      %2720 = vmatmul.mubr.f32.gmra.mrb[0].mxu0 %v2582
      %v2721 = vpop.f32.mrb[0].mxu0
      %v2722 = vadd.f32 0.0, %v2721
      %v2723 = vpop.f32.mrb[0].mxu0
      %2724 = vmatprep.mubr.f32.mxu0 0.0
      %2725 = vmatmul.mubr.f32.gmra.mrb[0].mxu0 %v2583
      %v2726 = vpop.f32.mrb[0].mxu0
      %v2727 = vadd.f32 0.0, %v2726
      %v2728 = vpop.f32.mrb[0].mxu0
      %2729 = vmatprep.mubr.f32.mxu0 0.0
      %2730 = vmatmul.mubr.f32.gmra.mrb[0].mxu0 %v2584
      %v2731 = vpop.f32.mrb[0].mxu0
      %v2732 = vadd.f32 0.0, %v2731
      %v2733 = vpop.f32.mrb[0].mxu0
      %2734 = vmatprep.mubr.f32.mxu0 0.0
      %2735 = vmatmul.mubr.f32.gmra.mrb[0].mxu0 %v2585
      %v2736 = vpop.f32.mrb[0].mxu0
      %v2737 = vadd.f32 0.0, %v2736
      %v2738 = vpop.f32.mrb[0].mxu0
      %2739 = vmatprep.mubr.f32.mxu0 0.0
      %2740 = vmatmul.mubr.f32.gmra.mrb[0].mxu0 %v2586
      %v2741 = vpop.f32.mrb[0].mxu0
      %v2742 = vadd.f32 0.0, %v2741
      %v2743 = vpop.f32.mrb[0].mxu0
      %2744 = vmatprep.mubr.f32.mxu0 0.0
      %2745 = vmatmul.mubr.f32.gmra.mrb[0].mxu0 %v2587
      %v2746 = vpop.f32.mrb[0].mxu0
      %v2747 = vadd.f32 0.0, %v2746
      %v2748 = vpop.f32.mrb[0].mxu0
      %2749 = vmatprep.mubr.f32.mxu0 0.0
      %2750 = vmatmul.mubr.f32.gmra.mrb[0].mxu0 %v2588
      %v2751 = vpop.f32.mrb[0].mxu0
      %v2752 = vadd.f32 0.0, %v2751
      %v2753 = vpop.f32.mrb[0].mxu0
      %2754 = vmatprep.mubr.f32.mxu0 0.0
      %2755 = vmatmul.mubr.f32.gmra.mrb[0].mxu0 %v2589
      %v2756 = vpop.f32.mrb[0].mxu0
      %v2757 = vadd.f32 0.0, %v2756
      %v2758 = vpop.f32.mrb[0].mxu0
      %2759 = vmatprep.mubr.f32.mxu0 0.0
      %2760 = vmatmul.mubr.f32.gmra.mrb[0].mxu0 %v2590
      %v2761 = vpop.f32.mrb[0].mxu0
      %v2762 = vadd.f32 0.0, %v2761
      %v2763 = vpop.f32.mrb[0].mxu0
      %2764 = vmatprep.mubr.f32.mxu0 0.0
      %2765 = vmatmul.mubr.f32.gmra.mrb[0].mxu0 %v2591
      %v2766 = vpop.f32.mrb[0].mxu0
      %v2767 = vadd.f32 0.0, %v2766
      %v2768 = vpop.f32.mrb[0].mxu0
      %2769 = vmatprep.mubr.f32.mxu0 0.0
      %2770 = vmatmul.mubr.f32.gmra.mrb[0].mxu0 %v2592
      %v2771 = vpop.f32.mrb[0].mxu0
      %v2772 = vadd.f32 0.0, %v2771
      %v2773 = vpop.f32.mrb[0].mxu0
      %2774 = vmatprep.mubr.f32.mxu0 0.0
      %2775 = vmatmul.mubr.f32.gmra.mrb[0].mxu0 %v2593
      %v2776 = vpop.f32.mrb[0].mxu0
      %v2777 = vadd.f32 0.0, %v2776
      %v2778 = vpop.f32.mrb[0].mxu0
      %2779 = vmatprep.mubr.f32.mxu0 0.0
      %2780 = vmatmul.mubr.f32.gmra.mrb[0].mxu0 %v2594
      %v2781 = vpop.f32.mrb[0].mxu0
      %v2782 = vadd.f32 0.0, %v2781
      %v2783 = vpop.f32.mrb[0].mxu0
      %2784 = vmatprep.mubr.f32.mxu0 0.0
      %2785 = vmatmul.mubr.f32.gmra.mrb[0].mxu0 %v2595
      %v2786 = vpop.f32.mrb[0].mxu0
      %v2787 = vadd.f32 0.0, %v2786
      %v2788 = vpop.f32.mrb[0].mxu0
      %2789 = vmatprep.mubr.f32.mxu0 0.0
      %2790 = vmatmul.mubr.f32.gmra.mrb[0].mxu0 %v2596
      %v2791 = vpop.f32.mrb[0].mxu0
      %v2792 = vadd.f32 0.0, %v2791
      %v2793 = vpop.f32.mrb[0].mxu0
      %2794 = vmatprep.mubr.f32.mxu0 0.0
      %2795 = vmatmul.mubr.f32.gmra.mrb[0].mxu0 %v2597
      %v2796 = vpop.f32.mrb[0].mxu0
      %v2797 = vadd.f32 0.0, %v2796
      %v2798 = vpop.f32.mrb[0].mxu0
      %2799 = vmatprep.mubr.f32.mxu0 0.0
      %2800 = vmatmul.mubr.f32.gmra.mrb[0].mxu0 %v2598
      %v2801 = vpop.f32.mrb[0].mxu0
      %v2802 = vadd.f32 0.0, %v2801
      %v2803 = vpop.f32.mrb[0].mxu0
      %2804 = vmatprep.mubr.f32.mxu0 0.0
      %2805 = vmatmul.mubr.f32.gmra.mrb[0].mxu0 %v2599
      %v2806 = vpop.f32.mrb[0].mxu0
      %v2807 = vadd.f32 0.0, %v2806
      %v2808 = vpop.f32.mrb[0].mxu0
      %2809 = vmatprep.mubr.f32.mxu0 0.0
      %2810 = vmatmul.mubr.f32.gmra.mrb[0].mxu0 %v2600
      %v2811 = vpop.f32.mrb[0].mxu0
      %v2812 = vadd.f32 0.0, %v2811
      %v2813 = vpop.f32.mrb[0].mxu0
      %2814 = vmatprep.mubr.f32.mxu0 0.0
      %2815 = vmatmul.mubr.f32.gmra.mrb[0].mxu0 %v2601
      %v2816 = vpop.f32.mrb[0].mxu0
      %v2817 = vadd.f32 0.0, %v2816
      %v2818 = vpop.f32.mrb[0].mxu0
      %2819 = vmatprep.mubr.f32.mxu0 0.0
      %2820 = vmatmul.mubr.f32.gmra.mrb[0].mxu0 %v2602
      %v2821 = vpop.f32.mrb[0].mxu0
      %v2822 = vadd.f32 0.0, %v2821
      %v2823 = vpop.f32.mrb[0].mxu0
      %2824 = vmatprep.mubr.f32.mxu0 0.0
      %2825 = vmatmul.mubr.f32.gmra.mrb[0].mxu0 %v2603
      %v2826 = vpop.f32.mrb[0].mxu0
      %v2827 = vadd.f32 0.0, %v2826
      %v2828 = vpop.f32.mrb[0].mxu0
      %2829 = vmatprep.mubr.f32.mxu0 0.0
      %2830 = vmatmul.mubr.f32.gmra.mrb[0].mxu0 %v2604
      %v2831 = vpop.f32.mrb[0].mxu0
      %v2832 = vadd.f32 0.0, %v2831
      %v2833 = vpop.f32.mrb[0].mxu0
      %2834 = vmatprep.mubr.f32.mxu0 0.0
      %2835 = vmatmul.mubr.f32.gmra.mrb[0].mxu0 %v2605
      %v2836 = vpop.f32.mrb[0].mxu0
      %v2837 = vadd.f32 0.0, %v2836
      %v2838 = vpop.f32.mrb[0].mxu0
      %2839 = vmatprep.mubr.f32.mxu0 0.0
      %2840 = vmatmul.mubr.f32.gmra.mrb[0].mxu0 %v2606
      %v2841 = vpop.f32.mrb[0].mxu0
      %v2842 = vadd.f32 0.0, %v2841
      %v2843 = vpop.f32.mrb[0].mxu0
      %2844 = vmatprep.mubr.f32.mxu0 0.0
      %2845 = vmatmul.mubr.f32.gmra.mrb[0].mxu0 %v2607
      %v2846 = vpop.f32.mrb[0].mxu0
      %v2847 = vadd.f32 0.0, %v2846
      %v2848 = vpop.f32.mrb[0].mxu0
      %2849 = vdwg.mxu0
      %v2850 = vadd.f32 %v2544, %v2692
      %v2851 = vadd.f32 %v2545, %v2697
      %v2852 = vadd.f32 %v2546, %v2702
      %v2853 = vadd.f32 %v2547, %v2707
      %v2854 = vadd.f32 %v2548, %v2712
      %v2855 = vadd.f32 %v2549, %v2717
      %v2856 = vadd.f32 %v2550, %v2722
      %v2857 = vadd.f32 %v2551, %v2727
      %v2858 = vadd.f32 %v2552, %v2732
      %v2859 = vadd.f32 %v2553, %v2737
      %v2860 = vadd.f32 %v2554, %v2742
      %v2861 = vadd.f32 %v2555, %v2747
      %v2862 = vadd.f32 %v2556, %v2752
      %v2863 = vadd.f32 %v2557, %v2757
      %v2864 = vadd.f32 %v2558, %v2762
      %v2865 = vadd.f32 %v2559, %v2767
      %v2866 = vadd.f32 %v2560, %v2772
      %v2867 = vadd.f32 %v2561, %v2777
      %v2868 = vadd.f32 %v2562, %v2782
      %v2869 = vadd.f32 %v2563, %v2787
      %v2870 = vadd.f32 %v2564, %v2792
      %v2871 = vadd.f32 %v2565, %v2797
      %v2872 = vadd.f32 %v2566, %v2802
      %v2873 = vadd.f32 %v2567, %v2807
      %v2874 = vadd.f32 %v2568, %v2812
      %v2875 = vadd.f32 %v2569, %v2817
      %v2876 = vadd.f32 %v2570, %v2822
      %v2877 = vadd.f32 %v2571, %v2827
      %v2878 = vadd.f32 %v2572, %v2832
      %v2879 = vadd.f32 %v2573, %v2837
      %v2880 = vadd.f32 %v2574, %v2842
      %v2881 = vadd.f32 %v2575, %v2847
      %v2882 = vld [vmem:[%s2269 + $0x2] sm:$0xff]
      %v2883 = vld [vmem:[%s2269 + $0xa] sm:$0xff]
      %v2884 = vld [vmem:[%s2269 + $0x1a] sm:$0xff]
      %v2885 = vld [vmem:[%s2269 + $0x22] sm:$0xff]
      %v2886 = vld [vmem:[%s2269 + $0x32] sm:$0xff]
      %v2887 = vld [vmem:[%s2269 + $0x3a] sm:$0xff]
      %v2888 = vld [vmem:[%s2269 + $0x4a] sm:$0xff]
      %v2889 = vld [vmem:[%s2269 + $0x52] sm:$0xff]
      %v2890 = vld [vmem:[%s2269 + $0x62] sm:$0xff]
      %v2891 = vld [vmem:[%s2269 + $0x6a] sm:$0xff]
      %v2892 = vld [vmem:[%s2269 + $0x7a] sm:$0xff]
      %v2893 = vld [vmem:[%s2269 + $0x82] sm:$0xff]
      %v2894 = vld [vmem:[%s2269 + $0x92] sm:$0xff]
      %v2895 = vld [vmem:[%s2269 + $0x9a] sm:$0xff]
      %v2896 = vld [vmem:[%s2269 + $0xaa] sm:$0xff]
      %v2897 = vld [vmem:[%s2269 + $0xb2] sm:$0xff]
      %v2898 = vld [vmem:[%s2269 + $0xc2] sm:$0xff]
      %v2899 = vld [vmem:[%s2269 + $0xca] sm:$0xff]
      %v2900 = vld [vmem:[%s2269 + $0xda] sm:$0xff]
      %v2901 = vld [vmem:[%s2269 + $0xe2] sm:$0xff]
      %v2902 = vld [vmem:[%s2269 + $0xf2] sm:$0xff]
      %v2903 = vld [vmem:[%s2269 + $0xfa] sm:$0xff]
      %v2904 = vld [vmem:[%s2269 + $0x10a] sm:$0xff]
      %v2905 = vld [vmem:[%s2269 + $0x112] sm:$0xff]
      %v2906 = vld [vmem:[%s2269 + $0x122] sm:$0xff]
      %v2907 = vld [vmem:[%s2269 + $0x12a] sm:$0xff]
      %v2908 = vld [vmem:[%s2269 + $0x13a] sm:$0xff]
      %v2909 = vld [vmem:[%s2269 + $0x142] sm:$0xff]
      %v2910 = vld [vmem:[%s2269 + $0x152] sm:$0xff]
      %v2911 = vld [vmem:[%s2269 + $0x15a] sm:$0xff]
      %v2912 = vld [vmem:[%s2269 + $0x16a] sm:$0xff]
      %v2913 = vld [vmem:[%s2269 + $0x172] sm:$0xff]
      %s2914 = scalar_lea.vmem %s3, 1024
      %v2915 = vld [vmem:[%s2914] sm:$0xff]
      %v2916 = vld [vmem:[%s2914 + $0x8] sm:$0xff]
      %v2917 = vld [vmem:[%s2914 + $0x10] sm:$0xff]
      %v2918 = vld [vmem:[%s2914 + $0x18] sm:$0xff]
      %v2919 = vld [vmem:[%s2914 + $0x20] sm:$0xff]
      %v2920 = vld [vmem:[%s2914 + $0x28] sm:$0xff]
      %v2921 = vld [vmem:[%s2914 + $0x30] sm:$0xff]
      %v2922 = vld [vmem:[%s2914 + $0x38] sm:$0xff]
      %v2923 = vld [vmem:[%s2914 + $0x40] sm:$0xff]
      %v2924 = vld [vmem:[%s2914 + $0x48] sm:$0xff]
      %v2925 = vld [vmem:[%s2914 + $0x50] sm:$0xff]
      %v2926 = vld [vmem:[%s2914 + $0x58] sm:$0xff]
      %v2927 = vld [vmem:[%s2914 + $0x60] sm:$0xff]
      %v2928 = vld [vmem:[%s2914 + $0x68] sm:$0xff]
      %v2929 = vld [vmem:[%s2914 + $0x70] sm:$0xff]
      %v2930 = vld [vmem:[%s2914 + $0x78] sm:$0xff]
      %2931 = vmatprep.subr.mxu0 0.0
      %2932 = vmatpush1.msra.mxu0 %v2915
      %2933 = vmatprep.subr.mxu0 0.0
      %2934 = vmatpush1.msra.mxu0 %v2916
      %2935 = vmatprep.subr.mxu0 0.0
      %2936 = vmatpush1.msra.mxu0 %v2917
      %2937 = vmatprep.subr.mxu0 0.0
      %2938 = vmatpush1.msra.mxu0 %v2918
      %2939 = vmatprep.subr.mxu0 0.0
      %2940 = vmatpush1.msra.mxu0 %v2919
      %2941 = vmatprep.subr.mxu0 0.0
      %2942 = vmatpush1.msra.mxu0 %v2920
      %2943 = vmatprep.subr.mxu0 0.0
      %2944 = vmatpush1.msra.mxu0 %v2921
      %2945 = vmatprep.subr.mxu0 0.0
      %2946 = vmatpush1.msra.mxu0 %v2922
      %2947 = vmatprep.subr.mxu0 0.0
      %2948 = vmatpush1.msra.mxu0 %v2923
      %2949 = vmatprep.subr.mxu0 0.0
      %2950 = vmatpush1.msra.mxu0 %v2924
      %2951 = vmatprep.subr.mxu0 0.0
      %2952 = vmatpush1.msra.mxu0 %v2925
      %2953 = vmatprep.subr.mxu0 0.0
      %2954 = vmatpush1.msra.mxu0 %v2926
      %2955 = vmatprep.subr.mxu0 0.0
      %2956 = vmatpush1.msra.mxu0 %v2927
      %2957 = vmatprep.subr.mxu0 0.0
      %2958 = vmatpush1.msra.mxu0 %v2928
      %2959 = vmatprep.subr.mxu0 0.0
      %2960 = vmatpush1.msra.mxu0 %v2929
      %2961 = vmatprep.subr.mxu0 0.0
      %2962 = vmatpush1.msra.mxu0 %v2930
      %2963 = vmatprep.subr.mxu0 0.0
      %2964 = vmatpush1.msra.mxu0 0.0
      %2965 = vmatprep.subr.mxu0 0.0
      %2966 = vmatpush1.msra.mxu0 0.0
      %2967 = vmatprep.subr.mxu0 0.0
      %2968 = vmatpush1.msra.mxu0 0.0
      %2969 = vmatprep.subr.mxu0 0.0
      %2970 = vmatpush1.msra.mxu0 0.0
      %2971 = vmatprep.subr.mxu0 0.0
      %2972 = vmatpush1.msra.mxu0 0.0
      %2973 = vmatprep.subr.mxu0 0.0
      %2974 = vmatpush1.msra.mxu0 0.0
      %2975 = vmatprep.subr.mxu0 0.0
      %2976 = vmatpush1.msra.mxu0 0.0
      %2977 = vmatprep.subr.mxu0 0.0
      %2978 = vmatpush1.msra.mxu0 0.0
      %2979 = vmatprep.subr.mxu0 0.0
      %2980 = vmatpush1.msra.mxu0 0.0
      %2981 = vmatprep.subr.mxu0 0.0
      %2982 = vmatpush1.msra.mxu0 0.0
      %2983 = vmatprep.subr.mxu0 0.0
      %2984 = vmatpush1.msra.mxu0 0.0
      %2985 = vmatprep.subr.mxu0 0.0
      %2986 = vmatpush1.msra.mxu0 0.0
      %2987 = vmatprep.subr.mxu0 0.0
      %2988 = vmatpush1.msra.mxu0 0.0
      %2989 = vmatprep.subr.mxu0 0.0
      %2990 = vmatpush1.msra.mxu0 0.0
      %2991 = vmatprep.subr.mxu0 0.0
      %2992 = vmatpush1.msra.mxu0 0.0
      %2993 = vmatprep.subr.mxu0 0.0
      %2994 = vmatpush1.msra.mxu0 0.0
      %2995 = vmatprep.mubr.f32.mxu0 0.0
      %2996 = vmatmul.mubr.f32.gmra.mrb[0].mxu0 %v2882
      %v2997 = vpop.f32.mrb[0].mxu0
      %v2998 = vadd.f32 0.0, %v2997
      %v2999 = vpop.f32.mrb[0].mxu0
      %3000 = vmatprep.mubr.f32.mxu0 0.0
      %3001 = vmatmul.mubr.f32.gmra.mrb[0].mxu0 %v2883
      %v3002 = vpop.f32.mrb[0].mxu0
      %v3003 = vadd.f32 0.0, %v3002
      %v3004 = vpop.f32.mrb[0].mxu0
      %3005 = vmatprep.mubr.f32.mxu0 0.0
      %3006 = vmatmul.mubr.f32.gmra.mrb[0].mxu0 %v2884
      %v3007 = vpop.f32.mrb[0].mxu0
      %v3008 = vadd.f32 0.0, %v3007
      %v3009 = vpop.f32.mrb[0].mxu0
      %3010 = vmatprep.mubr.f32.mxu0 0.0
      %3011 = vmatmul.mubr.f32.gmra.mrb[0].mxu0 %v2885
      %v3012 = vpop.f32.mrb[0].mxu0
      %v3013 = vadd.f32 0.0, %v3012
      %v3014 = vpop.f32.mrb[0].mxu0
      %3015 = vmatprep.mubr.f32.mxu0 0.0
      %3016 = vmatmul.mubr.f32.gmra.mrb[0].mxu0 %v2886
      %v3017 = vpop.f32.mrb[0].mxu0
      %v3018 = vadd.f32 0.0, %v3017
      %v3019 = vpop.f32.mrb[0].mxu0
      %3020 = vmatprep.mubr.f32.mxu0 0.0
      %3021 = vmatmul.mubr.f32.gmra.mrb[0].mxu0 %v2887
      %v3022 = vpop.f32.mrb[0].mxu0
      %v3023 = vadd.f32 0.0, %v3022
      %v3024 = vpop.f32.mrb[0].mxu0
      %3025 = vmatprep.mubr.f32.mxu0 0.0
      %3026 = vmatmul.mubr.f32.gmra.mrb[0].mxu0 %v2888
      %v3027 = vpop.f32.mrb[0].mxu0
      %v3028 = vadd.f32 0.0, %v3027
      %v3029 = vpop.f32.mrb[0].mxu0
      %3030 = vmatprep.mubr.f32.mxu0 0.0
      %3031 = vmatmul.mubr.f32.gmra.mrb[0].mxu0 %v2889
      %v3032 = vpop.f32.mrb[0].mxu0
      %v3033 = vadd.f32 0.0, %v3032
      %v3034 = vpop.f32.mrb[0].mxu0
      %3035 = vmatprep.mubr.f32.mxu0 0.0
      %3036 = vmatmul.mubr.f32.gmra.mrb[0].mxu0 %v2890
      %v3037 = vpop.f32.mrb[0].mxu0
      %v3038 = vadd.f32 0.0, %v3037
      %v3039 = vpop.f32.mrb[0].mxu0
      %3040 = vmatprep.mubr.f32.mxu0 0.0
      %3041 = vmatmul.mubr.f32.gmra.mrb[0].mxu0 %v2891
      %v3042 = vpop.f32.mrb[0].mxu0
      %v3043 = vadd.f32 0.0, %v3042
      %v3044 = vpop.f32.mrb[0].mxu0
      %3045 = vmatprep.mubr.f32.mxu0 0.0
      %3046 = vmatmul.mubr.f32.gmra.mrb[0].mxu0 %v2892
      %v3047 = vpop.f32.mrb[0].mxu0
      %v3048 = vadd.f32 0.0, %v3047
      %v3049 = vpop.f32.mrb[0].mxu0
      %3050 = vmatprep.mubr.f32.mxu0 0.0
      %3051 = vmatmul.mubr.f32.gmra.mrb[0].mxu0 %v2893
      %v3052 = vpop.f32.mrb[0].mxu0
      %v3053 = vadd.f32 0.0, %v3052
      %v3054 = vpop.f32.mrb[0].mxu0
      %3055 = vmatprep.mubr.f32.mxu0 0.0
      %3056 = vmatmul.mubr.f32.gmra.mrb[0].mxu0 %v2894
      %v3057 = vpop.f32.mrb[0].mxu0
      %v3058 = vadd.f32 0.0, %v3057
      %v3059 = vpop.f32.mrb[0].mxu0
      %3060 = vmatprep.mubr.f32.mxu0 0.0
      %3061 = vmatmul.mubr.f32.gmra.mrb[0].mxu0 %v2895
      %v3062 = vpop.f32.mrb[0].mxu0
      %v3063 = vadd.f32 0.0, %v3062
      %v3064 = vpop.f32.mrb[0].mxu0
      %3065 = vmatprep.mubr.f32.mxu0 0.0
      %3066 = vmatmul.mubr.f32.gmra.mrb[0].mxu0 %v2896
      %v3067 = vpop.f32.mrb[0].mxu0
      %v3068 = vadd.f32 0.0, %v3067
      %v3069 = vpop.f32.mrb[0].mxu0
      %3070 = vmatprep.mubr.f32.mxu0 0.0
      %3071 = vmatmul.mubr.f32.gmra.mrb[0].mxu0 %v2897
      %v3072 = vpop.f32.mrb[0].mxu0
      %v3073 = vadd.f32 0.0, %v3072
      %v3074 = vpop.f32.mrb[0].mxu0
      %3075 = vmatprep.mubr.f32.mxu0 0.0
      %3076 = vmatmul.mubr.f32.gmra.mrb[0].mxu0 %v2898
      %v3077 = vpop.f32.mrb[0].mxu0
      %v3078 = vadd.f32 0.0, %v3077
      %v3079 = vpop.f32.mrb[0].mxu0
      %3080 = vmatprep.mubr.f32.mxu0 0.0
      %3081 = vmatmul.mubr.f32.gmra.mrb[0].mxu0 %v2899
      %v3082 = vpop.f32.mrb[0].mxu0
      %v3083 = vadd.f32 0.0, %v3082
      %v3084 = vpop.f32.mrb[0].mxu0
      %3085 = vmatprep.mubr.f32.mxu0 0.0
      %3086 = vmatmul.mubr.f32.gmra.mrb[0].mxu0 %v2900
      %v3087 = vpop.f32.mrb[0].mxu0
      %v3088 = vadd.f32 0.0, %v3087
      %v3089 = vpop.f32.mrb[0].mxu0
      %3090 = vmatprep.mubr.f32.mxu0 0.0
      %3091 = vmatmul.mubr.f32.gmra.mrb[0].mxu0 %v2901
      %v3092 = vpop.f32.mrb[0].mxu0
      %v3093 = vadd.f32 0.0, %v3092
      %v3094 = vpop.f32.mrb[0].mxu0
      %3095 = vmatprep.mubr.f32.mxu0 0.0
      %3096 = vmatmul.mubr.f32.gmra.mrb[0].mxu0 %v2902
      %v3097 = vpop.f32.mrb[0].mxu0
      %v3098 = vadd.f32 0.0, %v3097
      %v3099 = vpop.f32.mrb[0].mxu0
      %3100 = vmatprep.mubr.f32.mxu0 0.0
      %3101 = vmatmul.mubr.f32.gmra.mrb[0].mxu0 %v2903
      %v3102 = vpop.f32.mrb[0].mxu0
      %v3103 = vadd.f32 0.0, %v3102
      %v3104 = vpop.f32.mrb[0].mxu0
      %3105 = vmatprep.mubr.f32.mxu0 0.0
      %3106 = vmatmul.mubr.f32.gmra.mrb[0].mxu0 %v2904
      %v3107 = vpop.f32.mrb[0].mxu0
      %v3108 = vadd.f32 0.0, %v3107
      %v3109 = vpop.f32.mrb[0].mxu0
      %3110 = vmatprep.mubr.f32.mxu0 0.0
      %3111 = vmatmul.mubr.f32.gmra.mrb[0].mxu0 %v2905
      %v3112 = vpop.f32.mrb[0].mxu0
      %v3113 = vadd.f32 0.0, %v3112
      %v3114 = vpop.f32.mrb[0].mxu0
      %3115 = vmatprep.mubr.f32.mxu0 0.0
      %3116 = vmatmul.mubr.f32.gmra.mrb[0].mxu0 %v2906
      %v3117 = vpop.f32.mrb[0].mxu0
      %v3118 = vadd.f32 0.0, %v3117
      %v3119 = vpop.f32.mrb[0].mxu0
      %3120 = vmatprep.mubr.f32.mxu0 0.0
      %3121 = vmatmul.mubr.f32.gmra.mrb[0].mxu0 %v2907
      %v3122 = vpop.f32.mrb[0].mxu0
      %v3123 = vadd.f32 0.0, %v3122
      %v3124 = vpop.f32.mrb[0].mxu0
      %3125 = vmatprep.mubr.f32.mxu0 0.0
      %3126 = vmatmul.mubr.f32.gmra.mrb[0].mxu0 %v2908
      %v3127 = vpop.f32.mrb[0].mxu0
      %v3128 = vadd.f32 0.0, %v3127
      %v3129 = vpop.f32.mrb[0].mxu0
      %3130 = vmatprep.mubr.f32.mxu0 0.0
      %3131 = vmatmul.mubr.f32.gmra.mrb[0].mxu0 %v2909
      %v3132 = vpop.f32.mrb[0].mxu0
      %v3133 = vadd.f32 0.0, %v3132
      %v3134 = vpop.f32.mrb[0].mxu0
      %3135 = vmatprep.mubr.f32.mxu0 0.0
      %3136 = vmatmul.mubr.f32.gmra.mrb[0].mxu0 %v2910
      %v3137 = vpop.f32.mrb[0].mxu0
      %v3138 = vadd.f32 0.0, %v3137
      %v3139 = vpop.f32.mrb[0].mxu0
      %3140 = vmatprep.mubr.f32.mxu0 0.0
      %3141 = vmatmul.mubr.f32.gmra.mrb[0].mxu0 %v2911
      %v3142 = vpop.f32.mrb[0].mxu0
      %v3143 = vadd.f32 0.0, %v3142
      %v3144 = vpop.f32.mrb[0].mxu0
      %3145 = vmatprep.mubr.f32.mxu0 0.0
      %3146 = vmatmul.mubr.f32.gmra.mrb[0].mxu0 %v2912
      %v3147 = vpop.f32.mrb[0].mxu0
      %v3148 = vadd.f32 0.0, %v3147
      %v3149 = vpop.f32.mrb[0].mxu0
      %3150 = vmatprep.mubr.f32.mxu0 0.0
      %3151 = vmatmul.mubr.f32.gmra.mrb[0].mxu0 %v2913
      %v3152 = vpop.f32.mrb[0].mxu0
      %v3153 = vadd.f32 0.0, %v3152
      %v3154 = vpop.f32.mrb[0].mxu0
      %3155 = vdwg.mxu0
      %v3156 = vadd.f32 %v2850, %v2998
      %v3157 = vadd.f32 %v2851, %v3003
      %v3158 = vadd.f32 %v2852, %v3008
      %v3159 = vadd.f32 %v2853, %v3013
      %v3160 = vadd.f32 %v2854, %v3018
      %v3161 = vadd.f32 %v2855, %v3023
      %v3162 = vadd.f32 %v2856, %v3028
      %v3163 = vadd.f32 %v2857, %v3033
      %v3164 = vadd.f32 %v2858, %v3038
      %v3165 = vadd.f32 %v2859, %v3043
      %v3166 = vadd.f32 %v2860, %v3048
      %v3167 = vadd.f32 %v2861, %v3053
      %v3168 = vadd.f32 %v2862, %v3058
      %v3169 = vadd.f32 %v2863, %v3063
      %v3170 = vadd.f32 %v2864, %v3068
      %v3171 = vadd.f32 %v2865, %v3073
      %v3172 = vadd.f32 %v2866, %v3078
      %v3173 = vadd.f32 %v2867, %v3083
      %v3174 = vadd.f32 %v2868, %v3088
      %v3175 = vadd.f32 %v2869, %v3093
      %v3176 = vadd.f32 %v2870, %v3098
      %v3177 = vadd.f32 %v2871, %v3103
      %v3178 = vadd.f32 %v2872, %v3108
      %v3179 = vadd.f32 %v2873, %v3113
      %v3180 = vadd.f32 %v2874, %v3118
      %v3181 = vadd.f32 %v2875, %v3123
      %v3182 = vadd.f32 %v2876, %v3128
      %v3183 = vadd.f32 %v2877, %v3133
      %v3184 = vadd.f32 %v2878, %v3138
      %v3185 = vadd.f32 %v2879, %v3143
      %v3186 = vadd.f32 %v2880, %v3148
      %v3187 = vadd.f32 %v2881, %v3153
      %3188 = vst [vmem:[%s262] sm:$0xff] %v3156
      %3189 = vst [vmem:[%s262 + $0x8] sm:$0xff] %v3157
      %3190 = vst [vmem:[%s262 + $0x10] sm:$0xff] %v3158
      %3191 = vst [vmem:[%s262 + $0x18] sm:$0xff] %v3159
      %3192 = vst [vmem:[%s262 + $0x20] sm:$0xff] %v3160
      %3193 = vst [vmem:[%s262 + $0x28] sm:$0xff] %v3161
      %3194 = vst [vmem:[%s262 + $0x30] sm:$0xff] %v3162
      %3195 = vst [vmem:[%s262 + $0x38] sm:$0xff] %v3163
      %3196 = vst [vmem:[%s262 + $0x40] sm:$0xff] %v3164
      %3197 = vst [vmem:[%s262 + $0x48] sm:$0xff] %v3165
      %3198 = vst [vmem:[%s262 + $0x50] sm:$0xff] %v3166
      %3199 = vst [vmem:[%s262 + $0x58] sm:$0xff] %v3167
      %3200 = vst [vmem:[%s262 + $0x60] sm:$0xff] %v3168
      %3201 = vst [vmem:[%s262 + $0x68] sm:$0xff] %v3169
      %3202 = vst [vmem:[%s262 + $0x70] sm:$0xff] %v3170
      %3203 = vst [vmem:[%s262 + $0x78] sm:$0xff] %v3171
      %3204 = vst [vmem:[%s262 + $0x80] sm:$0xff] %v3172
      %3205 = vst [vmem:[%s262 + $0x88] sm:$0xff] %v3173
      %3206 = vst [vmem:[%s262 + $0x90] sm:$0xff] %v3174
      %3207 = vst [vmem:[%s262 + $0x98] sm:$0xff] %v3175
      %3208 = vst [vmem:[%s262 + $0xa0] sm:$0xff] %v3176
      %3209 = vst [vmem:[%s262 + $0xa8] sm:$0xff] %v3177
      %3210 = vst [vmem:[%s262 + $0xb0] sm:$0xff] %v3178
      %3211 = vst [vmem:[%s262 + $0xb8] sm:$0xff] %v3179
      %3212 = vst [vmem:[%s262 + $0xc0] sm:$0xff] %v3180
      %3213 = vst [vmem:[%s262 + $0xc8] sm:$0xff] %v3181
      %3214 = vst [vmem:[%s262 + $0xd0] sm:$0xff] %v3182
      %3215 = vst [vmem:[%s262 + $0xd8] sm:$0xff] %v3183
      %3216 = vst [vmem:[%s262 + $0xe0] sm:$0xff] %v3184
      %3217 = vst [vmem:[%s262 + $0xe8] sm:$0xff] %v3185
      %3218 = vst [vmem:[%s262 + $0xf0] sm:$0xff] %v3186
      %3219 = vst [vmem:[%s262 + $0xf8] sm:$0xff] %v3187
      %v3220 = vadd.f32 %v3156, %v3157
      %v3221 = vadd.f32 %v3220, %v3158
      %v3222 = vadd.f32 %v3221, %v3159
      %v3223 = vadd.f32 %v3222, %v3160
      %v3224 = vadd.f32 %v3223, %v3161
      %v3225 = vadd.f32 %v3224, %v3162
      %v3226 = vadd.f32 %v3225, %v3163
      %v3227 = vadd.f32 %v3226, %v3164
      %v3228 = vadd.f32 %v3227, %v3165
      %v3229 = vadd.f32 %v3228, %v3166
      %v3230 = vadd.f32 %v3229, %v3167
      %v3231 = vadd.f32 %v3230, %v3168
      %v3232 = vadd.f32 %v3231, %v3169
      %v3233 = vadd.f32 %v3232, %v3170
      %v3234 = vadd.f32 %v3233, %v3171
      %v3235 = vadd.f32 %v3234, %v3172
      %v3236 = vadd.f32 %v3235, %v3173
      %v3237 = vadd.f32 %v3236, %v3174
      %v3238 = vadd.f32 %v3237, %v3175
      %v3239 = vadd.f32 %v3238, %v3176
      %v3240 = vadd.f32 %v3239, %v3177
      %v3241 = vadd.f32 %v3240, %v3178
      %v3242 = vadd.f32 %v3241, %v3179
      %v3243 = vadd.f32 %v3242, %v3180
      %v3244 = vadd.f32 %v3243, %v3181
      %v3245 = vadd.f32 %v3244, %v3182
      %v3246 = vadd.f32 %v3245, %v3183
      %v3247 = vadd.f32 %v3246, %v3184
      %v3248 = vadd.f32 %v3247, %v3185
      %v3249 = vadd.f32 %v3248, %v3186
      %v3250 = vadd.f32 %v3249, %v3187
      %v3251 = vrot.slane %v3250, 4
      %v3252 = vadd.f32 %v3250, %v3251
      %v3253 = vrot.slane %v3252, 2
      %v3254 = vadd.f32 %v3252, %v3253
      %v3255 = vrot.slane %v3254, 1
      %v3256 = vadd.f32 %v3254, %v3255
      %3257 = vst [vmem:[%s265] sm:$0x1] %v3256
      %v3258 = vmul.f32 %v3156, %v3156
      %v3259 = vmul.f32 %v3157, %v3157
      %v3260 = vmul.f32 %v3158, %v3158
      %v3261 = vmul.f32 %v3159, %v3159
      %v3262 = vmul.f32 %v3160, %v3160
      %v3263 = vmul.f32 %v3161, %v3161
      %v3264 = vmul.f32 %v3162, %v3162
      %v3265 = vmul.f32 %v3163, %v3163
      %v3266 = vmul.f32 %v3164, %v3164
      %v3267 = vmul.f32 %v3165, %v3165
      %v3268 = vmul.f32 %v3166, %v3166
      %v3269 = vmul.f32 %v3167, %v3167
      %v3270 = vmul.f32 %v3168, %v3168
      %v3271 = vmul.f32 %v3169, %v3169
      %v3272 = vmul.f32 %v3170, %v3170
      %v3273 = vmul.f32 %v3171, %v3171
      %v3274 = vmul.f32 %v3172, %v3172
      %v3275 = vmul.f32 %v3173, %v3173
      %v3276 = vmul.f32 %v3174, %v3174
      %v3277 = vmul.f32 %v3175, %v3175
      %v3278 = vmul.f32 %v3176, %v3176
      %v3279 = vmul.f32 %v3177, %v3177
      %v3280 = vmul.f32 %v3178, %v3178
      %v3281 = vmul.f32 %v3179, %v3179
      %v3282 = vmul.f32 %v3180, %v3180
      %v3283 = vmul.f32 %v3181, %v3181
      %v3284 = vmul.f32 %v3182, %v3182
      %v3285 = vmul.f32 %v3183, %v3183
      %v3286 = vmul.f32 %v3184, %v3184
      %v3287 = vmul.f32 %v3185, %v3185
      %v3288 = vmul.f32 %v3186, %v3186
      %v3289 = vmul.f32 %v3187, %v3187
      %v3290 = vadd.f32 %v3258, %v3259
      %v3291 = vadd.f32 %v3290, %v3260
      %v3292 = vadd.f32 %v3291, %v3261
      %v3293 = vadd.f32 %v3292, %v3262
      %v3294 = vadd.f32 %v3293, %v3263
      %v3295 = vadd.f32 %v3294, %v3264
      %v3296 = vadd.f32 %v3295, %v3265
      %v3297 = vadd.f32 %v3296, %v3266
      %v3298 = vadd.f32 %v3297, %v3267
      %v3299 = vadd.f32 %v3298, %v3268
      %v3300 = vadd.f32 %v3299, %v3269
      %v3301 = vadd.f32 %v3300, %v3270
      %v3302 = vadd.f32 %v3301, %v3271
      %v3303 = vadd.f32 %v3302, %v3272
      %v3304 = vadd.f32 %v3303, %v3273
      %v3305 = vadd.f32 %v3304, %v3274
      %v3306 = vadd.f32 %v3305, %v3275
      %v3307 = vadd.f32 %v3306, %v3276
      %v3308 = vadd.f32 %v3307, %v3277
      %v3309 = vadd.f32 %v3308, %v3278
      %v3310 = vadd.f32 %v3309, %v3279
      %v3311 = vadd.f32 %v3310, %v3280
      %v3312 = vadd.f32 %v3311, %v3281
      %v3313 = vadd.f32 %v3312, %v3282
      %v3314 = vadd.f32 %v3313, %v3283
      %v3315 = vadd.f32 %v3314, %v3284
      %v3316 = vadd.f32 %v3315, %v3285
      %v3317 = vadd.f32 %v3316, %v3286
      %v3318 = vadd.f32 %v3317, %v3287
      %v3319 = vadd.f32 %v3318, %v3288
      %v3320 = vadd.f32 %v3319, %v3289
      %v3321 = vrot.slane %v3320, 4
      %v3322 = vadd.f32 %v3320, %v3321
      %v3323 = vrot.slane %v3322, 2
      %v3324 = vadd.f32 %v3322, %v3323
      %v3325 = vrot.slane %v3324, 1
      %v3326 = vadd.f32 %v3324, %v3325
      %3327 = vst [vmem:[%s268] sm:$0x1] %v3326
      %p3328 = scmp.lt.s32.totalorder %s18, 1
      %s3329 = scalar_select %p3328, %s18, 1
      %s3330 = smul.addr %s3329, 32
      %s3331 = smul.addr %s3330, 8
      %s3332 = scalar_lea.vmem %s4, %s3331
      %p3333 = scmp.lt.s32.totalorder %s18, 1
      %s3334 = scalar_select %p3333, %s18, 1
      %s3335 = scalar_lea.vmem %s5, %s3334
      %p3336 = scmp.lt.s32.totalorder %s18, 1
      %s3337 = scalar_select %p3336, %s18, 1
      %s3338 = scalar_lea.vmem %s6, %s3337
      // Predicated region
      $region37: #{encoder_block_forward.4} parent=35 // pred_check
        %p3339 = pneg %p125
      $region38: #{encoder_block_forward.4} parent=35 // pred_check_branch
        %3341 = sbr.rel (%p3339) target = $region40
      $region39: #{encoder_block_forward.4} parent=35 // pred_region
        _
      $region40: #{encoder_block_forward.4} parent=35 // pred_fallthru
        _
      // Predicated region
      $region41: #{encoder_block_forward.4} parent=35 // pred_check
        %p3342 = pneg %p151
      $region42: #{encoder_block_forward.4} parent=35 // pred_check_branch
        %3344 = sbr.rel (%p3342) target = $region44
      $region43: #{encoder_block_forward.4} parent=35 // pred_region
        _
      $region44: #{encoder_block_forward.4} parent=35 // pred_fallthru
        _
      // Predicated region
      $region45: #{encoder_block_forward.4} parent=35 // pred_check
        %p3345 = pneg %p177
      $region46: #{encoder_block_forward.4} parent=35 // pred_check_branch
        %3347 = sbr.rel (%p3345) target = $region48
      $region47: #{encoder_block_forward.4} parent=35 // pred_region
        _
      $region48: #{encoder_block_forward.4} parent=35 // pred_fallthru
        _
    $region36: #{encoder_block_forward.4} parent=5 // pred_fallthru
      _
    %p3348 = scmp.le.s32.totalorder 2, %s13
    // Predicated region
    $region49: #{encoder_block_forward.4} parent=5 // pred_check
      %p3349 = pneg %p3348
    $region50: #{encoder_block_forward.4} parent=5 // pred_check_branch
      %3351 = sbr.rel (%p3349) target = $region52
    $region51: #{encoder_block_forward.4} parent=5 // pred_region
      %s3352 = ssub.s32 %s13, 2
      // Predicated region
      $region53: #{encoder_block_forward.4} parent=51 // pred_check
        %p3353 = pneg %p131
      $region54: #{encoder_block_forward.4} parent=51 // pred_check_branch
        %3355 = sbr.rel (%p3353) target = $region56
      $region55: #{encoder_block_forward.4} parent=51 // pred_region
        %p3356 = scmp.lt.s32.totalorder %s19, 1
        %s3357 = scalar_select %p3356, %s19, 1
        %s3358 = smul.addr %s3357, 32
        %s3359 = smul.addr %s3358, 8
        %s3360 = scalar_lea.vmem %s4, %s3359
      $region56: #{encoder_block_forward.4} parent=51 // pred_fallthru
        _
      // Predicated region
      $region57: #{encoder_block_forward.4} parent=51 // pred_check
        %p3361 = pneg %p157
      $region58: #{encoder_block_forward.4} parent=51 // pred_check_branch
        %3363 = sbr.rel (%p3361) target = $region60
      $region59: #{encoder_block_forward.4} parent=51 // pred_region
        %p3364 = scmp.lt.s32.totalorder %s19, 1
        %s3365 = scalar_select %p3364, %s19, 1
        %s3366 = scalar_lea.vmem %s5, %s3365
      $region60: #{encoder_block_forward.4} parent=51 // pred_fallthru
        _
      // Predicated region
      $region61: #{encoder_block_forward.4} parent=51 // pred_check
        %p3367 = pneg %p183
      $region62: #{encoder_block_forward.4} parent=51 // pred_check_branch
        %3369 = sbr.rel (%p3367) target = $region64
      $region63: #{encoder_block_forward.4} parent=51 // pred_region
        %p3370 = scmp.lt.s32.totalorder %s19, 1
        %s3371 = scalar_select %p3370, %s19, 1
        %s3372 = scalar_lea.vmem %s6, %s3371
      $region64: #{encoder_block_forward.4} parent=51 // pred_fallthru
        _
    $region52: #{encoder_block_forward.4} parent=5 // pred_fallthru
      _
  $region6: #{encoder_block_forward.4} parent=0 // loop_footer
    %s17 = sadd.s32 1, %s13
  $region7: #{encoder_block_forward.4} parent=0 // loop_footer_branch
    %12 = sbr.rel target = $region3
  $region8: #{encoder_block_forward.4} parent=0 // loop_exit
    _

</llo_original>
